<compile_context>
chip_gen: v5e
topology: v5e:2x2
jax: 0.10.0
libtpu: 0.0.40
codegen_flags: <defaults>
</compile_context>

<pallas_src>
import functools

import jax
import jax.numpy as jnp
from jax.experimental import pallas as pl
from jax.experimental.pallas import tpu as pltpu


DEFAULT_MM_DTYPE = jnp.bfloat16          # MXU input dtype (f32 accumulation)
LN_EPS = 1e-5
VMEM_LIMIT_BYTES = 64 * 1024 * 1024      # scoped-VMEM ceiling (headroom on v7x)


# ------------------------------------------------------------------ tiling utils

def _round_up(x, m):
    return -(-x // m) * m


def _pick_row_tile(m, target=256):
    """Row tile for (rows, C) kernels: full array if tiny; otherwise the largest
    multiple of 8 <= target that still yields >=2 grid steps, so both v7x
    TensorCores get work (harmless on single-TC v5e/v6e)."""
    if m <= 8:
        return m
    half = _round_up((m + 1) // 2, 8)
    return max(8, min(target, half))


def _pick_s_tile(s, target=512):
    """Memory-token tile: largest multiple of 128 <= target that divides S (so
    the (B, T, S) score output stays lane-aligned and no padded K/V tokens leak
    into the softmax).  Falls back to a single full-S tile for ragged S."""
    if s <= target:
        return s
    ts = (min(target, s) // 128) * 128
    while ts >= 128:
        if s % ts == 0:
            return ts
        ts -= 128
    # TODO(synk): ragged S (not a multiple of 128) falls back to one full tile;
    # very large ragged S would need a masked-K/V-tile path.
    return s


# ------------------------------------------------------ fused attention kernel

def _fused_attn_kernel(tgt_ref, mem_ref, wq_ref, bq_ref, wkv_ref, bkv_ref,
                       *refs, scale, num_heads, head_dim, mm_dtype, emit_attn):
    # tgt_ref: (1, T, C) queries (pre-projection), resident across S tiles.
    # mem_ref: (1, ts, C) memory tile (pre-projection).
    # Heads are contiguous channel slices; no (B, H, T, hd) tensor ever exists.
    if emit_attn:
        o_ref, a_ref, q_scr, m_scr, l_scr, acc_scr = refs
    else:
        o_ref, q_scr, m_scr, l_scr, acc_scr = refs
        a_ref = None

    s_idx = pl.program_id(1)
    n_s = pl.num_programs(1)
    c = num_heads * head_dim

    @pl.when(s_idx == 0)
    def _init():
        # Q projection once per batch element; fold the attention scale into Q.
        q = jnp.dot(tgt_ref[0].astype(mm_dtype), wq_ref[...].astype(mm_dtype),
                    preferred_element_type=jnp.float32)
        q = (q + bq_ref[...].astype(jnp.float32)) * scale
        q_scr[...] = q.astype(mm_dtype)
        m_scr[...] = jnp.full_like(m_scr, -jnp.inf)
        l_scr[...] = jnp.zeros_like(l_scr)
        acc_scr[...] = jnp.zeros_like(acc_scr)

    # Project this memory tile to fused K/V: (ts, C) @ (C, 2C) + bias.
    kv = jnp.dot(mem_ref[0].astype(mm_dtype), wkv_ref[...].astype(mm_dtype),
                 preferred_element_type=jnp.float32)
    kv = (kv + bkv_ref[...].astype(jnp.float32)).astype(mm_dtype)

    score_sum = None
    for h in range(num_heads):                              # static head loop
        c0 = h * head_dim
        q_h = q_scr[:, c0:c0 + head_dim]                    # (T, hd), pre-scaled
        k_h = kv[:, c0:c0 + head_dim]                       # (ts, hd)
        v_h = kv[:, c + c0:c + c0 + head_dim]               # (ts, hd)
        # (T, hd) x (ts, hd)^T -> (T, ts): lane-dense in the large S tile.
        s = jax.lax.dot_general(q_h, k_h, (((1,), (1,)), ((), ())),
                                preferred_element_type=jnp.float32)
        if emit_attn:
            score_sum = s if score_sum is None else score_sum + s
        # flash-style online softmax; statistics stay in f32
        m_prev = m_scr[h]                                   # (T, 1)
        m_new = jnp.maximum(m_prev, jnp.max(s, axis=-1, keepdims=True))
        alpha = jnp.exp(m_prev - m_new)
        p = jnp.exp(s - m_new)                              # (T, ts)
        l_scr[h] = alpha * l_scr[h] + jnp.sum(p, axis=-1, keepdims=True)
        acc_scr[h] = alpha * acc_scr[h] + jnp.dot(
            p.astype(mm_dtype), v_h, preferred_element_type=jnp.float32)
        m_scr[h] = m_new

    if emit_attn:
        # ATM: attn_save = post-scale, pre-softmax scores, mean over heads.
        a_ref[0] = (score_sum * (1.0 / num_heads)).astype(a_ref.dtype)

    @pl.when(s_idx == n_s - 1)
    def _finalize():
        # Exact reciprocal (runs once); single lane-dense (T, C) store.
        parts = [acc_scr[h] * (1.0 / l_scr[h]) for h in range(num_heads)]
        o_ref[0] = jnp.concatenate(parts, axis=-1).astype(o_ref.dtype)


def fused_attention(tgt_b, mem_b, pp, num_heads, *, mm_dtype=DEFAULT_MM_DTYPE,
                    emit_attn=True, s_tile=512):
    """Fused Q/KV projection + multi-head cross-attention with online softmax.

    tgt_b: (B, T, C) queries (pre-projection), mem_b: (B, S, C) memory.
    Returns (o, attn): o (B, T, C) pre-out-projection context; attn (B, T, S)
    head-mean pre-softmax scores (only when emit_attn), else None.
    """
    b, t, c = tgt_b.shape
    s_len = mem_b.shape[1]
    assert c % num_heads == 0
    hd = c // num_heads
    scale = hd ** -0.5
    ts = _pick_s_tile(s_len, s_tile)
    n_s = pl.cdiv(s_len, ts)

    out_shapes = [jax.ShapeDtypeStruct((b, t, c), tgt_b.dtype)]
    out_specs = [pl.BlockSpec((1, t, c), lambda bi, si: (bi, 0, 0))]
    if emit_attn:
        out_shapes.append(jax.ShapeDtypeStruct((b, t, s_len), tgt_b.dtype))
        out_specs.append(pl.BlockSpec((1, t, ts), lambda bi, si: (bi, 0, si)))

    flops = (2 * b * t * c * c + 4 * b * s_len * c * c + 4 * b * t * s_len * c)
    bytes_accessed = (4 * (2 * b * t * c + b * s_len * c)
                      + 2 * (3 * c * c) + (4 * b * t * s_len if emit_attn else 0))

    res = pl.pallas_call(
        functools.partial(_fused_attn_kernel, scale=scale, num_heads=num_heads,
                          head_dim=hd, mm_dtype=mm_dtype, emit_attn=emit_attn),
        out_shape=tuple(out_shapes),
        grid=(b, n_s),
        in_specs=[pl.BlockSpec((1, t, c), lambda bi, si: (bi, 0, 0)),    # tgt
                  pl.BlockSpec((1, ts, c), lambda bi, si: (bi, si, 0)),  # memory
                  pl.BlockSpec((c, c), lambda bi, si: (0, 0)),           # wq (bf16)
                  pl.BlockSpec((1, c), lambda bi, si: (0, 0)),           # bq
                  pl.BlockSpec((c, 2 * c), lambda bi, si: (0, 0)),       # wkv (bf16)
                  pl.BlockSpec((1, 2 * c), lambda bi, si: (0, 0))],      # bkv
        out_specs=tuple(out_specs),
        scratch_shapes=[pltpu.VMEM((t, c), mm_dtype),                    # scaled Q
                        pltpu.VMEM((num_heads, t, 1), jnp.float32),      # running max
                        pltpu.VMEM((num_heads, t, 1), jnp.float32),      # running sum
                        pltpu.VMEM((num_heads, t, hd), jnp.float32)],    # running ctx
        compiler_params=pltpu.CompilerParams(
            dimension_semantics=("parallel", "arbitrary"),
            vmem_limit_bytes=VMEM_LIMIT_BYTES),
        cost_estimate=pl.CostEstimate(
            flops=flops, transcendentals=b * num_heads * t * s_len,
            bytes_accessed=bytes_accessed),
    )(tgt_b, mem_b, pp['wq'], pp['bq'], pp['wkv'], pp['bkv'])

    if emit_attn:
        return res[0], res[1]
    return res[0], None


# ------------------------------- fused out-proj + LN2 + FFN + LN3 (post-attn)

def _postattn_kernel(o_ref, r_ref, wo_ref, pc_ref, w1_ref, b1_ref, w2_ref,
                     out_ref, *, eps, mm_dtype):
    # LN3( x + FFN(x) ),  x = LN2( residual + (attn_out @ Wo + bo) )
    bo  = pc_ref[0:1].astype(jnp.float32)
    g2  = pc_ref[1:2].astype(jnp.float32)
    be2 = pc_ref[2:3].astype(jnp.float32)
    b2f = pc_ref[3:4].astype(jnp.float32)
    g3  = pc_ref[4:5].astype(jnp.float32)
    be3 = pc_ref[5:6].astype(jnp.float32)

    y = jnp.dot(o_ref[...].astype(mm_dtype), wo_ref[...].astype(mm_dtype),
                preferred_element_type=jnp.float32) + bo
    z = y + r_ref[...].astype(jnp.float32)
    mu = jnp.mean(z, axis=-1, keepdims=True)
    var = jnp.mean((z - mu) * (z - mu), axis=-1, keepdims=True)
    x = (z - mu) * jax.lax.rsqrt(var + eps) * g2 + be2

    h = jnp.dot(x.astype(mm_dtype), w1_ref[...].astype(mm_dtype),
                preferred_element_type=jnp.float32) + b1_ref[...].astype(jnp.float32)
    h = jnp.maximum(h, 0.0)
    y2 = jnp.dot(h.astype(mm_dtype), w2_ref[...].astype(mm_dtype),
                 preferred_element_type=jnp.float32) + b2f
    z2 = x + y2
    mu2 = jnp.mean(z2, axis=-1, keepdims=True)
    var2 = jnp.mean((z2 - mu2) * (z2 - mu2), axis=-1, keepdims=True)
    out_ref[...] = ((z2 - mu2) * jax.lax.rsqrt(var2 + eps) * g3
                    + be3).astype(out_ref.dtype)


def postattn_ffn_ln(o_flat, resid_flat, pp, *, eps=LN_EPS,
                    mm_dtype=DEFAULT_MM_DTYPE, row_tile=256):
    """Fused attention-out-projection + residual + LN2 + FFN + residual + LN3."""
    m, c = o_flat.shape
    f = pp['w1'].shape[1]
    tm = _pick_row_tile(m, row_tile)
    return pl.pallas_call(
        functools.partial(_postattn_kernel, eps=eps, mm_dtype=mm_dtype),
        out_shape=jax.ShapeDtypeStruct((m, c), o_flat.dtype),
        grid=(pl.cdiv(m, tm),),
        in_specs=[pl.BlockSpec((tm, c), lambda i: (i, 0)),     # attn context
                  pl.BlockSpec((tm, c), lambda i: (i, 0)),     # residual (tgt)
                  pl.BlockSpec((c, c), lambda i: (0, 0)),      # Wo (bf16)
                  pl.BlockSpec((6, c), lambda i: (0, 0)),      # stacked per-C vecs
                  pl.BlockSpec((c, f), lambda i: (0, 0)),      # W1 (bf16)
                  pl.BlockSpec((1, f), lambda i: (0, 0)),      # b1
                  pl.BlockSpec((f, c), lambda i: (0, 0))],     # W2 (bf16)
        out_specs=pl.BlockSpec((tm, c), lambda i: (i, 0)),
        compiler_params=pltpu.CompilerParams(
            dimension_semantics=("parallel",),
            vmem_limit_bytes=VMEM_LIMIT_BYTES),
        cost_estimate=pl.CostEstimate(
            flops=2 * m * c * c + 4 * m * c * f + 20 * m * c,
            transcendentals=2 * m,
            bytes_accessed=4 * (3 * m * c) + 2 * (c * c + 2 * c * f)
                           + 4 * (7 * c + f)),
    )(o_flat, resid_flat, pp['wo'], pp['pc'], pp['w1'], pp['b1'], pp['w2'])


# --------------------------------------------------------------- final LayerNorm

def _ln_kernel(x_ref, g_ref, b_ref, o_ref, *, eps):
    x = x_ref[...].astype(jnp.float32)
    mu = jnp.mean(x, axis=-1, keepdims=True)
    var = jnp.mean((x - mu) * (x - mu), axis=-1, keepdims=True)
    y = (x - mu) * jax.lax.rsqrt(var + eps)
    o_ref[...] = (y * g_ref[...].astype(jnp.float32)
                  + b_ref[...].astype(jnp.float32)).astype(o_ref.dtype)


def layernorm(x, gamma, beta, *, eps=LN_EPS, row_tile=256):
    m, c = x.shape
    tm = _pick_row_tile(m, row_tile)
    return pl.pallas_call(
        functools.partial(_ln_kernel, eps=eps),
        out_shape=jax.ShapeDtypeStruct((m, c), x.dtype),
        grid=(pl.cdiv(m, tm),),
        in_specs=[pl.BlockSpec((tm, c), lambda i: (i, 0)),
                  pl.BlockSpec((1, c), lambda i: (0, 0)),
                  pl.BlockSpec((1, c), lambda i: (0, 0))],
        out_specs=pl.BlockSpec((tm, c), lambda i: (i, 0)),
        compiler_params=pltpu.CompilerParams(
            dimension_semantics=("parallel",)),
    )(x, gamma.reshape(1, c), beta.reshape(1, c))


# --------------------------------------------------- decoder layer / decoder glue

def _prepare_layer_params(p, mm_dtype):
    """Pre-cast matmul weights to the MXU dtype ONCE (halves weight DMA/VMEM)
    and stack the small per-channel vectors into one (6, C) array."""
    return dict(
        wq=p['wq'].astype(mm_dtype), bq=p['bq'].reshape(1, -1),
        wkv=p['wkv'].astype(mm_dtype), bkv=p['bkv'].reshape(1, -1),
        wo=p['wo'].astype(mm_dtype),
        w1=p['w1'].astype(mm_dtype), b1=p['b1'].reshape(1, -1),
        w2=p['w2'].astype(mm_dtype),
        pc=jnp.stack([p['bo'], p['ln2_g'], p['ln2_b'],
                      p['b2'], p['ln3_g'], p['ln3_b']], axis=0),   # (6, C) f32
    )


def tpn_decoder_layer(tgt_b, mem_b, pp, nhead, *, mm_dtype=DEFAULT_MM_DTYPE,
                      emit_attn=True, s_tile=512, row_tile=256):
    """One TPN_DecoderLayer (ATM cross-attention + FFN; no self-attention).

    tgt_b: (B, T, C), mem_b: (B, S, C). Returns [tgt_out, attn_or_None]."""
    b, t, c = tgt_b.shape
    o, attn = fused_attention(tgt_b, mem_b, pp, nhead, mm_dtype=mm_dtype,
                              emit_attn=emit_attn, s_tile=s_tile)
    y = postattn_ffn_ln(o.reshape(b * t, c), tgt_b.reshape(b * t, c), pp,
                        mm_dtype=mm_dtype, row_tile=row_tile)
    return [y.reshape(b, t, c), attn]


def tpn_decoder(tgt, memory, layer_params, norm_params, nhead,
                mm_dtype=DEFAULT_MM_DTYPE, s_tile=512, row_tile=256):
    """Mirrors TPN_Decoder.forward: outputs = [tgt]; loop layers; norm outputs[0].

    tgt: (T, B, C), memory: (S, B, C) (PyTorch seq-first convention).
    Returns [out (T, B, C), attn (B, T, S)] where attn is the LAST layer's
    head-mean pre-softmax score map (same as the reference, whose loop keeps
    only the last layer's extra outputs).
    """
    t, b, c = tgt.shape
    # Layout conversion to batch-major done ONCE, hoisted out of the layer loop.
    tgt_b = jnp.transpose(tgt, (1, 0, 2))      # (B, T, C)
    mem_b = jnp.transpose(memory, (1, 0, 2))   # (B, S, C)

    prepped = [_prepare_layer_params(p, mm_dtype) for p in layer_params]
    n_layers = len(prepped)

    outputs = [tgt_b]
    for li, pp in enumerate(prepped):
        outputs = tpn_decoder_layer(outputs[0], mem_b, pp, nhead,
                                    mm_dtype=mm_dtype,
                                    emit_attn=(li == n_layers - 1),
                                    s_tile=s_tile, row_tile=row_tile)
    if norm_params is not None:
        flat = outputs[0].reshape(b * t, c)
        outputs[0] = layernorm(flat, norm_params['g'], norm_params['b'],
                               row_tile=row_tile).reshape(b, t, c)
    outputs[0] = jnp.transpose(outputs[0], (1, 0, 2))   # back to (T, B, C)
    return outputs


# --------------------------------------------------- deterministic parameter init

def init_layer_params(key, c, ffn_dim):
    ks = jax.random.split(key, 5)

    def w(k, shape):
        return jax.random.normal(k, shape, jnp.float32) * 0.02

    return dict(
        wq=w(ks[0], (c, c)), bq=jnp.zeros((c,), jnp.float32),
        # fused K/V projection: one (C, 2C) matmul instead of two (C, C) matmuls
        wkv=w(ks[1], (c, 2 * c)), bkv=jnp.zeros((2 * c,), jnp.float32),
        wo=w(ks[2], (c, c)), bo=jnp.zeros((c,), jnp.float32),
        ln2_g=jnp.ones((c,), jnp.float32), ln2_b=jnp.zeros((c,), jnp.float32),
        w1=w(ks[3], (c, ffn_dim)), b1=jnp.zeros((ffn_dim,), jnp.float32),
        w2=w(ks[4], (ffn_dim, c)), b2=jnp.zeros((c,), jnp.float32),
        ln3_g=jnp.ones((c,), jnp.float32), ln3_b=jnp.zeros((c,), jnp.float32),
    )


if __name__ == "__main__":
    key = jax.random.PRNGKey(0)
    # Small SegViT-like shapes: T=16 class queries, B=2, d_model=128, 4 heads
    # (hd=32), S=1024 memory tokens (32x32 feature map) -> the attention runs
    # 2 online-softmax S-tiles of 512, and B*T=32 rows -> 2 parallel row tiles.
    T, B, C, S = 16, 2, 128, 1024
    nhead, ffn_dim, num_layers = 4, 256, 2

    k_tgt, k_mem, k_par = jax.random.split(key, 3)
    tgt = jax.random.normal(k_tgt, (T, B, C), jnp.float32)
    memory = jax.random.normal(k_mem, (S, B, C), jnp.float32)

    layer_keys = jax.random.split(k_par, num_layers)
    layer_params = [init_layer_params(layer_keys[i], C, ffn_dim)
                    for i in range(num_layers)]
    norm_params = dict(g=jnp.ones((C,), jnp.float32),
                       b=jnp.zeros((C,), jnp.float32))

    run = jax.jit(functools.partial(tpn_decoder, nhead=nhead))
    out, attn = run(tgt, memory, layer_params, norm_params)
    jax.block_until_ready((out, attn))
    assert out.shape == (T, B, C) and attn.shape == (B, T, S)
    assert bool(jnp.all(jnp.isfinite(out))) and bool(jnp.all(jnp.isfinite(attn)))
    print("KERNEL_OK")
</pallas_src>

<mosaic_0001>
module attributes {stable_mosaic.version = 11 : i64} {
  func.func @_fused_attn_kernel(%arg0: i32, %arg1: i32, %arg2: memref<1x16x128xf32, #tpu.memory_space<vmem>>, %arg3: memref<1x512x128xf32, #tpu.memory_space<vmem>>, %arg4: memref<128x128xbf16, #tpu.memory_space<vmem>>, %arg5: memref<1x128xf32, #tpu.memory_space<vmem>>, %arg6: memref<128x256xbf16, #tpu.memory_space<vmem>>, %arg7: memref<1x256xf32, #tpu.memory_space<vmem>>, %arg8: memref<1x16x128xf32, #tpu.memory_space<vmem>>, %arg9: memref<16x128xbf16, #tpu.memory_space<vmem>>, %arg10: memref<4x16x1xf32, #tpu.memory_space<vmem>>, %arg11: memref<4x16x1xf32, #tpu.memory_space<vmem>>, %arg12: memref<4x16x32xf32, #tpu.memory_space<vmem>>) attributes {dimension_semantics = [#tpu.dimension_semantics<parallel>, #tpu.dimension_semantics<arbitrary>], iteration_bounds = array<i64: 2, 2>, scalar_prefetch = 0 : i64, scratch_operands = 4 : i64, tpu.core_type = #tpu.core_type<tc>, window_params = [{transform_indices = @transform_0, window_bounds = array<i64: 1, 16, 128>}, {transform_indices = @transform_1, window_bounds = array<i64: 1, 512, 128>}, {pipeline_mode = #tpu.pipeline_mode<synchronous>, transform_indices = @transform_2, window_bounds = array<i64: 128, 128>}, {pipeline_mode = #tpu.pipeline_mode<synchronous>, transform_indices = @transform_3, window_bounds = array<i64: 1, 128>}, {pipeline_mode = #tpu.pipeline_mode<synchronous>, transform_indices = @transform_4, window_bounds = array<i64: 128, 256>}, {pipeline_mode = #tpu.pipeline_mode<synchronous>, transform_indices = @transform_5, window_bounds = array<i64: 1, 256>}, {transform_indices = @transform_6, window_bounds = array<i64: 1, 16, 128>}]} {
    %c0_i32 = arith.constant 0 : i32
    %0 = arith.cmpi eq, %arg1, %c0_i32 : i32
    %1 = arith.extui %0 : i1 to i32
    %c0_i32_0 = arith.constant 0 : i32
    %2 = arith.cmpi ne, %1, %c0_i32_0 : i32
    scf.if %2 {
      %c0_98 = arith.constant 0 : index
      %c0_99 = arith.constant 0 : index
      %c0_100 = arith.constant 0 : index
      %159 = vector.load %arg2[%c0_98, %c0_99, %c0_100] : memref<1x16x128xf32, #tpu.memory_space<vmem>>, vector<1x16x128xf32>
      %160 = vector.shape_cast %159 : vector<1x16x128xf32> to vector<16x128xf32>
      %161 = arith.truncf %160 : vector<16x128xf32> to vector<16x128xbf16>
      %c0_101 = arith.constant 0 : index
      %c0_102 = arith.constant 0 : index
      %162 = vector.load %arg4[%c0_101, %c0_102] : memref<128x128xbf16, #tpu.memory_space<vmem>>, vector<128x128xbf16>
      %cst_103 = arith.constant dense<0.000000e+00> : vector<16x128xf32>
      %163 = tpu.matmul %161, %162, %cst_103 {dimension_numbers = #tpu.dot_dimension_numbers<[1], [0], [0], [1], [0, 0, 1, 1], [], []>} : vector<16x128xbf16>, vector<128x128xbf16>, vector<16x128xf32> -> vector<16x128xf32>
      %c0_104 = arith.constant 0 : index
      %c0_105 = arith.constant 0 : index
      %164 = vector.load %arg5[%c0_104, %c0_105] : memref<1x128xf32, #tpu.memory_space<vmem>>, vector<1x128xf32>
      %165 = vector.broadcast %164 : vector<1x128xf32> to vector<16x128xf32>
      %166 = arith.addf %163, %165 : vector<16x128xf32>
      %cst_106 = arith.constant 0.176776692 : f32
      %167 = vector.broadcast %cst_106 : f32 to vector<16x128xf32>
      %168 = arith.mulf %166, %167 : vector<16x128xf32>
      %169 = arith.truncf %168 : vector<16x128xf32> to vector<16x128xbf16>
      %c0_107 = arith.constant 0 : index
      %c0_108 = arith.constant 0 : index
      %170 = vector.load %arg9[%c0_107, %c0_108] : memref<16x128xbf16, #tpu.memory_space<vmem>>, vector<16x128xbf16>
      tpu.vector_store %arg9[%c0_107, %c0_108], %169 {strides = array<i32>} : memref<16x128xbf16, #tpu.memory_space<vmem>>, vector<16x128xbf16>,
      %cst_109 = arith.constant 0xFF800000 : f32
      %171 = vector.broadcast %cst_109 : f32 to vector<4x16x1xf32>
      %c0_110 = arith.constant 0 : index
      %c0_111 = arith.constant 0 : index
      %c0_112 = arith.constant 0 : index
      %172 = vector.load %arg10[%c0_110, %c0_111, %c0_112] : memref<4x16x1xf32, #tpu.memory_space<vmem>>, vector<4x16x1xf32>
      tpu.vector_store %arg10[%c0_110, %c0_111, %c0_112], %171 {strides = array<i32>} : memref<4x16x1xf32, #tpu.memory_space<vmem>>, vector<4x16x1xf32>,
      %cst_113 = arith.constant 0.000000e+00 : f32
      %173 = vector.broadcast %cst_113 : f32 to vector<4x16x1xf32>
      %c0_114 = arith.constant 0 : index
      %c0_115 = arith.constant 0 : index
      %c0_116 = arith.constant 0 : index
      %174 = vector.load %arg11[%c0_114, %c0_115, %c0_116] : memref<4x16x1xf32, #tpu.memory_space<vmem>>, vector<4x16x1xf32>
      tpu.vector_store %arg11[%c0_114, %c0_115, %c0_116], %173 {strides = array<i32>} : memref<4x16x1xf32, #tpu.memory_space<vmem>>, vector<4x16x1xf32>,
      %cst_117 = arith.constant 0.000000e+00 : f32
      %175 = vector.broadcast %cst_117 : f32 to vector<4x16x32xf32>
      %c0_118 = arith.constant 0 : index
      %c0_119 = arith.constant 0 : index
      %c0_120 = arith.constant 0 : index
      %176 = vector.load %arg12[%c0_118, %c0_119, %c0_120] : memref<4x16x32xf32, #tpu.memory_space<vmem>>, vector<4x16x32xf32>
      tpu.vector_store %arg12[%c0_118, %c0_119, %c0_120], %175 {strides = array<i32>} : memref<4x16x32xf32, #tpu.memory_space<vmem>>, vector<4x16x32xf32>,
    } else {
    }
    %c0 = arith.constant 0 : index
    %c0_1 = arith.constant 0 : index
    %c0_2 = arith.constant 0 : index
    %3 = vector.load %arg3[%c0, %c0_1, %c0_2] : memref<1x512x128xf32, #tpu.memory_space<vmem>>, vector<1x512x128xf32>
    %4 = vector.shape_cast %3 : vector<1x512x128xf32> to vector<512x128xf32>
    %5 = arith.truncf %4 : vector<512x128xf32> to vector<512x128xbf16>
    %c0_3 = arith.constant 0 : index
    %c0_4 = arith.constant 0 : index
    %6 = vector.load %arg6[%c0_3, %c0_4] : memref<128x256xbf16, #tpu.memory_space<vmem>>, vector<128x256xbf16>
    %cst = arith.constant dense<0.000000e+00> : vector<512x256xf32>
    %7 = tpu.matmul %5, %6, %cst {dimension_numbers = #tpu.dot_dimension_numbers<[1], [0], [0], [1], [0, 0, 1, 1], [], []>} : vector<512x128xbf16>, vector<128x256xbf16>, vector<512x256xf32> -> vector<512x256xf32>
    %c0_5 = arith.constant 0 : index
    %c0_6 = arith.constant 0 : index
    %8 = vector.load %arg7[%c0_5, %c0_6] : memref<1x256xf32, #tpu.memory_space<vmem>>, vector<1x256xf32>
    %9 = vector.broadcast %8 : vector<1x256xf32> to vector<512x256xf32>
    %10 = arith.addf %7, %9 : vector<512x256xf32>
    %11 = arith.truncf %10 : vector<512x256xf32> to vector<512x256xbf16>
    %c0_7 = arith.constant 0 : index
    %c0_8 = arith.constant 0 : index
    %12 = vector.load %arg9[%c0_7, %c0_8] : memref<16x128xbf16, #tpu.memory_space<vmem>>, vector<16x32xbf16>
    %13 = vector.extract_strided_slice %11 {offsets = [0, 0], sizes = [512, 32], strides = [1, 1]} : vector<512x256xbf16> to vector<512x32xbf16>
    %14 = vector.extract_strided_slice %11 {offsets = [0, 128], sizes = [512, 32], strides = [1, 1]} : vector<512x256xbf16> to vector<512x32xbf16>
    %cst_9 = arith.constant dense<0.000000e+00> : vector<16x512xf32>
    %15 = tpu.matmul %12, %13, %cst_9 {dimension_numbers = #tpu.dot_dimension_numbers<[1], [1], [0], [0], [0, 0, 1, 0], [], []>} : vector<16x32xbf16>, vector<512x32xbf16>, vector<16x512xf32> -> vector<16x512xf32>
    %c0_10 = arith.constant 0 : index
    %c0_11 = arith.constant 0 : index
    %c0_12 = arith.constant 0 : index
    %16 = vector.load %arg10[%c0_10, %c0_11, %c0_12] : memref<4x16x1xf32, #tpu.memory_space<vmem>>, vector<1x16x1xf32>
    %17 = vector.shape_cast %16 : vector<1x16x1xf32> to vector<16x1xf32>
    %cst_13 = arith.constant dense<0xFF800000> : vector<16xf32>
    %18 = vector.multi_reduction <maximumf>, %15, %cst_13 [1] : vector<16x512xf32> to vector<16xf32>
    %19 = vector.shape_cast %18 : vector<16xf32> to vector<16x1xf32>
    %20 = arith.maximumf %17, %19 : vector<16x1xf32>
    %21 = arith.subf %17, %20 : vector<16x1xf32>
    %22 = math.exp %21 : vector<16x1xf32>
    %23 = vector.broadcast %20 : vector<16x1xf32> to vector<16x512xf32>
    %24 = arith.subf %15, %23 : vector<16x512xf32>
    %25 = math.exp %24 : vector<16x512xf32>
    %c0_14 = arith.constant 0 : index
    %c0_15 = arith.constant 0 : index
    %c0_16 = arith.constant 0 : index
    %26 = vector.load %arg11[%c0_14, %c0_15, %c0_16] : memref<4x16x1xf32, #tpu.memory_space<vmem>>, vector<1x16x1xf32>
    %27 = vector.shape_cast %26 : vector<1x16x1xf32> to vector<16x1xf32>
    %28 = arith.mulf %22, %27 : vector<16x1xf32>
    %cst_17 = arith.constant dense<0.000000e+00> : vector<16xf32>
    %29 = vector.multi_reduction <add>, %25, %cst_17 [1] : vector<16x512xf32> to vector<16xf32>
    %30 = vector.shape_cast %29 : vector<16xf32> to vector<16x1xf32>
    %31 = arith.addf %28, %30 : vector<16x1xf32>
    %c0_18 = arith.constant 0 : index
    %c0_19 = arith.constant 0 : index
    %c0_20 = arith.constant 0 : index
    %32 = vector.load %arg11[%c0_18, %c0_19, %c0_20] : memref<4x16x1xf32, #tpu.memory_space<vmem>>, vector<1x16x1xf32>
    %33 = vector.shape_cast %32 : vector<1x16x1xf32> to vector<16x1xf32>
    %34 = vector.shape_cast %31 : vector<16x1xf32> to vector<1x16x1xf32>
    tpu.vector_store %arg11[%c0_18, %c0_19, %c0_20], %34 {strides = array<i32>} : memref<4x16x1xf32, #tpu.memory_space<vmem>>, vector<1x16x1xf32>,
    %c0_21 = arith.constant 0 : index
    %c0_22 = arith.constant 0 : index
    %c0_23 = arith.constant 0 : index
    %35 = vector.load %arg12[%c0_21, %c0_22, %c0_23] : memref<4x16x32xf32, #tpu.memory_space<vmem>>, vector<1x16x32xf32>
    %36 = vector.shape_cast %35 : vector<1x16x32xf32> to vector<16x32xf32>
    %37 = vector.broadcast %22 : vector<16x1xf32> to vector<16x32xf32>
    %38 = arith.mulf %37, %36 : vector<16x32xf32>
    %39 = arith.truncf %25 : vector<16x512xf32> to vector<16x512xbf16>
    %cst_24 = arith.constant dense<0.000000e+00> : vector<16x32xf32>
    %40 = tpu.matmul %39, %14, %cst_24 {dimension_numbers = #tpu.dot_dimension_numbers<[1], [0], [0], [1], [0, 0, 1, 1], [], []>} : vector<16x512xbf16>, vector<512x32xbf16>, vector<16x32xf32> -> vector<16x32xf32>
    %41 = arith.addf %38, %40 : vector<16x32xf32>
    %c0_25 = arith.constant 0 : index
    %c0_26 = arith.constant 0 : index
    %c0_27 = arith.constant 0 : index
    %42 = vector.load %arg12[%c0_25, %c0_26, %c0_27] : memref<4x16x32xf32, #tpu.memory_space<vmem>>, vector<1x16x32xf32>
    %43 = vector.shape_cast %42 : vector<1x16x32xf32> to vector<16x32xf32>
    %44 = vector.shape_cast %41 : vector<16x32xf32> to vector<1x16x32xf32>
    tpu.vector_store %arg12[%c0_25, %c0_26, %c0_27], %44 {strides = array<i32>} : memref<4x16x32xf32, #tpu.memory_space<vmem>>, vector<1x16x32xf32>,
    %c0_28 = arith.constant 0 : index
    %c0_29 = arith.constant 0 : index
    %c0_30 = arith.constant 0 : index
    %45 = vector.load %arg10[%c0_28, %c0_29, %c0_30] : memref<4x16x1xf32, #tpu.memory_space<vmem>>, vector<1x16x1xf32>
    %46 = vector.shape_cast %45 : vector<1x16x1xf32> to vector<16x1xf32>
    %47 = vector.shape_cast %20 : vector<16x1xf32> to vector<1x16x1xf32>
    tpu.vector_store %arg10[%c0_28, %c0_29, %c0_30], %47 {strides = array<i32>} : memref<4x16x1xf32, #tpu.memory_space<vmem>>, vector<1x16x1xf32>,
    %c0_31 = arith.constant 0 : index
    %c32 = arith.constant 32 : index
    %48 = vector.load %arg9[%c0_31, %c32] : memref<16x128xbf16, #tpu.memory_space<vmem>>, vector<16x32xbf16>
    %49 = vector.extract_strided_slice %11 {offsets = [0, 32], sizes = [512, 32], strides = [1, 1]} : vector<512x256xbf16> to vector<512x32xbf16>
    %50 = vector.extract_strided_slice %11 {offsets = [0, 160], sizes = [512, 32], strides = [1, 1]} : vector<512x256xbf16> to vector<512x32xbf16>
    %cst_32 = arith.constant dense<0.000000e+00> : vector<16x512xf32>
    %51 = tpu.matmul %48, %49, %cst_32 {dimension_numbers = #tpu.dot_dimension_numbers<[1], [1], [0], [0], [0, 0, 1, 0], [], []>} : vector<16x32xbf16>, vector<512x32xbf16>, vector<16x512xf32> -> vector<16x512xf32>
    %c1 = arith.constant 1 : index
    %c0_33 = arith.constant 0 : index
    %c0_34 = arith.constant 0 : index
    %52 = vector.load %arg10[%c1, %c0_33, %c0_34] : memref<4x16x1xf32, #tpu.memory_space<vmem>>, vector<1x16x1xf32>
    %53 = vector.shape_cast %52 : vector<1x16x1xf32> to vector<16x1xf32>
    %cst_35 = arith.constant dense<0xFF800000> : vector<16xf32>
    %54 = vector.multi_reduction <maximumf>, %51, %cst_35 [1] : vector<16x512xf32> to vector<16xf32>
    %55 = vector.shape_cast %54 : vector<16xf32> to vector<16x1xf32>
    %56 = arith.maximumf %53, %55 : vector<16x1xf32>
    %57 = arith.subf %53, %56 : vector<16x1xf32>
    %58 = math.exp %57 : vector<16x1xf32>
    %59 = vector.broadcast %56 : vector<16x1xf32> to vector<16x512xf32>
    %60 = arith.subf %51, %59 : vector<16x512xf32>
    %61 = math.exp %60 : vector<16x512xf32>
    %c1_36 = arith.constant 1 : index
    %c0_37 = arith.constant 0 : index
    %c0_38 = arith.constant 0 : index
    %62 = vector.load %arg11[%c1_36, %c0_37, %c0_38] : memref<4x16x1xf32, #tpu.memory_space<vmem>>, vector<1x16x1xf32>
    %63 = vector.shape_cast %62 : vector<1x16x1xf32> to vector<16x1xf32>
    %64 = arith.mulf %58, %63 : vector<16x1xf32>
    %cst_39 = arith.constant dense<0.000000e+00> : vector<16xf32>
    %65 = vector.multi_reduction <add>, %61, %cst_39 [1] : vector<16x512xf32> to vector<16xf32>
    %66 = vector.shape_cast %65 : vector<16xf32> to vector<16x1xf32>
    %67 = arith.addf %64, %66 : vector<16x1xf32>
    %c1_40 = arith.constant 1 : index
    %c0_41 = arith.constant 0 : index
    %c0_42 = arith.constant 0 : index
    %68 = vector.load %arg11[%c1_40, %c0_41, %c0_42] : memref<4x16x1xf32, #tpu.memory_space<vmem>>, vector<1x16x1xf32>
    %69 = vector.shape_cast %68 : vector<1x16x1xf32> to vector<16x1xf32>
    %70 = vector.shape_cast %67 : vector<16x1xf32> to vector<1x16x1xf32>
    tpu.vector_store %arg11[%c1_40, %c0_41, %c0_42], %70 {strides = array<i32>} : memref<4x16x1xf32, #tpu.memory_space<vmem>>, vector<1x16x1xf32>,
    %c1_43 = arith.constant 1 : index
    %c0_44 = arith.constant 0 : index
    %c0_45 = arith.constant 0 : index
    %71 = vector.load %arg12[%c1_43, %c0_44, %c0_45] : memref<4x16x32xf32, #tpu.memory_space<vmem>>, vector<1x16x32xf32>
    %72 = vector.shape_cast %71 : vector<1x16x32xf32> to vector<16x32xf32>
    %73 = vector.broadcast %58 : vector<16x1xf32> to vector<16x32xf32>
    %74 = arith.mulf %73, %72 : vector<16x32xf32>
    %75 = arith.truncf %61 : vector<16x512xf32> to vector<16x512xbf16>
    %cst_46 = arith.constant dense<0.000000e+00> : vector<16x32xf32>
    %76 = tpu.matmul %75, %50, %cst_46 {dimension_numbers = #tpu.dot_dimension_numbers<[1], [0], [0], [1], [0, 0, 1, 1], [], []>} : vector<16x512xbf16>, vector<512x32xbf16>, vector<16x32xf32> -> vector<16x32xf32>
    %77 = arith.addf %74, %76 : vector<16x32xf32>
    %c1_47 = arith.constant 1 : index
    %c0_48 = arith.constant 0 : index
    %c0_49 = arith.constant 0 : index
    %78 = vector.load %arg12[%c1_47, %c0_48, %c0_49] : memref<4x16x32xf32, #tpu.memory_space<vmem>>, vector<1x16x32xf32>
    %79 = vector.shape_cast %78 : vector<1x16x32xf32> to vector<16x32xf32>
    %80 = vector.shape_cast %77 : vector<16x32xf32> to vector<1x16x32xf32>
    tpu.vector_store %arg12[%c1_47, %c0_48, %c0_49], %80 {strides = array<i32>} : memref<4x16x32xf32, #tpu.memory_space<vmem>>, vector<1x16x32xf32>,
    %c1_50 = arith.constant 1 : index
    %c0_51 = arith.constant 0 : index
    %c0_52 = arith.constant 0 : index
    %81 = vector.load %arg10[%c1_50, %c0_51, %c0_52] : memref<4x16x1xf32, #tpu.memory_space<vmem>>, vector<1x16x1xf32>
    %82 = vector.shape_cast %81 : vector<1x16x1xf32> to vector<16x1xf32>
    %83 = vector.shape_cast %56 : vector<16x1xf32> to vector<1x16x1xf32>
    tpu.vector_store %arg10[%c1_50, %c0_51, %c0_52], %83 {strides = array<i32>} : memref<4x16x1xf32, #tpu.memory_space<vmem>>, vector<1x16x1xf32>,
    %c0_53 = arith.constant 0 : index
    %c64 = arith.constant 64 : index
    %84 = vector.load %arg9[%c0_53, %c64] : memref<16x128xbf16, #tpu.memory_space<vmem>>, vector<16x32xbf16>
    %85 = vector.extract_strided_slice %11 {offsets = [0, 64], sizes = [512, 32], strides = [1, 1]} : vector<512x256xbf16> to vector<512x32xbf16>
    %86 = vector.extract_strided_slice %11 {offsets = [0, 192], sizes = [512, 32], strides = [1, 1]} : vector<512x256xbf16> to vector<512x32xbf16>
    %cst_54 = arith.constant dense<0.000000e+00> : vector<16x512xf32>
    %87 = tpu.matmul %84, %85, %cst_54 {dimension_numbers = #tpu.dot_dimension_numbers<[1], [1], [0], [0], [0, 0, 1, 0], [], []>} : vector<16x32xbf16>, vector<512x32xbf16>, vector<16x512xf32> -> vector<16x512xf32>
    %c2 = arith.constant 2 : index
    %c0_55 = arith.constant 0 : index
    %c0_56 = arith.constant 0 : index
    %88 = vector.load %arg10[%c2, %c0_55, %c0_56] : memref<4x16x1xf32, #tpu.memory_space<vmem>>, vector<1x16x1xf32>
    %89 = vector.shape_cast %88 : vector<1x16x1xf32> to vector<16x1xf32>
    %cst_57 = arith.constant dense<0xFF800000> : vector<16xf32>
    %90 = vector.multi_reduction <maximumf>, %87, %cst_57 [1] : vector<16x512xf32> to vector<16xf32>
    %91 = vector.shape_cast %90 : vector<16xf32> to vector<16x1xf32>
    %92 = arith.maximumf %89, %91 : vector<16x1xf32>
    %93 = arith.subf %89, %92 : vector<16x1xf32>
    %94 = math.exp %93 : vector<16x1xf32>
    %95 = vector.broadcast %92 : vector<16x1xf32> to vector<16x512xf32>
    %96 = arith.subf %87, %95 : vector<16x512xf32>
    %97 = math.exp %96 : vector<16x512xf32>
    %c2_58 = arith.constant 2 : index
    %c0_59 = arith.constant 0 : index
    %c0_60 = arith.constant 0 : index
    %98 = vector.load %arg11[%c2_58, %c0_59, %c0_60] : memref<4x16x1xf32, #tpu.memory_space<vmem>>, vector<1x16x1xf32>
    %99 = vector.shape_cast %98 : vector<1x16x1xf32> to vector<16x1xf32>
    %100 = arith.mulf %94, %99 : vector<16x1xf32>
    %cst_61 = arith.constant dense<0.000000e+00> : vector<16xf32>
    %101 = vector.multi_reduction <add>, %97, %cst_61 [1] : vector<16x512xf32> to vector<16xf32>
    %102 = vector.shape_cast %101 : vector<16xf32> to vector<16x1xf32>
    %103 = arith.addf %100, %102 : vector<16x1xf32>
    %c2_62 = arith.constant 2 : index
    %c0_63 = arith.constant 0 : index
    %c0_64 = arith.constant 0 : index
    %104 = vector.load %arg11[%c2_62, %c0_63, %c0_64] : memref<4x16x1xf32, #tpu.memory_space<vmem>>, vector<1x16x1xf32>
    %105 = vector.shape_cast %104 : vector<1x16x1xf32> to vector<16x1xf32>
    %106 = vector.shape_cast %103 : vector<16x1xf32> to vector<1x16x1xf32>
    tpu.vector_store %arg11[%c2_62, %c0_63, %c0_64], %106 {strides = array<i32>} : memref<4x16x1xf32, #tpu.memory_space<vmem>>, vector<1x16x1xf32>,
    %c2_65 = arith.constant 2 : index
    %c0_66 = arith.constant 0 : index
    %c0_67 = arith.constant 0 : index
    %107 = vector.load %arg12[%c2_65, %c0_66, %c0_67] : memref<4x16x32xf32, #tpu.memory_space<vmem>>, vector<1x16x32xf32>
    %108 = vector.shape_cast %107 : vector<1x16x32xf32> to vector<16x32xf32>
    %109 = vector.broadcast %94 : vector<16x1xf32> to vector<16x32xf32>
    %110 = arith.mulf %109, %108 : vector<16x32xf32>
    %111 = arith.truncf %97 : vector<16x512xf32> to vector<16x512xbf16>
    %cst_68 = arith.constant dense<0.000000e+00> : vector<16x32xf32>
    %112 = tpu.matmul %111, %86, %cst_68 {dimension_numbers = #tpu.dot_dimension_numbers<[1], [0], [0], [1], [0, 0, 1, 1], [], []>} : vector<16x512xbf16>, vector<512x32xbf16>, vector<16x32xf32> -> vector<16x32xf32>
    %113 = arith.addf %110, %112 : vector<16x32xf32>
    %c2_69 = arith.constant 2 : index
    %c0_70 = arith.constant 0 : index
    %c0_71 = arith.constant 0 : index
    %114 = vector.load %arg12[%c2_69, %c0_70, %c0_71] : memref<4x16x32xf32, #tpu.memory_space<vmem>>, vector<1x16x32xf32>
    %115 = vector.shape_cast %114 : vector<1x16x32xf32> to vector<16x32xf32>
    %116 = vector.shape_cast %113 : vector<16x32xf32> to vector<1x16x32xf32>
    tpu.vector_store %arg12[%c2_69, %c0_70, %c0_71], %116 {strides = array<i32>} : memref<4x16x32xf32, #tpu.memory_space<vmem>>, vector<1x16x32xf32>,
    %c2_72 = arith.constant 2 : index
    %c0_73 = arith.constant 0 : index
    %c0_74 = arith.constant 0 : index
    %117 = vector.load %arg10[%c2_72, %c0_73, %c0_74] : memref<4x16x1xf32, #tpu.memory_space<vmem>>, vector<1x16x1xf32>
    %118 = vector.shape_cast %117 : vector<1x16x1xf32> to vector<16x1xf32>
    %119 = vector.shape_cast %92 : vector<16x1xf32> to vector<1x16x1xf32>
    tpu.vector_store %arg10[%c2_72, %c0_73, %c0_74], %119 {strides = array<i32>} : memref<4x16x1xf32, #tpu.memory_space<vmem>>, vector<1x16x1xf32>,
    %c0_75 = arith.constant 0 : index
    %c96 = arith.constant 96 : index
    %120 = vector.load %arg9[%c0_75, %c96] : memref<16x128xbf16, #tpu.memory_space<vmem>>, vector<16x32xbf16>
    %121 = vector.extract_strided_slice %11 {offsets = [0, 96], sizes = [512, 32], strides = [1, 1]} : vector<512x256xbf16> to vector<512x32xbf16>
    %122 = vector.extract_strided_slice %11 {offsets = [0, 224], sizes = [512, 32], strides = [1, 1]} : vector<512x256xbf16> to vector<512x32xbf16>
    %cst_76 = arith.constant dense<0.000000e+00> : vector<16x512xf32>
    %123 = tpu.matmul %120, %121, %cst_76 {dimension_numbers = #tpu.dot_dimension_numbers<[1], [1], [0], [0], [0, 0, 1, 0], [], []>} : vector<16x32xbf16>, vector<512x32xbf16>, vector<16x512xf32> -> vector<16x512xf32>
    %c3 = arith.constant 3 : index
    %c0_77 = arith.constant 0 : index
    %c0_78 = arith.constant 0 : index
    %124 = vector.load %arg10[%c3, %c0_77, %c0_78] : memref<4x16x1xf32, #tpu.memory_space<vmem>>, vector<1x16x1xf32>
    %125 = vector.shape_cast %124 : vector<1x16x1xf32> to vector<16x1xf32>
    %cst_79 = arith.constant dense<0xFF800000> : vector<16xf32>
    %126 = vector.multi_reduction <maximumf>, %123, %cst_79 [1] : vector<16x512xf32> to vector<16xf32>
    %127 = vector.shape_cast %126 : vector<16xf32> to vector<16x1xf32>
    %128 = arith.maximumf %125, %127 : vector<16x1xf32>
    %129 = arith.subf %125, %128 : vector<16x1xf32>
    %130 = math.exp %129 : vector<16x1xf32>
    %131 = vector.broadcast %128 : vector<16x1xf32> to vector<16x512xf32>
    %132 = arith.subf %123, %131 : vector<16x512xf32>
    %133 = math.exp %132 : vector<16x512xf32>
    %c3_80 = arith.constant 3 : index
    %c0_81 = arith.constant 0 : index
    %c0_82 = arith.constant 0 : index
    %134 = vector.load %arg11[%c3_80, %c0_81, %c0_82] : memref<4x16x1xf32, #tpu.memory_space<vmem>>, vector<1x16x1xf32>
    %135 = vector.shape_cast %134 : vector<1x16x1xf32> to vector<16x1xf32>
    %136 = arith.mulf %130, %135 : vector<16x1xf32>
    %cst_83 = arith.constant dense<0.000000e+00> : vector<16xf32>
    %137 = vector.multi_reduction <add>, %133, %cst_83 [1] : vector<16x512xf32> to vector<16xf32>
    %138 = vector.shape_cast %137 : vector<16xf32> to vector<16x1xf32>
    %139 = arith.addf %136, %138 : vector<16x1xf32>
    %c3_84 = arith.constant 3 : index
    %c0_85 = arith.constant 0 : index
    %c0_86 = arith.constant 0 : index
    %140 = vector.load %arg11[%c3_84, %c0_85, %c0_86] : memref<4x16x1xf32, #tpu.memory_space<vmem>>, vector<1x16x1xf32>
    %141 = vector.shape_cast %140 : vector<1x16x1xf32> to vector<16x1xf32>
    %142 = vector.shape_cast %139 : vector<16x1xf32> to vector<1x16x1xf32>
    tpu.vector_store %arg11[%c3_84, %c0_85, %c0_86], %142 {strides = array<i32>} : memref<4x16x1xf32, #tpu.memory_space<vmem>>, vector<1x16x1xf32>,
    %c3_87 = arith.constant 3 : index
    %c0_88 = arith.constant 0 : index
    %c0_89 = arith.constant 0 : index
    %143 = vector.load %arg12[%c3_87, %c0_88, %c0_89] : memref<4x16x32xf32, #tpu.memory_space<vmem>>, vector<1x16x32xf32>
    %144 = vector.shape_cast %143 : vector<1x16x32xf32> to vector<16x32xf32>
    %145 = vector.broadcast %130 : vector<16x1xf32> to vector<16x32xf32>
    %146 = arith.mulf %145, %144 : vector<16x32xf32>
    %147 = arith.truncf %133 : vector<16x512xf32> to vector<16x512xbf16>
    %cst_90 = arith.constant dense<0.000000e+00> : vector<16x32xf32>
    %148 = tpu.matmul %147, %122, %cst_90 {dimension_numbers = #tpu.dot_dimension_numbers<[1], [0], [0], [1], [0, 0, 1, 1], [], []>} : vector<16x512xbf16>, vector<512x32xbf16>, vector<16x32xf32> -> vector<16x32xf32>
    %149 = arith.addf %146, %148 : vector<16x32xf32>
    %c3_91 = arith.constant 3 : index
    %c0_92 = arith.constant 0 : index
    %c0_93 = arith.constant 0 : index
    %150 = vector.load %arg12[%c3_91, %c0_92, %c0_93] : memref<4x16x32xf32, #tpu.memory_space<vmem>>, vector<1x16x32xf32>
    %151 = vector.shape_cast %150 : vector<1x16x32xf32> to vector<16x32xf32>
    %152 = vector.shape_cast %149 : vector<16x32xf32> to vector<1x16x32xf32>
    tpu.vector_store %arg12[%c3_91, %c0_92, %c0_93], %152 {strides = array<i32>} : memref<4x16x32xf32, #tpu.memory_space<vmem>>, vector<1x16x32xf32>,
    %c3_94 = arith.constant 3 : index
    %c0_95 = arith.constant 0 : index
    %c0_96 = arith.constant 0 : index
    %153 = vector.load %arg10[%c3_94, %c0_95, %c0_96] : memref<4x16x1xf32, #tpu.memory_space<vmem>>, vector<1x16x1xf32>
    %154 = vector.shape_cast %153 : vector<1x16x1xf32> to vector<16x1xf32>
    %155 = vector.shape_cast %128 : vector<16x1xf32> to vector<1x16x1xf32>
    tpu.vector_store %arg10[%c3_94, %c0_95, %c0_96], %155 {strides = array<i32>} : memref<4x16x1xf32, #tpu.memory_space<vmem>>, vector<1x16x1xf32>,
    %c1_i32 = arith.constant 1 : i32
    %156 = arith.cmpi eq, %arg1, %c1_i32 : i32
    %157 = arith.extui %156 : i1 to i32
    %c0_i32_97 = arith.constant 0 : i32
    %158 = arith.cmpi ne, %157, %c0_i32_97 : i32
    scf.if %158 {
      %c0_98 = arith.constant 0 : index
      %c0_99 = arith.constant 0 : index
      %c0_100 = arith.constant 0 : index
      %159 = vector.load %arg12[%c0_98, %c0_99, %c0_100] : memref<4x16x32xf32, #tpu.memory_space<vmem>>, vector<1x16x32xf32>
      %160 = vector.shape_cast %159 : vector<1x16x32xf32> to vector<16x32xf32>
      %c0_101 = arith.constant 0 : index
      %c0_102 = arith.constant 0 : index
      %c0_103 = arith.constant 0 : index
      %161 = vector.load %arg11[%c0_101, %c0_102, %c0_103] : memref<4x16x1xf32, #tpu.memory_space<vmem>>, vector<1x16x1xf32>
      %162 = vector.shape_cast %161 : vector<1x16x1xf32> to vector<16x1xf32>
      %cst_104 = arith.constant 1.000000e+00 : f32
      %163 = vector.broadcast %cst_104 : f32 to vector<16x1xf32>
      %164 = arith.divf %163, %162 : vector<16x1xf32>
      %165 = vector.broadcast %164 : vector<16x1xf32> to vector<16x32xf32>
      %166 = arith.mulf %160, %165 : vector<16x32xf32>
      %c1_105 = arith.constant 1 : index
      %c0_106 = arith.constant 0 : index
      %c0_107 = arith.constant 0 : index
      %167 = vector.load %arg12[%c1_105, %c0_106, %c0_107] : memref<4x16x32xf32, #tpu.memory_space<vmem>>, vector<1x16x32xf32>
      %168 = vector.shape_cast %167 : vector<1x16x32xf32> to vector<16x32xf32>
      %c1_108 = arith.constant 1 : index
      %c0_109 = arith.constant 0 : index
      %c0_110 = arith.constant 0 : index
      %169 = vector.load %arg11[%c1_108, %c0_109, %c0_110] : memref<4x16x1xf32, #tpu.memory_space<vmem>>, vector<1x16x1xf32>
      %170 = vector.shape_cast %169 : vector<1x16x1xf32> to vector<16x1xf32>
      %cst_111 = arith.constant 1.000000e+00 : f32
      %171 = vector.broadcast %cst_111 : f32 to vector<16x1xf32>
      %172 = arith.divf %171, %170 : vector<16x1xf32>
      %173 = vector.broadcast %172 : vector<16x1xf32> to vector<16x32xf32>
      %174 = arith.mulf %168, %173 : vector<16x32xf32>
      %c2_112 = arith.constant 2 : index
      %c0_113 = arith.constant 0 : index
      %c0_114 = arith.constant 0 : index
      %175 = vector.load %arg12[%c2_112, %c0_113, %c0_114] : memref<4x16x32xf32, #tpu.memory_space<vmem>>, vector<1x16x32xf32>
      %176 = vector.shape_cast %175 : vector<1x16x32xf32> to vector<16x32xf32>
      %c2_115 = arith.constant 2 : index
      %c0_116 = arith.constant 0 : index
      %c0_117 = arith.constant 0 : index
      %177 = vector.load %arg11[%c2_115, %c0_116, %c0_117] : memref<4x16x1xf32, #tpu.memory_space<vmem>>, vector<1x16x1xf32>
      %178 = vector.shape_cast %177 : vector<1x16x1xf32> to vector<16x1xf32>
      %cst_118 = arith.constant 1.000000e+00 : f32
      %179 = vector.broadcast %cst_118 : f32 to vector<16x1xf32>
      %180 = arith.divf %179, %178 : vector<16x1xf32>
      %181 = vector.broadcast %180 : vector<16x1xf32> to vector<16x32xf32>
      %182 = arith.mulf %176, %181 : vector<16x32xf32>
      %c3_119 = arith.constant 3 : index
      %c0_120 = arith.constant 0 : index
      %c0_121 = arith.constant 0 : index
      %183 = vector.load %arg12[%c3_119, %c0_120, %c0_121] : memref<4x16x32xf32, #tpu.memory_space<vmem>>, vector<1x16x32xf32>
      %184 = vector.shape_cast %183 : vector<1x16x32xf32> to vector<16x32xf32>
      %c3_122 = arith.constant 3 : index
      %c0_123 = arith.constant 0 : index
      %c0_124 = arith.constant 0 : index
      %185 = vector.load %arg11[%c3_122, %c0_123, %c0_124] : memref<4x16x1xf32, #tpu.memory_space<vmem>>, vector<1x16x1xf32>
      %186 = vector.shape_cast %185 : vector<1x16x1xf32> to vector<16x1xf32>
      %cst_125 = arith.constant 1.000000e+00 : f32
      %187 = vector.broadcast %cst_125 : f32 to vector<16x1xf32>
      %188 = arith.divf %187, %186 : vector<16x1xf32>
      %189 = vector.broadcast %188 : vector<16x1xf32> to vector<16x32xf32>
      %190 = arith.mulf %184, %189 : vector<16x32xf32>
      %191 = tpu.concatenate %166, %174, %182, %190 in 1 : vector<16x32xf32>, vector<16x32xf32>, vector<16x32xf32>, vector<16x32xf32> -> vector<16x128xf32>
      %c0_126 = arith.constant 0 : index
      %c0_127 = arith.constant 0 : index
      %c0_128 = arith.constant 0 : index
      %192 = vector.load %arg8[%c0_126, %c0_127, %c0_128] : memref<1x16x128xf32, #tpu.memory_space<vmem>>, vector<1x16x128xf32>
      %193 = vector.shape_cast %192 : vector<1x16x128xf32> to vector<16x128xf32>
      %194 = vector.shape_cast %191 : vector<16x128xf32> to vector<1x16x128xf32>
      tpu.vector_store %arg8[%c0_126, %c0_127, %c0_128], %194 {strides = array<i32>} : memref<1x16x128xf32, #tpu.memory_space<vmem>>, vector<1x16x128xf32>,
    } else {
    }
    return
  }
  func.func @transform_0(%arg0: i32, %arg1: i32) -> (i32, i32, i32) {
    %c0_i32 = arith.constant 0 : i32
    %c0_i32_0 = arith.constant 0 : i32
    %c0_i32_1 = arith.constant 0 : i32
    return %arg0, %c0_i32, %c0_i32_0 : i32, i32, i32
  }
  func.func @transform_1(%arg0: i32, %arg1: i32) -> (i32, i32, i32) {
    %c0_i32 = arith.constant 0 : i32
    %c0_i32_0 = arith.constant 0 : i32
    return %arg0, %arg1, %c0_i32 : i32, i32, i32
  }
  func.func @transform_2(%arg0: i32, %arg1: i32) -> (i32, i32) {
    %c0_i32 = arith.constant 0 : i32
    %c0_i32_0 = arith.constant 0 : i32
    %c0_i32_1 = arith.constant 0 : i32
    return %c0_i32, %c0_i32_0 : i32, i32
  }
  func.func @transform_3(%arg0: i32, %arg1: i32) -> (i32, i32) {
    %c0_i32 = arith.constant 0 : i32
    %c0_i32_0 = arith.constant 0 : i32
    %c0_i32_1 = arith.constant 0 : i32
    return %c0_i32, %c0_i32_0 : i32, i32
  }
  func.func @transform_4(%arg0: i32, %arg1: i32) -> (i32, i32) {
    %c0_i32 = arith.constant 0 : i32
    %c0_i32_0 = arith.constant 0 : i32
    %c0_i32_1 = arith.constant 0 : i32
    return %c0_i32, %c0_i32_0 : i32, i32
  }
  func.func @transform_5(%arg0: i32, %arg1: i32) -> (i32, i32) {
    %c0_i32 = arith.constant 0 : i32
    %c0_i32_0 = arith.constant 0 : i32
    %c0_i32_1 = arith.constant 0 : i32
    return %c0_i32, %c0_i32_0 : i32, i32
  }
  func.func @transform_6(%arg0: i32, %arg1: i32) -> (i32, i32, i32) {
    %c0_i32 = arith.constant 0 : i32
    %c0_i32_0 = arith.constant 0 : i32
    %c0_i32_1 = arith.constant 0 : i32
    return %arg0, %c0_i32, %c0_i32_0 : i32, i32, i32
  }
}

module attributes {stable_mosaic.version = 11 : i64} {
  func.func @_postattn_kernel(%arg0: i32, %arg1: memref<16x128xf32, #tpu.memory_space<vmem>>, %arg2: memref<16x128xf32, #tpu.memory_space<vmem>>, %arg3: memref<128x128xbf16, #tpu.memory_space<vmem>>, %arg4: memref<6x128xf32, #tpu.memory_space<vmem>>, %arg5: memref<128x256xbf16, #tpu.memory_space<vmem>>, %arg6: memref<1x256xf32, #tpu.memory_space<vmem>>, %arg7: memref<256x128xbf16, #tpu.memory_space<vmem>>, %arg8: memref<16x128xf32, #tpu.memory_space<vmem>>) attributes {dimension_semantics = [#tpu.dimension_semantics<parallel>], iteration_bounds = array<i64: 2>, scalar_prefetch = 0 : i64, scratch_operands = 0 : i64, tpu.core_type = #tpu.core_type<tc>, window_params = [{transform_indices = @transform_0, window_bounds = array<i64: 16, 128>}, {transform_indices = @transform_1, window_bounds = array<i64: 16, 128>}, {pipeline_mode = #tpu.pipeline_mode<synchronous>, transform_indices = @transform_2, window_bounds = array<i64: 128, 128>}, {pipeline_mode = #tpu.pipeline_mode<synchronous>, transform_indices = @transform_3, window_bounds = array<i64: 6, 128>}, {pipeline_mode = #tpu.pipeline_mode<synchronous>, transform_indices = @transform_4, window_bounds = array<i64: 128, 256>}, {pipeline_mode = #tpu.pipeline_mode<synchronous>, transform_indices = @transform_5, window_bounds = array<i64: 1, 256>}, {pipeline_mode = #tpu.pipeline_mode<synchronous>, transform_indices = @transform_6, window_bounds = array<i64: 256, 128>}, {transform_indices = @transform_7, window_bounds = array<i64: 16, 128>}]} {
    %c0 = arith.constant 0 : index
    %c0_0 = arith.constant 0 : index
    %0 = vector.load %arg4[%c0, %c0_0] : memref<6x128xf32, #tpu.memory_space<vmem>>, vector<1x128xf32>
    %c1 = arith.constant 1 : index
    %c0_1 = arith.constant 0 : index
    %1 = vector.load %arg4[%c1, %c0_1] : memref<6x128xf32, #tpu.memory_space<vmem>>, vector<1x128xf32>
    %c2 = arith.constant 2 : index
    %c0_2 = arith.constant 0 : index
    %2 = vector.load %arg4[%c2, %c0_2] : memref<6x128xf32, #tpu.memory_space<vmem>>, vector<1x128xf32>
    %c3 = arith.constant 3 : index
    %c0_3 = arith.constant 0 : index
    %3 = vector.load %arg4[%c3, %c0_3] : memref<6x128xf32, #tpu.memory_space<vmem>>, vector<1x128xf32>
    %c4 = arith.constant 4 : index
    %c0_4 = arith.constant 0 : index
    %4 = vector.load %arg4[%c4, %c0_4] : memref<6x128xf32, #tpu.memory_space<vmem>>, vector<1x128xf32>
    %c5 = arith.constant 5 : index
    %c0_5 = arith.constant 0 : index
    %5 = vector.load %arg4[%c5, %c0_5] : memref<6x128xf32, #tpu.memory_space<vmem>>, vector<1x128xf32>
    %c0_6 = arith.constant 0 : index
    %c0_7 = arith.constant 0 : index
    %6 = vector.load %arg1[%c0_6, %c0_7] : memref<16x128xf32, #tpu.memory_space<vmem>>, vector<16x128xf32>
    %7 = arith.truncf %6 : vector<16x128xf32> to vector<16x128xbf16>
    %c0_8 = arith.constant 0 : index
    %c0_9 = arith.constant 0 : index
    %8 = vector.load %arg3[%c0_8, %c0_9] : memref<128x128xbf16, #tpu.memory_space<vmem>>, vector<128x128xbf16>
    %cst = arith.constant dense<0.000000e+00> : vector<16x128xf32>
    %9 = tpu.matmul %7, %8, %cst {dimension_numbers = #tpu.dot_dimension_numbers<[1], [0], [0], [1], [0, 0, 1, 1], [], []>} : vector<16x128xbf16>, vector<128x128xbf16>, vector<16x128xf32> -> vector<16x128xf32>
    %10 = vector.broadcast %0 : vector<1x128xf32> to vector<16x128xf32>
    %11 = arith.addf %9, %10 : vector<16x128xf32>
    %c0_10 = arith.constant 0 : index
    %c0_11 = arith.constant 0 : index
    %12 = vector.load %arg2[%c0_10, %c0_11] : memref<16x128xf32, #tpu.memory_space<vmem>>, vector<16x128xf32>
    %13 = arith.addf %11, %12 : vector<16x128xf32>
    %cst_12 = arith.constant dense<0.000000e+00> : vector<16xf32>
    %14 = vector.multi_reduction <add>, %13, %cst_12 [1] : vector<16x128xf32> to vector<16xf32>
    %15 = vector.shape_cast %14 : vector<16xf32> to vector<16x1xf32>
    %cst_13 = arith.constant 1.280000e+02 : f32
    %16 = vector.broadcast %cst_13 : f32 to vector<16x1xf32>
    %17 = arith.divf %15, %16 : vector<16x1xf32>
    %18 = vector.broadcast %17 : vector<16x1xf32> to vector<16x128xf32>
    %19 = arith.subf %13, %18 : vector<16x128xf32>
    %20 = vector.broadcast %17 : vector<16x1xf32> to vector<16x128xf32>
    %21 = arith.subf %13, %20 : vector<16x128xf32>
    %22 = arith.mulf %19, %21 : vector<16x128xf32>
    %cst_14 = arith.constant dense<0.000000e+00> : vector<16xf32>
    %23 = vector.multi_reduction <add>, %22, %cst_14 [1] : vector<16x128xf32> to vector<16xf32>
    %24 = vector.shape_cast %23 : vector<16xf32> to vector<16x1xf32>
    %cst_15 = arith.constant 1.280000e+02 : f32
    %25 = vector.broadcast %cst_15 : f32 to vector<16x1xf32>
    %26 = arith.divf %24, %25 : vector<16x1xf32>
    %27 = vector.broadcast %17 : vector<16x1xf32> to vector<16x128xf32>
    %28 = arith.subf %13, %27 : vector<16x128xf32>
    %cst_16 = arith.constant 9.99999974E-6 : f32
    %29 = vector.broadcast %cst_16 : f32 to vector<16x1xf32>
    %30 = arith.addf %26, %29 : vector<16x1xf32>
    %31 = math.rsqrt %30 : vector<16x1xf32>
    %32 = vector.broadcast %31 : vector<16x1xf32> to vector<16x128xf32>
    %33 = arith.mulf %28, %32 : vector<16x128xf32>
    %34 = vector.broadcast %1 : vector<1x128xf32> to vector<16x128xf32>
    %35 = arith.mulf %33, %34 : vector<16x128xf32>
    %36 = vector.broadcast %2 : vector<1x128xf32> to vector<16x128xf32>
    %37 = arith.addf %35, %36 : vector<16x128xf32>
    %38 = arith.truncf %37 : vector<16x128xf32> to vector<16x128xbf16>
    %c0_17 = arith.constant 0 : index
    %c0_18 = arith.constant 0 : index
    %39 = vector.load %arg5[%c0_17, %c0_18] : memref<128x256xbf16, #tpu.memory_space<vmem>>, vector<128x256xbf16>
    %cst_19 = arith.constant dense<0.000000e+00> : vector<16x256xf32>
    %40 = tpu.matmul %38, %39, %cst_19 {dimension_numbers = #tpu.dot_dimension_numbers<[1], [0], [0], [1], [0, 0, 1, 1], [], []>} : vector<16x128xbf16>, vector<128x256xbf16>, vector<16x256xf32> -> vector<16x256xf32>
    %c0_20 = arith.constant 0 : index
    %c0_21 = arith.constant 0 : index
    %41 = vector.load %arg6[%c0_20, %c0_21] : memref<1x256xf32, #tpu.memory_space<vmem>>, vector<1x256xf32>
    %42 = vector.broadcast %41 : vector<1x256xf32> to vector<16x256xf32>
    %43 = arith.addf %40, %42 : vector<16x256xf32>
    %cst_22 = arith.constant 0.000000e+00 : f32
    %44 = vector.broadcast %cst_22 : f32 to vector<16x256xf32>
    %45 = arith.maximumf %43, %44 : vector<16x256xf32>
    %46 = arith.truncf %45 : vector<16x256xf32> to vector<16x256xbf16>
    %c0_23 = arith.constant 0 : index
    %c0_24 = arith.constant 0 : index
    %47 = vector.load %arg7[%c0_23, %c0_24] : memref<256x128xbf16, #tpu.memory_space<vmem>>, vector<256x128xbf16>
    %cst_25 = arith.constant dense<0.000000e+00> : vector<16x128xf32>
    %48 = tpu.matmul %46, %47, %cst_25 {dimension_numbers = #tpu.dot_dimension_numbers<[1], [0], [0], [1], [0, 0, 1, 1], [], []>} : vector<16x256xbf16>, vector<256x128xbf16>, vector<16x128xf32> -> vector<16x128xf32>
    %49 = vector.broadcast %3 : vector<1x128xf32> to vector<16x128xf32>
    %50 = arith.addf %48, %49 : vector<16x128xf32>
    %51 = arith.addf %37, %50 : vector<16x128xf32>
    %cst_26 = arith.constant dense<0.000000e+00> : vector<16xf32>
    %52 = vector.multi_reduction <add>, %51, %cst_26 [1] : vector<16x128xf32> to vector<16xf32>
    %53 = vector.shape_cast %52 : vector<16xf32> to vector<16x1xf32>
    %cst_27 = arith.constant 1.280000e+02 : f32
    %54 = vector.broadcast %cst_27 : f32 to vector<16x1xf32>
    %55 = arith.divf %53, %54 : vector<16x1xf32>
    %56 = vector.broadcast %55 : vector<16x1xf32> to vector<16x128xf32>
    %57 = arith.subf %51, %56 : vector<16x128xf32>
    %58 = vector.broadcast %55 : vector<16x1xf32> to vector<16x128xf32>
    %59 = arith.subf %51, %58 : vector<16x128xf32>
    %60 = arith.mulf %57, %59 : vector<16x128xf32>
    %cst_28 = arith.constant dense<0.000000e+00> : vector<16xf32>
    %61 = vector.multi_reduction <add>, %60, %cst_28 [1] : vector<16x128xf32> to vector<16xf32>
    %62 = vector.shape_cast %61 : vector<16xf32> to vector<16x1xf32>
    %cst_29 = arith.constant 1.280000e+02 : f32
    %63 = vector.broadcast %cst_29 : f32 to vector<16x1xf32>
    %64 = arith.divf %62, %63 : vector<16x1xf32>
    %65 = vector.broadcast %55 : vector<16x1xf32> to vector<16x128xf32>
    %66 = arith.subf %51, %65 : vector<16x128xf32>
    %cst_30 = arith.constant 9.99999974E-6 : f32
    %67 = vector.broadcast %cst_30 : f32 to vector<16x1xf32>
    %68 = arith.addf %64, %67 : vector<16x1xf32>
    %69 = math.rsqrt %68 : vector<16x1xf32>
    %70 = vector.broadcast %69 : vector<16x1xf32> to vector<16x128xf32>
    %71 = arith.mulf %66, %70 : vector<16x128xf32>
    %72 = vector.broadcast %4 : vector<1x128xf32> to vector<16x128xf32>
    %73 = arith.mulf %71, %72 : vector<16x128xf32>
    %74 = vector.broadcast %5 : vector<1x128xf32> to vector<16x128xf32>
    %75 = arith.addf %73, %74 : vector<16x128xf32>
    %c0_31 = arith.constant 0 : index
    %c0_32 = arith.constant 0 : index
    %76 = vector.load %arg8[%c0_31, %c0_32] : memref<16x128xf32, #tpu.memory_space<vmem>>, vector<16x128xf32>
    tpu.vector_store %arg8[%c0_31, %c0_32], %75 {strides = array<i32>} : memref<16x128xf32, #tpu.memory_space<vmem>>, vector<16x128xf32>,
    return
  }
  func.func @transform_0(%arg0: i32) -> (i32, i32) {
    %c0_i32 = arith.constant 0 : i32
    %c0_i32_0 = arith.constant 0 : i32
    return %arg0, %c0_i32 : i32, i32
  }
  func.func @transform_1(%arg0: i32) -> (i32, i32) {
    %c0_i32 = arith.constant 0 : i32
    %c0_i32_0 = arith.constant 0 : i32
    return %arg0, %c0_i32 : i32, i32
  }
  func.func @transform_2(%arg0: i32) -> (i32, i32) {
    %c0_i32 = arith.constant 0 : i32
    %c0_i32_0 = arith.constant 0 : i32
    %c0_i32_1 = arith.constant 0 : i32
    return %c0_i32, %c0_i32_0 : i32, i32
  }
  func.func @transform_3(%arg0: i32) -> (i32, i32) {
    %c0_i32 = arith.constant 0 : i32
    %c0_i32_0 = arith.constant 0 : i32
    %c0_i32_1 = arith.constant 0 : i32
    return %c0_i32, %c0_i32_0 : i32, i32
  }
  func.func @transform_4(%arg0: i32) -> (i32, i32) {
    %c0_i32 = arith.constant 0 : i32
    %c0_i32_0 = arith.constant 0 : i32
    %c0_i32_1 = arith.constant 0 : i32
    return %c0_i32, %c0_i32_0 : i32, i32
  }
  func.func @transform_5(%arg0: i32) -> (i32, i32) {
    %c0_i32 = arith.constant 0 : i32
    %c0_i32_0 = arith.constant 0 : i32
    %c0_i32_1 = arith.constant 0 : i32
    return %c0_i32, %c0_i32_0 : i32, i32
  }
  func.func @transform_6(%arg0: i32) -> (i32, i32) {
    %c0_i32 = arith.constant 0 : i32
    %c0_i32_0 = arith.constant 0 : i32
    %c0_i32_1 = arith.constant 0 : i32
    return %c0_i32, %c0_i32_0 : i32, i32
  }
  func.func @transform_7(%arg0: i32) -> (i32, i32) {
    %c0_i32 = arith.constant 0 : i32
    %c0_i32_0 = arith.constant 0 : i32
    return %arg0, %c0_i32 : i32, i32
  }
}

module attributes {stable_mosaic.version = 11 : i64} {
  func.func @_ln_kernel(%arg0: i32, %arg1: memref<16x128xf32, #tpu.memory_space<vmem>>, %arg2: memref<1x128xf32, #tpu.memory_space<vmem>>, %arg3: memref<1x128xf32, #tpu.memory_space<vmem>>, %arg4: memref<16x128xf32, #tpu.memory_space<vmem>>) attributes {dimension_semantics = [#tpu.dimension_semantics<parallel>], iteration_bounds = array<i64: 2>, scalar_prefetch = 0 : i64, scratch_operands = 0 : i64, tpu.core_type = #tpu.core_type<tc>, window_params = [{transform_indices = @transform_0, window_bounds = array<i64: 16, 128>}, {pipeline_mode = #tpu.pipeline_mode<synchronous>, transform_indices = @transform_1, window_bounds = array<i64: 1, 128>}, {pipeline_mode = #tpu.pipeline_mode<synchronous>, transform_indices = @transform_2, window_bounds = array<i64: 1, 128>}, {transform_indices = @transform_3, window_bounds = array<i64: 16, 128>}]} {
    %c0 = arith.constant 0 : index
    %c0_0 = arith.constant 0 : index
    %0 = vector.load %arg1[%c0, %c0_0] : memref<16x128xf32, #tpu.memory_space<vmem>>, vector<16x128xf32>
    %cst = arith.constant dense<0.000000e+00> : vector<16xf32>
    %1 = vector.multi_reduction <add>, %0, %cst [1] : vector<16x128xf32> to vector<16xf32>
    %2 = vector.shape_cast %1 : vector<16xf32> to vector<16x1xf32>
    %cst_1 = arith.constant 1.280000e+02 : f32
    %3 = vector.broadcast %cst_1 : f32 to vector<16x1xf32>
    %4 = arith.divf %2, %3 : vector<16x1xf32>
    %5 = vector.broadcast %4 : vector<16x1xf32> to vector<16x128xf32>
    %6 = arith.subf %0, %5 : vector<16x128xf32>
    %7 = vector.broadcast %4 : vector<16x1xf32> to vector<16x128xf32>
    %8 = arith.subf %0, %7 : vector<16x128xf32>
    %9 = arith.mulf %6, %8 : vector<16x128xf32>
    %cst_2 = arith.constant dense<0.000000e+00> : vector<16xf32>
    %10 = vector.multi_reduction <add>, %9, %cst_2 [1] : vector<16x128xf32> to vector<16xf32>
    %11 = vector.shape_cast %10 : vector<16xf32> to vector<16x1xf32>
    %cst_3 = arith.constant 1.280000e+02 : f32
    %12 = vector.broadcast %cst_3 : f32 to vector<16x1xf32>
    %13 = arith.divf %11, %12 : vector<16x1xf32>
    %14 = vector.broadcast %4 : vector<16x1xf32> to vector<16x128xf32>
    %15 = arith.subf %0, %14 : vector<16x128xf32>
    %cst_4 = arith.constant 9.99999974E-6 : f32
    %16 = vector.broadcast %cst_4 : f32 to vector<16x1xf32>
    %17 = arith.addf %13, %16 : vector<16x1xf32>
    %18 = math.rsqrt %17 : vector<16x1xf32>
    %19 = vector.broadcast %18 : vector<16x1xf32> to vector<16x128xf32>
    %20 = arith.mulf %15, %19 : vector<16x128xf32>
    %c0_5 = arith.constant 0 : index
    %c0_6 = arith.constant 0 : index
    %21 = vector.load %arg2[%c0_5, %c0_6] : memref<1x128xf32, #tpu.memory_space<vmem>>, vector<1x128xf32>
    %22 = vector.broadcast %21 : vector<1x128xf32> to vector<16x128xf32>
    %23 = arith.mulf %20, %22 : vector<16x128xf32>
    %c0_7 = arith.constant 0 : index
    %c0_8 = arith.constant 0 : index
    %24 = vector.load %arg3[%c0_7, %c0_8] : memref<1x128xf32, #tpu.memory_space<vmem>>, vector<1x128xf32>
    %25 = vector.broadcast %24 : vector<1x128xf32> to vector<16x128xf32>
    %26 = arith.addf %23, %25 : vector<16x128xf32>
    %c0_9 = arith.constant 0 : index
    %c0_10 = arith.constant 0 : index
    %27 = vector.load %arg4[%c0_9, %c0_10] : memref<16x128xf32, #tpu.memory_space<vmem>>, vector<16x128xf32>
    tpu.vector_store %arg4[%c0_9, %c0_10], %26 {strides = array<i32>} : memref<16x128xf32, #tpu.memory_space<vmem>>, vector<16x128xf32>,
    return
  }
  func.func @transform_0(%arg0: i32) -> (i32, i32) {
    %c0_i32 = arith.constant 0 : i32
    %c0_i32_0 = arith.constant 0 : i32
    return %arg0, %c0_i32 : i32, i32
  }
  func.func @transform_1(%arg0: i32) -> (i32, i32) {
    %c0_i32 = arith.constant 0 : i32
    %c0_i32_0 = arith.constant 0 : i32
    %c0_i32_1 = arith.constant 0 : i32
    return %c0_i32, %c0_i32_0 : i32, i32
  }
  func.func @transform_2(%arg0: i32) -> (i32, i32) {
    %c0_i32 = arith.constant 0 : i32
    %c0_i32_0 = arith.constant 0 : i32
    %c0_i32_1 = arith.constant 0 : i32
    return %c0_i32, %c0_i32_0 : i32, i32
  }
  func.func @transform_3(%arg0: i32) -> (i32, i32) {
    %c0_i32 = arith.constant 0 : i32
    %c0_i32_0 = arith.constant 0 : i32
    return %arg0, %c0_i32 : i32, i32
  }
}

module attributes {stable_mosaic.version = 11 : i64} {
  func.func @_fused_attn_kernel(%arg0: i32, %arg1: i32, %arg2: memref<1x16x128xf32, #tpu.memory_space<vmem>>, %arg3: memref<1x512x128xf32, #tpu.memory_space<vmem>>, %arg4: memref<128x128xbf16, #tpu.memory_space<vmem>>, %arg5: memref<1x128xf32, #tpu.memory_space<vmem>>, %arg6: memref<128x256xbf16, #tpu.memory_space<vmem>>, %arg7: memref<1x256xf32, #tpu.memory_space<vmem>>, %arg8: memref<1x16x128xf32, #tpu.memory_space<vmem>>, %arg9: memref<1x16x512xf32, #tpu.memory_space<vmem>>, %arg10: memref<16x128xbf16, #tpu.memory_space<vmem>>, %arg11: memref<4x16x1xf32, #tpu.memory_space<vmem>>, %arg12: memref<4x16x1xf32, #tpu.memory_space<vmem>>, %arg13: memref<4x16x32xf32, #tpu.memory_space<vmem>>) attributes {dimension_semantics = [#tpu.dimension_semantics<parallel>, #tpu.dimension_semantics<arbitrary>], iteration_bounds = array<i64: 2, 2>, scalar_prefetch = 0 : i64, scratch_operands = 4 : i64, tpu.core_type = #tpu.core_type<tc>, window_params = [{transform_indices = @transform_0, window_bounds = array<i64: 1, 16, 128>}, {transform_indices = @transform_1, window_bounds = array<i64: 1, 512, 128>}, {pipeline_mode = #tpu.pipeline_mode<synchronous>, transform_indices = @transform_2, window_bounds = array<i64: 128, 128>}, {pipeline_mode = #tpu.pipeline_mode<synchronous>, transform_indices = @transform_3, window_bounds = array<i64: 1, 128>}, {pipeline_mode = #tpu.pipeline_mode<synchronous>, transform_indices = @transform_4, window_bounds = array<i64: 128, 256>}, {pipeline_mode = #tpu.pipeline_mode<synchronous>, transform_indices = @transform_5, window_bounds = array<i64: 1, 256>}, {transform_indices = @transform_6, window_bounds = array<i64: 1, 16, 128>}, {transform_indices = @transform_7, window_bounds = array<i64: 1, 16, 512>}]} {
    %c0_i32 = arith.constant 0 : i32
    %0 = arith.cmpi eq, %arg1, %c0_i32 : i32
    %1 = arith.extui %0 : i1 to i32
    %c0_i32_0 = arith.constant 0 : i32
    %2 = arith.cmpi ne, %1, %c0_i32_0 : i32
    scf.if %2 {
      %c0_102 = arith.constant 0 : index
      %c0_103 = arith.constant 0 : index
      %c0_104 = arith.constant 0 : index
      %167 = vector.load %arg2[%c0_102, %c0_103, %c0_104] : memref<1x16x128xf32, #tpu.memory_space<vmem>>, vector<1x16x128xf32>
      %168 = vector.shape_cast %167 : vector<1x16x128xf32> to vector<16x128xf32>
      %169 = arith.truncf %168 : vector<16x128xf32> to vector<16x128xbf16>
      %c0_105 = arith.constant 0 : index
      %c0_106 = arith.constant 0 : index
      %170 = vector.load %arg4[%c0_105, %c0_106] : memref<128x128xbf16, #tpu.memory_space<vmem>>, vector<128x128xbf16>
      %cst_107 = arith.constant dense<0.000000e+00> : vector<16x128xf32>
      %171 = tpu.matmul %169, %170, %cst_107 {dimension_numbers = #tpu.dot_dimension_numbers<[1], [0], [0], [1], [0, 0, 1, 1], [], []>} : vector<16x128xbf16>, vector<128x128xbf16>, vector<16x128xf32> -> vector<16x128xf32>
      %c0_108 = arith.constant 0 : index
      %c0_109 = arith.constant 0 : index
      %172 = vector.load %arg5[%c0_108, %c0_109] : memref<1x128xf32, #tpu.memory_space<vmem>>, vector<1x128xf32>
      %173 = vector.broadcast %172 : vector<1x128xf32> to vector<16x128xf32>
      %174 = arith.addf %171, %173 : vector<16x128xf32>
      %cst_110 = arith.constant 0.176776692 : f32
      %175 = vector.broadcast %cst_110 : f32 to vector<16x128xf32>
      %176 = arith.mulf %174, %175 : vector<16x128xf32>
      %177 = arith.truncf %176 : vector<16x128xf32> to vector<16x128xbf16>
      %c0_111 = arith.constant 0 : index
      %c0_112 = arith.constant 0 : index
      %178 = vector.load %arg10[%c0_111, %c0_112] : memref<16x128xbf16, #tpu.memory_space<vmem>>, vector<16x128xbf16>
      tpu.vector_store %arg10[%c0_111, %c0_112], %177 {strides = array<i32>} : memref<16x128xbf16, #tpu.memory_space<vmem>>, vector<16x128xbf16>,
      %cst_113 = arith.constant 0xFF800000 : f32
      %179 = vector.broadcast %cst_113 : f32 to vector<4x16x1xf32>
      %c0_114 = arith.constant 0 : index
      %c0_115 = arith.constant 0 : index
      %c0_116 = arith.constant 0 : index
      %180 = vector.load %arg11[%c0_114, %c0_115, %c0_116] : memref<4x16x1xf32, #tpu.memory_space<vmem>>, vector<4x16x1xf32>
      tpu.vector_store %arg11[%c0_114, %c0_115, %c0_116], %179 {strides = array<i32>} : memref<4x16x1xf32, #tpu.memory_space<vmem>>, vector<4x16x1xf32>,
      %cst_117 = arith.constant 0.000000e+00 : f32
      %181 = vector.broadcast %cst_117 : f32 to vector<4x16x1xf32>
      %c0_118 = arith.constant 0 : index
      %c0_119 = arith.constant 0 : index
      %c0_120 = arith.constant 0 : index
      %182 = vector.load %arg12[%c0_118, %c0_119, %c0_120] : memref<4x16x1xf32, #tpu.memory_space<vmem>>, vector<4x16x1xf32>
      tpu.vector_store %arg12[%c0_118, %c0_119, %c0_120], %181 {strides = array<i32>} : memref<4x16x1xf32, #tpu.memory_space<vmem>>, vector<4x16x1xf32>,
      %cst_121 = arith.constant 0.000000e+00 : f32
      %183 = vector.broadcast %cst_121 : f32 to vector<4x16x32xf32>
      %c0_122 = arith.constant 0 : index
      %c0_123 = arith.constant 0 : index
      %c0_124 = arith.constant 0 : index
      %184 = vector.load %arg13[%c0_122, %c0_123, %c0_124] : memref<4x16x32xf32, #tpu.memory_space<vmem>>, vector<4x16x32xf32>
      tpu.vector_store %arg13[%c0_122, %c0_123, %c0_124], %183 {strides = array<i32>} : memref<4x16x32xf32, #tpu.memory_space<vmem>>, vector<4x16x32xf32>,
    } else {
    }
    %c0 = arith.constant 0 : index
    %c0_1 = arith.constant 0 : index
    %c0_2 = arith.constant 0 : index
    %3 = vector.load %arg3[%c0, %c0_1, %c0_2] : memref<1x512x128xf32, #tpu.memory_space<vmem>>, vector<1x512x128xf32>
    %4 = vector.shape_cast %3 : vector<1x512x128xf32> to vector<512x128xf32>
    %5 = arith.truncf %4 : vector<512x128xf32> to vector<512x128xbf16>
    %c0_3 = arith.constant 0 : index
    %c0_4 = arith.constant 0 : index
    %6 = vector.load %arg6[%c0_3, %c0_4] : memref<128x256xbf16, #tpu.memory_space<vmem>>, vector<128x256xbf16>
    %cst = arith.constant dense<0.000000e+00> : vector<512x256xf32>
    %7 = tpu.matmul %5, %6, %cst {dimension_numbers = #tpu.dot_dimension_numbers<[1], [0], [0], [1], [0, 0, 1, 1], [], []>} : vector<512x128xbf16>, vector<128x256xbf16>, vector<512x256xf32> -> vector<512x256xf32>
    %c0_5 = arith.constant 0 : index
    %c0_6 = arith.constant 0 : index
    %8 = vector.load %arg7[%c0_5, %c0_6] : memref<1x256xf32, #tpu.memory_space<vmem>>, vector<1x256xf32>
    %9 = vector.broadcast %8 : vector<1x256xf32> to vector<512x256xf32>
    %10 = arith.addf %7, %9 : vector<512x256xf32>
    %11 = arith.truncf %10 : vector<512x256xf32> to vector<512x256xbf16>
    %c0_7 = arith.constant 0 : index
    %c0_8 = arith.constant 0 : index
    %12 = vector.load %arg10[%c0_7, %c0_8] : memref<16x128xbf16, #tpu.memory_space<vmem>>, vector<16x32xbf16>
    %13 = vector.extract_strided_slice %11 {offsets = [0, 0], sizes = [512, 32], strides = [1, 1]} : vector<512x256xbf16> to vector<512x32xbf16>
    %14 = vector.extract_strided_slice %11 {offsets = [0, 128], sizes = [512, 32], strides = [1, 1]} : vector<512x256xbf16> to vector<512x32xbf16>
    %cst_9 = arith.constant dense<0.000000e+00> : vector<16x512xf32>
    %15 = tpu.matmul %12, %13, %cst_9 {dimension_numbers = #tpu.dot_dimension_numbers<[1], [1], [0], [0], [0, 0, 1, 0], [], []>} : vector<16x32xbf16>, vector<512x32xbf16>, vector<16x512xf32> -> vector<16x512xf32>
    %c0_10 = arith.constant 0 : index
    %c0_11 = arith.constant 0 : index
    %c0_12 = arith.constant 0 : index
    %16 = vector.load %arg11[%c0_10, %c0_11, %c0_12] : memref<4x16x1xf32, #tpu.memory_space<vmem>>, vector<1x16x1xf32>
    %17 = vector.shape_cast %16 : vector<1x16x1xf32> to vector<16x1xf32>
    %cst_13 = arith.constant dense<0xFF800000> : vector<16xf32>
    %18 = vector.multi_reduction <maximumf>, %15, %cst_13 [1] : vector<16x512xf32> to vector<16xf32>
    %19 = vector.shape_cast %18 : vector<16xf32> to vector<16x1xf32>
    %20 = arith.maximumf %17, %19 : vector<16x1xf32>
    %21 = arith.subf %17, %20 : vector<16x1xf32>
    %22 = math.exp %21 : vector<16x1xf32>
    %23 = vector.broadcast %20 : vector<16x1xf32> to vector<16x512xf32>
    %24 = arith.subf %15, %23 : vector<16x512xf32>
    %25 = math.exp %24 : vector<16x512xf32>
    %c0_14 = arith.constant 0 : index
    %c0_15 = arith.constant 0 : index
    %c0_16 = arith.constant 0 : index
    %26 = vector.load %arg12[%c0_14, %c0_15, %c0_16] : memref<4x16x1xf32, #tpu.memory_space<vmem>>, vector<1x16x1xf32>
    %27 = vector.shape_cast %26 : vector<1x16x1xf32> to vector<16x1xf32>
    %28 = arith.mulf %22, %27 : vector<16x1xf32>
    %cst_17 = arith.constant dense<0.000000e+00> : vector<16xf32>
    %29 = vector.multi_reduction <add>, %25, %cst_17 [1] : vector<16x512xf32> to vector<16xf32>
    %30 = vector.shape_cast %29 : vector<16xf32> to vector<16x1xf32>
    %31 = arith.addf %28, %30 : vector<16x1xf32>
    %c0_18 = arith.constant 0 : index
    %c0_19 = arith.constant 0 : index
    %c0_20 = arith.constant 0 : index
    %32 = vector.load %arg12[%c0_18, %c0_19, %c0_20] : memref<4x16x1xf32, #tpu.memory_space<vmem>>, vector<1x16x1xf32>
    %33 = vector.shape_cast %32 : vector<1x16x1xf32> to vector<16x1xf32>
    %34 = vector.shape_cast %31 : vector<16x1xf32> to vector<1x16x1xf32>
    tpu.vector_store %arg12[%c0_18, %c0_19, %c0_20], %34 {strides = array<i32>} : memref<4x16x1xf32, #tpu.memory_space<vmem>>, vector<1x16x1xf32>,
    %c0_21 = arith.constant 0 : index
    %c0_22 = arith.constant 0 : index
    %c0_23 = arith.constant 0 : index
    %35 = vector.load %arg13[%c0_21, %c0_22, %c0_23] : memref<4x16x32xf32, #tpu.memory_space<vmem>>, vector<1x16x32xf32>
    %36 = vector.shape_cast %35 : vector<1x16x32xf32> to vector<16x32xf32>
    %37 = vector.broadcast %22 : vector<16x1xf32> to vector<16x32xf32>
    %38 = arith.mulf %37, %36 : vector<16x32xf32>
    %39 = arith.truncf %25 : vector<16x512xf32> to vector<16x512xbf16>
    %cst_24 = arith.constant dense<0.000000e+00> : vector<16x32xf32>
    %40 = tpu.matmul %39, %14, %cst_24 {dimension_numbers = #tpu.dot_dimension_numbers<[1], [0], [0], [1], [0, 0, 1, 1], [], []>} : vector<16x512xbf16>, vector<512x32xbf16>, vector<16x32xf32> -> vector<16x32xf32>
    %41 = arith.addf %38, %40 : vector<16x32xf32>
    %c0_25 = arith.constant 0 : index
    %c0_26 = arith.constant 0 : index
    %c0_27 = arith.constant 0 : index
    %42 = vector.load %arg13[%c0_25, %c0_26, %c0_27] : memref<4x16x32xf32, #tpu.memory_space<vmem>>, vector<1x16x32xf32>
    %43 = vector.shape_cast %42 : vector<1x16x32xf32> to vector<16x32xf32>
    %44 = vector.shape_cast %41 : vector<16x32xf32> to vector<1x16x32xf32>
    tpu.vector_store %arg13[%c0_25, %c0_26, %c0_27], %44 {strides = array<i32>} : memref<4x16x32xf32, #tpu.memory_space<vmem>>, vector<1x16x32xf32>,
    %c0_28 = arith.constant 0 : index
    %c0_29 = arith.constant 0 : index
    %c0_30 = arith.constant 0 : index
    %45 = vector.load %arg11[%c0_28, %c0_29, %c0_30] : memref<4x16x1xf32, #tpu.memory_space<vmem>>, vector<1x16x1xf32>
    %46 = vector.shape_cast %45 : vector<1x16x1xf32> to vector<16x1xf32>
    %47 = vector.shape_cast %20 : vector<16x1xf32> to vector<1x16x1xf32>
    tpu.vector_store %arg11[%c0_28, %c0_29, %c0_30], %47 {strides = array<i32>} : memref<4x16x1xf32, #tpu.memory_space<vmem>>, vector<1x16x1xf32>,
    %c0_31 = arith.constant 0 : index
    %c32 = arith.constant 32 : index
    %48 = vector.load %arg10[%c0_31, %c32] : memref<16x128xbf16, #tpu.memory_space<vmem>>, vector<16x32xbf16>
    %49 = vector.extract_strided_slice %11 {offsets = [0, 32], sizes = [512, 32], strides = [1, 1]} : vector<512x256xbf16> to vector<512x32xbf16>
    %50 = vector.extract_strided_slice %11 {offsets = [0, 160], sizes = [512, 32], strides = [1, 1]} : vector<512x256xbf16> to vector<512x32xbf16>
    %cst_32 = arith.constant dense<0.000000e+00> : vector<16x512xf32>
    %51 = tpu.matmul %48, %49, %cst_32 {dimension_numbers = #tpu.dot_dimension_numbers<[1], [1], [0], [0], [0, 0, 1, 0], [], []>} : vector<16x32xbf16>, vector<512x32xbf16>, vector<16x512xf32> -> vector<16x512xf32>
    %52 = arith.addf %15, %51 : vector<16x512xf32>
    %c1 = arith.constant 1 : index
    %c0_33 = arith.constant 0 : index
    %c0_34 = arith.constant 0 : index
    %53 = vector.load %arg11[%c1, %c0_33, %c0_34] : memref<4x16x1xf32, #tpu.memory_space<vmem>>, vector<1x16x1xf32>
    %54 = vector.shape_cast %53 : vector<1x16x1xf32> to vector<16x1xf32>
    %cst_35 = arith.constant dense<0xFF800000> : vector<16xf32>
    %55 = vector.multi_reduction <maximumf>, %51, %cst_35 [1] : vector<16x512xf32> to vector<16xf32>
    %56 = vector.shape_cast %55 : vector<16xf32> to vector<16x1xf32>
    %57 = arith.maximumf %54, %56 : vector<16x1xf32>
    %58 = arith.subf %54, %57 : vector<16x1xf32>
    %59 = math.exp %58 : vector<16x1xf32>
    %60 = vector.broadcast %57 : vector<16x1xf32> to vector<16x512xf32>
    %61 = arith.subf %51, %60 : vector<16x512xf32>
    %62 = math.exp %61 : vector<16x512xf32>
    %c1_36 = arith.constant 1 : index
    %c0_37 = arith.constant 0 : index
    %c0_38 = arith.constant 0 : index
    %63 = vector.load %arg12[%c1_36, %c0_37, %c0_38] : memref<4x16x1xf32, #tpu.memory_space<vmem>>, vector<1x16x1xf32>
    %64 = vector.shape_cast %63 : vector<1x16x1xf32> to vector<16x1xf32>
    %65 = arith.mulf %59, %64 : vector<16x1xf32>
    %cst_39 = arith.constant dense<0.000000e+00> : vector<16xf32>
    %66 = vector.multi_reduction <add>, %62, %cst_39 [1] : vector<16x512xf32> to vector<16xf32>
    %67 = vector.shape_cast %66 : vector<16xf32> to vector<16x1xf32>
    %68 = arith.addf %65, %67 : vector<16x1xf32>
    %c1_40 = arith.constant 1 : index
    %c0_41 = arith.constant 0 : index
    %c0_42 = arith.constant 0 : index
    %69 = vector.load %arg12[%c1_40, %c0_41, %c0_42] : memref<4x16x1xf32, #tpu.memory_space<vmem>>, vector<1x16x1xf32>
    %70 = vector.shape_cast %69 : vector<1x16x1xf32> to vector<16x1xf32>
    %71 = vector.shape_cast %68 : vector<16x1xf32> to vector<1x16x1xf32>
    tpu.vector_store %arg12[%c1_40, %c0_41, %c0_42], %71 {strides = array<i32>} : memref<4x16x1xf32, #tpu.memory_space<vmem>>, vector<1x16x1xf32>,
    %c1_43 = arith.constant 1 : index
    %c0_44 = arith.constant 0 : index
    %c0_45 = arith.constant 0 : index
    %72 = vector.load %arg13[%c1_43, %c0_44, %c0_45] : memref<4x16x32xf32, #tpu.memory_space<vmem>>, vector<1x16x32xf32>
    %73 = vector.shape_cast %72 : vector<1x16x32xf32> to vector<16x32xf32>
    %74 = vector.broadcast %59 : vector<16x1xf32> to vector<16x32xf32>
    %75 = arith.mulf %74, %73 : vector<16x32xf32>
    %76 = arith.truncf %62 : vector<16x512xf32> to vector<16x512xbf16>
    %cst_46 = arith.constant dense<0.000000e+00> : vector<16x32xf32>
    %77 = tpu.matmul %76, %50, %cst_46 {dimension_numbers = #tpu.dot_dimension_numbers<[1], [0], [0], [1], [0, 0, 1, 1], [], []>} : vector<16x512xbf16>, vector<512x32xbf16>, vector<16x32xf32> -> vector<16x32xf32>
    %78 = arith.addf %75, %77 : vector<16x32xf32>
    %c1_47 = arith.constant 1 : index
    %c0_48 = arith.constant 0 : index
    %c0_49 = arith.constant 0 : index
    %79 = vector.load %arg13[%c1_47, %c0_48, %c0_49] : memref<4x16x32xf32, #tpu.memory_space<vmem>>, vector<1x16x32xf32>
    %80 = vector.shape_cast %79 : vector<1x16x32xf32> to vector<16x32xf32>
    %81 = vector.shape_cast %78 : vector<16x32xf32> to vector<1x16x32xf32>
    tpu.vector_store %arg13[%c1_47, %c0_48, %c0_49], %81 {strides = array<i32>} : memref<4x16x32xf32, #tpu.memory_space<vmem>>, vector<1x16x32xf32>,
    %c1_50 = arith.constant 1 : index
    %c0_51 = arith.constant 0 : index
    %c0_52 = arith.constant 0 : index
    %82 = vector.load %arg11[%c1_50, %c0_51, %c0_52] : memref<4x16x1xf32, #tpu.memory_space<vmem>>, vector<1x16x1xf32>
    %83 = vector.shape_cast %82 : vector<1x16x1xf32> to vector<16x1xf32>
    %84 = vector.shape_cast %57 : vector<16x1xf32> to vector<1x16x1xf32>
    tpu.vector_store %arg11[%c1_50, %c0_51, %c0_52], %84 {strides = array<i32>} : memref<4x16x1xf32, #tpu.memory_space<vmem>>, vector<1x16x1xf32>,
    %c0_53 = arith.constant 0 : index
    %c64 = arith.constant 64 : index
    %85 = vector.load %arg10[%c0_53, %c64] : memref<16x128xbf16, #tpu.memory_space<vmem>>, vector<16x32xbf16>
    %86 = vector.extract_strided_slice %11 {offsets = [0, 64], sizes = [512, 32], strides = [1, 1]} : vector<512x256xbf16> to vector<512x32xbf16>
    %87 = vector.extract_strided_slice %11 {offsets = [0, 192], sizes = [512, 32], strides = [1, 1]} : vector<512x256xbf16> to vector<512x32xbf16>
    %cst_54 = arith.constant dense<0.000000e+00> : vector<16x512xf32>
    %88 = tpu.matmul %85, %86, %cst_54 {dimension_numbers = #tpu.dot_dimension_numbers<[1], [1], [0], [0], [0, 0, 1, 0], [], []>} : vector<16x32xbf16>, vector<512x32xbf16>, vector<16x512xf32> -> vector<16x512xf32>
    %89 = arith.addf %52, %88 : vector<16x512xf32>
    %c2 = arith.constant 2 : index
    %c0_55 = arith.constant 0 : index
    %c0_56 = arith.constant 0 : index
    %90 = vector.load %arg11[%c2, %c0_55, %c0_56] : memref<4x16x1xf32, #tpu.memory_space<vmem>>, vector<1x16x1xf32>
    %91 = vector.shape_cast %90 : vector<1x16x1xf32> to vector<16x1xf32>
    %cst_57 = arith.constant dense<0xFF800000> : vector<16xf32>
    %92 = vector.multi_reduction <maximumf>, %88, %cst_57 [1] : vector<16x512xf32> to vector<16xf32>
    %93 = vector.shape_cast %92 : vector<16xf32> to vector<16x1xf32>
    %94 = arith.maximumf %91, %93 : vector<16x1xf32>
    %95 = arith.subf %91, %94 : vector<16x1xf32>
    %96 = math.exp %95 : vector<16x1xf32>
    %97 = vector.broadcast %94 : vector<16x1xf32> to vector<16x512xf32>
    %98 = arith.subf %88, %97 : vector<16x512xf32>
    %99 = math.exp %98 : vector<16x512xf32>
    %c2_58 = arith.constant 2 : index
    %c0_59 = arith.constant 0 : index
    %c0_60 = arith.constant 0 : index
    %100 = vector.load %arg12[%c2_58, %c0_59, %c0_60] : memref<4x16x1xf32, #tpu.memory_space<vmem>>, vector<1x16x1xf32>
    %101 = vector.shape_cast %100 : vector<1x16x1xf32> to vector<16x1xf32>
    %102 = arith.mulf %96, %101 : vector<16x1xf32>
    %cst_61 = arith.constant dense<0.000000e+00> : vector<16xf32>
    %103 = vector.multi_reduction <add>, %99, %cst_61 [1] : vector<16x512xf32> to vector<16xf32>
    %104 = vector.shape_cast %103 : vector<16xf32> to vector<16x1xf32>
    %105 = arith.addf %102, %104 : vector<16x1xf32>
    %c2_62 = arith.constant 2 : index
    %c0_63 = arith.constant 0 : index
    %c0_64 = arith.constant 0 : index
    %106 = vector.load %arg12[%c2_62, %c0_63, %c0_64] : memref<4x16x1xf32, #tpu.memory_space<vmem>>, vector<1x16x1xf32>
    %107 = vector.shape_cast %106 : vector<1x16x1xf32> to vector<16x1xf32>
    %108 = vector.shape_cast %105 : vector<16x1xf32> to vector<1x16x1xf32>
    tpu.vector_store %arg12[%c2_62, %c0_63, %c0_64], %108 {strides = array<i32>} : memref<4x16x1xf32, #tpu.memory_space<vmem>>, vector<1x16x1xf32>,
    %c2_65 = arith.constant 2 : index
    %c0_66 = arith.constant 0 : index
    %c0_67 = arith.constant 0 : index
    %109 = vector.load %arg13[%c2_65, %c0_66, %c0_67] : memref<4x16x32xf32, #tpu.memory_space<vmem>>, vector<1x16x32xf32>
    %110 = vector.shape_cast %109 : vector<1x16x32xf32> to vector<16x32xf32>
    %111 = vector.broadcast %96 : vector<16x1xf32> to vector<16x32xf32>
    %112 = arith.mulf %111, %110 : vector<16x32xf32>
    %113 = arith.truncf %99 : vector<16x512xf32> to vector<16x512xbf16>
    %cst_68 = arith.constant dense<0.000000e+00> : vector<16x32xf32>
    %114 = tpu.matmul %113, %87, %cst_68 {dimension_numbers = #tpu.dot_dimension_numbers<[1], [0], [0], [1], [0, 0, 1, 1], [], []>} : vector<16x512xbf16>, vector<512x32xbf16>, vector<16x32xf32> -> vector<16x32xf32>
    %115 = arith.addf %112, %114 : vector<16x32xf32>
    %c2_69 = arith.constant 2 : index
    %c0_70 = arith.constant 0 : index
    %c0_71 = arith.constant 0 : index
    %116 = vector.load %arg13[%c2_69, %c0_70, %c0_71] : memref<4x16x32xf32, #tpu.memory_space<vmem>>, vector<1x16x32xf32>
    %117 = vector.shape_cast %116 : vector<1x16x32xf32> to vector<16x32xf32>
    %118 = vector.shape_cast %115 : vector<16x32xf32> to vector<1x16x32xf32>
    tpu.vector_store %arg13[%c2_69, %c0_70, %c0_71], %118 {strides = array<i32>} : memref<4x16x32xf32, #tpu.memory_space<vmem>>, vector<1x16x32xf32>,
    %c2_72 = arith.constant 2 : index
    %c0_73 = arith.constant 0 : index
    %c0_74 = arith.constant 0 : index
    %119 = vector.load %arg11[%c2_72, %c0_73, %c0_74] : memref<4x16x1xf32, #tpu.memory_space<vmem>>, vector<1x16x1xf32>
    %120 = vector.shape_cast %119 : vector<1x16x1xf32> to vector<16x1xf32>
    %121 = vector.shape_cast %94 : vector<16x1xf32> to vector<1x16x1xf32>
    tpu.vector_store %arg11[%c2_72, %c0_73, %c0_74], %121 {strides = array<i32>} : memref<4x16x1xf32, #tpu.memory_space<vmem>>, vector<1x16x1xf32>,
    %c0_75 = arith.constant 0 : index
    %c96 = arith.constant 96 : index
    %122 = vector.load %arg10[%c0_75, %c96] : memref<16x128xbf16, #tpu.memory_space<vmem>>, vector<16x32xbf16>
    %123 = vector.extract_strided_slice %11 {offsets = [0, 96], sizes = [512, 32], strides = [1, 1]} : vector<512x256xbf16> to vector<512x32xbf16>
    %124 = vector.extract_strided_slice %11 {offsets = [0, 224], sizes = [512, 32], strides = [1, 1]} : vector<512x256xbf16> to vector<512x32xbf16>
    %cst_76 = arith.constant dense<0.000000e+00> : vector<16x512xf32>
    %125 = tpu.matmul %122, %123, %cst_76 {dimension_numbers = #tpu.dot_dimension_numbers<[1], [1], [0], [0], [0, 0, 1, 0], [], []>} : vector<16x32xbf16>, vector<512x32xbf16>, vector<16x512xf32> -> vector<16x512xf32>
    %126 = arith.addf %89, %125 : vector<16x512xf32>
    %c3 = arith.constant 3 : index
    %c0_77 = arith.constant 0 : index
    %c0_78 = arith.constant 0 : index
    %127 = vector.load %arg11[%c3, %c0_77, %c0_78] : memref<4x16x1xf32, #tpu.memory_space<vmem>>, vector<1x16x1xf32>
    %128 = vector.shape_cast %127 : vector<1x16x1xf32> to vector<16x1xf32>
    %cst_79 = arith.constant dense<0xFF800000> : vector<16xf32>
    %129 = vector.multi_reduction <maximumf>, %125, %cst_79 [1] : vector<16x512xf32> to vector<16xf32>
    %130 = vector.shape_cast %129 : vector<16xf32> to vector<16x1xf32>
    %131 = arith.maximumf %128, %130 : vector<16x1xf32>
    %132 = arith.subf %128, %131 : vector<16x1xf32>
    %133 = math.exp %132 : vector<16x1xf32>
    %134 = vector.broadcast %131 : vector<16x1xf32> to vector<16x512xf32>
    %135 = arith.subf %125, %134 : vector<16x512xf32>
    %136 = math.exp %135 : vector<16x512xf32>
    %c3_80 = arith.constant 3 : index
    %c0_81 = arith.constant 0 : index
    %c0_82 = arith.constant 0 : index
    %137 = vector.load %arg12[%c3_80, %c0_81, %c0_82] : memref<4x16x1xf32, #tpu.memory_space<vmem>>, vector<1x16x1xf32>
    %138 = vector.shape_cast %137 : vector<1x16x1xf32> to vector<16x1xf32>
    %139 = arith.mulf %133, %138 : vector<16x1xf32>
    %cst_83 = arith.constant dense<0.000000e+00> : vector<16xf32>
    %140 = vector.multi_reduction <add>, %136, %cst_83 [1] : vector<16x512xf32> to vector<16xf32>
    %141 = vector.shape_cast %140 : vector<16xf32> to vector<16x1xf32>
    %142 = arith.addf %139, %141 : vector<16x1xf32>
    %c3_84 = arith.constant 3 : index
    %c0_85 = arith.constant 0 : index
    %c0_86 = arith.constant 0 : index
    %143 = vector.load %arg12[%c3_84, %c0_85, %c0_86] : memref<4x16x1xf32, #tpu.memory_space<vmem>>, vector<1x16x1xf32>
    %144 = vector.shape_cast %143 : vector<1x16x1xf32> to vector<16x1xf32>
    %145 = vector.shape_cast %142 : vector<16x1xf32> to vector<1x16x1xf32>
    tpu.vector_store %arg12[%c3_84, %c0_85, %c0_86], %145 {strides = array<i32>} : memref<4x16x1xf32, #tpu.memory_space<vmem>>, vector<1x16x1xf32>,
    %c3_87 = arith.constant 3 : index
    %c0_88 = arith.constant 0 : index
    %c0_89 = arith.constant 0 : index
    %146 = vector.load %arg13[%c3_87, %c0_88, %c0_89] : memref<4x16x32xf32, #tpu.memory_space<vmem>>, vector<1x16x32xf32>
    %147 = vector.shape_cast %146 : vector<1x16x32xf32> to vector<16x32xf32>
    %148 = vector.broadcast %133 : vector<16x1xf32> to vector<16x32xf32>
    %149 = arith.mulf %148, %147 : vector<16x32xf32>
    %150 = arith.truncf %136 : vector<16x512xf32> to vector<16x512xbf16>
    %cst_90 = arith.constant dense<0.000000e+00> : vector<16x32xf32>
    %151 = tpu.matmul %150, %124, %cst_90 {dimension_numbers = #tpu.dot_dimension_numbers<[1], [0], [0], [1], [0, 0, 1, 1], [], []>} : vector<16x512xbf16>, vector<512x32xbf16>, vector<16x32xf32> -> vector<16x32xf32>
    %152 = arith.addf %149, %151 : vector<16x32xf32>
    %c3_91 = arith.constant 3 : index
    %c0_92 = arith.constant 0 : index
    %c0_93 = arith.constant 0 : index
    %153 = vector.load %arg13[%c3_91, %c0_92, %c0_93] : memref<4x16x32xf32, #tpu.memory_space<vmem>>, vector<1x16x32xf32>
    %154 = vector.shape_cast %153 : vector<1x16x32xf32> to vector<16x32xf32>
    %155 = vector.shape_cast %152 : vector<16x32xf32> to vector<1x16x32xf32>
    tpu.vector_store %arg13[%c3_91, %c0_92, %c0_93], %155 {strides = array<i32>} : memref<4x16x32xf32, #tpu.memory_space<vmem>>, vector<1x16x32xf32>,
    %c3_94 = arith.constant 3 : index
    %c0_95 = arith.constant 0 : index
    %c0_96 = arith.constant 0 : index
    %156 = vector.load %arg11[%c3_94, %c0_95, %c0_96] : memref<4x16x1xf32, #tpu.memory_space<vmem>>, vector<1x16x1xf32>
    %157 = vector.shape_cast %156 : vector<1x16x1xf32> to vector<16x1xf32>
    %158 = vector.shape_cast %131 : vector<16x1xf32> to vector<1x16x1xf32>
    tpu.vector_store %arg11[%c3_94, %c0_95, %c0_96], %158 {strides = array<i32>} : memref<4x16x1xf32, #tpu.memory_space<vmem>>, vector<1x16x1xf32>,
    %cst_97 = arith.constant 2.500000e-01 : f32
    %159 = vector.broadcast %cst_97 : f32 to vector<16x512xf32>
    %160 = arith.mulf %126, %159 : vector<16x512xf32>
    %c0_98 = arith.constant 0 : index
    %c0_99 = arith.constant 0 : index
    %c0_100 = arith.constant 0 : index
    %161 = vector.load %arg9[%c0_98, %c0_99, %c0_100] : memref<1x16x512xf32, #tpu.memory_space<vmem>>, vector<1x16x512xf32>
    %162 = vector.shape_cast %161 : vector<1x16x512xf32> to vector<16x512xf32>
    %163 = vector.shape_cast %160 : vector<16x512xf32> to vector<1x16x512xf32>
    tpu.vector_store %arg9[%c0_98, %c0_99, %c0_100], %163 {strides = array<i32>} : memref<1x16x512xf32, #tpu.memory_space<vmem>>, vector<1x16x512xf32>,
    %c1_i32 = arith.constant 1 : i32
    %164 = arith.cmpi eq, %arg1, %c1_i32 : i32
    %165 = arith.extui %164 : i1 to i32
    %c0_i32_101 = arith.constant 0 : i32
    %166 = arith.cmpi ne, %165, %c0_i32_101 : i32
    scf.if %166 {
      %c0_102 = arith.constant 0 : index
      %c0_103 = arith.constant 0 : index
      %c0_104 = arith.constant 0 : index
      %167 = vector.load %arg13[%c0_102, %c0_103, %c0_104] : memref<4x16x32xf32, #tpu.memory_space<vmem>>, vector<1x16x32xf32>
      %168 = vector.shape_cast %167 : vector<1x16x32xf32> to vector<16x32xf32>
      %c0_105 = arith.constant 0 : index
      %c0_106 = arith.constant 0 : index
      %c0_107 = arith.constant 0 : index
      %169 = vector.load %arg12[%c0_105, %c0_106, %c0_107] : memref<4x16x1xf32, #tpu.memory_space<vmem>>, vector<1x16x1xf32>
      %170 = vector.shape_cast %169 : vector<1x16x1xf32> to vector<16x1xf32>
      %cst_108 = arith.constant 1.000000e+00 : f32
      %171 = vector.broadcast %cst_108 : f32 to vector<16x1xf32>
      %172 = arith.divf %171, %170 : vector<16x1xf32>
      %173 = vector.broadcast %172 : vector<16x1xf32> to vector<16x32xf32>
      %174 = arith.mulf %168, %173 : vector<16x32xf32>
      %c1_109 = arith.constant 1 : index
      %c0_110 = arith.constant 0 : index
      %c0_111 = arith.constant 0 : index
      %175 = vector.load %arg13[%c1_109, %c0_110, %c0_111] : memref<4x16x32xf32, #tpu.memory_space<vmem>>, vector<1x16x32xf32>
      %176 = vector.shape_cast %175 : vector<1x16x32xf32> to vector<16x32xf32>
      %c1_112 = arith.constant 1 : index
      %c0_113 = arith.constant 0 : index
      %c0_114 = arith.constant 0 : index
      %177 = vector.load %arg12[%c1_112, %c0_113, %c0_114] : memref<4x16x1xf32, #tpu.memory_space<vmem>>, vector<1x16x1xf32>
      %178 = vector.shape_cast %177 : vector<1x16x1xf32> to vector<16x1xf32>
      %cst_115 = arith.constant 1.000000e+00 : f32
      %179 = vector.broadcast %cst_115 : f32 to vector<16x1xf32>
      %180 = arith.divf %179, %178 : vector<16x1xf32>
      %181 = vector.broadcast %180 : vector<16x1xf32> to vector<16x32xf32>
      %182 = arith.mulf %176, %181 : vector<16x32xf32>
      %c2_116 = arith.constant 2 : index
      %c0_117 = arith.constant 0 : index
      %c0_118 = arith.constant 0 : index
      %183 = vector.load %arg13[%c2_116, %c0_117, %c0_118] : memref<4x16x32xf32, #tpu.memory_space<vmem>>, vector<1x16x32xf32>
      %184 = vector.shape_cast %183 : vector<1x16x32xf32> to vector<16x32xf32>
      %c2_119 = arith.constant 2 : index
      %c0_120 = arith.constant 0 : index
      %c0_121 = arith.constant 0 : index
      %185 = vector.load %arg12[%c2_119, %c0_120, %c0_121] : memref<4x16x1xf32, #tpu.memory_space<vmem>>, vector<1x16x1xf32>
      %186 = vector.shape_cast %185 : vector<1x16x1xf32> to vector<16x1xf32>
      %cst_122 = arith.constant 1.000000e+00 : f32
      %187 = vector.broadcast %cst_122 : f32 to vector<16x1xf32>
      %188 = arith.divf %187, %186 : vector<16x1xf32>
      %189 = vector.broadcast %188 : vector<16x1xf32> to vector<16x32xf32>
      %190 = arith.mulf %184, %189 : vector<16x32xf32>
      %c3_123 = arith.constant 3 : index
      %c0_124 = arith.constant 0 : index
      %c0_125 = arith.constant 0 : index
      %191 = vector.load %arg13[%c3_123, %c0_124, %c0_125] : memref<4x16x32xf32, #tpu.memory_space<vmem>>, vector<1x16x32xf32>
      %192 = vector.shape_cast %191 : vector<1x16x32xf32> to vector<16x32xf32>
      %c3_126 = arith.constant 3 : index
      %c0_127 = arith.constant 0 : index
      %c0_128 = arith.constant 0 : index
      %193 = vector.load %arg12[%c3_126, %c0_127, %c0_128] : memref<4x16x1xf32, #tpu.memory_space<vmem>>, vector<1x16x1xf32>
      %194 = vector.shape_cast %193 : vector<1x16x1xf32> to vector<16x1xf32>
      %cst_129 = arith.constant 1.000000e+00 : f32
      %195 = vector.broadcast %cst_129 : f32 to vector<16x1xf32>
      %196 = arith.divf %195, %194 : vector<16x1xf32>
      %197 = vector.broadcast %196 : vector<16x1xf32> to vector<16x32xf32>
      %198 = arith.mulf %192, %197 : vector<16x32xf32>
      %199 = tpu.concatenate %174, %182, %190, %198 in 1 : vector<16x32xf32>, vector<16x32xf32>, vector<16x32xf32>, vector<16x32xf32> -> vector<16x128xf32>
      %c0_130 = arith.constant 0 : index
      %c0_131 = arith.constant 0 : index
      %c0_132 = arith.constant 0 : index
      %200 = vector.load %arg8[%c0_130, %c0_131, %c0_132] : memref<1x16x128xf32, #tpu.memory_space<vmem>>, vector<1x16x128xf32>
      %201 = vector.shape_cast %200 : vector<1x16x128xf32> to vector<16x128xf32>
      %202 = vector.shape_cast %199 : vector<16x128xf32> to vector<1x16x128xf32>
      tpu.vector_store %arg8[%c0_130, %c0_131, %c0_132], %202 {strides = array<i32>} : memref<1x16x128xf32, #tpu.memory_space<vmem>>, vector<1x16x128xf32>,
    } else {
    }
    return
  }
  func.func @transform_0(%arg0: i32, %arg1: i32) -> (i32, i32, i32) {
    %c0_i32 = arith.constant 0 : i32
    %c0_i32_0 = arith.constant 0 : i32
    %c0_i32_1 = arith.constant 0 : i32
    return %arg0, %c0_i32, %c0_i32_0 : i32, i32, i32
  }
  func.func @transform_1(%arg0: i32, %arg1: i32) -> (i32, i32, i32) {
    %c0_i32 = arith.constant 0 : i32
    %c0_i32_0 = arith.constant 0 : i32
    return %arg0, %arg1, %c0_i32 : i32, i32, i32
  }
  func.func @transform_2(%arg0: i32, %arg1: i32) -> (i32, i32) {
    %c0_i32 = arith.constant 0 : i32
    %c0_i32_0 = arith.constant 0 : i32
    %c0_i32_1 = arith.constant 0 : i32
    return %c0_i32, %c0_i32_0 : i32, i32
  }
  func.func @transform_3(%arg0: i32, %arg1: i32) -> (i32, i32) {
    %c0_i32 = arith.constant 0 : i32
    %c0_i32_0 = arith.constant 0 : i32
    %c0_i32_1 = arith.constant 0 : i32
    return %c0_i32, %c0_i32_0 : i32, i32
  }
  func.func @transform_4(%arg0: i32, %arg1: i32) -> (i32, i32) {
    %c0_i32 = arith.constant 0 : i32
    %c0_i32_0 = arith.constant 0 : i32
    %c0_i32_1 = arith.constant 0 : i32
    return %c0_i32, %c0_i32_0 : i32, i32
  }
  func.func @transform_5(%arg0: i32, %arg1: i32) -> (i32, i32) {
    %c0_i32 = arith.constant 0 : i32
    %c0_i32_0 = arith.constant 0 : i32
    %c0_i32_1 = arith.constant 0 : i32
    return %c0_i32, %c0_i32_0 : i32, i32
  }
  func.func @transform_6(%arg0: i32, %arg1: i32) -> (i32, i32, i32) {
    %c0_i32 = arith.constant 0 : i32
    %c0_i32_0 = arith.constant 0 : i32
    %c0_i32_1 = arith.constant 0 : i32
    return %arg0, %c0_i32, %c0_i32_0 : i32, i32, i32
  }
  func.func @transform_7(%arg0: i32, %arg1: i32) -> (i32, i32, i32) {
    %c0_i32 = arith.constant 0 : i32
    %c0_i32_0 = arith.constant 0 : i32
    return %arg0, %c0_i32, %arg1 : i32, i32, i32
  }
}

</mosaic_0001>

<llo_original>
// kernel: tpn_decoder.9
$region0: #{tpn_decoder.9}
  #allocation0 [shape = 'u32[]', space=smem, size = 0x4, offset = 0x4, fixed_abs, tag = 'smem constant byte address 0x4 - core index']
  #allocation1 [shape = 'u32[72,128]{1,0:T(1,128)}', space=vmem, size = 0x9000, scoped, tag = 'internal scratch']
  %s0 = inlined_call_operand.vmem [shape: f32[32,128], index: 0, kind: input, shape index: {}]
  %s1 = inlined_call_operand.vmem [shape: f32[1,128], index: 1, kind: input, shape index: {}]
  %s2 = inlined_call_operand.vmem [shape: f32[1,128], index: 2, kind: input, shape index: {}]
  %s3 = inlined_call_operand.vmem [shape: f32[32,128], index: 3, kind: output, shape index: {}]
  %s4 = sld [smem:[#allocation0]]
  $region45: #{tpn_decoder.9} parent=0
    _
  %s6 = ssub.s32 1, %s4
  %s7 = scalar_select 0, %s6, %s4
  loop: start=0, step=1, limit=4
  $region2: #{tpn_decoder.9} parent=0 // loop_pre_header
    _
  $region3: #{tpn_decoder.9} parent=0 // loop_header
    %s9 = sphi 0, %s13
    %p10 = scmp.ge.s32.totalorder %s9, 4
    %s19 = sphi 0, %s21
    %s22 = sphi 0, %s19
    %s23 = sphi 0, %s22
    %s39 = sphi 0, %s23
    %s43 = sphi 0, %s43
    %s45 = sphi 0, %s43
    %s46 = sphi 0, %s45
    %s60 = sphi 0, %s46
    %s64 = sphi 0, %s64
    %s66 = sphi 0, %s64
    %s67 = sphi 0, %s66
    %s81 = sphi 0, %s67
    %s87 = sphi 0, %s89
    %s90 = sphi 0, %s87
    %s91 = sphi 0, %s90
    %s107 = sphi 0, %s91
  $region4: #{tpn_decoder.9} parent=0 // loop_header_branch
    %12 = sbr.rel (%p10) target = $region8
  $region5: #{tpn_decoder.9} parent=0 // loop_body
    %s14 = ssub.s32 %s9, 1
    %s15 = ssub.s32 %s9, 2
    %s16 = sadd.s32 %s9, 1
    %s17 = ssub.s32 %s9, %s16
    %p18 = scmp.eq.s32.totalorder %s17, 0
    %s20 = sadd.s32 %s19, 1
    %s21 = scalar_select %p18, %s19, %s20
    %p24 = pneg %p18
    %p25 = scmp.eq.s32.totalorder %s9, 1
    %p26 = por %p24, %p25
    %p27 = scmp.ne.s32.totalorder %s19, %s22
    %p28 = scmp.eq.s32.totalorder %s9, 0
    %p29 = por %p27, %p28
    %p30 = scmp.ne.s32.totalorder %s19, %s22
    %p31 = scmp.eq.s32.totalorder %s14, 1
    %p32 = por %p30, %p31
    %p33 = scmp.ne.s32.totalorder %s22, %s23
    %p34 = scmp.eq.s32.totalorder %s14, 0
    %p35 = por %p33, %p34
    %p36 = scmp.ne.s32.totalorder %s22, %s23
    %p37 = scmp.eq.s32.totalorder %s15, 1
    %p38 = por %p36, %p37
    %p40 = scmp.ne.s32.totalorder %s23, %s39
    %p41 = scmp.eq.s32.totalorder %s15, 0
    %p42 = por %p40, %p41
    %s44 = sadd.s32 %s43, 1
    %p47 = scmp.eq.s32.totalorder %s9, 1
    %p48 = scmp.ne.s32.totalorder %s43, %s45
    %p49 = scmp.eq.s32.totalorder %s9, 0
    %p50 = por %p48, %p49
    %p51 = scmp.ne.s32.totalorder %s43, %s45
    %p52 = scmp.eq.s32.totalorder %s14, 1
    %p53 = por %p51, %p52
    %p54 = scmp.ne.s32.totalorder %s45, %s46
    %p55 = scmp.eq.s32.totalorder %s14, 0
    %p56 = por %p54, %p55
    %p57 = scmp.ne.s32.totalorder %s45, %s46
    %p58 = scmp.eq.s32.totalorder %s15, 1
    %p59 = por %p57, %p58
    %p61 = scmp.ne.s32.totalorder %s46, %s60
    %p62 = scmp.eq.s32.totalorder %s15, 0
    %p63 = por %p61, %p62
    %s65 = sadd.s32 %s64, 1
    %p68 = scmp.eq.s32.totalorder %s9, 1
    %p69 = scmp.ne.s32.totalorder %s64, %s66
    %p70 = scmp.eq.s32.totalorder %s9, 0
    %p71 = por %p69, %p70
    %p72 = scmp.ne.s32.totalorder %s64, %s66
    %p73 = scmp.eq.s32.totalorder %s14, 1
    %p74 = por %p72, %p73
    %p75 = scmp.ne.s32.totalorder %s66, %s67
    %p76 = scmp.eq.s32.totalorder %s14, 0
    %p77 = por %p75, %p76
    %p78 = scmp.ne.s32.totalorder %s66, %s67
    %p79 = scmp.eq.s32.totalorder %s15, 1
    %p80 = por %p78, %p79
    %p82 = scmp.ne.s32.totalorder %s67, %s81
    %p83 = scmp.eq.s32.totalorder %s15, 0
    %p84 = por %p82, %p83
    %s85 = ssub.s32 %s9, %s16
    %p86 = scmp.eq.s32.totalorder %s85, 0
    %s88 = sadd.s32 %s87, 1
    %s89 = scalar_select %p86, %s87, %s88
    %p92 = pneg %p86
    %p93 = scmp.eq.s32.totalorder %s9, 1
    %p94 = por %p92, %p93
    %p95 = scmp.ne.s32.totalorder %s87, %s90
    %p96 = scmp.eq.s32.totalorder %s9, 0
    %p97 = por %p95, %p96
    %p98 = scmp.ne.s32.totalorder %s87, %s90
    %p99 = scmp.eq.s32.totalorder %s14, 1
    %p100 = por %p98, %p99
    %p101 = scmp.ne.s32.totalorder %s90, %s91
    %p102 = scmp.eq.s32.totalorder %s14, 0
    %p103 = por %p101, %p102
    %p104 = scmp.ne.s32.totalorder %s90, %s91
    %p105 = scmp.eq.s32.totalorder %s15, 1
    %p106 = por %p104, %p105
    %p108 = scmp.ne.s32.totalorder %s91, %s107
    %p109 = scmp.eq.s32.totalorder %s15, 0
    %p110 = por %p108, %p109
    %p111 = scmp.le.s32.totalorder 1, %s9
    %p112 = scmp.lt.s32.totalorder %s9, 3
    %p113 = pnand %p111, %p112
    %p114 = pneg %p113
    // Predicated region
    $region9: #{tpn_decoder.9} parent=5 // pred_check
      _
    $region10: #{tpn_decoder.9} parent=5 // pred_check_branch
      %116 = sbr.rel (%p113) target = $region12
    $region11: #{tpn_decoder.9} parent=5 // pred_region
      %s117 = ssub.s32 %s9, 1
      // Predicated region
      $region13: #{tpn_decoder.9} parent=11 // pred_check
        %p118 = pneg %p56
      $region14: #{tpn_decoder.9} parent=11 // pred_check_branch
        %120 = sbr.rel (%p118) target = $region16
      $region15: #{tpn_decoder.9} parent=11 // pred_region
        _
      $region16: #{tpn_decoder.9} parent=11 // pred_fallthru
        _
      // Predicated region
      $region17: #{tpn_decoder.9} parent=11 // pred_check
        %p121 = pneg %p77
      $region18: #{tpn_decoder.9} parent=11 // pred_check_branch
        %123 = sbr.rel (%p121) target = $region20
      $region19: #{tpn_decoder.9} parent=11 // pred_region
        _
      $region20: #{tpn_decoder.9} parent=11 // pred_fallthru
        _
    $region12: #{tpn_decoder.9} parent=5 // pred_fallthru
      _
    %p124 = scmp.lt.s32.totalorder %s9, 2
    // Predicated region
    $region21: #{tpn_decoder.9} parent=5 // pred_check
      %p125 = pneg %p124
    $region22: #{tpn_decoder.9} parent=5 // pred_check_branch
      %127 = sbr.rel (%p125) target = $region24
    $region23: #{tpn_decoder.9} parent=5 // pred_region
      // Predicated region
      $region25: #{tpn_decoder.9} parent=23 // pred_check
        %p128 = pneg %p29
      $region26: #{tpn_decoder.9} parent=23 // pred_check_branch
        %130 = sbr.rel (%p128) target = $region28
      $region27: #{tpn_decoder.9} parent=23 // pred_region
        %s131 = smul.u32 2, %s9
        %p132 = scmp.lt.s32.totalorder %s131, 3
        %s133 = scalar_select %p132, %s131, 3
        %s134 = smul.addr %s133, 8
        %s135 = scalar_lea.vmem %s0, %s134
        %s136 = smul.u32 2, %s9
      $region28: #{tpn_decoder.9} parent=23 // pred_fallthru
        _
    $region24: #{tpn_decoder.9} parent=5 // pred_fallthru
      _
    %p137 = scmp.le.s32.totalorder 1, %s9
    %p138 = scmp.lt.s32.totalorder %s9, 3
    %p139 = pnand %p137, %p138
    %p140 = pneg %p139
    // Predicated region
    $region29: #{tpn_decoder.9} parent=5 // pred_check
      _
    $region30: #{tpn_decoder.9} parent=5 // pred_check_branch
      %142 = sbr.rel (%p139) target = $region32
    $region31: #{tpn_decoder.9} parent=5 // pred_region
      %s143 = ssub.s32 %s9, 1
      %s144 = smul.u32 2, %s14
      %p145 = scmp.lt.s32.totalorder %s144, 3
      %s146 = scalar_select %p145, %s144, 3
      %s147 = smul.addr %s146, 8
      %s148 = scalar_lea.vmem %s0, %s147
      %p149 = pneg %p35
      %p150 = pneg %p32
      %p151 = pneg %p56
      %p152 = pneg %p53
      %p153 = pneg %p77
      %p154 = pneg %p74
      %p155 = pneg %p103
      %p156 = pneg %p100
      %s157 = smul.u32 2, %s14
      %p158 = scmp.lt.s32.totalorder %s157, 3
      %s159 = scalar_select %p158, %s157, 3
      %s160 = smul.addr %s159, 8
      %s161 = scalar_lea.vmem %s3, %s160
      %s162 = smul.u32 2, %s14
      %p163 = scmp.lt.s32.totalorder %s162, 3
      %s164 = scalar_select %p163, %s162, 3
      %s165 = smul.addr %s164, 8
      %s166 = scalar_lea.vmem %s0, %s165
      %s167 = smul.u32 2, %s14
      %s168 = smul.u32 2, %s14
      %p169 = scmp.lt.s32.totalorder %s168, 3
      %s170 = scalar_select %p169, %s168, 3
      %s171 = smul.addr %s170, 8
      %s172 = scalar_lea.vmem %s3, %s171
      %s173 = smul.u32 2, %s14
      %v174 = vld [vmem:[%s166] sm:$0xff]
      %v175 = vld [vmem:[%s166 + $0x8] sm:$0xff]
      %176 = vadd.xlane.f32.xlu0 %v174
      %v177 = vpop.xlane.xlu0 %176
      %178 = vadd.xlane.f32.xlu0 %v175
      %v179 = vpop.xlane.xlu0 %178
      %v180 = vrcp.pop 128.0
      %v181 = vmul.f32 128.0, %v180
      %v182 = vsub.f32 1.0, %v181
      %v183 = vmul.f32 %v180, %v182
      %v184 = vadd.f32 %v180, %v183
      %vm185 = vweird.f32 %v180
      %v186 = vsel %vm185, %v180, %v184
      %v187 = vmul.f32 %v177, %v186
      %v188 = vmul.f32 %v179, %v186
      %v189 = vsub.f32 %v174, %v187
      %v190 = vsub.f32 %v175, %v188
      %v191 = vmul.f32 %v189, %v189
      %v192 = vmul.f32 %v190, %v190
      %193 = vadd.xlane.f32.xlu0 %v191
      %v194 = vpop.xlane.xlu0 %193
      %195 = vadd.xlane.f32.xlu0 %v192
      %v196 = vpop.xlane.xlu0 %195
      %v197 = vmul.f32 %v194, %v186
      %v198 = vmul.f32 %v196, %v186
      %v199 = vadd.f32 %v197, 1e-05
      %v200 = vadd.f32 %v198, 1e-05
      %v201 = vrsqrt.pop %v199
      %v202 = vmul.f32 %v201, %v199
      %v203 = vmul.f32 %v202, %v201
      %v204 = vmul.f32 0.5, %v203
      %v205 = vsub.f32 1.5, %v204
      %v206 = vmul.f32 %v201, %v205
      %vm207 = vweird.f32 %v199
      %vm208 = vweird.f32 %v201
      %vm209 = vmor %vm207, %vm208
      %v210 = vsel %vm209, %v201, %v206
      %v211 = vrsqrt.pop %v200
      %v212 = vmul.f32 %v211, %v200
      %v213 = vmul.f32 %v212, %v211
      %v214 = vmul.f32 0.5, %v213
      %v215 = vsub.f32 1.5, %v214
      %v216 = vmul.f32 %v211, %v215
      %vm217 = vweird.f32 %v200
      %vm218 = vweird.f32 %v211
      %vm219 = vmor %vm217, %vm218
      %v220 = vsel %vm219, %v211, %v216
      %v221 = vmul.f32 %v189, %v210
      %v222 = vmul.f32 %v190, %v220
      %v223 = vld [vmem:[%s1] sm:$0x1]
      %v225 = vperm.slane %v223, 0
      %v227 = vmul.f32 %v221, %v225
      %v228 = vmul.f32 %v222, %v225
      %v229 = vld [vmem:[%s2] sm:$0x1]
      %v231 = vperm.slane %v229, 0
      %v233 = vadd.f32 %v227, %v231
      %v234 = vadd.f32 %v228, %v231
      %235 = vst [vmem:[%s172] sm:$0xff] %v233
      %236 = vst [vmem:[%s172 + $0x8] sm:$0xff] %v234
      %s237 = smul.u32 2, %s14
      %p238 = scmp.lt.s32.totalorder %s237, 3
      %s239 = scalar_select %p238, %s237, 3
      %s240 = smul.addr %s239, 8
      %s241 = scalar_lea.vmem %s3, %s240
      // Predicated region
      $region33: #{tpn_decoder.9} parent=31 // pred_check
        %p242 = pneg %p100
      $region34: #{tpn_decoder.9} parent=31 // pred_check_branch
        %244 = sbr.rel (%p242) target = $region36
      $region35: #{tpn_decoder.9} parent=31 // pred_region
        %s245 = smul.u32 2, %s14
      $region36: #{tpn_decoder.9} parent=31 // pred_fallthru
        _
    $region32: #{tpn_decoder.9} parent=5 // pred_fallthru
      _
    %p246 = scmp.le.s32.totalorder 2, %s9
    // Predicated region
    $region37: #{tpn_decoder.9} parent=5 // pred_check
      %p247 = pneg %p246
    $region38: #{tpn_decoder.9} parent=5 // pred_check_branch
      %249 = sbr.rel (%p247) target = $region40
    $region39: #{tpn_decoder.9} parent=5 // pred_region
      %s250 = ssub.s32 %s9, 2
      // Predicated region
      $region41: #{tpn_decoder.9} parent=39 // pred_check
        %p251 = pneg %p106
      $region42: #{tpn_decoder.9} parent=39 // pred_check_branch
        %253 = sbr.rel (%p251) target = $region44
      $region43: #{tpn_decoder.9} parent=39 // pred_region
        %s254 = smul.u32 2, %s15
        %p255 = scmp.lt.s32.totalorder %s254, 3
        %s256 = scalar_select %p255, %s254, 3
        %s257 = smul.addr %s256, 8
        %s258 = scalar_lea.vmem %s3, %s257
      $region44: #{tpn_decoder.9} parent=39 // pred_fallthru
        _
    $region40: #{tpn_decoder.9} parent=5 // pred_fallthru
      _
  $region6: #{tpn_decoder.9} parent=0 // loop_footer
    %s13 = sadd.s32 1, %s9
  $region7: #{tpn_decoder.9} parent=0 // loop_footer_branch
    %8 = sbr.rel target = $region3
  $region8: #{tpn_decoder.9} parent=0 // loop_exit
    _

// kernel: tpn_decoder.6
$region0: #{tpn_decoder.6}
  #allocation0 [shape = 'u32[]', space=smem, size = 0x4, offset = 0x4, fixed_abs, tag = 'smem constant byte address 0x4 - core index']
  #allocation1 [shape = 'u32[72,128]{1,0:T(1,128)}', space=vmem, size = 0x9000, scoped, tag = 'internal scratch']
  %s0 = inlined_call_operand.vmem [shape: f32[32,128], index: 0, kind: input, shape index: {}]
  %s1 = inlined_call_operand.vmem [shape: f32[32,128], index: 1, kind: input, shape index: {}]
  %s2 = inlined_call_operand.vmem [shape: bf16[128,128], index: 2, kind: input, shape index: {}]
  %s3 = inlined_call_operand.vmem [shape: f32[6,128], index: 3, kind: input, shape index: {}]
  %s4 = inlined_call_operand.vmem [shape: bf16[128,256], index: 4, kind: input, shape index: {}]
  %s5 = inlined_call_operand.vmem [shape: f32[1,256], index: 5, kind: input, shape index: {}]
  %s6 = inlined_call_operand.vmem [shape: bf16[256,128], index: 6, kind: input, shape index: {}]
  %s7 = inlined_call_operand.vmem [shape: f32[32,128], index: 7, kind: output, shape index: {}]
  %s8 = sld [smem:[#allocation0]]
  $region61: #{tpn_decoder.6} parent=0
    _
  %s10 = ssub.s32 1, %s8
  %s11 = scalar_select 0, %s10, %s8
  loop: start=0, step=1, limit=4
  $region2: #{tpn_decoder.6} parent=0 // loop_pre_header
    _
  $region3: #{tpn_decoder.6} parent=0 // loop_header
    %s13 = sphi 0, %s17
    %p14 = scmp.ge.s32.totalorder %s13, 4
    %s23 = sphi 0, %s25
    %s26 = sphi 0, %s23
    %s27 = sphi 0, %s26
    %s43 = sphi 0, %s27
    %s49 = sphi 0, %s51
    %s52 = sphi 0, %s49
    %s53 = sphi 0, %s52
    %s69 = sphi 0, %s53
    %s73 = sphi 0, %s73
    %s75 = sphi 0, %s73
    %s76 = sphi 0, %s75
    %s90 = sphi 0, %s76
    %s94 = sphi 0, %s94
    %s96 = sphi 0, %s94
    %s97 = sphi 0, %s96
    %s111 = sphi 0, %s97
    %s115 = sphi 0, %s115
    %s117 = sphi 0, %s115
    %s118 = sphi 0, %s117
    %s132 = sphi 0, %s118
    %s136 = sphi 0, %s136
    %s138 = sphi 0, %s136
    %s139 = sphi 0, %s138
    %s153 = sphi 0, %s139
    %s157 = sphi 0, %s157
    %s159 = sphi 0, %s157
    %s160 = sphi 0, %s159
    %s174 = sphi 0, %s160
    %s180 = sphi 0, %s182
    %s183 = sphi 0, %s180
    %s184 = sphi 0, %s183
    %s200 = sphi 0, %s184
  $region4: #{tpn_decoder.6} parent=0 // loop_header_branch
    %16 = sbr.rel (%p14) target = $region8
  $region5: #{tpn_decoder.6} parent=0 // loop_body
    %s18 = ssub.s32 %s13, 1
    %s19 = ssub.s32 %s13, 2
    %s20 = sadd.s32 %s13, 1
    %s21 = ssub.s32 %s13, %s20
    %p22 = scmp.eq.s32.totalorder %s21, 0
    %s24 = sadd.s32 %s23, 1
    %s25 = scalar_select %p22, %s23, %s24
    %p28 = pneg %p22
    %p29 = scmp.eq.s32.totalorder %s13, 1
    %p30 = por %p28, %p29
    %p31 = scmp.ne.s32.totalorder %s23, %s26
    %p32 = scmp.eq.s32.totalorder %s13, 0
    %p33 = por %p31, %p32
    %p34 = scmp.ne.s32.totalorder %s23, %s26
    %p35 = scmp.eq.s32.totalorder %s18, 1
    %p36 = por %p34, %p35
    %p37 = scmp.ne.s32.totalorder %s26, %s27
    %p38 = scmp.eq.s32.totalorder %s18, 0
    %p39 = por %p37, %p38
    %p40 = scmp.ne.s32.totalorder %s26, %s27
    %p41 = scmp.eq.s32.totalorder %s19, 1
    %p42 = por %p40, %p41
    %p44 = scmp.ne.s32.totalorder %s27, %s43
    %p45 = scmp.eq.s32.totalorder %s19, 0
    %p46 = por %p44, %p45
    %s47 = ssub.s32 %s13, %s20
    %p48 = scmp.eq.s32.totalorder %s47, 0
    %s50 = sadd.s32 %s49, 1
    %s51 = scalar_select %p48, %s49, %s50
    %p54 = pneg %p48
    %p55 = scmp.eq.s32.totalorder %s13, 1
    %p56 = por %p54, %p55
    %p57 = scmp.ne.s32.totalorder %s49, %s52
    %p58 = scmp.eq.s32.totalorder %s13, 0
    %p59 = por %p57, %p58
    %p60 = scmp.ne.s32.totalorder %s49, %s52
    %p61 = scmp.eq.s32.totalorder %s18, 1
    %p62 = por %p60, %p61
    %p63 = scmp.ne.s32.totalorder %s52, %s53
    %p64 = scmp.eq.s32.totalorder %s18, 0
    %p65 = por %p63, %p64
    %p66 = scmp.ne.s32.totalorder %s52, %s53
    %p67 = scmp.eq.s32.totalorder %s19, 1
    %p68 = por %p66, %p67
    %p70 = scmp.ne.s32.totalorder %s53, %s69
    %p71 = scmp.eq.s32.totalorder %s19, 0
    %p72 = por %p70, %p71
    %s74 = sadd.s32 %s73, 1
    %p77 = scmp.eq.s32.totalorder %s13, 1
    %p78 = scmp.ne.s32.totalorder %s73, %s75
    %p79 = scmp.eq.s32.totalorder %s13, 0
    %p80 = por %p78, %p79
    %p81 = scmp.ne.s32.totalorder %s73, %s75
    %p82 = scmp.eq.s32.totalorder %s18, 1
    %p83 = por %p81, %p82
    %p84 = scmp.ne.s32.totalorder %s75, %s76
    %p85 = scmp.eq.s32.totalorder %s18, 0
    %p86 = por %p84, %p85
    %p87 = scmp.ne.s32.totalorder %s75, %s76
    %p88 = scmp.eq.s32.totalorder %s19, 1
    %p89 = por %p87, %p88
    %p91 = scmp.ne.s32.totalorder %s76, %s90
    %p92 = scmp.eq.s32.totalorder %s19, 0
    %p93 = por %p91, %p92
    %s95 = sadd.s32 %s94, 1
    %p98 = scmp.eq.s32.totalorder %s13, 1
    %p99 = scmp.ne.s32.totalorder %s94, %s96
    %p100 = scmp.eq.s32.totalorder %s13, 0
    %p101 = por %p99, %p100
    %p102 = scmp.ne.s32.totalorder %s94, %s96
    %p103 = scmp.eq.s32.totalorder %s18, 1
    %p104 = por %p102, %p103
    %p105 = scmp.ne.s32.totalorder %s96, %s97
    %p106 = scmp.eq.s32.totalorder %s18, 0
    %p107 = por %p105, %p106
    %p108 = scmp.ne.s32.totalorder %s96, %s97
    %p109 = scmp.eq.s32.totalorder %s19, 1
    %p110 = por %p108, %p109
    %p112 = scmp.ne.s32.totalorder %s97, %s111
    %p113 = scmp.eq.s32.totalorder %s19, 0
    %p114 = por %p112, %p113
    %s116 = sadd.s32 %s115, 1
    %p119 = scmp.eq.s32.totalorder %s13, 1
    %p120 = scmp.ne.s32.totalorder %s115, %s117
    %p121 = scmp.eq.s32.totalorder %s13, 0
    %p122 = por %p120, %p121
    %p123 = scmp.ne.s32.totalorder %s115, %s117
    %p124 = scmp.eq.s32.totalorder %s18, 1
    %p125 = por %p123, %p124
    %p126 = scmp.ne.s32.totalorder %s117, %s118
    %p127 = scmp.eq.s32.totalorder %s18, 0
    %p128 = por %p126, %p127
    %p129 = scmp.ne.s32.totalorder %s117, %s118
    %p130 = scmp.eq.s32.totalorder %s19, 1
    %p131 = por %p129, %p130
    %p133 = scmp.ne.s32.totalorder %s118, %s132
    %p134 = scmp.eq.s32.totalorder %s19, 0
    %p135 = por %p133, %p134
    %s137 = sadd.s32 %s136, 1
    %p140 = scmp.eq.s32.totalorder %s13, 1
    %p141 = scmp.ne.s32.totalorder %s136, %s138
    %p142 = scmp.eq.s32.totalorder %s13, 0
    %p143 = por %p141, %p142
    %p144 = scmp.ne.s32.totalorder %s136, %s138
    %p145 = scmp.eq.s32.totalorder %s18, 1
    %p146 = por %p144, %p145
    %p147 = scmp.ne.s32.totalorder %s138, %s139
    %p148 = scmp.eq.s32.totalorder %s18, 0
    %p149 = por %p147, %p148
    %p150 = scmp.ne.s32.totalorder %s138, %s139
    %p151 = scmp.eq.s32.totalorder %s19, 1
    %p152 = por %p150, %p151
    %p154 = scmp.ne.s32.totalorder %s139, %s153
    %p155 = scmp.eq.s32.totalorder %s19, 0
    %p156 = por %p154, %p155
    %s158 = sadd.s32 %s157, 1
    %p161 = scmp.eq.s32.totalorder %s13, 1
    %p162 = scmp.ne.s32.totalorder %s157, %s159
    %p163 = scmp.eq.s32.totalorder %s13, 0
    %p164 = por %p162, %p163
    %p165 = scmp.ne.s32.totalorder %s157, %s159
    %p166 = scmp.eq.s32.totalorder %s18, 1
    %p167 = por %p165, %p166
    %p168 = scmp.ne.s32.totalorder %s159, %s160
    %p169 = scmp.eq.s32.totalorder %s18, 0
    %p170 = por %p168, %p169
    %p171 = scmp.ne.s32.totalorder %s159, %s160
    %p172 = scmp.eq.s32.totalorder %s19, 1
    %p173 = por %p171, %p172
    %p175 = scmp.ne.s32.totalorder %s160, %s174
    %p176 = scmp.eq.s32.totalorder %s19, 0
    %p177 = por %p175, %p176
    %s178 = ssub.s32 %s13, %s20
    %p179 = scmp.eq.s32.totalorder %s178, 0
    %s181 = sadd.s32 %s180, 1
    %s182 = scalar_select %p179, %s180, %s181
    %p185 = pneg %p179
    %p186 = scmp.eq.s32.totalorder %s13, 1
    %p187 = por %p185, %p186
    %p188 = scmp.ne.s32.totalorder %s180, %s183
    %p189 = scmp.eq.s32.totalorder %s13, 0
    %p190 = por %p188, %p189
    %p191 = scmp.ne.s32.totalorder %s180, %s183
    %p192 = scmp.eq.s32.totalorder %s18, 1
    %p193 = por %p191, %p192
    %p194 = scmp.ne.s32.totalorder %s183, %s184
    %p195 = scmp.eq.s32.totalorder %s18, 0
    %p196 = por %p194, %p195
    %p197 = scmp.ne.s32.totalorder %s183, %s184
    %p198 = scmp.eq.s32.totalorder %s19, 1
    %p199 = por %p197, %p198
    %p201 = scmp.ne.s32.totalorder %s184, %s200
    %p202 = scmp.eq.s32.totalorder %s19, 0
    %p203 = por %p201, %p202
    %p204 = scmp.le.s32.totalorder 1, %s13
    %p205 = scmp.lt.s32.totalorder %s13, 3
    %p206 = pnand %p204, %p205
    %p207 = pneg %p206
    // Predicated region
    $region9: #{tpn_decoder.6} parent=5 // pred_check
      _
    $region10: #{tpn_decoder.6} parent=5 // pred_check_branch
      %209 = sbr.rel (%p206) target = $region12
    $region11: #{tpn_decoder.6} parent=5 // pred_region
      %s210 = ssub.s32 %s13, 1
      // Predicated region
      $region13: #{tpn_decoder.6} parent=11 // pred_check
        %p211 = pneg %p86
      $region14: #{tpn_decoder.6} parent=11 // pred_check_branch
        %213 = sbr.rel (%p211) target = $region16
      $region15: #{tpn_decoder.6} parent=11 // pred_region
        _
      $region16: #{tpn_decoder.6} parent=11 // pred_fallthru
        _
      // Predicated region
      $region17: #{tpn_decoder.6} parent=11 // pred_check
        %p214 = pneg %p107
      $region18: #{tpn_decoder.6} parent=11 // pred_check_branch
        %216 = sbr.rel (%p214) target = $region20
      $region19: #{tpn_decoder.6} parent=11 // pred_region
        _
      $region20: #{tpn_decoder.6} parent=11 // pred_fallthru
        _
      // Predicated region
      $region21: #{tpn_decoder.6} parent=11 // pred_check
        %p217 = pneg %p128
      $region22: #{tpn_decoder.6} parent=11 // pred_check_branch
        %219 = sbr.rel (%p217) target = $region24
      $region23: #{tpn_decoder.6} parent=11 // pred_region
        _
      $region24: #{tpn_decoder.6} parent=11 // pred_fallthru
        _
      // Predicated region
      $region25: #{tpn_decoder.6} parent=11 // pred_check
        %p220 = pneg %p149
      $region26: #{tpn_decoder.6} parent=11 // pred_check_branch
        %222 = sbr.rel (%p220) target = $region28
      $region27: #{tpn_decoder.6} parent=11 // pred_region
        _
      $region28: #{tpn_decoder.6} parent=11 // pred_fallthru
        _
      // Predicated region
      $region29: #{tpn_decoder.6} parent=11 // pred_check
        %p223 = pneg %p170
      $region30: #{tpn_decoder.6} parent=11 // pred_check_branch
        %225 = sbr.rel (%p223) target = $region32
      $region31: #{tpn_decoder.6} parent=11 // pred_region
        _
      $region32: #{tpn_decoder.6} parent=11 // pred_fallthru
        _
    $region12: #{tpn_decoder.6} parent=5 // pred_fallthru
      _
    %p226 = scmp.lt.s32.totalorder %s13, 2
    // Predicated region
    $region33: #{tpn_decoder.6} parent=5 // pred_check
      %p227 = pneg %p226
    $region34: #{tpn_decoder.6} parent=5 // pred_check_branch
      %229 = sbr.rel (%p227) target = $region36
    $region35: #{tpn_decoder.6} parent=5 // pred_region
      // Predicated region
      $region37: #{tpn_decoder.6} parent=35 // pred_check
        %p230 = pneg %p33
      $region38: #{tpn_decoder.6} parent=35 // pred_check_branch
        %232 = sbr.rel (%p230) target = $region40
      $region39: #{tpn_decoder.6} parent=35 // pred_region
        %s233 = smul.u32 2, %s13
        %p234 = scmp.lt.s32.totalorder %s233, 3
        %s235 = scalar_select %p234, %s233, 3
        %s236 = smul.addr %s235, 8
        %s237 = scalar_lea.vmem %s0, %s236
        %s238 = smul.u32 2, %s13
      $region40: #{tpn_decoder.6} parent=35 // pred_fallthru
        _
      // Predicated region
      $region41: #{tpn_decoder.6} parent=35 // pred_check
        %p239 = pneg %p59
      $region42: #{tpn_decoder.6} parent=35 // pred_check_branch
        %241 = sbr.rel (%p239) target = $region44
      $region43: #{tpn_decoder.6} parent=35 // pred_region
        %s242 = smul.u32 2, %s13
        %p243 = scmp.lt.s32.totalorder %s242, 3
        %s244 = scalar_select %p243, %s242, 3
        %s245 = smul.addr %s244, 8
        %s246 = scalar_lea.vmem %s1, %s245
        %s247 = smul.u32 2, %s13
      $region44: #{tpn_decoder.6} parent=35 // pred_fallthru
        _
    $region36: #{tpn_decoder.6} parent=5 // pred_fallthru
      _
    %p248 = scmp.le.s32.totalorder 1, %s13
    %p249 = scmp.lt.s32.totalorder %s13, 3
    %p250 = pnand %p248, %p249
    %p251 = pneg %p250
    // Predicated region
    $region45: #{tpn_decoder.6} parent=5 // pred_check
      _
    $region46: #{tpn_decoder.6} parent=5 // pred_check_branch
      %253 = sbr.rel (%p250) target = $region48
    $region47: #{tpn_decoder.6} parent=5 // pred_region
      %s254 = ssub.s32 %s13, 1
      %s255 = smul.u32 2, %s18
      %p256 = scmp.lt.s32.totalorder %s255, 3
      %s257 = scalar_select %p256, %s255, 3
      %s258 = smul.addr %s257, 8
      %s259 = scalar_lea.vmem %s0, %s258
      %p260 = pneg %p39
      %p261 = pneg %p36
      %s262 = smul.u32 2, %s18
      %p263 = scmp.lt.s32.totalorder %s262, 3
      %s264 = scalar_select %p263, %s262, 3
      %s265 = smul.addr %s264, 8
      %s266 = scalar_lea.vmem %s1, %s265
      %p267 = pneg %p65
      %p268 = pneg %p62
      %p269 = pneg %p86
      %p270 = pneg %p83
      %p271 = pneg %p107
      %p272 = pneg %p104
      %p273 = pneg %p128
      %p274 = pneg %p125
      %p275 = pneg %p149
      %p276 = pneg %p146
      %p277 = pneg %p170
      %p278 = pneg %p167
      %p279 = pneg %p196
      %p280 = pneg %p193
      %s281 = smul.u32 2, %s18
      %p282 = scmp.lt.s32.totalorder %s281, 3
      %s283 = scalar_select %p282, %s281, 3
      %s284 = smul.addr %s283, 8
      %s285 = scalar_lea.vmem %s7, %s284
      %s286 = smul.u32 2, %s18
      %p287 = scmp.lt.s32.totalorder %s286, 3
      %s288 = scalar_select %p287, %s286, 3
      %s289 = smul.addr %s288, 8
      %s290 = scalar_lea.vmem %s0, %s289
      %s291 = smul.u32 2, %s18
      %s292 = smul.u32 2, %s18
      %p293 = scmp.lt.s32.totalorder %s292, 3
      %s294 = scalar_select %p293, %s292, 3
      %s295 = smul.addr %s294, 8
      %s296 = scalar_lea.vmem %s1, %s295
      %s297 = smul.u32 2, %s18
      %s298 = smul.u32 2, %s18
      %p299 = scmp.lt.s32.totalorder %s298, 3
      %s300 = scalar_select %p299, %s298, 3
      %s301 = smul.addr %s300, 8
      %s302 = scalar_lea.vmem %s7, %s301
      %s303 = smul.u32 2, %s18
      %v304 = vld [vmem:[%s3] sm:$0x1]
      %v305 = vld [vmem:[%s3 + $0x1] sm:$0x1]
      %v306 = vld [vmem:[%s3 + $0x2] sm:$0x1]
      %v307 = vld [vmem:[%s3 + $0x3] sm:$0x1]
      %v308 = vld [vmem:[%s3 + $0x4] sm:$0x1]
      %v309 = vld [vmem:[%s3 + $0x5] sm:$0x1]
      %v310 = vld [vmem:[%s290] sm:$0xff]
      %v311 = vld [vmem:[%s290 + $0x8] sm:$0xff]
      %v312 = vpack.c.bf16 %v311, %v310
      %v313 = vld [vmem:[%s2] sm:$0xf]
      %v314 = vld [vmem:[%s2 + $0x4] sm:$0xf]
      %v315 = vld [vmem:[%s2 + $0x8] sm:$0xf]
      %v316 = vld [vmem:[%s2 + $0xc] sm:$0xf]
      %v317 = vld [vmem:[%s2 + $0x10] sm:$0xf]
      %v318 = vld [vmem:[%s2 + $0x14] sm:$0xf]
      %v319 = vld [vmem:[%s2 + $0x18] sm:$0xf]
      %v320 = vld [vmem:[%s2 + $0x1c] sm:$0xf]
      %v321 = vld [vmem:[%s2 + $0x20] sm:$0xf]
      %v322 = vld [vmem:[%s2 + $0x24] sm:$0xf]
      %v323 = vld [vmem:[%s2 + $0x28] sm:$0xf]
      %v324 = vld [vmem:[%s2 + $0x2c] sm:$0xf]
      %v325 = vld [vmem:[%s2 + $0x30] sm:$0xf]
      %v326 = vld [vmem:[%s2 + $0x34] sm:$0xf]
      %v327 = vld [vmem:[%s2 + $0x38] sm:$0xf]
      %v328 = vld [vmem:[%s2 + $0x3c] sm:$0xf]
      %v329 = vperm.slane %v304, 0
      %v346 = vunpack.c.l.b16 %v313
      %v347 = vunpack.c.l.b16 %v314
      %v348 = vunpack.c.l.b16 %v315
      %v349 = vunpack.c.l.b16 %v316
      %v350 = vunpack.c.l.b16 %v317
      %v351 = vunpack.c.l.b16 %v318
      %v352 = vunpack.c.l.b16 %v319
      %v353 = vunpack.c.l.b16 %v320
      %v354 = vunpack.c.l.b16 %v321
      %v355 = vunpack.c.l.b16 %v322
      %v356 = vunpack.c.l.b16 %v323
      %v357 = vunpack.c.l.b16 %v324
      %v358 = vunpack.c.l.b16 %v325
      %v359 = vunpack.c.l.b16 %v326
      %v360 = vunpack.c.l.b16 %v327
      %v361 = vunpack.c.l.b16 %v328
      %v362 = vpack.c.b16 %v347, %v346
      %v363 = vpack.c.b16 %v349, %v348
      %v364 = vpack.c.b16 %v351, %v350
      %v365 = vpack.c.b16 %v353, %v352
      %v366 = vpack.c.b16 %v355, %v354
      %v367 = vpack.c.b16 %v357, %v356
      %v368 = vpack.c.b16 %v359, %v358
      %v369 = vpack.c.b16 %v361, %v360
      %378 = vmatpush.bf16.msra.mxu0 %v369
      %379 = vmatpush.bf16.msra.mxu0 %v368
      %380 = vmatpush.bf16.msra.mxu0 %v367
      %381 = vmatpush.bf16.msra.mxu0 %v366
      %382 = vmatpush.bf16.msra.mxu0 %v365
      %383 = vmatpush.bf16.msra.mxu0 %v364
      %384 = vmatpush.bf16.msra.mxu0 %v363
      %385 = vmatpush.bf16.msra.mxu0 %v362
      %386 = vmatmul.bf16.gmra.mxu0 %v312
      %v387 = vpop.f32.mrf.mxu0
      %v388 = vadd.f32 %v329, %v387
      %v389 = vpop.f32.mrf.mxu0
      %v390 = vadd.f32 %v329, %v389
      %391 = vdwg.mxu0
      %v392 = vld [vmem:[%s296] sm:$0xff]
      %v393 = vld [vmem:[%s296 + $0x8] sm:$0xff]
      %v394 = vadd.f32 %v388, %v392
      %v395 = vadd.f32 %v390, %v393
      %396 = vadd.xlane.f32.xlu0 %v394
      %v397 = vpop.xlane.xlu0 %396
      %398 = vadd.xlane.f32.xlu0 %v395
      %v399 = vpop.xlane.xlu0 %398
      %v400 = vrcp.pop 128.0
      %v401 = vmul.f32 128.0, %v400
      %v402 = vsub.f32 1.0, %v401
      %v403 = vmul.f32 %v400, %v402
      %v404 = vadd.f32 %v400, %v403
      %vm405 = vweird.f32 %v400
      %v406 = vsel %vm405, %v400, %v404
      %v407 = vmul.f32 %v397, %v406
      %v408 = vmul.f32 %v399, %v406
      %v409 = vsub.f32 %v394, %v407
      %v410 = vsub.f32 %v395, %v408
      %v411 = vmul.f32 %v409, %v409
      %v412 = vmul.f32 %v410, %v410
      %413 = vadd.xlane.f32.xlu0 %v411
      %v414 = vpop.xlane.xlu0 %413
      %415 = vadd.xlane.f32.xlu0 %v412
      %v416 = vpop.xlane.xlu0 %415
      %v417 = vmul.f32 %v414, %v406
      %v418 = vmul.f32 %v416, %v406
      %v419 = vadd.f32 %v417, 1e-05
      %v420 = vadd.f32 %v418, 1e-05
      %v421 = vrsqrt.pop %v419
      %v422 = vmul.f32 %v421, %v419
      %v423 = vmul.f32 %v422, %v421
      %v424 = vmul.f32 0.5, %v423
      %v425 = vsub.f32 1.5, %v424
      %v426 = vmul.f32 %v421, %v425
      %vm427 = vweird.f32 %v419
      %vm428 = vweird.f32 %v421
      %vm429 = vmor %vm427, %vm428
      %v430 = vsel %vm429, %v421, %v426
      %v431 = vrsqrt.pop %v420
      %v432 = vmul.f32 %v431, %v420
      %v433 = vmul.f32 %v432, %v431
      %v434 = vmul.f32 0.5, %v433
      %v435 = vsub.f32 1.5, %v434
      %v436 = vmul.f32 %v431, %v435
      %vm437 = vweird.f32 %v420
      %vm438 = vweird.f32 %v431
      %vm439 = vmor %vm437, %vm438
      %v440 = vsel %vm439, %v431, %v436
      %v441 = vmul.f32 %v409, %v430
      %v442 = vmul.f32 %v410, %v440
      %v443 = vperm.slane %v305, 0
      %v444 = vmul.f32 %v441, %v443
      %v445 = vmul.f32 %v442, %v443
      %v446 = vperm.slane %v306, 0
      %v447 = vadd.f32 %v444, %v446
      %v448 = vadd.f32 %v445, %v446
      %v449 = vpack.c.bf16 %v448, %v447
      %v450 = vld [vmem:[%s4] sm:$0xff]
      %v451 = vld [vmem:[%s4 + $0x8] sm:$0xff]
      %v452 = vld [vmem:[%s4 + $0x10] sm:$0xff]
      %v453 = vld [vmem:[%s4 + $0x18] sm:$0xff]
      %v454 = vld [vmem:[%s4 + $0x20] sm:$0xff]
      %v455 = vld [vmem:[%s4 + $0x28] sm:$0xff]
      %v456 = vld [vmem:[%s4 + $0x30] sm:$0xff]
      %v457 = vld [vmem:[%s4 + $0x38] sm:$0xff]
      %v458 = vld [vmem:[%s4 + $0x40] sm:$0xff]
      %v459 = vld [vmem:[%s4 + $0x48] sm:$0xff]
      %v460 = vld [vmem:[%s4 + $0x50] sm:$0xff]
      %v461 = vld [vmem:[%s4 + $0x58] sm:$0xff]
      %v462 = vld [vmem:[%s4 + $0x60] sm:$0xff]
      %v463 = vld [vmem:[%s4 + $0x68] sm:$0xff]
      %v464 = vld [vmem:[%s4 + $0x70] sm:$0xff]
      %v465 = vld [vmem:[%s4 + $0x78] sm:$0xff]
      %v466 = vld [vmem:[%s5] sm:$0x3]
      %v468 = vperm.slane %v466, 0
      %v469 = vperm.slane %v466, 1
      %v488 = vunpack.c.l.b16 %v450
      %v489 = vunpack.c.h.b16 %v450
      %v490 = vunpack.c.l.b16 %v451
      %v491 = vunpack.c.h.b16 %v451
      %v492 = vunpack.c.l.b16 %v452
      %v493 = vunpack.c.h.b16 %v452
      %v494 = vunpack.c.l.b16 %v453
      %v495 = vunpack.c.h.b16 %v453
      %v496 = vunpack.c.l.b16 %v454
      %v497 = vunpack.c.h.b16 %v454
      %v498 = vunpack.c.l.b16 %v455
      %v499 = vunpack.c.h.b16 %v455
      %v500 = vunpack.c.l.b16 %v456
      %v501 = vunpack.c.h.b16 %v456
      %v502 = vunpack.c.l.b16 %v457
      %v503 = vunpack.c.h.b16 %v457
      %v504 = vunpack.c.l.b16 %v458
      %v505 = vunpack.c.h.b16 %v458
      %v506 = vunpack.c.l.b16 %v459
      %v507 = vunpack.c.h.b16 %v459
      %v508 = vunpack.c.l.b16 %v460
      %v509 = vunpack.c.h.b16 %v460
      %v510 = vunpack.c.l.b16 %v461
      %v511 = vunpack.c.h.b16 %v461
      %v512 = vunpack.c.l.b16 %v462
      %v513 = vunpack.c.h.b16 %v462
      %v514 = vunpack.c.l.b16 %v463
      %v515 = vunpack.c.h.b16 %v463
      %v516 = vunpack.c.l.b16 %v464
      %v517 = vunpack.c.h.b16 %v464
      %v518 = vunpack.c.l.b16 %v465
      %v519 = vunpack.c.h.b16 %v465
      %v520 = vpack.c.b16 %v490, %v488
      %v521 = vpack.c.b16 %v491, %v489
      %v522 = vpack.c.b16 %v494, %v492
      %v523 = vpack.c.b16 %v495, %v493
      %v524 = vpack.c.b16 %v498, %v496
      %v525 = vpack.c.b16 %v499, %v497
      %v526 = vpack.c.b16 %v502, %v500
      %v527 = vpack.c.b16 %v503, %v501
      %v528 = vpack.c.b16 %v506, %v504
      %v529 = vpack.c.b16 %v507, %v505
      %v530 = vpack.c.b16 %v510, %v508
      %v531 = vpack.c.b16 %v511, %v509
      %v532 = vpack.c.b16 %v514, %v512
      %v533 = vpack.c.b16 %v515, %v513
      %v534 = vpack.c.b16 %v518, %v516
      %v535 = vpack.c.b16 %v519, %v517
      %552 = vmatpush.bf16.msra.mxu0 %v534
      %553 = vmatpush.bf16.msra.mxu0 %v532
      %554 = vmatpush.bf16.msra.mxu0 %v530
      %555 = vmatpush.bf16.msra.mxu0 %v528
      %556 = vmatpush.bf16.msra.mxu0 %v526
      %557 = vmatpush.bf16.msra.mxu0 %v524
      %558 = vmatpush.bf16.msra.mxu0 %v522
      %559 = vmatpush.bf16.msra.mxu0 %v520
      %560 = vmatmul.bf16.gmra.mxu0 %v449
      %v561 = vpop.f32.mrf.mxu0
      %v562 = vadd.f32 %v468, %v561
      %v563 = vpop.f32.mrf.mxu0
      %v564 = vadd.f32 %v468, %v563
      %565 = vdwg.mxu0
      %566 = vmatpush.bf16.msra.mxu0 %v535
      %567 = vmatpush.bf16.msra.mxu0 %v533
      %568 = vmatpush.bf16.msra.mxu0 %v531
      %569 = vmatpush.bf16.msra.mxu0 %v529
      %570 = vmatpush.bf16.msra.mxu0 %v527
      %571 = vmatpush.bf16.msra.mxu0 %v525
      %572 = vmatpush.bf16.msra.mxu0 %v523
      %573 = vmatpush.bf16.msra.mxu0 %v521
      %574 = vmatmul.bf16.gmra.mxu0 %v449
      %v575 = vpop.f32.mrf.mxu0
      %v576 = vadd.f32 %v469, %v575
      %v577 = vpop.f32.mrf.mxu0
      %v578 = vadd.f32 %v469, %v577
      %579 = vdwg.mxu0
      %v580 = vmax.f32 %v562, 0.0
      %v581 = vmax.f32 %v576, 0.0
      %v582 = vmax.f32 %v564, 0.0
      %v583 = vmax.f32 %v578, 0.0
      %v584 = vpack.c.bf16 %v582, %v580
      %v585 = vpack.c.bf16 %v583, %v581
      %v586 = vld [vmem:[%s6] sm:$0xf]
      %v587 = vld [vmem:[%s6 + $0x4] sm:$0xf]
      %v588 = vld [vmem:[%s6 + $0x8] sm:$0xf]
      %v589 = vld [vmem:[%s6 + $0xc] sm:$0xf]
      %v590 = vld [vmem:[%s6 + $0x10] sm:$0xf]
      %v591 = vld [vmem:[%s6 + $0x14] sm:$0xf]
      %v592 = vld [vmem:[%s6 + $0x18] sm:$0xf]
      %v593 = vld [vmem:[%s6 + $0x1c] sm:$0xf]
      %v594 = vld [vmem:[%s6 + $0x20] sm:$0xf]
      %v595 = vld [vmem:[%s6 + $0x24] sm:$0xf]
      %v596 = vld [vmem:[%s6 + $0x28] sm:$0xf]
      %v597 = vld [vmem:[%s6 + $0x2c] sm:$0xf]
      %v598 = vld [vmem:[%s6 + $0x30] sm:$0xf]
      %v599 = vld [vmem:[%s6 + $0x34] sm:$0xf]
      %v600 = vld [vmem:[%s6 + $0x38] sm:$0xf]
      %v601 = vld [vmem:[%s6 + $0x3c] sm:$0xf]
      %v602 = vld [vmem:[%s6 + $0x40] sm:$0xf]
      %v603 = vld [vmem:[%s6 + $0x44] sm:$0xf]
      %v604 = vld [vmem:[%s6 + $0x48] sm:$0xf]
      %v605 = vld [vmem:[%s6 + $0x4c] sm:$0xf]
      %v606 = vld [vmem:[%s6 + $0x50] sm:$0xf]
      %v607 = vld [vmem:[%s6 + $0x54] sm:$0xf]
      %v608 = vld [vmem:[%s6 + $0x58] sm:$0xf]
      %v609 = vld [vmem:[%s6 + $0x5c] sm:$0xf]
      %v610 = vld [vmem:[%s6 + $0x60] sm:$0xf]
      %v611 = vld [vmem:[%s6 + $0x64] sm:$0xf]
      %v612 = vld [vmem:[%s6 + $0x68] sm:$0xf]
      %v613 = vld [vmem:[%s6 + $0x6c] sm:$0xf]
      %v614 = vld [vmem:[%s6 + $0x70] sm:$0xf]
      %v615 = vld [vmem:[%s6 + $0x74] sm:$0xf]
      %v616 = vld [vmem:[%s6 + $0x78] sm:$0xf]
      %v617 = vld [vmem:[%s6 + $0x7c] sm:$0xf]
      %v618 = vperm.slane %v307, 0
      %v651 = vunpack.c.l.b16 %v586
      %v652 = vunpack.c.l.b16 %v587
      %v653 = vunpack.c.l.b16 %v588
      %v654 = vunpack.c.l.b16 %v589
      %v655 = vunpack.c.l.b16 %v590
      %v656 = vunpack.c.l.b16 %v591
      %v657 = vunpack.c.l.b16 %v592
      %v658 = vunpack.c.l.b16 %v593
      %v659 = vunpack.c.l.b16 %v594
      %v660 = vunpack.c.l.b16 %v595
      %v661 = vunpack.c.l.b16 %v596
      %v662 = vunpack.c.l.b16 %v597
      %v663 = vunpack.c.l.b16 %v598
      %v664 = vunpack.c.l.b16 %v599
      %v665 = vunpack.c.l.b16 %v600
      %v666 = vunpack.c.l.b16 %v601
      %v667 = vunpack.c.l.b16 %v602
      %v668 = vunpack.c.l.b16 %v603
      %v669 = vunpack.c.l.b16 %v604
      %v670 = vunpack.c.l.b16 %v605
      %v671 = vunpack.c.l.b16 %v606
      %v672 = vunpack.c.l.b16 %v607
      %v673 = vunpack.c.l.b16 %v608
      %v674 = vunpack.c.l.b16 %v609
      %v675 = vunpack.c.l.b16 %v610
      %v676 = vunpack.c.l.b16 %v611
      %v677 = vunpack.c.l.b16 %v612
      %v678 = vunpack.c.l.b16 %v613
      %v679 = vunpack.c.l.b16 %v614
      %v680 = vunpack.c.l.b16 %v615
      %v681 = vunpack.c.l.b16 %v616
      %v682 = vunpack.c.l.b16 %v617
      %v683 = vpack.c.b16 %v652, %v651
      %v684 = vpack.c.b16 %v654, %v653
      %v685 = vpack.c.b16 %v656, %v655
      %v686 = vpack.c.b16 %v658, %v657
      %v687 = vpack.c.b16 %v660, %v659
      %v688 = vpack.c.b16 %v662, %v661
      %v689 = vpack.c.b16 %v664, %v663
      %v690 = vpack.c.b16 %v666, %v665
      %v691 = vpack.c.b16 %v668, %v667
      %v692 = vpack.c.b16 %v670, %v669
      %v693 = vpack.c.b16 %v672, %v671
      %v694 = vpack.c.b16 %v674, %v673
      %v695 = vpack.c.b16 %v676, %v675
      %v696 = vpack.c.b16 %v678, %v677
      %v697 = vpack.c.b16 %v680, %v679
      %v698 = vpack.c.b16 %v682, %v681
      %715 = vmatpush.bf16.msra.mxu0 %v690
      %716 = vmatpush.bf16.msra.mxu0 %v689
      %717 = vmatpush.bf16.msra.mxu0 %v688
      %718 = vmatpush.bf16.msra.mxu0 %v687
      %719 = vmatpush.bf16.msra.mxu0 %v686
      %720 = vmatpush.bf16.msra.mxu0 %v685
      %721 = vmatpush.bf16.msra.mxu0 %v684
      %722 = vmatpush.bf16.msra.mxu0 %v683
      %723 = vmatmul.bf16.gmra.mxu0 %v584
      %v724 = vpop.f32.mrf.mxu0
      %v725 = vadd.f32 %v618, %v724
      %v726 = vpop.f32.mrf.mxu0
      %v727 = vadd.f32 %v618, %v726
      %728 = vdwg.mxu0
      %729 = vmatpush.bf16.msra.mxu0 %v698
      %730 = vmatpush.bf16.msra.mxu0 %v697
      %731 = vmatpush.bf16.msra.mxu0 %v696
      %732 = vmatpush.bf16.msra.mxu0 %v695
      %733 = vmatpush.bf16.msra.mxu0 %v694
      %734 = vmatpush.bf16.msra.mxu0 %v693
      %735 = vmatpush.bf16.msra.mxu0 %v692
      %736 = vmatpush.bf16.msra.mxu0 %v691
      %737 = vmatmul.bf16.gmra.mxu0 %v585
      %v738 = vpop.f32.mrf.mxu0
      %v739 = vadd.f32 %v725, %v738
      %v740 = vpop.f32.mrf.mxu0
      %v741 = vadd.f32 %v727, %v740
      %742 = vdwg.mxu0
      %v743 = vadd.f32 %v447, %v739
      %v744 = vadd.f32 %v448, %v741
      %745 = vadd.xlane.f32.xlu0 %v743
      %v746 = vpop.xlane.xlu0 %745
      %747 = vadd.xlane.f32.xlu0 %v744
      %v748 = vpop.xlane.xlu0 %747
      %v749 = vmul.f32 %v746, %v406
      %v750 = vmul.f32 %v748, %v406
      %v751 = vsub.f32 %v743, %v749
      %v752 = vsub.f32 %v744, %v750
      %v753 = vmul.f32 %v751, %v751
      %v754 = vmul.f32 %v752, %v752
      %755 = vadd.xlane.f32.xlu0 %v753
      %v756 = vpop.xlane.xlu0 %755
      %757 = vadd.xlane.f32.xlu0 %v754
      %v758 = vpop.xlane.xlu0 %757
      %v759 = vmul.f32 %v756, %v406
      %v760 = vmul.f32 %v758, %v406
      %v761 = vadd.f32 %v759, 1e-05
      %v762 = vadd.f32 %v760, 1e-05
      %v763 = vrsqrt.pop %v761
      %v764 = vmul.f32 %v763, %v761
      %v765 = vmul.f32 %v764, %v763
      %v766 = vmul.f32 0.5, %v765
      %v767 = vsub.f32 1.5, %v766
      %v768 = vmul.f32 %v763, %v767
      %vm769 = vweird.f32 %v761
      %vm770 = vweird.f32 %v763
      %vm771 = vmor %vm769, %vm770
      %v772 = vsel %vm771, %v763, %v768
      %v773 = vrsqrt.pop %v762
      %v774 = vmul.f32 %v773, %v762
      %v775 = vmul.f32 %v774, %v773
      %v776 = vmul.f32 0.5, %v775
      %v777 = vsub.f32 1.5, %v776
      %v778 = vmul.f32 %v773, %v777
      %vm779 = vweird.f32 %v762
      %vm780 = vweird.f32 %v773
      %vm781 = vmor %vm779, %vm780
      %v782 = vsel %vm781, %v773, %v778
      %v783 = vmul.f32 %v751, %v772
      %v784 = vmul.f32 %v752, %v782
      %v785 = vperm.slane %v308, 0
      %v786 = vmul.f32 %v783, %v785
      %v787 = vmul.f32 %v784, %v785
      %v788 = vperm.slane %v309, 0
      %v789 = vadd.f32 %v786, %v788
      %v790 = vadd.f32 %v787, %v788
      %791 = vst [vmem:[%s302] sm:$0xff] %v789
      %792 = vst [vmem:[%s302 + $0x8] sm:$0xff] %v790
      %s793 = smul.u32 2, %s18
      %p794 = scmp.lt.s32.totalorder %s793, 3
      %s795 = scalar_select %p794, %s793, 3
      %s796 = smul.addr %s795, 8
      %s797 = scalar_lea.vmem %s7, %s796
      // Predicated region
      $region49: #{tpn_decoder.6} parent=47 // pred_check
        %p798 = pneg %p193
      $region50: #{tpn_decoder.6} parent=47 // pred_check_branch
        %800 = sbr.rel (%p798) target = $region52
      $region51: #{tpn_decoder.6} parent=47 // pred_region
        %s801 = smul.u32 2, %s18
      $region52: #{tpn_decoder.6} parent=47 // pred_fallthru
        _
    $region48: #{tpn_decoder.6} parent=5 // pred_fallthru
      _
    %p802 = scmp.le.s32.totalorder 2, %s13
    // Predicated region
    $region53: #{tpn_decoder.6} parent=5 // pred_check
      %p803 = pneg %p802
    $region54: #{tpn_decoder.6} parent=5 // pred_check_branch
      %805 = sbr.rel (%p803) target = $region56
    $region55: #{tpn_decoder.6} parent=5 // pred_region
      %s806 = ssub.s32 %s13, 2
      // Predicated region
      $region57: #{tpn_decoder.6} parent=55 // pred_check
        %p807 = pneg %p199
      $region58: #{tpn_decoder.6} parent=55 // pred_check_branch
        %809 = sbr.rel (%p807) target = $region60
      $region59: #{tpn_decoder.6} parent=55 // pred_region
        %s810 = smul.u32 2, %s19
        %p811 = scmp.lt.s32.totalorder %s810, 3
        %s812 = scalar_select %p811, %s810, 3
        %s813 = smul.addr %s812, 8
        %s814 = scalar_lea.vmem %s7, %s813
      $region60: #{tpn_decoder.6} parent=55 // pred_fallthru
        _
    $region56: #{tpn_decoder.6} parent=5 // pred_fallthru
      _
  $region6: #{tpn_decoder.6} parent=0 // loop_footer
    %s17 = sadd.s32 1, %s13
  $region7: #{tpn_decoder.6} parent=0 // loop_footer_branch
    %12 = sbr.rel target = $region3
  $region8: #{tpn_decoder.6} parent=0 // loop_exit
    _

// kernel: tpn_decoder.5
$region0: #{tpn_decoder.5}
  #allocation0 [shape = 'u32[]', space=smem, size = 0x4, offset = 0x4, fixed_abs, tag = 'smem constant byte address 0x4 - core index']
  #allocation1 [shape = 'u32[72,128]{1,0:T(1,128)}', space=vmem, size = 0x9000, scoped, tag = 'internal scratch']
  #allocation2 [shape = 'bf16[16,128]{1,0:T(8,128)(2,1)}', space=vmem, size = 0x1000, scoped, tag = 'scratch operand']
  #allocation3 [shape = 'f32[4,16,1]{2,1,0:T(8,128)}', space=vmem, size = 0x8000, scoped, tag = 'scratch operand']
  #allocation4 [shape = 'f32[4,16,1]{2,1,0:T(8,128)}', space=vmem, size = 0x8000, scoped, tag = 'scratch operand']
  #allocation5 [shape = 'f32[4,16,32]{2,1,0:T(8,128)}', space=vmem, size = 0x8000, scoped, tag = 'scratch operand']
  %s0 = inlined_call_operand.vmem [shape: f32[2,16,128], index: 0, kind: input, shape index: {}]
  %s1 = inlined_call_operand.vmem [shape: f32[2,1024,128], index: 1, kind: input, shape index: {}]
  %s2 = inlined_call_operand.vmem [shape: bf16[128,128], index: 2, kind: input, shape index: {}]
  %s3 = inlined_call_operand.vmem [shape: f32[1,128], index: 3, kind: input, shape index: {}]
  %s4 = inlined_call_operand.vmem [shape: bf16[128,256], index: 4, kind: input, shape index: {}]
  %s5 = inlined_call_operand.vmem [shape: f32[1,256], index: 5, kind: input, shape index: {}]
  %s6 = inlined_call_operand.vmem [shape: f32[2,16,128], index: 6, kind: output, shape index: {}]
  %s7 = sld [smem:[#allocation0]]
  $region65: #{tpn_decoder.5} parent=0
    _
  %s9 = ssub.s32 1, %s7
  %s10 = scalar_select 0, %s9, %s7
  loop: start=0, step=1, limit=6
  $region2: #{tpn_decoder.5} parent=0 // loop_pre_header
    _
  $region3: #{tpn_decoder.5} parent=0 // loop_header
    %s12 = sphi 0, %s16
    %p13 = scmp.ge.s32.totalorder %s12, 6
    %s19 = sphi 0, %s31
    %s20 = sphi 0, %s27
    %s21 = sphi 0, %s19
    %s22 = sphi 0, %s20
    %s23 = sphi 0, %s21
    %s24 = sphi 0, %s22
    %s34 = sphi 0, %s36
    %s37 = sphi 0, %s34
    %s38 = sphi 0, %s37
    %s54 = sphi 0, %s38
    %s62 = sphi 0, %s64
    %s65 = sphi 0, %s62
    %s66 = sphi 0, %s65
    %s82 = sphi 0, %s66
    %s86 = sphi 0, %s86
    %s88 = sphi 0, %s86
    %s89 = sphi 0, %s88
    %s103 = sphi 0, %s89
    %s107 = sphi 0, %s107
    %s109 = sphi 0, %s107
    %s110 = sphi 0, %s109
    %s124 = sphi 0, %s110
    %s128 = sphi 0, %s128
    %s130 = sphi 0, %s128
    %s131 = sphi 0, %s130
    %s145 = sphi 0, %s131
    %s149 = sphi 0, %s149
    %s151 = sphi 0, %s149
    %s152 = sphi 0, %s151
    %s166 = sphi 0, %s152
    %s172 = sphi 0, %s174
    %s175 = sphi 0, %s172
    %s176 = sphi 0, %s175
    %s192 = sphi 0, %s176
  $region4: #{tpn_decoder.5} parent=0 // loop_header_branch
    %15 = sbr.rel (%p13) target = $region8
  $region5: #{tpn_decoder.5} parent=0 // loop_body
    %s17 = ssub.s32 %s12, 1
    %s18 = ssub.s32 %s12, 2
    %s25 = sadd.s32 1, %s20
    %p26 = scmp.ge.s32.totalorder %s25, 2
    %s27 = scalar_select %p26, 0, %s25
    %s28 = sadd.s32 1, %s19
    %s29 = scalar_select %p26, %s28, %s19
    %p30 = scmp.ge.s32.totalorder %s29, 2
    %s31 = scalar_select %p30, 0, %s29
    %s32 = ssub.s32 %s19, %s31
    %p33 = scmp.eq.s32.totalorder %s32, 0
    %s35 = sadd.s32 %s34, 1
    %s36 = scalar_select %p33, %s34, %s35
    %p39 = pneg %p33
    %p40 = scmp.eq.s32.totalorder %s12, 3
    %p41 = por %p39, %p40
    %p42 = scmp.ne.s32.totalorder %s34, %s37
    %p43 = scmp.eq.s32.totalorder %s12, 0
    %p44 = por %p42, %p43
    %p45 = scmp.ne.s32.totalorder %s34, %s37
    %p46 = scmp.eq.s32.totalorder %s17, 3
    %p47 = por %p45, %p46
    %p48 = scmp.ne.s32.totalorder %s37, %s38
    %p49 = scmp.eq.s32.totalorder %s17, 0
    %p50 = por %p48, %p49
    %p51 = scmp.ne.s32.totalorder %s37, %s38
    %p52 = scmp.eq.s32.totalorder %s18, 3
    %p53 = por %p51, %p52
    %p55 = scmp.ne.s32.totalorder %s38, %s54
    %p56 = scmp.eq.s32.totalorder %s18, 0
    %p57 = por %p55, %p56
    %s58 = ssub.s32 %s19, %s31
    %s59 = ssub.s32 %s20, %s27
    %s60 = sor.u32 %s58, %s59
    %p61 = scmp.eq.s32.totalorder %s60, 0
    %s63 = sadd.s32 %s62, 1
    %s64 = scalar_select %p61, %s62, %s63
    %p67 = pneg %p61
    %p68 = scmp.eq.s32.totalorder %s12, 3
    %p69 = por %p67, %p68
    %p70 = scmp.ne.s32.totalorder %s62, %s65
    %p71 = scmp.eq.s32.totalorder %s12, 0
    %p72 = por %p70, %p71
    %p73 = scmp.ne.s32.totalorder %s62, %s65
    %p74 = scmp.eq.s32.totalorder %s17, 3
    %p75 = por %p73, %p74
    %p76 = scmp.ne.s32.totalorder %s65, %s66
    %p77 = scmp.eq.s32.totalorder %s17, 0
    %p78 = por %p76, %p77
    %p79 = scmp.ne.s32.totalorder %s65, %s66
    %p80 = scmp.eq.s32.totalorder %s18, 3
    %p81 = por %p79, %p80
    %p83 = scmp.ne.s32.totalorder %s66, %s82
    %p84 = scmp.eq.s32.totalorder %s18, 0
    %p85 = por %p83, %p84
    %s87 = sadd.s32 %s86, 1
    %p90 = scmp.eq.s32.totalorder %s12, 3
    %p91 = scmp.ne.s32.totalorder %s86, %s88
    %p92 = scmp.eq.s32.totalorder %s12, 0
    %p93 = por %p91, %p92
    %p94 = scmp.ne.s32.totalorder %s86, %s88
    %p95 = scmp.eq.s32.totalorder %s17, 3
    %p96 = por %p94, %p95
    %p97 = scmp.ne.s32.totalorder %s88, %s89
    %p98 = scmp.eq.s32.totalorder %s17, 0
    %p99 = por %p97, %p98
    %p100 = scmp.ne.s32.totalorder %s88, %s89
    %p101 = scmp.eq.s32.totalorder %s18, 3
    %p102 = por %p100, %p101
    %p104 = scmp.ne.s32.totalorder %s89, %s103
    %p105 = scmp.eq.s32.totalorder %s18, 0
    %p106 = por %p104, %p105
    %s108 = sadd.s32 %s107, 1
    %p111 = scmp.eq.s32.totalorder %s12, 3
    %p112 = scmp.ne.s32.totalorder %s107, %s109
    %p113 = scmp.eq.s32.totalorder %s12, 0
    %p114 = por %p112, %p113
    %p115 = scmp.ne.s32.totalorder %s107, %s109
    %p116 = scmp.eq.s32.totalorder %s17, 3
    %p117 = por %p115, %p116
    %p118 = scmp.ne.s32.totalorder %s109, %s110
    %p119 = scmp.eq.s32.totalorder %s17, 0
    %p120 = por %p118, %p119
    %p121 = scmp.ne.s32.totalorder %s109, %s110
    %p122 = scmp.eq.s32.totalorder %s18, 3
    %p123 = por %p121, %p122
    %p125 = scmp.ne.s32.totalorder %s110, %s124
    %p126 = scmp.eq.s32.totalorder %s18, 0
    %p127 = por %p125, %p126
    %s129 = sadd.s32 %s128, 1
    %p132 = scmp.eq.s32.totalorder %s12, 3
    %p133 = scmp.ne.s32.totalorder %s128, %s130
    %p134 = scmp.eq.s32.totalorder %s12, 0
    %p135 = por %p133, %p134
    %p136 = scmp.ne.s32.totalorder %s128, %s130
    %p137 = scmp.eq.s32.totalorder %s17, 3
    %p138 = por %p136, %p137
    %p139 = scmp.ne.s32.totalorder %s130, %s131
    %p140 = scmp.eq.s32.totalorder %s17, 0
    %p141 = por %p139, %p140
    %p142 = scmp.ne.s32.totalorder %s130, %s131
    %p143 = scmp.eq.s32.totalorder %s18, 3
    %p144 = por %p142, %p143
    %p146 = scmp.ne.s32.totalorder %s131, %s145
    %p147 = scmp.eq.s32.totalorder %s18, 0
    %p148 = por %p146, %p147
    %s150 = sadd.s32 %s149, 1
    %p153 = scmp.eq.s32.totalorder %s12, 3
    %p154 = scmp.ne.s32.totalorder %s149, %s151
    %p155 = scmp.eq.s32.totalorder %s12, 0
    %p156 = por %p154, %p155
    %p157 = scmp.ne.s32.totalorder %s149, %s151
    %p158 = scmp.eq.s32.totalorder %s17, 3
    %p159 = por %p157, %p158
    %p160 = scmp.ne.s32.totalorder %s151, %s152
    %p161 = scmp.eq.s32.totalorder %s17, 0
    %p162 = por %p160, %p161
    %p163 = scmp.ne.s32.totalorder %s151, %s152
    %p164 = scmp.eq.s32.totalorder %s18, 3
    %p165 = por %p163, %p164
    %p167 = scmp.ne.s32.totalorder %s152, %s166
    %p168 = scmp.eq.s32.totalorder %s18, 0
    %p169 = por %p167, %p168
    %s170 = ssub.s32 %s19, %s31
    %p171 = scmp.eq.s32.totalorder %s170, 0
    %s173 = sadd.s32 %s172, 1
    %s174 = scalar_select %p171, %s172, %s173
    %p177 = pneg %p171
    %p178 = scmp.eq.s32.totalorder %s12, 3
    %p179 = por %p177, %p178
    %p180 = scmp.ne.s32.totalorder %s172, %s175
    %p181 = scmp.eq.s32.totalorder %s12, 0
    %p182 = por %p180, %p181
    %p183 = scmp.ne.s32.totalorder %s172, %s175
    %p184 = scmp.eq.s32.totalorder %s17, 3
    %p185 = por %p183, %p184
    %p186 = scmp.ne.s32.totalorder %s175, %s176
    %p187 = scmp.eq.s32.totalorder %s17, 0
    %p188 = por %p186, %p187
    %p189 = scmp.ne.s32.totalorder %s175, %s176
    %p190 = scmp.eq.s32.totalorder %s18, 3
    %p191 = por %p189, %p190
    %p193 = scmp.ne.s32.totalorder %s176, %s192
    %p194 = scmp.eq.s32.totalorder %s18, 0
    %p195 = por %p193, %p194
    %p196 = scmp.le.s32.totalorder 1, %s12
    %p197 = scmp.lt.s32.totalorder %s12, 5
    %p198 = pnand %p196, %p197
    %p199 = pneg %p198
    // Predicated region
    $region9: #{tpn_decoder.5} parent=5 // pred_check
      _
    $region10: #{tpn_decoder.5} parent=5 // pred_check_branch
      %201 = sbr.rel (%p198) target = $region12
    $region11: #{tpn_decoder.5} parent=5 // pred_region
      %s202 = ssub.s32 %s12, 1
      // Predicated region
      $region13: #{tpn_decoder.5} parent=11 // pred_check
        %p203 = pneg %p99
      $region14: #{tpn_decoder.5} parent=11 // pred_check_branch
        %205 = sbr.rel (%p203) target = $region16
      $region15: #{tpn_decoder.5} parent=11 // pred_region
        _
      $region16: #{tpn_decoder.5} parent=11 // pred_fallthru
        _
      // Predicated region
      $region17: #{tpn_decoder.5} parent=11 // pred_check
        %p206 = pneg %p120
      $region18: #{tpn_decoder.5} parent=11 // pred_check_branch
        %208 = sbr.rel (%p206) target = $region20
      $region19: #{tpn_decoder.5} parent=11 // pred_region
        _
      $region20: #{tpn_decoder.5} parent=11 // pred_fallthru
        _
      // Predicated region
      $region21: #{tpn_decoder.5} parent=11 // pred_check
        %p209 = pneg %p141
      $region22: #{tpn_decoder.5} parent=11 // pred_check_branch
        %211 = sbr.rel (%p209) target = $region24
      $region23: #{tpn_decoder.5} parent=11 // pred_region
        _
      $region24: #{tpn_decoder.5} parent=11 // pred_fallthru
        _
      // Predicated region
      $region25: #{tpn_decoder.5} parent=11 // pred_check
        %p212 = pneg %p162
      $region26: #{tpn_decoder.5} parent=11 // pred_check_branch
        %214 = sbr.rel (%p212) target = $region28
      $region27: #{tpn_decoder.5} parent=11 // pred_region
        _
      $region28: #{tpn_decoder.5} parent=11 // pred_fallthru
        _
    $region12: #{tpn_decoder.5} parent=5 // pred_fallthru
      _
    %p215 = scmp.lt.s32.totalorder %s12, 4
    // Predicated region
    $region29: #{tpn_decoder.5} parent=5 // pred_check
      %p216 = pneg %p215
    $region30: #{tpn_decoder.5} parent=5 // pred_check_branch
      %218 = sbr.rel (%p216) target = $region32
    $region31: #{tpn_decoder.5} parent=5 // pred_region
      // Predicated region
      $region33: #{tpn_decoder.5} parent=31 // pred_check
        %p219 = pneg %p44
      $region34: #{tpn_decoder.5} parent=31 // pred_check_branch
        %221 = sbr.rel (%p219) target = $region36
      $region35: #{tpn_decoder.5} parent=31 // pred_region
        %p222 = scmp.lt.s32.totalorder %s19, 1
        %s223 = scalar_select %p222, %s19, 1
        %s224 = smul.addr %s223, 2
        %s225 = smul.addr %s224, 8
        %s226 = scalar_lea.vmem %s0, %s225
      $region36: #{tpn_decoder.5} parent=31 // pred_fallthru
        _
      // Predicated region
      $region37: #{tpn_decoder.5} parent=31 // pred_check
        %p227 = pneg %p72
      $region38: #{tpn_decoder.5} parent=31 // pred_check_branch
        %229 = sbr.rel (%p227) target = $region40
      $region39: #{tpn_decoder.5} parent=31 // pred_region
        %s230 = smul.u32 64, %s20
        %p231 = scmp.lt.s32.totalorder %s19, 1
        %s232 = scalar_select %p231, %s19, 1
        %p233 = scmp.lt.s32.totalorder %s230, 127
        %s234 = scalar_select %p233, %s230, 127
        %s235 = smul.addr %s232, 128
        %s236 = sadd.s32 %s234, %s235
        %s237 = smul.addr %s236, 8
        %s238 = scalar_lea.vmem %s1, %s237
        %s239 = smul.u32 64, %s20
      $region40: #{tpn_decoder.5} parent=31 // pred_fallthru
        _
    $region32: #{tpn_decoder.5} parent=5 // pred_fallthru
      _
    %p240 = scmp.le.s32.totalorder 1, %s12
    %p241 = scmp.lt.s32.totalorder %s12, 5
    %p242 = pnand %p240, %p241
    %p243 = pneg %p242
    // Predicated region
    $region41: #{tpn_decoder.5} parent=5 // pred_check
      _
    $region42: #{tpn_decoder.5} parent=5 // pred_check_branch
      %245 = sbr.rel (%p242) target = $region44
    $region43: #{tpn_decoder.5} parent=5 // pred_region
      %s246 = ssub.s32 %s12, 1
      %p247 = scmp.lt.s32.totalorder %s21, 1
      %s248 = scalar_select %p247, %s21, 1
      %s249 = smul.addr %s248, 2
      %s250 = smul.addr %s249, 8
      %s251 = scalar_lea.vmem %s0, %s250
      %p252 = pneg %p50
      %p253 = pneg %p47
      %s254 = smul.u32 64, %s22
      %p255 = scmp.lt.s32.totalorder %s21, 1
      %s256 = scalar_select %p255, %s21, 1
      %p257 = scmp.lt.s32.totalorder %s254, 127
      %s258 = scalar_select %p257, %s254, 127
      %s259 = smul.addr %s256, 128
      %s260 = sadd.s32 %s258, %s259
      %s261 = smul.addr %s260, 8
      %s262 = scalar_lea.vmem %s1, %s261
      %p263 = pneg %p78
      %p264 = pneg %p75
      %p265 = pneg %p99
      %p266 = pneg %p96
      %p267 = pneg %p120
      %p268 = pneg %p117
      %p269 = pneg %p141
      %p270 = pneg %p138
      %p271 = pneg %p162
      %p272 = pneg %p159
      %p273 = pneg %p188
      %p274 = pneg %p185
      %p275 = scmp.lt.s32.totalorder %s21, 1
      %s276 = scalar_select %p275, %s21, 1
      %s277 = smul.addr %s276, 2
      %s278 = smul.addr %s277, 8
      %s279 = scalar_lea.vmem %s6, %s278
      %p280 = scmp.lt.s32.totalorder %s21, 1
      %s281 = scalar_select %p280, %s21, 1
      %s282 = smul.addr %s281, 2
      %s283 = smul.addr %s282, 8
      %s284 = scalar_lea.vmem %s0, %s283
      %s285 = smul.u32 64, %s22
      %p286 = scmp.lt.s32.totalorder %s21, 1
      %s287 = scalar_select %p286, %s21, 1
      %p288 = scmp.lt.s32.totalorder %s285, 127
      %s289 = scalar_select %p288, %s285, 127
      %s290 = smul.addr %s287, 128
      %s291 = sadd.s32 %s289, %s290
      %s292 = smul.addr %s291, 8
      %s293 = scalar_lea.vmem %s1, %s292
      %s294 = smul.u32 64, %s22
      %p295 = scmp.lt.s32.totalorder %s21, 1
      %s296 = scalar_select %p295, %s21, 1
      %s297 = smul.addr %s296, 2
      %s298 = smul.addr %s297, 8
      %s299 = scalar_lea.vmem %s6, %s298
      %p300 = scmp.eq.s32.totalorder %s22, 0
      // Predicated region
      $region45: #{tpn_decoder.5} parent=43 // pred_check
        %p301 = pneg %p300
      $region46: #{tpn_decoder.5} parent=43 // pred_check_branch
        %303 = sbr.rel (%p301) target = $region48
      $region47: #{tpn_decoder.5} parent=43 // pred_region
        %v304 = vld [vmem:[%s284] sm:$0xff]
        %v305 = vld [vmem:[%s284 + $0x8] sm:$0xff]
        %v306 = vpack.c.bf16 %v305, %v304
        %v307 = vld [vmem:[%s2] sm:$0xf]
        %v308 = vld [vmem:[%s2 + $0x4] sm:$0xf]
        %v309 = vld [vmem:[%s2 + $0x8] sm:$0xf]
        %v310 = vld [vmem:[%s2 + $0xc] sm:$0xf]
        %v311 = vld [vmem:[%s2 + $0x10] sm:$0xf]
        %v312 = vld [vmem:[%s2 + $0x14] sm:$0xf]
        %v313 = vld [vmem:[%s2 + $0x18] sm:$0xf]
        %v314 = vld [vmem:[%s2 + $0x1c] sm:$0xf]
        %v315 = vld [vmem:[%s2 + $0x20] sm:$0xf]
        %v316 = vld [vmem:[%s2 + $0x24] sm:$0xf]
        %v317 = vld [vmem:[%s2 + $0x28] sm:$0xf]
        %v318 = vld [vmem:[%s2 + $0x2c] sm:$0xf]
        %v319 = vld [vmem:[%s2 + $0x30] sm:$0xf]
        %v320 = vld [vmem:[%s2 + $0x34] sm:$0xf]
        %v321 = vld [vmem:[%s2 + $0x38] sm:$0xf]
        %v322 = vld [vmem:[%s2 + $0x3c] sm:$0xf]
        %v323 = vld [vmem:[%s3] sm:$0x1]
        %v325 = vperm.slane %v323, 0
        %v343 = vunpack.c.l.b16 %v307
        %v344 = vunpack.c.l.b16 %v308
        %v345 = vunpack.c.l.b16 %v309
        %v346 = vunpack.c.l.b16 %v310
        %v347 = vunpack.c.l.b16 %v311
        %v348 = vunpack.c.l.b16 %v312
        %v349 = vunpack.c.l.b16 %v313
        %v350 = vunpack.c.l.b16 %v314
        %v351 = vunpack.c.l.b16 %v315
        %v352 = vunpack.c.l.b16 %v316
        %v353 = vunpack.c.l.b16 %v317
        %v354 = vunpack.c.l.b16 %v318
        %v355 = vunpack.c.l.b16 %v319
        %v356 = vunpack.c.l.b16 %v320
        %v357 = vunpack.c.l.b16 %v321
        %v358 = vunpack.c.l.b16 %v322
        %v359 = vpack.c.b16 %v344, %v343
        %v360 = vpack.c.b16 %v346, %v345
        %v361 = vpack.c.b16 %v348, %v347
        %v362 = vpack.c.b16 %v350, %v349
        %v363 = vpack.c.b16 %v352, %v351
        %v364 = vpack.c.b16 %v354, %v353
        %v365 = vpack.c.b16 %v356, %v355
        %v366 = vpack.c.b16 %v358, %v357
        %375 = vmatpush.bf16.msra.mxu0 %v366
        %376 = vmatpush.bf16.msra.mxu0 %v365
        %377 = vmatpush.bf16.msra.mxu0 %v364
        %378 = vmatpush.bf16.msra.mxu0 %v363
        %379 = vmatpush.bf16.msra.mxu0 %v362
        %380 = vmatpush.bf16.msra.mxu0 %v361
        %381 = vmatpush.bf16.msra.mxu0 %v360
        %382 = vmatpush.bf16.msra.mxu0 %v359
        %383 = vmatmul.bf16.gmra.mxu0 %v306
        %v384 = vpop.f32.mrf.mxu0
        %v385 = vadd.f32 %v325, %v384
        %v386 = vpop.f32.mrf.mxu0
        %v387 = vadd.f32 %v325, %v386
        %388 = vdwg.mxu0
        %v389 = vmul.f32 %v385, 0.17677669
        %v390 = vmul.f32 %v387, 0.17677669
        %v391 = vpack.c.bf16 %v389, %v389
        %v392 = vpack.c.bf16 %v390, %v390
        %393 = vst [vmem:[#allocation2] sm:$0xf] %v391
        %394 = vst [vmem:[#allocation2 + $0x4] sm:$0xf] %v392
        %vm395 = vcmask 7168
        %396 = vst.msk [vmem:[#allocation3] sm:$0xff] %vm395, -inf
        %397 = vst.msk [vmem:[#allocation3 + $0x8] sm:$0xff] %vm395, -inf
        %398 = vst.msk [vmem:[#allocation3 + $0x10] sm:$0xff] %vm395, -inf
        %399 = vst.msk [vmem:[#allocation3 + $0x18] sm:$0xff] %vm395, -inf
        %400 = vst.msk [vmem:[#allocation3 + $0x20] sm:$0xff] %vm395, -inf
        %401 = vst.msk [vmem:[#allocation3 + $0x28] sm:$0xff] %vm395, -inf
        %402 = vst.msk [vmem:[#allocation3 + $0x30] sm:$0xff] %vm395, -inf
        %403 = vst.msk [vmem:[#allocation3 + $0x38] sm:$0xff] %vm395, -inf
        %404 = vst.msk [vmem:[#allocation4] sm:$0xff] %vm395, 0.0
        %405 = vst.msk [vmem:[#allocation4 + $0x8] sm:$0xff] %vm395, 0.0
        %406 = vst.msk [vmem:[#allocation4 + $0x10] sm:$0xff] %vm395, 0.0
        %407 = vst.msk [vmem:[#allocation4 + $0x18] sm:$0xff] %vm395, 0.0
        %408 = vst.msk [vmem:[#allocation4 + $0x20] sm:$0xff] %vm395, 0.0
        %409 = vst.msk [vmem:[#allocation4 + $0x28] sm:$0xff] %vm395, 0.0
        %410 = vst.msk [vmem:[#allocation4 + $0x30] sm:$0xff] %vm395, 0.0
        %411 = vst.msk [vmem:[#allocation4 + $0x38] sm:$0xff] %vm395, 0.0
        %vm412 = vcmask 261120
        %413 = vst.msk [vmem:[#allocation5] sm:$0xff] %vm412, 0.0
        %414 = vst.msk [vmem:[#allocation5 + $0x8] sm:$0xff] %vm412, 0.0
        %415 = vst.msk [vmem:[#allocation5 + $0x10] sm:$0xff] %vm412, 0.0
        %416 = vst.msk [vmem:[#allocation5 + $0x18] sm:$0xff] %vm412, 0.0
        %417 = vst.msk [vmem:[#allocation5 + $0x20] sm:$0xff] %vm412, 0.0
        %418 = vst.msk [vmem:[#allocation5 + $0x28] sm:$0xff] %vm412, 0.0
        %419 = vst.msk [vmem:[#allocation5 + $0x30] sm:$0xff] %vm412, 0.0
        %420 = vst.msk [vmem:[#allocation5 + $0x38] sm:$0xff] %vm412, 0.0
      $region48: #{tpn_decoder.5} parent=43 // pred_fallthru
        _
      %v421 = vld [vmem:[%s293] sm:$0xff]
      %v422 = vld [vmem:[%s293 + $0x8] sm:$0xff]
      %v423 = vld [vmem:[%s293 + $0x10] sm:$0xff]
      %v424 = vld [vmem:[%s293 + $0x18] sm:$0xff]
      %v425 = vld [vmem:[%s293 + $0x20] sm:$0xff]
      %v426 = vld [vmem:[%s293 + $0x28] sm:$0xff]
      %v427 = vld [vmem:[%s293 + $0x30] sm:$0xff]
      %v428 = vld [vmem:[%s293 + $0x38] sm:$0xff]
      %v429 = vld [vmem:[%s293 + $0x40] sm:$0xff]
      %v430 = vld [vmem:[%s293 + $0x48] sm:$0xff]
      %v431 = vld [vmem:[%s293 + $0x50] sm:$0xff]
      %v432 = vld [vmem:[%s293 + $0x58] sm:$0xff]
      %v433 = vld [vmem:[%s293 + $0x60] sm:$0xff]
      %v434 = vld [vmem:[%s293 + $0x68] sm:$0xff]
      %v435 = vld [vmem:[%s293 + $0x70] sm:$0xff]
      %v436 = vld [vmem:[%s293 + $0x78] sm:$0xff]
      %v437 = vld [vmem:[%s293 + $0x80] sm:$0xff]
      %v438 = vld [vmem:[%s293 + $0x88] sm:$0xff]
      %v439 = vld [vmem:[%s293 + $0x90] sm:$0xff]
      %v440 = vld [vmem:[%s293 + $0x98] sm:$0xff]
      %v441 = vld [vmem:[%s293 + $0xa0] sm:$0xff]
      %v442 = vld [vmem:[%s293 + $0xa8] sm:$0xff]
      %v443 = vld [vmem:[%s293 + $0xb0] sm:$0xff]
      %v444 = vld [vmem:[%s293 + $0xb8] sm:$0xff]
      %v445 = vld [vmem:[%s293 + $0xc0] sm:$0xff]
      %v446 = vld [vmem:[%s293 + $0xc8] sm:$0xff]
      %v447 = vld [vmem:[%s293 + $0xd0] sm:$0xff]
      %v448 = vld [vmem:[%s293 + $0xd8] sm:$0xff]
      %v449 = vld [vmem:[%s293 + $0xe0] sm:$0xff]
      %v450 = vld [vmem:[%s293 + $0xe8] sm:$0xff]
      %v451 = vld [vmem:[%s293 + $0xf0] sm:$0xff]
      %v452 = vld [vmem:[%s293 + $0xf8] sm:$0xff]
      %v453 = vld [vmem:[%s293 + $0x100] sm:$0xff]
      %v454 = vld [vmem:[%s293 + $0x108] sm:$0xff]
      %v455 = vld [vmem:[%s293 + $0x110] sm:$0xff]
      %v456 = vld [vmem:[%s293 + $0x118] sm:$0xff]
      %v457 = vld [vmem:[%s293 + $0x120] sm:$0xff]
      %v458 = vld [vmem:[%s293 + $0x128] sm:$0xff]
      %v459 = vld [vmem:[%s293 + $0x130] sm:$0xff]
      %v460 = vld [vmem:[%s293 + $0x138] sm:$0xff]
      %v461 = vld [vmem:[%s293 + $0x140] sm:$0xff]
      %v462 = vld [vmem:[%s293 + $0x148] sm:$0xff]
      %v463 = vld [vmem:[%s293 + $0x150] sm:$0xff]
      %v464 = vld [vmem:[%s293 + $0x158] sm:$0xff]
      %v465 = vld [vmem:[%s293 + $0x160] sm:$0xff]
      %v466 = vld [vmem:[%s293 + $0x168] sm:$0xff]
      %v467 = vld [vmem:[%s293 + $0x170] sm:$0xff]
      %v468 = vld [vmem:[%s293 + $0x178] sm:$0xff]
      %v469 = vld [vmem:[%s293 + $0x180] sm:$0xff]
      %v470 = vld [vmem:[%s293 + $0x188] sm:$0xff]
      %v471 = vld [vmem:[%s293 + $0x190] sm:$0xff]
      %v472 = vld [vmem:[%s293 + $0x198] sm:$0xff]
      %v473 = vld [vmem:[%s293 + $0x1a0] sm:$0xff]
      %v474 = vld [vmem:[%s293 + $0x1a8] sm:$0xff]
      %v475 = vld [vmem:[%s293 + $0x1b0] sm:$0xff]
      %v476 = vld [vmem:[%s293 + $0x1b8] sm:$0xff]
      %v477 = vld [vmem:[%s293 + $0x1c0] sm:$0xff]
      %v478 = vld [vmem:[%s293 + $0x1c8] sm:$0xff]
      %v479 = vld [vmem:[%s293 + $0x1d0] sm:$0xff]
      %v480 = vld [vmem:[%s293 + $0x1d8] sm:$0xff]
      %v481 = vld [vmem:[%s293 + $0x1e0] sm:$0xff]
      %v482 = vld [vmem:[%s293 + $0x1e8] sm:$0xff]
      %v483 = vld [vmem:[%s293 + $0x1f0] sm:$0xff]
      %v484 = vld [vmem:[%s293 + $0x1f8] sm:$0xff]
      %v485 = vpack.c.bf16 %v422, %v421
      %v486 = vpack.c.bf16 %v424, %v423
      %v487 = vpack.c.bf16 %v426, %v425
      %v488 = vpack.c.bf16 %v428, %v427
      %v489 = vpack.c.bf16 %v430, %v429
      %v490 = vpack.c.bf16 %v432, %v431
      %v491 = vpack.c.bf16 %v434, %v433
      %v492 = vpack.c.bf16 %v436, %v435
      %v493 = vpack.c.bf16 %v438, %v437
      %v494 = vpack.c.bf16 %v440, %v439
      %v495 = vpack.c.bf16 %v442, %v441
      %v496 = vpack.c.bf16 %v444, %v443
      %v497 = vpack.c.bf16 %v446, %v445
      %v498 = vpack.c.bf16 %v448, %v447
      %v499 = vpack.c.bf16 %v450, %v449
      %v500 = vpack.c.bf16 %v452, %v451
      %v501 = vpack.c.bf16 %v454, %v453
      %v502 = vpack.c.bf16 %v456, %v455
      %v503 = vpack.c.bf16 %v458, %v457
      %v504 = vpack.c.bf16 %v460, %v459
      %v505 = vpack.c.bf16 %v462, %v461
      %v506 = vpack.c.bf16 %v464, %v463
      %v507 = vpack.c.bf16 %v466, %v465
      %v508 = vpack.c.bf16 %v468, %v467
      %v509 = vpack.c.bf16 %v470, %v469
      %v510 = vpack.c.bf16 %v472, %v471
      %v511 = vpack.c.bf16 %v474, %v473
      %v512 = vpack.c.bf16 %v476, %v475
      %v513 = vpack.c.bf16 %v478, %v477
      %v514 = vpack.c.bf16 %v480, %v479
      %v515 = vpack.c.bf16 %v482, %v481
      %v516 = vpack.c.bf16 %v484, %v483
      %v517 = vld [vmem:[%s4] sm:$0xff]
      %v518 = vld [vmem:[%s4 + $0x8] sm:$0xff]
      %v519 = vld [vmem:[%s4 + $0x10] sm:$0xff]
      %v520 = vld [vmem:[%s4 + $0x18] sm:$0xff]
      %v521 = vld [vmem:[%s4 + $0x20] sm:$0xff]
      %v522 = vld [vmem:[%s4 + $0x28] sm:$0xff]
      %v523 = vld [vmem:[%s4 + $0x30] sm:$0xff]
      %v524 = vld [vmem:[%s4 + $0x38] sm:$0xff]
      %v525 = vld [vmem:[%s4 + $0x40] sm:$0xff]
      %v526 = vld [vmem:[%s4 + $0x48] sm:$0xff]
      %v527 = vld [vmem:[%s4 + $0x50] sm:$0xff]
      %v528 = vld [vmem:[%s4 + $0x58] sm:$0xff]
      %v529 = vld [vmem:[%s4 + $0x60] sm:$0xff]
      %v530 = vld [vmem:[%s4 + $0x68] sm:$0xff]
      %v531 = vld [vmem:[%s4 + $0x70] sm:$0xff]
      %v532 = vld [vmem:[%s4 + $0x78] sm:$0xff]
      %v533 = vld [vmem:[%s5] sm:$0x3]
      %v535 = vperm.slane %v533, 0
      %v536 = vperm.slane %v533, 1
      %v555 = vunpack.c.l.b16 %v517
      %v556 = vunpack.c.h.b16 %v517
      %v557 = vunpack.c.l.b16 %v518
      %v558 = vunpack.c.h.b16 %v518
      %v559 = vunpack.c.l.b16 %v519
      %v560 = vunpack.c.h.b16 %v519
      %v561 = vunpack.c.l.b16 %v520
      %v562 = vunpack.c.h.b16 %v520
      %v563 = vunpack.c.l.b16 %v521
      %v564 = vunpack.c.h.b16 %v521
      %v565 = vunpack.c.l.b16 %v522
      %v566 = vunpack.c.h.b16 %v522
      %v567 = vunpack.c.l.b16 %v523
      %v568 = vunpack.c.h.b16 %v523
      %v569 = vunpack.c.l.b16 %v524
      %v570 = vunpack.c.h.b16 %v524
      %v571 = vunpack.c.l.b16 %v525
      %v572 = vunpack.c.h.b16 %v525
      %v573 = vunpack.c.l.b16 %v526
      %v574 = vunpack.c.h.b16 %v526
      %v575 = vunpack.c.l.b16 %v527
      %v576 = vunpack.c.h.b16 %v527
      %v577 = vunpack.c.l.b16 %v528
      %v578 = vunpack.c.h.b16 %v528
      %v579 = vunpack.c.l.b16 %v529
      %v580 = vunpack.c.h.b16 %v529
      %v581 = vunpack.c.l.b16 %v530
      %v582 = vunpack.c.h.b16 %v530
      %v583 = vunpack.c.l.b16 %v531
      %v584 = vunpack.c.h.b16 %v531
      %v585 = vunpack.c.l.b16 %v532
      %v586 = vunpack.c.h.b16 %v532
      %v587 = vpack.c.b16 %v557, %v555
      %v588 = vpack.c.b16 %v558, %v556
      %v589 = vpack.c.b16 %v561, %v559
      %v590 = vpack.c.b16 %v562, %v560
      %v591 = vpack.c.b16 %v565, %v563
      %v592 = vpack.c.b16 %v566, %v564
      %v593 = vpack.c.b16 %v569, %v567
      %v594 = vpack.c.b16 %v570, %v568
      %v595 = vpack.c.b16 %v573, %v571
      %v596 = vpack.c.b16 %v574, %v572
      %v597 = vpack.c.b16 %v577, %v575
      %v598 = vpack.c.b16 %v578, %v576
      %v599 = vpack.c.b16 %v581, %v579
      %v600 = vpack.c.b16 %v582, %v580
      %v601 = vpack.c.b16 %v585, %v583
      %v602 = vpack.c.b16 %v586, %v584
      %619 = vmatpush.bf16.msra.mxu0 %v601
      %620 = vmatpush.bf16.msra.mxu0 %v599
      %621 = vmatpush.bf16.msra.mxu0 %v597
      %622 = vmatpush.bf16.msra.mxu0 %v595
      %623 = vmatpush.bf16.msra.mxu0 %v593
      %624 = vmatpush.bf16.msra.mxu0 %v591
      %625 = vmatpush.bf16.msra.mxu0 %v589
      %626 = vmatpush.bf16.msra.mxu0 %v587
      %627 = vmatmul.bf16.gmra.mxu0 %v485
      %v628 = vpop.f32.mrf.mxu0
      %v629 = vadd.f32 %v535, %v628
      %v630 = vpop.f32.mrf.mxu0
      %v631 = vadd.f32 %v535, %v630
      %632 = vmatmul.bf16.gmra.mxu0 %v486
      %v633 = vpop.f32.mrf.mxu0
      %v634 = vadd.f32 %v535, %v633
      %v635 = vpop.f32.mrf.mxu0
      %v636 = vadd.f32 %v535, %v635
      %637 = vmatmul.bf16.gmra.mxu0 %v487
      %v638 = vpop.f32.mrf.mxu0
      %v639 = vadd.f32 %v535, %v638
      %v640 = vpop.f32.mrf.mxu0
      %v641 = vadd.f32 %v535, %v640
      %642 = vmatmul.bf16.gmra.mxu0 %v488
      %v643 = vpop.f32.mrf.mxu0
      %v644 = vadd.f32 %v535, %v643
      %v645 = vpop.f32.mrf.mxu0
      %v646 = vadd.f32 %v535, %v645
      %647 = vmatmul.bf16.gmra.mxu0 %v489
      %v648 = vpop.f32.mrf.mxu0
      %v649 = vadd.f32 %v535, %v648
      %v650 = vpop.f32.mrf.mxu0
      %v651 = vadd.f32 %v535, %v650
      %652 = vmatmul.bf16.gmra.mxu0 %v490
      %v653 = vpop.f32.mrf.mxu0
      %v654 = vadd.f32 %v535, %v653
      %v655 = vpop.f32.mrf.mxu0
      %v656 = vadd.f32 %v535, %v655
      %657 = vmatmul.bf16.gmra.mxu0 %v491
      %v658 = vpop.f32.mrf.mxu0
      %v659 = vadd.f32 %v535, %v658
      %v660 = vpop.f32.mrf.mxu0
      %v661 = vadd.f32 %v535, %v660
      %662 = vmatmul.bf16.gmra.mxu0 %v492
      %v663 = vpop.f32.mrf.mxu0
      %v664 = vadd.f32 %v535, %v663
      %v665 = vpop.f32.mrf.mxu0
      %v666 = vadd.f32 %v535, %v665
      %667 = vmatmul.bf16.gmra.mxu0 %v493
      %v668 = vpop.f32.mrf.mxu0
      %v669 = vadd.f32 %v535, %v668
      %v670 = vpop.f32.mrf.mxu0
      %v671 = vadd.f32 %v535, %v670
      %672 = vmatmul.bf16.gmra.mxu0 %v494
      %v673 = vpop.f32.mrf.mxu0
      %v674 = vadd.f32 %v535, %v673
      %v675 = vpop.f32.mrf.mxu0
      %v676 = vadd.f32 %v535, %v675
      %677 = vmatmul.bf16.gmra.mxu0 %v495
      %v678 = vpop.f32.mrf.mxu0
      %v679 = vadd.f32 %v535, %v678
      %v680 = vpop.f32.mrf.mxu0
      %v681 = vadd.f32 %v535, %v680
      %682 = vmatmul.bf16.gmra.mxu0 %v496
      %v683 = vpop.f32.mrf.mxu0
      %v684 = vadd.f32 %v535, %v683
      %v685 = vpop.f32.mrf.mxu0
      %v686 = vadd.f32 %v535, %v685
      %687 = vmatmul.bf16.gmra.mxu0 %v497
      %v688 = vpop.f32.mrf.mxu0
      %v689 = vadd.f32 %v535, %v688
      %v690 = vpop.f32.mrf.mxu0
      %v691 = vadd.f32 %v535, %v690
      %692 = vmatmul.bf16.gmra.mxu0 %v498
      %v693 = vpop.f32.mrf.mxu0
      %v694 = vadd.f32 %v535, %v693
      %v695 = vpop.f32.mrf.mxu0
      %v696 = vadd.f32 %v535, %v695
      %697 = vmatmul.bf16.gmra.mxu0 %v499
      %v698 = vpop.f32.mrf.mxu0
      %v699 = vadd.f32 %v535, %v698
      %v700 = vpop.f32.mrf.mxu0
      %v701 = vadd.f32 %v535, %v700
      %702 = vmatmul.bf16.gmra.mxu0 %v500
      %v703 = vpop.f32.mrf.mxu0
      %v704 = vadd.f32 %v535, %v703
      %v705 = vpop.f32.mrf.mxu0
      %v706 = vadd.f32 %v535, %v705
      %707 = vmatmul.bf16.gmra.mxu0 %v501
      %v708 = vpop.f32.mrf.mxu0
      %v709 = vadd.f32 %v535, %v708
      %v710 = vpop.f32.mrf.mxu0
      %v711 = vadd.f32 %v535, %v710
      %712 = vmatmul.bf16.gmra.mxu0 %v502
      %v713 = vpop.f32.mrf.mxu0
      %v714 = vadd.f32 %v535, %v713
      %v715 = vpop.f32.mrf.mxu0
      %v716 = vadd.f32 %v535, %v715
      %717 = vmatmul.bf16.gmra.mxu0 %v503
      %v718 = vpop.f32.mrf.mxu0
      %v719 = vadd.f32 %v535, %v718
      %v720 = vpop.f32.mrf.mxu0
      %v721 = vadd.f32 %v535, %v720
      %722 = vmatmul.bf16.gmra.mxu0 %v504
      %v723 = vpop.f32.mrf.mxu0
      %v724 = vadd.f32 %v535, %v723
      %v725 = vpop.f32.mrf.mxu0
      %v726 = vadd.f32 %v535, %v725
      %727 = vmatmul.bf16.gmra.mxu0 %v505
      %v728 = vpop.f32.mrf.mxu0
      %v729 = vadd.f32 %v535, %v728
      %v730 = vpop.f32.mrf.mxu0
      %v731 = vadd.f32 %v535, %v730
      %732 = vmatmul.bf16.gmra.mxu0 %v506
      %v733 = vpop.f32.mrf.mxu0
      %v734 = vadd.f32 %v535, %v733
      %v735 = vpop.f32.mrf.mxu0
      %v736 = vadd.f32 %v535, %v735
      %737 = vmatmul.bf16.gmra.mxu0 %v507
      %v738 = vpop.f32.mrf.mxu0
      %v739 = vadd.f32 %v535, %v738
      %v740 = vpop.f32.mrf.mxu0
      %v741 = vadd.f32 %v535, %v740
      %742 = vmatmul.bf16.gmra.mxu0 %v508
      %v743 = vpop.f32.mrf.mxu0
      %v744 = vadd.f32 %v535, %v743
      %v745 = vpop.f32.mrf.mxu0
      %v746 = vadd.f32 %v535, %v745
      %747 = vmatmul.bf16.gmra.mxu0 %v509
      %v748 = vpop.f32.mrf.mxu0
      %v749 = vadd.f32 %v535, %v748
      %v750 = vpop.f32.mrf.mxu0
      %v751 = vadd.f32 %v535, %v750
      %752 = vmatmul.bf16.gmra.mxu0 %v510
      %v753 = vpop.f32.mrf.mxu0
      %v754 = vadd.f32 %v535, %v753
      %v755 = vpop.f32.mrf.mxu0
      %v756 = vadd.f32 %v535, %v755
      %757 = vmatmul.bf16.gmra.mxu0 %v511
      %v758 = vpop.f32.mrf.mxu0
      %v759 = vadd.f32 %v535, %v758
      %v760 = vpop.f32.mrf.mxu0
      %v761 = vadd.f32 %v535, %v760
      %762 = vmatmul.bf16.gmra.mxu0 %v512
      %v763 = vpop.f32.mrf.mxu0
      %v764 = vadd.f32 %v535, %v763
      %v765 = vpop.f32.mrf.mxu0
      %v766 = vadd.f32 %v535, %v765
      %767 = vmatmul.bf16.gmra.mxu0 %v513
      %v768 = vpop.f32.mrf.mxu0
      %v769 = vadd.f32 %v535, %v768
      %v770 = vpop.f32.mrf.mxu0
      %v771 = vadd.f32 %v535, %v770
      %772 = vmatmul.bf16.gmra.mxu0 %v514
      %v773 = vpop.f32.mrf.mxu0
      %v774 = vadd.f32 %v535, %v773
      %v775 = vpop.f32.mrf.mxu0
      %v776 = vadd.f32 %v535, %v775
      %777 = vmatmul.bf16.gmra.mxu0 %v515
      %v778 = vpop.f32.mrf.mxu0
      %v779 = vadd.f32 %v535, %v778
      %v780 = vpop.f32.mrf.mxu0
      %v781 = vadd.f32 %v535, %v780
      %782 = vmatmul.bf16.gmra.mxu0 %v516
      %v783 = vpop.f32.mrf.mxu0
      %v784 = vadd.f32 %v535, %v783
      %v785 = vpop.f32.mrf.mxu0
      %v786 = vadd.f32 %v535, %v785
      %787 = vdwg.mxu0
      %788 = vmatpush.bf16.msra.mxu0 %v602
      %789 = vmatpush.bf16.msra.mxu0 %v600
      %790 = vmatpush.bf16.msra.mxu0 %v598
      %791 = vmatpush.bf16.msra.mxu0 %v596
      %792 = vmatpush.bf16.msra.mxu0 %v594
      %793 = vmatpush.bf16.msra.mxu0 %v592
      %794 = vmatpush.bf16.msra.mxu0 %v590
      %795 = vmatpush.bf16.msra.mxu0 %v588
      %796 = vmatmul.bf16.gmra.mxu0 %v485
      %v797 = vpop.f32.mrf.mxu0
      %v798 = vadd.f32 %v536, %v797
      %v799 = vpop.f32.mrf.mxu0
      %v800 = vadd.f32 %v536, %v799
      %801 = vmatmul.bf16.gmra.mxu0 %v486
      %v802 = vpop.f32.mrf.mxu0
      %v803 = vadd.f32 %v536, %v802
      %v804 = vpop.f32.mrf.mxu0
      %v805 = vadd.f32 %v536, %v804
      %806 = vmatmul.bf16.gmra.mxu0 %v487
      %v807 = vpop.f32.mrf.mxu0
      %v808 = vadd.f32 %v536, %v807
      %v809 = vpop.f32.mrf.mxu0
      %v810 = vadd.f32 %v536, %v809
      %811 = vmatmul.bf16.gmra.mxu0 %v488
      %v812 = vpop.f32.mrf.mxu0
      %v813 = vadd.f32 %v536, %v812
      %v814 = vpop.f32.mrf.mxu0
      %v815 = vadd.f32 %v536, %v814
      %816 = vmatmul.bf16.gmra.mxu0 %v489
      %v817 = vpop.f32.mrf.mxu0
      %v818 = vadd.f32 %v536, %v817
      %v819 = vpop.f32.mrf.mxu0
      %v820 = vadd.f32 %v536, %v819
      %821 = vmatmul.bf16.gmra.mxu0 %v490
      %v822 = vpop.f32.mrf.mxu0
      %v823 = vadd.f32 %v536, %v822
      %v824 = vpop.f32.mrf.mxu0
      %v825 = vadd.f32 %v536, %v824
      %826 = vmatmul.bf16.gmra.mxu0 %v491
      %v827 = vpop.f32.mrf.mxu0
      %v828 = vadd.f32 %v536, %v827
      %v829 = vpop.f32.mrf.mxu0
      %v830 = vadd.f32 %v536, %v829
      %831 = vmatmul.bf16.gmra.mxu0 %v492
      %v832 = vpop.f32.mrf.mxu0
      %v833 = vadd.f32 %v536, %v832
      %v834 = vpop.f32.mrf.mxu0
      %v835 = vadd.f32 %v536, %v834
      %836 = vmatmul.bf16.gmra.mxu0 %v493
      %v837 = vpop.f32.mrf.mxu0
      %v838 = vadd.f32 %v536, %v837
      %v839 = vpop.f32.mrf.mxu0
      %v840 = vadd.f32 %v536, %v839
      %841 = vmatmul.bf16.gmra.mxu0 %v494
      %v842 = vpop.f32.mrf.mxu0
      %v843 = vadd.f32 %v536, %v842
      %v844 = vpop.f32.mrf.mxu0
      %v845 = vadd.f32 %v536, %v844
      %846 = vmatmul.bf16.gmra.mxu0 %v495
      %v847 = vpop.f32.mrf.mxu0
      %v848 = vadd.f32 %v536, %v847
      %v849 = vpop.f32.mrf.mxu0
      %v850 = vadd.f32 %v536, %v849
      %851 = vmatmul.bf16.gmra.mxu0 %v496
      %v852 = vpop.f32.mrf.mxu0
      %v853 = vadd.f32 %v536, %v852
      %v854 = vpop.f32.mrf.mxu0
      %v855 = vadd.f32 %v536, %v854
      %856 = vmatmul.bf16.gmra.mxu0 %v497
      %v857 = vpop.f32.mrf.mxu0
      %v858 = vadd.f32 %v536, %v857
      %v859 = vpop.f32.mrf.mxu0
      %v860 = vadd.f32 %v536, %v859
      %861 = vmatmul.bf16.gmra.mxu0 %v498
      %v862 = vpop.f32.mrf.mxu0
      %v863 = vadd.f32 %v536, %v862
      %v864 = vpop.f32.mrf.mxu0
      %v865 = vadd.f32 %v536, %v864
      %866 = vmatmul.bf16.gmra.mxu0 %v499
      %v867 = vpop.f32.mrf.mxu0
      %v868 = vadd.f32 %v536, %v867
      %v869 = vpop.f32.mrf.mxu0
      %v870 = vadd.f32 %v536, %v869
      %871 = vmatmul.bf16.gmra.mxu0 %v500
      %v872 = vpop.f32.mrf.mxu0
      %v873 = vadd.f32 %v536, %v872
      %v874 = vpop.f32.mrf.mxu0
      %v875 = vadd.f32 %v536, %v874
      %876 = vmatmul.bf16.gmra.mxu0 %v501
      %v877 = vpop.f32.mrf.mxu0
      %v878 = vadd.f32 %v536, %v877
      %v879 = vpop.f32.mrf.mxu0
      %v880 = vadd.f32 %v536, %v879
      %881 = vmatmul.bf16.gmra.mxu0 %v502
      %v882 = vpop.f32.mrf.mxu0
      %v883 = vadd.f32 %v536, %v882
      %v884 = vpop.f32.mrf.mxu0
      %v885 = vadd.f32 %v536, %v884
      %886 = vmatmul.bf16.gmra.mxu0 %v503
      %v887 = vpop.f32.mrf.mxu0
      %v888 = vadd.f32 %v536, %v887
      %v889 = vpop.f32.mrf.mxu0
      %v890 = vadd.f32 %v536, %v889
      %891 = vmatmul.bf16.gmra.mxu0 %v504
      %v892 = vpop.f32.mrf.mxu0
      %v893 = vadd.f32 %v536, %v892
      %v894 = vpop.f32.mrf.mxu0
      %v895 = vadd.f32 %v536, %v894
      %896 = vmatmul.bf16.gmra.mxu0 %v505
      %v897 = vpop.f32.mrf.mxu0
      %v898 = vadd.f32 %v536, %v897
      %v899 = vpop.f32.mrf.mxu0
      %v900 = vadd.f32 %v536, %v899
      %901 = vmatmul.bf16.gmra.mxu0 %v506
      %v902 = vpop.f32.mrf.mxu0
      %v903 = vadd.f32 %v536, %v902
      %v904 = vpop.f32.mrf.mxu0
      %v905 = vadd.f32 %v536, %v904
      %906 = vmatmul.bf16.gmra.mxu0 %v507
      %v907 = vpop.f32.mrf.mxu0
      %v908 = vadd.f32 %v536, %v907
      %v909 = vpop.f32.mrf.mxu0
      %v910 = vadd.f32 %v536, %v909
      %911 = vmatmul.bf16.gmra.mxu0 %v508
      %v912 = vpop.f32.mrf.mxu0
      %v913 = vadd.f32 %v536, %v912
      %v914 = vpop.f32.mrf.mxu0
      %v915 = vadd.f32 %v536, %v914
      %916 = vmatmul.bf16.gmra.mxu0 %v509
      %v917 = vpop.f32.mrf.mxu0
      %v918 = vadd.f32 %v536, %v917
      %v919 = vpop.f32.mrf.mxu0
      %v920 = vadd.f32 %v536, %v919
      %921 = vmatmul.bf16.gmra.mxu0 %v510
      %v922 = vpop.f32.mrf.mxu0
      %v923 = vadd.f32 %v536, %v922
      %v924 = vpop.f32.mrf.mxu0
      %v925 = vadd.f32 %v536, %v924
      %926 = vmatmul.bf16.gmra.mxu0 %v511
      %v927 = vpop.f32.mrf.mxu0
      %v928 = vadd.f32 %v536, %v927
      %v929 = vpop.f32.mrf.mxu0
      %v930 = vadd.f32 %v536, %v929
      %931 = vmatmul.bf16.gmra.mxu0 %v512
      %v932 = vpop.f32.mrf.mxu0
      %v933 = vadd.f32 %v536, %v932
      %v934 = vpop.f32.mrf.mxu0
      %v935 = vadd.f32 %v536, %v934
      %936 = vmatmul.bf16.gmra.mxu0 %v513
      %v937 = vpop.f32.mrf.mxu0
      %v938 = vadd.f32 %v536, %v937
      %v939 = vpop.f32.mrf.mxu0
      %v940 = vadd.f32 %v536, %v939
      %941 = vmatmul.bf16.gmra.mxu0 %v514
      %v942 = vpop.f32.mrf.mxu0
      %v943 = vadd.f32 %v536, %v942
      %v944 = vpop.f32.mrf.mxu0
      %v945 = vadd.f32 %v536, %v944
      %946 = vmatmul.bf16.gmra.mxu0 %v515
      %v947 = vpop.f32.mrf.mxu0
      %v948 = vadd.f32 %v536, %v947
      %v949 = vpop.f32.mrf.mxu0
      %v950 = vadd.f32 %v536, %v949
      %951 = vmatmul.bf16.gmra.mxu0 %v516
      %v952 = vpop.f32.mrf.mxu0
      %v953 = vadd.f32 %v536, %v952
      %v954 = vpop.f32.mrf.mxu0
      %v955 = vadd.f32 %v536, %v954
      %956 = vdwg.mxu0
      %v957 = vpack.c.bf16 %v798, %v629
      %v958 = vpack.c.bf16 %v800, %v631
      %v959 = vpack.c.bf16 %v803, %v634
      %v960 = vpack.c.bf16 %v805, %v636
      %v961 = vpack.c.bf16 %v808, %v639
      %v962 = vpack.c.bf16 %v810, %v641
      %v963 = vpack.c.bf16 %v813, %v644
      %v964 = vpack.c.bf16 %v815, %v646
      %v965 = vpack.c.bf16 %v818, %v649
      %v966 = vpack.c.bf16 %v820, %v651
      %v967 = vpack.c.bf16 %v823, %v654
      %v968 = vpack.c.bf16 %v825, %v656
      %v969 = vpack.c.bf16 %v828, %v659
      %v970 = vpack.c.bf16 %v830, %v661
      %v971 = vpack.c.bf16 %v833, %v664
      %v972 = vpack.c.bf16 %v835, %v666
      %v973 = vpack.c.bf16 %v838, %v669
      %v974 = vpack.c.bf16 %v840, %v671
      %v975 = vpack.c.bf16 %v843, %v674
      %v976 = vpack.c.bf16 %v845, %v676
      %v977 = vpack.c.bf16 %v848, %v679
      %v978 = vpack.c.bf16 %v850, %v681
      %v979 = vpack.c.bf16 %v853, %v684
      %v980 = vpack.c.bf16 %v855, %v686
      %v981 = vpack.c.bf16 %v858, %v689
      %v982 = vpack.c.bf16 %v860, %v691
      %v983 = vpack.c.bf16 %v863, %v694
      %v984 = vpack.c.bf16 %v865, %v696
      %v985 = vpack.c.bf16 %v868, %v699
      %v986 = vpack.c.bf16 %v870, %v701
      %v987 = vpack.c.bf16 %v873, %v704
      %v988 = vpack.c.bf16 %v875, %v706
      %v989 = vpack.c.bf16 %v878, %v709
      %v990 = vpack.c.bf16 %v880, %v711
      %v991 = vpack.c.bf16 %v883, %v714
      %v992 = vpack.c.bf16 %v885, %v716
      %v993 = vpack.c.bf16 %v888, %v719
      %v994 = vpack.c.bf16 %v890, %v721
      %v995 = vpack.c.bf16 %v893, %v724
      %v996 = vpack.c.bf16 %v895, %v726
      %v997 = vpack.c.bf16 %v898, %v729
      %v998 = vpack.c.bf16 %v900, %v731
      %v999 = vpack.c.bf16 %v903, %v734
      %v1000 = vpack.c.bf16 %v905, %v736
      %v1001 = vpack.c.bf16 %v908, %v739
      %v1002 = vpack.c.bf16 %v910, %v741
      %v1003 = vpack.c.bf16 %v913, %v744
      %v1004 = vpack.c.bf16 %v915, %v746
      %v1005 = vpack.c.bf16 %v918, %v749
      %v1006 = vpack.c.bf16 %v920, %v751
      %v1007 = vpack.c.bf16 %v923, %v754
      %v1008 = vpack.c.bf16 %v925, %v756
      %v1009 = vpack.c.bf16 %v928, %v759
      %v1010 = vpack.c.bf16 %v930, %v761
      %v1011 = vpack.c.bf16 %v933, %v764
      %v1012 = vpack.c.bf16 %v935, %v766
      %v1013 = vpack.c.bf16 %v938, %v769
      %v1014 = vpack.c.bf16 %v940, %v771
      %v1015 = vpack.c.bf16 %v943, %v774
      %v1016 = vpack.c.bf16 %v945, %v776
      %v1017 = vpack.c.bf16 %v948, %v779
      %v1018 = vpack.c.bf16 %v950, %v781
      %v1019 = vpack.c.bf16 %v953, %v784
      %v1020 = vpack.c.bf16 %v955, %v786
      %v1021 = vld [vmem:[#allocation2] sm:$0xf]
      %v1022 = vld [vmem:[#allocation2 + $0x4] sm:$0xf]
      %v1025 = vunpack.c.l.b16 %v1021
      %v1026 = vunpack.c.l.b16 %v1022
      %v1027 = vpack.c.b16 %v1026, %v1025
      %v1092 = vunpack.c.l.b16 %v957
      %v1093 = vunpack.c.l.b16 %v958
      %v1094 = vunpack.c.l.b16 %v959
      %v1095 = vunpack.c.l.b16 %v960
      %v1096 = vunpack.c.l.b16 %v961
      %v1097 = vunpack.c.l.b16 %v962
      %v1098 = vunpack.c.l.b16 %v963
      %v1099 = vunpack.c.l.b16 %v964
      %v1100 = vunpack.c.l.b16 %v965
      %v1101 = vunpack.c.l.b16 %v966
      %v1102 = vunpack.c.l.b16 %v967
      %v1103 = vunpack.c.l.b16 %v968
      %v1104 = vunpack.c.l.b16 %v969
      %v1105 = vunpack.c.l.b16 %v970
      %v1106 = vunpack.c.l.b16 %v971
      %v1107 = vunpack.c.l.b16 %v972
      %v1108 = vunpack.c.l.b16 %v973
      %v1109 = vunpack.c.l.b16 %v974
      %v1110 = vunpack.c.l.b16 %v975
      %v1111 = vunpack.c.l.b16 %v976
      %v1112 = vunpack.c.l.b16 %v977
      %v1113 = vunpack.c.l.b16 %v978
      %v1114 = vunpack.c.l.b16 %v979
      %v1115 = vunpack.c.l.b16 %v980
      %v1116 = vunpack.c.l.b16 %v981
      %v1117 = vunpack.c.l.b16 %v982
      %v1118 = vunpack.c.l.b16 %v983
      %v1119 = vunpack.c.l.b16 %v984
      %v1120 = vunpack.c.l.b16 %v985
      %v1121 = vunpack.c.l.b16 %v986
      %v1122 = vunpack.c.l.b16 %v987
      %v1123 = vunpack.c.l.b16 %v988
      %v1124 = vunpack.c.l.b16 %v989
      %v1125 = vunpack.c.l.b16 %v990
      %v1126 = vunpack.c.l.b16 %v991
      %v1127 = vunpack.c.l.b16 %v992
      %v1128 = vunpack.c.l.b16 %v993
      %v1129 = vunpack.c.l.b16 %v994
      %v1130 = vunpack.c.l.b16 %v995
      %v1131 = vunpack.c.l.b16 %v996
      %v1132 = vunpack.c.l.b16 %v997
      %v1133 = vunpack.c.l.b16 %v998
      %v1134 = vunpack.c.l.b16 %v999
      %v1135 = vunpack.c.l.b16 %v1000
      %v1136 = vunpack.c.l.b16 %v1001
      %v1137 = vunpack.c.l.b16 %v1002
      %v1138 = vunpack.c.l.b16 %v1003
      %v1139 = vunpack.c.l.b16 %v1004
      %v1140 = vunpack.c.l.b16 %v1005
      %v1141 = vunpack.c.l.b16 %v1006
      %v1142 = vunpack.c.l.b16 %v1007
      %v1143 = vunpack.c.l.b16 %v1008
      %v1144 = vunpack.c.l.b16 %v1009
      %v1145 = vunpack.c.l.b16 %v1010
      %v1146 = vunpack.c.l.b16 %v1011
      %v1147 = vunpack.c.l.b16 %v1012
      %v1148 = vunpack.c.l.b16 %v1013
      %v1149 = vunpack.c.l.b16 %v1014
      %v1150 = vunpack.c.l.b16 %v1015
      %v1151 = vunpack.c.l.b16 %v1016
      %v1152 = vunpack.c.l.b16 %v1017
      %v1153 = vunpack.c.l.b16 %v1018
      %v1154 = vunpack.c.l.b16 %v1019
      %v1155 = vunpack.c.l.b16 %v1020
      %v1156 = vpack.c.b16 %v1093, %v1092
      %v1157 = vpack.c.b16 %v1095, %v1094
      %v1158 = vpack.c.b16 %v1097, %v1096
      %v1159 = vpack.c.b16 %v1099, %v1098
      %v1160 = vpack.c.b16 %v1101, %v1100
      %v1161 = vpack.c.b16 %v1103, %v1102
      %v1162 = vpack.c.b16 %v1105, %v1104
      %v1163 = vpack.c.b16 %v1107, %v1106
      %v1164 = vpack.c.b16 %v1109, %v1108
      %v1165 = vpack.c.b16 %v1111, %v1110
      %v1166 = vpack.c.b16 %v1113, %v1112
      %v1167 = vpack.c.b16 %v1115, %v1114
      %v1168 = vpack.c.b16 %v1117, %v1116
      %v1169 = vpack.c.b16 %v1119, %v1118
      %v1170 = vpack.c.b16 %v1121, %v1120
      %v1171 = vpack.c.b16 %v1123, %v1122
      %v1172 = vpack.c.b16 %v1125, %v1124
      %v1173 = vpack.c.b16 %v1127, %v1126
      %v1174 = vpack.c.b16 %v1129, %v1128
      %v1175 = vpack.c.b16 %v1131, %v1130
      %v1176 = vpack.c.b16 %v1133, %v1132
      %v1177 = vpack.c.b16 %v1135, %v1134
      %v1178 = vpack.c.b16 %v1137, %v1136
      %v1179 = vpack.c.b16 %v1139, %v1138
      %v1180 = vpack.c.b16 %v1141, %v1140
      %v1181 = vpack.c.b16 %v1143, %v1142
      %v1182 = vpack.c.b16 %v1145, %v1144
      %v1183 = vpack.c.b16 %v1147, %v1146
      %v1184 = vpack.c.b16 %v1149, %v1148
      %v1185 = vpack.c.b16 %v1151, %v1150
      %v1186 = vpack.c.b16 %v1153, %v1152
      %v1187 = vpack.c.b16 %v1155, %v1154
      %vm1188 = vcmask 261120
      %v1190 = vsel %vm1188, %v1027, 0
      %v1193 = vsel %vm1188, %v1156, 0
      %v1196 = vsel %vm1188, %v1157, 0
      %v1199 = vsel %vm1188, %v1158, 0
      %v1202 = vsel %vm1188, %v1159, 0
      %v1205 = vsel %vm1188, %v1160, 0
      %v1208 = vsel %vm1188, %v1161, 0
      %v1211 = vsel %vm1188, %v1162, 0
      %v1214 = vsel %vm1188, %v1163, 0
      %v1217 = vsel %vm1188, %v1164, 0
      %v1220 = vsel %vm1188, %v1165, 0
      %v1223 = vsel %vm1188, %v1166, 0
      %v1226 = vsel %vm1188, %v1167, 0
      %v1229 = vsel %vm1188, %v1168, 0
      %v1232 = vsel %vm1188, %v1169, 0
      %v1235 = vsel %vm1188, %v1170, 0
      %v1238 = vsel %vm1188, %v1171, 0
      %v1241 = vsel %vm1188, %v1172, 0
      %v1244 = vsel %vm1188, %v1173, 0
      %v1247 = vsel %vm1188, %v1174, 0
      %v1250 = vsel %vm1188, %v1175, 0
      %v1253 = vsel %vm1188, %v1176, 0
      %v1256 = vsel %vm1188, %v1177, 0
      %v1259 = vsel %vm1188, %v1178, 0
      %v1262 = vsel %vm1188, %v1179, 0
      %v1265 = vsel %vm1188, %v1180, 0
      %v1268 = vsel %vm1188, %v1181, 0
      %v1271 = vsel %vm1188, %v1182, 0
      %v1274 = vsel %vm1188, %v1183, 0
      %v1277 = vsel %vm1188, %v1184, 0
      %v1280 = vsel %vm1188, %v1185, 0
      %v1283 = vsel %vm1188, %v1186, 0
      %v1286 = vsel %vm1188, %v1187, 0
      %1288 = vmatpush.bf16.xpose.msra.mxu0 %v1214
      %1289 = vmatpush.bf16.xpose.msra.mxu0 %v1211
      %1290 = vmatpush.bf16.xpose.msra.mxu0 %v1208
      %1291 = vmatpush.bf16.xpose.msra.mxu0 %v1205
      %1292 = vmatpush.bf16.xpose.msra.mxu0 %v1202
      %1293 = vmatpush.bf16.xpose.msra.mxu0 %v1199
      %1294 = vmatpush.bf16.xpose.msra.mxu0 %v1196
      %1295 = vmatpush.bf16.xpose.msra.mxu0 %v1193
      %1296 = vmatmul.bf16.gmra.mxu0 %v1190
      %v1297 = vpop.f32.mrf.mxu0
      %v1298 = vadd.f32 0.0, %v1297
      %v1299 = vpop.f32.mrf.mxu0
      %v1300 = vadd.f32 0.0, %v1299
      %1301 = vdwg.mxu0
      %1302 = vmatpush.bf16.xpose.msra.mxu0 %v1238
      %1303 = vmatpush.bf16.xpose.msra.mxu0 %v1235
      %1304 = vmatpush.bf16.xpose.msra.mxu0 %v1232
      %1305 = vmatpush.bf16.xpose.msra.mxu0 %v1229
      %1306 = vmatpush.bf16.xpose.msra.mxu0 %v1226
      %1307 = vmatpush.bf16.xpose.msra.mxu0 %v1223
      %1308 = vmatpush.bf16.xpose.msra.mxu0 %v1220
      %1309 = vmatpush.bf16.xpose.msra.mxu0 %v1217
      %1310 = vmatmul.bf16.gmra.mxu0 %v1190
      %v1311 = vpop.f32.mrf.mxu0
      %v1312 = vadd.f32 0.0, %v1311
      %v1313 = vpop.f32.mrf.mxu0
      %v1314 = vadd.f32 0.0, %v1313
      %1315 = vdwg.mxu0
      %1316 = vmatpush.bf16.xpose.msra.mxu0 %v1262
      %1317 = vmatpush.bf16.xpose.msra.mxu0 %v1259
      %1318 = vmatpush.bf16.xpose.msra.mxu0 %v1256
      %1319 = vmatpush.bf16.xpose.msra.mxu0 %v1253
      %1320 = vmatpush.bf16.xpose.msra.mxu0 %v1250
      %1321 = vmatpush.bf16.xpose.msra.mxu0 %v1247
      %1322 = vmatpush.bf16.xpose.msra.mxu0 %v1244
      %1323 = vmatpush.bf16.xpose.msra.mxu0 %v1241
      %1324 = vmatmul.bf16.gmra.mxu0 %v1190
      %v1325 = vpop.f32.mrf.mxu0
      %v1326 = vadd.f32 0.0, %v1325
      %v1327 = vpop.f32.mrf.mxu0
      %v1328 = vadd.f32 0.0, %v1327
      %1329 = vdwg.mxu0
      %1330 = vmatpush.bf16.xpose.msra.mxu0 %v1286
      %1331 = vmatpush.bf16.xpose.msra.mxu0 %v1283
      %1332 = vmatpush.bf16.xpose.msra.mxu0 %v1280
      %1333 = vmatpush.bf16.xpose.msra.mxu0 %v1277
      %1334 = vmatpush.bf16.xpose.msra.mxu0 %v1274
      %1335 = vmatpush.bf16.xpose.msra.mxu0 %v1271
      %1336 = vmatpush.bf16.xpose.msra.mxu0 %v1268
      %1337 = vmatpush.bf16.xpose.msra.mxu0 %v1265
      %1338 = vmatmul.bf16.gmra.mxu0 %v1190
      %v1339 = vpop.f32.mrf.mxu0
      %v1340 = vadd.f32 0.0, %v1339
      %v1341 = vpop.f32.mrf.mxu0
      %v1342 = vadd.f32 0.0, %v1341
      %1343 = vdwg.mxu0
      %v1344 = vld [vmem:[#allocation3] sm:$0xff]
      %v1345 = vld [vmem:[#allocation3 + $0x8] sm:$0xff]
      %v1346 = vmax.f32 %v1298, %v1326
      %v1347 = vmax.f32 %v1312, %v1340
      %v1348 = vmax.f32 %v1346, %v1347
      %1349 = vmax.xlane.f32.xlu0 %v1348
      %v1350 = vpop.xlane.xlu0 %1349
      %v1351 = vmax.f32 %v1300, %v1328
      %v1352 = vmax.f32 %v1314, %v1342
      %v1353 = vmax.f32 %v1351, %v1352
      %1354 = vmax.xlane.f32.xlu0 %v1353
      %v1355 = vpop.xlane.xlu0 %1354
      %v1356 = vmax.f32 %v1344, %v1350
      %v1357 = vmax.f32 %v1345, %v1355
      %v1358 = vsub.f32 %v1344, %v1356
      %v1359 = vsub.f32 %v1345, %v1357
      %v1360 = vmul.f32 %v1358, 1.442695
      %v1361 = vpow.pop %v1360
      %v1362 = vmul.f32 %v1359, 1.442695
      %v1363 = vpow.pop %v1362
      %1365 = vset.pattern.permute.xlu0 0
      %1366 = vperm.xlu0 %1365, %v1356
      %v1367 = vpop.permute.xlu0 %1366
      %1370 = vset.pattern.permute.xlu0 0
      %1371 = vperm.xlu0 %1370, %v1357
      %v1372 = vpop.permute.xlu0 %1371
      %v1374 = vsub.f32 %v1298, %v1367
      %v1375 = vsub.f32 %v1312, %v1367
      %v1376 = vsub.f32 %v1326, %v1367
      %v1377 = vsub.f32 %v1340, %v1367
      %v1378 = vsub.f32 %v1300, %v1372
      %v1379 = vsub.f32 %v1314, %v1372
      %v1380 = vsub.f32 %v1328, %v1372
      %v1381 = vsub.f32 %v1342, %v1372
      %v1382 = vmul.f32 %v1374, 1.442695
      %v1383 = vpow.pop %v1382
      %v1384 = vmul.f32 %v1375, 1.442695
      %v1385 = vpow.pop %v1384
      %v1386 = vmul.f32 %v1376, 1.442695
      %v1387 = vpow.pop %v1386
      %v1388 = vmul.f32 %v1377, 1.442695
      %v1389 = vpow.pop %v1388
      %v1390 = vmul.f32 %v1378, 1.442695
      %v1391 = vpow.pop %v1390
      %v1392 = vmul.f32 %v1379, 1.442695
      %v1393 = vpow.pop %v1392
      %v1394 = vmul.f32 %v1380, 1.442695
      %v1395 = vpow.pop %v1394
      %v1396 = vmul.f32 %v1381, 1.442695
      %v1397 = vpow.pop %v1396
      %v1398 = vld [vmem:[#allocation4] sm:$0xff]
      %v1399 = vld [vmem:[#allocation4 + $0x8] sm:$0xff]
      %v1400 = vmul.f32 %v1361, %v1398
      %v1401 = vmul.f32 %v1363, %v1399
      %v1402 = vadd.f32 %v1383, %v1385
      %v1403 = vadd.f32 %v1402, %v1387
      %v1404 = vadd.f32 %v1403, %v1389
      %1405 = vadd.xlane.f32.xlu0 %v1404
      %v1406 = vpop.xlane.xlu0 %1405
      %v1407 = vadd.f32 %v1391, %v1393
      %v1408 = vadd.f32 %v1407, %v1395
      %v1409 = vadd.f32 %v1408, %v1397
      %1410 = vadd.xlane.f32.xlu0 %v1409
      %v1411 = vpop.xlane.xlu0 %1410
      %v1412 = vadd.f32 %v1400, %v1406
      %v1413 = vadd.f32 %v1401, %v1411
      %vm1414 = vcmask 7168
      %1415 = vst.msk [vmem:[#allocation4] sm:$0xff] %vm1414, %v1412
      %1416 = vst.msk [vmem:[#allocation4 + $0x8] sm:$0xff] %vm1414, %v1413
      %v1417 = vld [vmem:[#allocation5] sm:$0xff]
      %v1418 = vld [vmem:[#allocation5 + $0x8] sm:$0xff]
      %1420 = vset.pattern.permute.xlu0 0
      %1421 = vperm.xlu0 %1420, %v1361
      %v1422 = vpop.permute.xlu0 %1421
      %1425 = vset.pattern.permute.xlu0 0
      %1426 = vperm.xlu0 %1425, %v1363
      %v1427 = vpop.permute.xlu0 %1426
      %v1429 = vmul.f32 %v1422, %v1417
      %v1430 = vmul.f32 %v1427, %v1418
      %v1431 = vpack.c.bf16 %v1391, %v1383
      %v1432 = vpack.c.bf16 %v1393, %v1385
      %v1433 = vpack.c.bf16 %v1395, %v1387
      %v1434 = vpack.c.bf16 %v1397, %v1389
      %v1435 = vunpack.c.h.b16 %v957
      %v1436 = vunpack.c.h.b16 %v958
      %v1437 = vunpack.c.h.b16 %v959
      %v1438 = vunpack.c.h.b16 %v960
      %v1439 = vunpack.c.h.b16 %v961
      %v1440 = vunpack.c.h.b16 %v962
      %v1441 = vunpack.c.h.b16 %v963
      %v1442 = vunpack.c.h.b16 %v964
      %v1443 = vunpack.c.h.b16 %v965
      %v1444 = vunpack.c.h.b16 %v966
      %v1445 = vunpack.c.h.b16 %v967
      %v1446 = vunpack.c.h.b16 %v968
      %v1447 = vunpack.c.h.b16 %v969
      %v1448 = vunpack.c.h.b16 %v970
      %v1449 = vunpack.c.h.b16 %v971
      %v1450 = vunpack.c.h.b16 %v972
      %v1451 = vunpack.c.h.b16 %v973
      %v1452 = vunpack.c.h.b16 %v974
      %v1453 = vunpack.c.h.b16 %v975
      %v1454 = vunpack.c.h.b16 %v976
      %v1455 = vunpack.c.h.b16 %v977
      %v1456 = vunpack.c.h.b16 %v978
      %v1457 = vunpack.c.h.b16 %v979
      %v1458 = vunpack.c.h.b16 %v980
      %v1459 = vunpack.c.h.b16 %v981
      %v1460 = vunpack.c.h.b16 %v982
      %v1461 = vunpack.c.h.b16 %v983
      %v1462 = vunpack.c.h.b16 %v984
      %v1463 = vunpack.c.h.b16 %v985
      %v1464 = vunpack.c.h.b16 %v986
      %v1465 = vunpack.c.h.b16 %v987
      %v1466 = vunpack.c.h.b16 %v988
      %v1467 = vunpack.c.h.b16 %v989
      %v1468 = vunpack.c.h.b16 %v990
      %v1469 = vunpack.c.h.b16 %v991
      %v1470 = vunpack.c.h.b16 %v992
      %v1471 = vunpack.c.h.b16 %v993
      %v1472 = vunpack.c.h.b16 %v994
      %v1473 = vunpack.c.h.b16 %v995
      %v1474 = vunpack.c.h.b16 %v996
      %v1475 = vunpack.c.h.b16 %v997
      %v1476 = vunpack.c.h.b16 %v998
      %v1477 = vunpack.c.h.b16 %v999
      %v1478 = vunpack.c.h.b16 %v1000
      %v1479 = vunpack.c.h.b16 %v1001
      %v1480 = vunpack.c.h.b16 %v1002
      %v1481 = vunpack.c.h.b16 %v1003
      %v1482 = vunpack.c.h.b16 %v1004
      %v1483 = vunpack.c.h.b16 %v1005
      %v1484 = vunpack.c.h.b16 %v1006
      %v1485 = vunpack.c.h.b16 %v1007
      %v1486 = vunpack.c.h.b16 %v1008
      %v1487 = vunpack.c.h.b16 %v1009
      %v1488 = vunpack.c.h.b16 %v1010
      %v1489 = vunpack.c.h.b16 %v1011
      %v1490 = vunpack.c.h.b16 %v1012
      %v1491 = vunpack.c.h.b16 %v1013
      %v1492 = vunpack.c.h.b16 %v1014
      %v1493 = vunpack.c.h.b16 %v1015
      %v1494 = vunpack.c.h.b16 %v1016
      %v1495 = vunpack.c.h.b16 %v1017
      %v1496 = vunpack.c.h.b16 %v1018
      %v1497 = vunpack.c.h.b16 %v1019
      %v1498 = vunpack.c.h.b16 %v1020
      %v1499 = vpack.c.b16 %v1436, %v1435
      %v1500 = vpack.c.b16 %v1438, %v1437
      %v1501 = vpack.c.b16 %v1440, %v1439
      %v1502 = vpack.c.b16 %v1442, %v1441
      %v1503 = vpack.c.b16 %v1444, %v1443
      %v1504 = vpack.c.b16 %v1446, %v1445
      %v1505 = vpack.c.b16 %v1448, %v1447
      %v1506 = vpack.c.b16 %v1450, %v1449
      %v1507 = vpack.c.b16 %v1452, %v1451
      %v1508 = vpack.c.b16 %v1454, %v1453
      %v1509 = vpack.c.b16 %v1456, %v1455
      %v1510 = vpack.c.b16 %v1458, %v1457
      %v1511 = vpack.c.b16 %v1460, %v1459
      %v1512 = vpack.c.b16 %v1462, %v1461
      %v1513 = vpack.c.b16 %v1464, %v1463
      %v1514 = vpack.c.b16 %v1466, %v1465
      %v1515 = vpack.c.b16 %v1468, %v1467
      %v1516 = vpack.c.b16 %v1470, %v1469
      %v1517 = vpack.c.b16 %v1472, %v1471
      %v1518 = vpack.c.b16 %v1474, %v1473
      %v1519 = vpack.c.b16 %v1476, %v1475
      %v1520 = vpack.c.b16 %v1478, %v1477
      %v1521 = vpack.c.b16 %v1480, %v1479
      %v1522 = vpack.c.b16 %v1482, %v1481
      %v1523 = vpack.c.b16 %v1484, %v1483
      %v1524 = vpack.c.b16 %v1486, %v1485
      %v1525 = vpack.c.b16 %v1488, %v1487
      %v1526 = vpack.c.b16 %v1490, %v1489
      %v1527 = vpack.c.b16 %v1492, %v1491
      %v1528 = vpack.c.b16 %v1494, %v1493
      %v1529 = vpack.c.b16 %v1496, %v1495
      %v1530 = vpack.c.b16 %v1498, %v1497
      %1563 = vmatpush.bf16.msra.mxu0 %v1506
      %1564 = vmatpush.bf16.msra.mxu0 %v1505
      %1565 = vmatpush.bf16.msra.mxu0 %v1504
      %1566 = vmatpush.bf16.msra.mxu0 %v1503
      %1567 = vmatpush.bf16.msra.mxu0 %v1502
      %1568 = vmatpush.bf16.msra.mxu0 %v1501
      %1569 = vmatpush.bf16.msra.mxu0 %v1500
      %1570 = vmatpush.bf16.msra.mxu0 %v1499
      %1571 = vmatmul.bf16.gmra.mxu0 %v1431
      %v1572 = vpop.f32.mrf.mxu0
      %v1573 = vadd.f32 0.0, %v1572
      %v1574 = vpop.f32.mrf.mxu0
      %v1575 = vadd.f32 0.0, %v1574
      %1576 = vdwg.mxu0
      %1577 = vmatpush.bf16.msra.mxu0 %v1514
      %1578 = vmatpush.bf16.msra.mxu0 %v1513
      %1579 = vmatpush.bf16.msra.mxu0 %v1512
      %1580 = vmatpush.bf16.msra.mxu0 %v1511
      %1581 = vmatpush.bf16.msra.mxu0 %v1510
      %1582 = vmatpush.bf16.msra.mxu0 %v1509
      %1583 = vmatpush.bf16.msra.mxu0 %v1508
      %1584 = vmatpush.bf16.msra.mxu0 %v1507
      %1585 = vmatmul.bf16.gmra.mxu0 %v1432
      %v1586 = vpop.f32.mrf.mxu0
      %v1587 = vadd.f32 %v1573, %v1586
      %v1588 = vpop.f32.mrf.mxu0
      %v1589 = vadd.f32 %v1575, %v1588
      %1590 = vdwg.mxu0
      %1591 = vmatpush.bf16.msra.mxu0 %v1522
      %1592 = vmatpush.bf16.msra.mxu0 %v1521
      %1593 = vmatpush.bf16.msra.mxu0 %v1520
      %1594 = vmatpush.bf16.msra.mxu0 %v1519
      %1595 = vmatpush.bf16.msra.mxu0 %v1518
      %1596 = vmatpush.bf16.msra.mxu0 %v1517
      %1597 = vmatpush.bf16.msra.mxu0 %v1516
      %1598 = vmatpush.bf16.msra.mxu0 %v1515
      %1599 = vmatmul.bf16.gmra.mxu0 %v1433
      %v1600 = vpop.f32.mrf.mxu0
      %v1601 = vadd.f32 %v1587, %v1600
      %v1602 = vpop.f32.mrf.mxu0
      %v1603 = vadd.f32 %v1589, %v1602
      %1604 = vdwg.mxu0
      %1605 = vmatpush.bf16.msra.mxu0 %v1530
      %1606 = vmatpush.bf16.msra.mxu0 %v1529
      %1607 = vmatpush.bf16.msra.mxu0 %v1528
      %1608 = vmatpush.bf16.msra.mxu0 %v1527
      %1609 = vmatpush.bf16.msra.mxu0 %v1526
      %1610 = vmatpush.bf16.msra.mxu0 %v1525
      %1611 = vmatpush.bf16.msra.mxu0 %v1524
      %1612 = vmatpush.bf16.msra.mxu0 %v1523
      %1613 = vmatmul.bf16.gmra.mxu0 %v1434
      %v1614 = vpop.f32.mrf.mxu0
      %v1615 = vadd.f32 %v1601, %v1614
      %v1616 = vpop.f32.mrf.mxu0
      %v1617 = vadd.f32 %v1603, %v1616
      %1618 = vdwg.mxu0
      %v1619 = vadd.f32 %v1429, %v1615
      %v1620 = vadd.f32 %v1430, %v1617
      %1621 = vst.msk [vmem:[#allocation5] sm:$0xff] %vm1188, %v1619
      %1622 = vst.msk [vmem:[#allocation5 + $0x8] sm:$0xff] %vm1188, %v1620
      %1623 = vst.msk [vmem:[#allocation3] sm:$0xff] %vm1414, %v1356
      %1624 = vst.msk [vmem:[#allocation3 + $0x8] sm:$0xff] %vm1414, %v1357
      %v1625 = vld [vmem:[#allocation2] sm:$0xf]
      %v1626 = vld [vmem:[#allocation2 + $0x4] sm:$0xf]
      %v1629 = vunpack.c.l.b16 %v1625
      %v1630 = vunpack.c.l.b16 %v1626
      %v1631 = vpack.c.b16 %v1630, %v1629
      %1632 = vrot.lane.b32.xlu0 %v1631, 96
      %v1633 = vpop.permute.xlu0 %1632
      %1634 = vrot.lane.b32.xlu0 %v1156, 96
      %v1635 = vpop.permute.xlu0 %1634
      %1636 = vrot.lane.b32.xlu0 %v1157, 96
      %v1637 = vpop.permute.xlu0 %1636
      %1638 = vrot.lane.b32.xlu0 %v1158, 96
      %v1639 = vpop.permute.xlu0 %1638
      %1640 = vrot.lane.b32.xlu0 %v1159, 96
      %v1641 = vpop.permute.xlu0 %1640
      %1642 = vrot.lane.b32.xlu0 %v1160, 96
      %v1643 = vpop.permute.xlu0 %1642
      %1644 = vrot.lane.b32.xlu0 %v1161, 96
      %v1645 = vpop.permute.xlu0 %1644
      %1646 = vrot.lane.b32.xlu0 %v1162, 96
      %v1647 = vpop.permute.xlu0 %1646
      %1648 = vrot.lane.b32.xlu0 %v1163, 96
      %v1649 = vpop.permute.xlu0 %1648
      %1650 = vrot.lane.b32.xlu0 %v1164, 96
      %v1651 = vpop.permute.xlu0 %1650
      %1652 = vrot.lane.b32.xlu0 %v1165, 96
      %v1653 = vpop.permute.xlu0 %1652
      %1654 = vrot.lane.b32.xlu0 %v1166, 96
      %v1655 = vpop.permute.xlu0 %1654
      %1656 = vrot.lane.b32.xlu0 %v1167, 96
      %v1657 = vpop.permute.xlu0 %1656
      %1658 = vrot.lane.b32.xlu0 %v1168, 96
      %v1659 = vpop.permute.xlu0 %1658
      %1660 = vrot.lane.b32.xlu0 %v1169, 96
      %v1661 = vpop.permute.xlu0 %1660
      %1662 = vrot.lane.b32.xlu0 %v1170, 96
      %v1663 = vpop.permute.xlu0 %1662
      %1664 = vrot.lane.b32.xlu0 %v1171, 96
      %v1665 = vpop.permute.xlu0 %1664
      %1666 = vrot.lane.b32.xlu0 %v1172, 96
      %v1667 = vpop.permute.xlu0 %1666
      %1668 = vrot.lane.b32.xlu0 %v1173, 96
      %v1669 = vpop.permute.xlu0 %1668
      %1670 = vrot.lane.b32.xlu0 %v1174, 96
      %v1671 = vpop.permute.xlu0 %1670
      %1672 = vrot.lane.b32.xlu0 %v1175, 96
      %v1673 = vpop.permute.xlu0 %1672
      %1674 = vrot.lane.b32.xlu0 %v1176, 96
      %v1675 = vpop.permute.xlu0 %1674
      %1676 = vrot.lane.b32.xlu0 %v1177, 96
      %v1677 = vpop.permute.xlu0 %1676
      %1678 = vrot.lane.b32.xlu0 %v1178, 96
      %v1679 = vpop.permute.xlu0 %1678
      %1680 = vrot.lane.b32.xlu0 %v1179, 96
      %v1681 = vpop.permute.xlu0 %1680
      %1682 = vrot.lane.b32.xlu0 %v1180, 96
      %v1683 = vpop.permute.xlu0 %1682
      %1684 = vrot.lane.b32.xlu0 %v1181, 96
      %v1685 = vpop.permute.xlu0 %1684
      %1686 = vrot.lane.b32.xlu0 %v1182, 96
      %v1687 = vpop.permute.xlu0 %1686
      %1688 = vrot.lane.b32.xlu0 %v1183, 96
      %v1689 = vpop.permute.xlu0 %1688
      %1690 = vrot.lane.b32.xlu0 %v1184, 96
      %v1691 = vpop.permute.xlu0 %1690
      %1692 = vrot.lane.b32.xlu0 %v1185, 96
      %v1693 = vpop.permute.xlu0 %1692
      %1694 = vrot.lane.b32.xlu0 %v1186, 96
      %v1695 = vpop.permute.xlu0 %1694
      %1696 = vrot.lane.b32.xlu0 %v1187, 96
      %v1697 = vpop.permute.xlu0 %1696
      %v1699 = vsel %vm1188, %v1633, 0
      %v1702 = vsel %vm1188, %v1635, 0
      %v1705 = vsel %vm1188, %v1637, 0
      %v1708 = vsel %vm1188, %v1639, 0
      %v1711 = vsel %vm1188, %v1641, 0
      %v1714 = vsel %vm1188, %v1643, 0
      %v1717 = vsel %vm1188, %v1645, 0
      %v1720 = vsel %vm1188, %v1647, 0
      %v1723 = vsel %vm1188, %v1649, 0
      %v1726 = vsel %vm1188, %v1651, 0
      %v1729 = vsel %vm1188, %v1653, 0
      %v1732 = vsel %vm1188, %v1655, 0
      %v1735 = vsel %vm1188, %v1657, 0
      %v1738 = vsel %vm1188, %v1659, 0
      %v1741 = vsel %vm1188, %v1661, 0
      %v1744 = vsel %vm1188, %v1663, 0
      %v1747 = vsel %vm1188, %v1665, 0
      %v1750 = vsel %vm1188, %v1667, 0
      %v1753 = vsel %vm1188, %v1669, 0
      %v1756 = vsel %vm1188, %v1671, 0
      %v1759 = vsel %vm1188, %v1673, 0
      %v1762 = vsel %vm1188, %v1675, 0
      %v1765 = vsel %vm1188, %v1677, 0
      %v1768 = vsel %vm1188, %v1679, 0
      %v1771 = vsel %vm1188, %v1681, 0
      %v1774 = vsel %vm1188, %v1683, 0
      %v1777 = vsel %vm1188, %v1685, 0
      %v1780 = vsel %vm1188, %v1687, 0
      %v1783 = vsel %vm1188, %v1689, 0
      %v1786 = vsel %vm1188, %v1691, 0
      %v1789 = vsel %vm1188, %v1693, 0
      %v1792 = vsel %vm1188, %v1695, 0
      %v1795 = vsel %vm1188, %v1697, 0
      %1797 = vmatpush.bf16.xpose.msra.mxu0 %v1723
      %1798 = vmatpush.bf16.xpose.msra.mxu0 %v1720
      %1799 = vmatpush.bf16.xpose.msra.mxu0 %v1717
      %1800 = vmatpush.bf16.xpose.msra.mxu0 %v1714
      %1801 = vmatpush.bf16.xpose.msra.mxu0 %v1711
      %1802 = vmatpush.bf16.xpose.msra.mxu0 %v1708
      %1803 = vmatpush.bf16.xpose.msra.mxu0 %v1705
      %1804 = vmatpush.bf16.xpose.msra.mxu0 %v1702
      %1805 = vmatmul.bf16.gmra.mxu0 %v1699
      %v1806 = vpop.f32.mrf.mxu0
      %v1807 = vadd.f32 0.0, %v1806
      %v1808 = vpop.f32.mrf.mxu0
      %v1809 = vadd.f32 0.0, %v1808
      %1810 = vdwg.mxu0
      %1811 = vmatpush.bf16.xpose.msra.mxu0 %v1747
      %1812 = vmatpush.bf16.xpose.msra.mxu0 %v1744
      %1813 = vmatpush.bf16.xpose.msra.mxu0 %v1741
      %1814 = vmatpush.bf16.xpose.msra.mxu0 %v1738
      %1815 = vmatpush.bf16.xpose.msra.mxu0 %v1735
      %1816 = vmatpush.bf16.xpose.msra.mxu0 %v1732
      %1817 = vmatpush.bf16.xpose.msra.mxu0 %v1729
      %1818 = vmatpush.bf16.xpose.msra.mxu0 %v1726
      %1819 = vmatmul.bf16.gmra.mxu0 %v1699
      %v1820 = vpop.f32.mrf.mxu0
      %v1821 = vadd.f32 0.0, %v1820
      %v1822 = vpop.f32.mrf.mxu0
      %v1823 = vadd.f32 0.0, %v1822
      %1824 = vdwg.mxu0
      %1825 = vmatpush.bf16.xpose.msra.mxu0 %v1771
      %1826 = vmatpush.bf16.xpose.msra.mxu0 %v1768
      %1827 = vmatpush.bf16.xpose.msra.mxu0 %v1765
      %1828 = vmatpush.bf16.xpose.msra.mxu0 %v1762
      %1829 = vmatpush.bf16.xpose.msra.mxu0 %v1759
      %1830 = vmatpush.bf16.xpose.msra.mxu0 %v1756
      %1831 = vmatpush.bf16.xpose.msra.mxu0 %v1753
      %1832 = vmatpush.bf16.xpose.msra.mxu0 %v1750
      %1833 = vmatmul.bf16.gmra.mxu0 %v1699
      %v1834 = vpop.f32.mrf.mxu0
      %v1835 = vadd.f32 0.0, %v1834
      %v1836 = vpop.f32.mrf.mxu0
      %v1837 = vadd.f32 0.0, %v1836
      %1838 = vdwg.mxu0
      %1839 = vmatpush.bf16.xpose.msra.mxu0 %v1795
      %1840 = vmatpush.bf16.xpose.msra.mxu0 %v1792
      %1841 = vmatpush.bf16.xpose.msra.mxu0 %v1789
      %1842 = vmatpush.bf16.xpose.msra.mxu0 %v1786
      %1843 = vmatpush.bf16.xpose.msra.mxu0 %v1783
      %1844 = vmatpush.bf16.xpose.msra.mxu0 %v1780
      %1845 = vmatpush.bf16.xpose.msra.mxu0 %v1777
      %1846 = vmatpush.bf16.xpose.msra.mxu0 %v1774
      %1847 = vmatmul.bf16.gmra.mxu0 %v1699
      %v1848 = vpop.f32.mrf.mxu0
      %v1849 = vadd.f32 0.0, %v1848
      %v1850 = vpop.f32.mrf.mxu0
      %v1851 = vadd.f32 0.0, %v1850
      %1852 = vdwg.mxu0
      %s1853 = scalar_lea.vmem [#allocation3], 16
      %v1854 = vld [vmem:[%s1853] sm:$0xff]
      %v1855 = vld [vmem:[%s1853 + $0x8] sm:$0xff]
      %v1856 = vmax.f32 %v1807, %v1835
      %v1857 = vmax.f32 %v1821, %v1849
      %v1858 = vmax.f32 %v1856, %v1857
      %1859 = vmax.xlane.f32.xlu0 %v1858
      %v1860 = vpop.xlane.xlu0 %1859
      %v1861 = vmax.f32 %v1809, %v1837
      %v1862 = vmax.f32 %v1823, %v1851
      %v1863 = vmax.f32 %v1861, %v1862
      %1864 = vmax.xlane.f32.xlu0 %v1863
      %v1865 = vpop.xlane.xlu0 %1864
      %v1866 = vmax.f32 %v1854, %v1860
      %v1867 = vmax.f32 %v1855, %v1865
      %v1868 = vsub.f32 %v1854, %v1866
      %v1869 = vsub.f32 %v1855, %v1867
      %v1870 = vmul.f32 %v1868, 1.442695
      %v1871 = vpow.pop %v1870
      %v1872 = vmul.f32 %v1869, 1.442695
      %v1873 = vpow.pop %v1872
      %1875 = vset.pattern.permute.xlu0 0
      %1876 = vperm.xlu0 %1875, %v1866
      %v1877 = vpop.permute.xlu0 %1876
      %1880 = vset.pattern.permute.xlu0 0
      %1881 = vperm.xlu0 %1880, %v1867
      %v1882 = vpop.permute.xlu0 %1881
      %v1884 = vsub.f32 %v1807, %v1877
      %v1885 = vsub.f32 %v1821, %v1877
      %v1886 = vsub.f32 %v1835, %v1877
      %v1887 = vsub.f32 %v1849, %v1877
      %v1888 = vsub.f32 %v1809, %v1882
      %v1889 = vsub.f32 %v1823, %v1882
      %v1890 = vsub.f32 %v1837, %v1882
      %v1891 = vsub.f32 %v1851, %v1882
      %v1892 = vmul.f32 %v1884, 1.442695
      %v1893 = vpow.pop %v1892
      %v1894 = vmul.f32 %v1885, 1.442695
      %v1895 = vpow.pop %v1894
      %v1896 = vmul.f32 %v1886, 1.442695
      %v1897 = vpow.pop %v1896
      %v1898 = vmul.f32 %v1887, 1.442695
      %v1899 = vpow.pop %v1898
      %v1900 = vmul.f32 %v1888, 1.442695
      %v1901 = vpow.pop %v1900
      %v1902 = vmul.f32 %v1889, 1.442695
      %v1903 = vpow.pop %v1902
      %v1904 = vmul.f32 %v1890, 1.442695
      %v1905 = vpow.pop %v1904
      %v1906 = vmul.f32 %v1891, 1.442695
      %v1907 = vpow.pop %v1906
      %s1908 = scalar_lea.vmem [#allocation4], 16
      %v1909 = vld [vmem:[%s1908] sm:$0xff]
      %v1910 = vld [vmem:[%s1908 + $0x8] sm:$0xff]
      %v1911 = vmul.f32 %v1871, %v1909
      %v1912 = vmul.f32 %v1873, %v1910
      %v1913 = vadd.f32 %v1893, %v1895
      %v1914 = vadd.f32 %v1913, %v1897
      %v1915 = vadd.f32 %v1914, %v1899
      %1916 = vadd.xlane.f32.xlu0 %v1915
      %v1917 = vpop.xlane.xlu0 %1916
      %v1918 = vadd.f32 %v1901, %v1903
      %v1919 = vadd.f32 %v1918, %v1905
      %v1920 = vadd.f32 %v1919, %v1907
      %1921 = vadd.xlane.f32.xlu0 %v1920
      %v1922 = vpop.xlane.xlu0 %1921
      %v1923 = vadd.f32 %v1911, %v1917
      %v1924 = vadd.f32 %v1912, %v1922
      %1925 = vst.msk [vmem:[%s1908] sm:$0xff] %vm1414, %v1923
      %1926 = vst.msk [vmem:[%s1908 + $0x8] sm:$0xff] %vm1414, %v1924
      %s1927 = scalar_lea.vmem [#allocation5], 16
      %v1928 = vld [vmem:[%s1927] sm:$0xff]
      %v1929 = vld [vmem:[%s1927 + $0x8] sm:$0xff]
      %1931 = vset.pattern.permute.xlu0 0
      %1932 = vperm.xlu0 %1931, %v1871
      %v1933 = vpop.permute.xlu0 %1932
      %1936 = vset.pattern.permute.xlu0 0
      %1937 = vperm.xlu0 %1936, %v1873
      %v1938 = vpop.permute.xlu0 %1937
      %v1940 = vmul.f32 %v1933, %v1928
      %v1941 = vmul.f32 %v1938, %v1929
      %v1942 = vpack.c.bf16 %v1901, %v1893
      %v1943 = vpack.c.bf16 %v1903, %v1895
      %v1944 = vpack.c.bf16 %v1905, %v1897
      %v1945 = vpack.c.bf16 %v1907, %v1899
      %1946 = vrot.lane.b32.xlu0 %v1499, 96
      %v1947 = vpop.permute.xlu0 %1946
      %1948 = vrot.lane.b32.xlu0 %v1500, 96
      %v1949 = vpop.permute.xlu0 %1948
      %1950 = vrot.lane.b32.xlu0 %v1501, 96
      %v1951 = vpop.permute.xlu0 %1950
      %1952 = vrot.lane.b32.xlu0 %v1502, 96
      %v1953 = vpop.permute.xlu0 %1952
      %1954 = vrot.lane.b32.xlu0 %v1503, 96
      %v1955 = vpop.permute.xlu0 %1954
      %1956 = vrot.lane.b32.xlu0 %v1504, 96
      %v1957 = vpop.permute.xlu0 %1956
      %1958 = vrot.lane.b32.xlu0 %v1505, 96
      %v1959 = vpop.permute.xlu0 %1958
      %1960 = vrot.lane.b32.xlu0 %v1506, 96
      %v1961 = vpop.permute.xlu0 %1960
      %1962 = vrot.lane.b32.xlu0 %v1507, 96
      %v1963 = vpop.permute.xlu0 %1962
      %1964 = vrot.lane.b32.xlu0 %v1508, 96
      %v1965 = vpop.permute.xlu0 %1964
      %1966 = vrot.lane.b32.xlu0 %v1509, 96
      %v1967 = vpop.permute.xlu0 %1966
      %1968 = vrot.lane.b32.xlu0 %v1510, 96
      %v1969 = vpop.permute.xlu0 %1968
      %1970 = vrot.lane.b32.xlu0 %v1511, 96
      %v1971 = vpop.permute.xlu0 %1970
      %1972 = vrot.lane.b32.xlu0 %v1512, 96
      %v1973 = vpop.permute.xlu0 %1972
      %1974 = vrot.lane.b32.xlu0 %v1513, 96
      %v1975 = vpop.permute.xlu0 %1974
      %1976 = vrot.lane.b32.xlu0 %v1514, 96
      %v1977 = vpop.permute.xlu0 %1976
      %1978 = vrot.lane.b32.xlu0 %v1515, 96
      %v1979 = vpop.permute.xlu0 %1978
      %1980 = vrot.lane.b32.xlu0 %v1516, 96
      %v1981 = vpop.permute.xlu0 %1980
      %1982 = vrot.lane.b32.xlu0 %v1517, 96
      %v1983 = vpop.permute.xlu0 %1982
      %1984 = vrot.lane.b32.xlu0 %v1518, 96
      %v1985 = vpop.permute.xlu0 %1984
      %1986 = vrot.lane.b32.xlu0 %v1519, 96
      %v1987 = vpop.permute.xlu0 %1986
      %1988 = vrot.lane.b32.xlu0 %v1520, 96
      %v1989 = vpop.permute.xlu0 %1988
      %1990 = vrot.lane.b32.xlu0 %v1521, 96
      %v1991 = vpop.permute.xlu0 %1990
      %1992 = vrot.lane.b32.xlu0 %v1522, 96
      %v1993 = vpop.permute.xlu0 %1992
      %1994 = vrot.lane.b32.xlu0 %v1523, 96
      %v1995 = vpop.permute.xlu0 %1994
      %1996 = vrot.lane.b32.xlu0 %v1524, 96
      %v1997 = vpop.permute.xlu0 %1996
      %1998 = vrot.lane.b32.xlu0 %v1525, 96
      %v1999 = vpop.permute.xlu0 %1998
      %2000 = vrot.lane.b32.xlu0 %v1526, 96
      %v2001 = vpop.permute.xlu0 %2000
      %2002 = vrot.lane.b32.xlu0 %v1527, 96
      %v2003 = vpop.permute.xlu0 %2002
      %2004 = vrot.lane.b32.xlu0 %v1528, 96
      %v2005 = vpop.permute.xlu0 %2004
      %2006 = vrot.lane.b32.xlu0 %v1529, 96
      %v2007 = vpop.permute.xlu0 %2006
      %2008 = vrot.lane.b32.xlu0 %v1530, 96
      %v2009 = vpop.permute.xlu0 %2008
      %2042 = vmatpush.bf16.msra.mxu0 %v1961
      %2043 = vmatpush.bf16.msra.mxu0 %v1959
      %2044 = vmatpush.bf16.msra.mxu0 %v1957
      %2045 = vmatpush.bf16.msra.mxu0 %v1955
      %2046 = vmatpush.bf16.msra.mxu0 %v1953
      %2047 = vmatpush.bf16.msra.mxu0 %v1951
      %2048 = vmatpush.bf16.msra.mxu0 %v1949
      %2049 = vmatpush.bf16.msra.mxu0 %v1947
      %2050 = vmatmul.bf16.gmra.mxu0 %v1942
      %v2051 = vpop.f32.mrf.mxu0
      %v2052 = vadd.f32 0.0, %v2051
      %v2053 = vpop.f32.mrf.mxu0
      %v2054 = vadd.f32 0.0, %v2053
      %2055 = vdwg.mxu0
      %2056 = vmatpush.bf16.msra.mxu0 %v1977
      %2057 = vmatpush.bf16.msra.mxu0 %v1975
      %2058 = vmatpush.bf16.msra.mxu0 %v1973
      %2059 = vmatpush.bf16.msra.mxu0 %v1971
      %2060 = vmatpush.bf16.msra.mxu0 %v1969
      %2061 = vmatpush.bf16.msra.mxu0 %v1967
      %2062 = vmatpush.bf16.msra.mxu0 %v1965
      %2063 = vmatpush.bf16.msra.mxu0 %v1963
      %2064 = vmatmul.bf16.gmra.mxu0 %v1943
      %v2065 = vpop.f32.mrf.mxu0
      %v2066 = vadd.f32 %v2052, %v2065
      %v2067 = vpop.f32.mrf.mxu0
      %v2068 = vadd.f32 %v2054, %v2067
      %2069 = vdwg.mxu0
      %2070 = vmatpush.bf16.msra.mxu0 %v1993
      %2071 = vmatpush.bf16.msra.mxu0 %v1991
      %2072 = vmatpush.bf16.msra.mxu0 %v1989
      %2073 = vmatpush.bf16.msra.mxu0 %v1987
      %2074 = vmatpush.bf16.msra.mxu0 %v1985
      %2075 = vmatpush.bf16.msra.mxu0 %v1983
      %2076 = vmatpush.bf16.msra.mxu0 %v1981
      %2077 = vmatpush.bf16.msra.mxu0 %v1979
      %2078 = vmatmul.bf16.gmra.mxu0 %v1944
      %v2079 = vpop.f32.mrf.mxu0
      %v2080 = vadd.f32 %v2066, %v2079
      %v2081 = vpop.f32.mrf.mxu0
      %v2082 = vadd.f32 %v2068, %v2081
      %2083 = vdwg.mxu0
      %2084 = vmatpush.bf16.msra.mxu0 %v2009
      %2085 = vmatpush.bf16.msra.mxu0 %v2007
      %2086 = vmatpush.bf16.msra.mxu0 %v2005
      %2087 = vmatpush.bf16.msra.mxu0 %v2003
      %2088 = vmatpush.bf16.msra.mxu0 %v2001
      %2089 = vmatpush.bf16.msra.mxu0 %v1999
      %2090 = vmatpush.bf16.msra.mxu0 %v1997
      %2091 = vmatpush.bf16.msra.mxu0 %v1995
      %2092 = vmatmul.bf16.gmra.mxu0 %v1945
      %v2093 = vpop.f32.mrf.mxu0
      %v2094 = vadd.f32 %v2080, %v2093
      %v2095 = vpop.f32.mrf.mxu0
      %v2096 = vadd.f32 %v2082, %v2095
      %2097 = vdwg.mxu0
      %v2098 = vadd.f32 %v1940, %v2094
      %v2099 = vadd.f32 %v1941, %v2096
      %2100 = vst.msk [vmem:[%s1927] sm:$0xff] %vm1188, %v2098
      %2101 = vst.msk [vmem:[%s1927 + $0x8] sm:$0xff] %vm1188, %v2099
      %2102 = vst.msk [vmem:[%s1853] sm:$0xff] %vm1414, %v1866
      %2103 = vst.msk [vmem:[%s1853 + $0x8] sm:$0xff] %vm1414, %v1867
      %v2104 = vld [vmem:[#allocation2] sm:$0xf]
      %v2105 = vld [vmem:[#allocation2 + $0x4] sm:$0xf]
      %v2108 = vunpack.c.l.b16 %v2104
      %v2109 = vunpack.c.l.b16 %v2105
      %v2110 = vpack.c.b16 %v2109, %v2108
      %2111 = vrot.lane.b32.xlu0 %v2110, 64
      %v2112 = vpop.permute.xlu0 %2111
      %2113 = vrot.lane.b32.xlu0 %v1156, 64
      %v2114 = vpop.permute.xlu0 %2113
      %2115 = vrot.lane.b32.xlu0 %v1157, 64
      %v2116 = vpop.permute.xlu0 %2115
      %2117 = vrot.lane.b32.xlu0 %v1158, 64
      %v2118 = vpop.permute.xlu0 %2117
      %2119 = vrot.lane.b32.xlu0 %v1159, 64
      %v2120 = vpop.permute.xlu0 %2119
      %2121 = vrot.lane.b32.xlu0 %v1160, 64
      %v2122 = vpop.permute.xlu0 %2121
      %2123 = vrot.lane.b32.xlu0 %v1161, 64
      %v2124 = vpop.permute.xlu0 %2123
      %2125 = vrot.lane.b32.xlu0 %v1162, 64
      %v2126 = vpop.permute.xlu0 %2125
      %2127 = vrot.lane.b32.xlu0 %v1163, 64
      %v2128 = vpop.permute.xlu0 %2127
      %2129 = vrot.lane.b32.xlu0 %v1164, 64
      %v2130 = vpop.permute.xlu0 %2129
      %2131 = vrot.lane.b32.xlu0 %v1165, 64
      %v2132 = vpop.permute.xlu0 %2131
      %2133 = vrot.lane.b32.xlu0 %v1166, 64
      %v2134 = vpop.permute.xlu0 %2133
      %2135 = vrot.lane.b32.xlu0 %v1167, 64
      %v2136 = vpop.permute.xlu0 %2135
      %2137 = vrot.lane.b32.xlu0 %v1168, 64
      %v2138 = vpop.permute.xlu0 %2137
      %2139 = vrot.lane.b32.xlu0 %v1169, 64
      %v2140 = vpop.permute.xlu0 %2139
      %2141 = vrot.lane.b32.xlu0 %v1170, 64
      %v2142 = vpop.permute.xlu0 %2141
      %2143 = vrot.lane.b32.xlu0 %v1171, 64
      %v2144 = vpop.permute.xlu0 %2143
      %2145 = vrot.lane.b32.xlu0 %v1172, 64
      %v2146 = vpop.permute.xlu0 %2145
      %2147 = vrot.lane.b32.xlu0 %v1173, 64
      %v2148 = vpop.permute.xlu0 %2147
      %2149 = vrot.lane.b32.xlu0 %v1174, 64
      %v2150 = vpop.permute.xlu0 %2149
      %2151 = vrot.lane.b32.xlu0 %v1175, 64
      %v2152 = vpop.permute.xlu0 %2151
      %2153 = vrot.lane.b32.xlu0 %v1176, 64
      %v2154 = vpop.permute.xlu0 %2153
      %2155 = vrot.lane.b32.xlu0 %v1177, 64
      %v2156 = vpop.permute.xlu0 %2155
      %2157 = vrot.lane.b32.xlu0 %v1178, 64
      %v2158 = vpop.permute.xlu0 %2157
      %2159 = vrot.lane.b32.xlu0 %v1179, 64
      %v2160 = vpop.permute.xlu0 %2159
      %2161 = vrot.lane.b32.xlu0 %v1180, 64
      %v2162 = vpop.permute.xlu0 %2161
      %2163 = vrot.lane.b32.xlu0 %v1181, 64
      %v2164 = vpop.permute.xlu0 %2163
      %2165 = vrot.lane.b32.xlu0 %v1182, 64
      %v2166 = vpop.permute.xlu0 %2165
      %2167 = vrot.lane.b32.xlu0 %v1183, 64
      %v2168 = vpop.permute.xlu0 %2167
      %2169 = vrot.lane.b32.xlu0 %v1184, 64
      %v2170 = vpop.permute.xlu0 %2169
      %2171 = vrot.lane.b32.xlu0 %v1185, 64
      %v2172 = vpop.permute.xlu0 %2171
      %2173 = vrot.lane.b32.xlu0 %v1186, 64
      %v2174 = vpop.permute.xlu0 %2173
      %2175 = vrot.lane.b32.xlu0 %v1187, 64
      %v2176 = vpop.permute.xlu0 %2175
      %v2178 = vsel %vm1188, %v2112, 0
      %v2181 = vsel %vm1188, %v2114, 0
      %v2184 = vsel %vm1188, %v2116, 0
      %v2187 = vsel %vm1188, %v2118, 0
      %v2190 = vsel %vm1188, %v2120, 0
      %v2193 = vsel %vm1188, %v2122, 0
      %v2196 = vsel %vm1188, %v2124, 0
      %v2199 = vsel %vm1188, %v2126, 0
      %v2202 = vsel %vm1188, %v2128, 0
      %v2205 = vsel %vm1188, %v2130, 0
      %v2208 = vsel %vm1188, %v2132, 0
      %v2211 = vsel %vm1188, %v2134, 0
      %v2214 = vsel %vm1188, %v2136, 0
      %v2217 = vsel %vm1188, %v2138, 0
      %v2220 = vsel %vm1188, %v2140, 0
      %v2223 = vsel %vm1188, %v2142, 0
      %v2226 = vsel %vm1188, %v2144, 0
      %v2229 = vsel %vm1188, %v2146, 0
      %v2232 = vsel %vm1188, %v2148, 0
      %v2235 = vsel %vm1188, %v2150, 0
      %v2238 = vsel %vm1188, %v2152, 0
      %v2241 = vsel %vm1188, %v2154, 0
      %v2244 = vsel %vm1188, %v2156, 0
      %v2247 = vsel %vm1188, %v2158, 0
      %v2250 = vsel %vm1188, %v2160, 0
      %v2253 = vsel %vm1188, %v2162, 0
      %v2256 = vsel %vm1188, %v2164, 0
      %v2259 = vsel %vm1188, %v2166, 0
      %v2262 = vsel %vm1188, %v2168, 0
      %v2265 = vsel %vm1188, %v2170, 0
      %v2268 = vsel %vm1188, %v2172, 0
      %v2271 = vsel %vm1188, %v2174, 0
      %v2274 = vsel %vm1188, %v2176, 0
      %2276 = vmatpush.bf16.xpose.msra.mxu0 %v2202
      %2277 = vmatpush.bf16.xpose.msra.mxu0 %v2199
      %2278 = vmatpush.bf16.xpose.msra.mxu0 %v2196
      %2279 = vmatpush.bf16.xpose.msra.mxu0 %v2193
      %2280 = vmatpush.bf16.xpose.msra.mxu0 %v2190
      %2281 = vmatpush.bf16.xpose.msra.mxu0 %v2187
      %2282 = vmatpush.bf16.xpose.msra.mxu0 %v2184
      %2283 = vmatpush.bf16.xpose.msra.mxu0 %v2181
      %2284 = vmatmul.bf16.gmra.mxu0 %v2178
      %v2285 = vpop.f32.mrf.mxu0
      %v2286 = vadd.f32 0.0, %v2285
      %v2287 = vpop.f32.mrf.mxu0
      %v2288 = vadd.f32 0.0, %v2287
      %2289 = vdwg.mxu0
      %2290 = vmatpush.bf16.xpose.msra.mxu0 %v2226
      %2291 = vmatpush.bf16.xpose.msra.mxu0 %v2223
      %2292 = vmatpush.bf16.xpose.msra.mxu0 %v2220
      %2293 = vmatpush.bf16.xpose.msra.mxu0 %v2217
      %2294 = vmatpush.bf16.xpose.msra.mxu0 %v2214
      %2295 = vmatpush.bf16.xpose.msra.mxu0 %v2211
      %2296 = vmatpush.bf16.xpose.msra.mxu0 %v2208
      %2297 = vmatpush.bf16.xpose.msra.mxu0 %v2205
      %2298 = vmatmul.bf16.gmra.mxu0 %v2178
      %v2299 = vpop.f32.mrf.mxu0
      %v2300 = vadd.f32 0.0, %v2299
      %v2301 = vpop.f32.mrf.mxu0
      %v2302 = vadd.f32 0.0, %v2301
      %2303 = vdwg.mxu0
      %2304 = vmatpush.bf16.xpose.msra.mxu0 %v2250
      %2305 = vmatpush.bf16.xpose.msra.mxu0 %v2247
      %2306 = vmatpush.bf16.xpose.msra.mxu0 %v2244
      %2307 = vmatpush.bf16.xpose.msra.mxu0 %v2241
      %2308 = vmatpush.bf16.xpose.msra.mxu0 %v2238
      %2309 = vmatpush.bf16.xpose.msra.mxu0 %v2235
      %2310 = vmatpush.bf16.xpose.msra.mxu0 %v2232
      %2311 = vmatpush.bf16.xpose.msra.mxu0 %v2229
      %2312 = vmatmul.bf16.gmra.mxu0 %v2178
      %v2313 = vpop.f32.mrf.mxu0
      %v2314 = vadd.f32 0.0, %v2313
      %v2315 = vpop.f32.mrf.mxu0
      %v2316 = vadd.f32 0.0, %v2315
      %2317 = vdwg.mxu0
      %2318 = vmatpush.bf16.xpose.msra.mxu0 %v2274
      %2319 = vmatpush.bf16.xpose.msra.mxu0 %v2271
      %2320 = vmatpush.bf16.xpose.msra.mxu0 %v2268
      %2321 = vmatpush.bf16.xpose.msra.mxu0 %v2265
      %2322 = vmatpush.bf16.xpose.msra.mxu0 %v2262
      %2323 = vmatpush.bf16.xpose.msra.mxu0 %v2259
      %2324 = vmatpush.bf16.xpose.msra.mxu0 %v2256
      %2325 = vmatpush.bf16.xpose.msra.mxu0 %v2253
      %2326 = vmatmul.bf16.gmra.mxu0 %v2178
      %v2327 = vpop.f32.mrf.mxu0
      %v2328 = vadd.f32 0.0, %v2327
      %v2329 = vpop.f32.mrf.mxu0
      %v2330 = vadd.f32 0.0, %v2329
      %2331 = vdwg.mxu0
      %s2332 = scalar_lea.vmem [#allocation3], 32
      %v2333 = vld [vmem:[%s2332] sm:$0xff]
      %v2334 = vld [vmem:[%s2332 + $0x8] sm:$0xff]
      %v2335 = vmax.f32 %v2286, %v2314
      %v2336 = vmax.f32 %v2300, %v2328
      %v2337 = vmax.f32 %v2335, %v2336
      %2338 = vmax.xlane.f32.xlu0 %v2337
      %v2339 = vpop.xlane.xlu0 %2338
      %v2340 = vmax.f32 %v2288, %v2316
      %v2341 = vmax.f32 %v2302, %v2330
      %v2342 = vmax.f32 %v2340, %v2341
      %2343 = vmax.xlane.f32.xlu0 %v2342
      %v2344 = vpop.xlane.xlu0 %2343
      %v2345 = vmax.f32 %v2333, %v2339
      %v2346 = vmax.f32 %v2334, %v2344
      %v2347 = vsub.f32 %v2333, %v2345
      %v2348 = vsub.f32 %v2334, %v2346
      %v2349 = vmul.f32 %v2347, 1.442695
      %v2350 = vpow.pop %v2349
      %v2351 = vmul.f32 %v2348, 1.442695
      %v2352 = vpow.pop %v2351
      %2354 = vset.pattern.permute.xlu0 0
      %2355 = vperm.xlu0 %2354, %v2345
      %v2356 = vpop.permute.xlu0 %2355
      %2359 = vset.pattern.permute.xlu0 0
      %2360 = vperm.xlu0 %2359, %v2346
      %v2361 = vpop.permute.xlu0 %2360
      %v2363 = vsub.f32 %v2286, %v2356
      %v2364 = vsub.f32 %v2300, %v2356
      %v2365 = vsub.f32 %v2314, %v2356
      %v2366 = vsub.f32 %v2328, %v2356
      %v2367 = vsub.f32 %v2288, %v2361
      %v2368 = vsub.f32 %v2302, %v2361
      %v2369 = vsub.f32 %v2316, %v2361
      %v2370 = vsub.f32 %v2330, %v2361
      %v2371 = vmul.f32 %v2363, 1.442695
      %v2372 = vpow.pop %v2371
      %v2373 = vmul.f32 %v2364, 1.442695
      %v2374 = vpow.pop %v2373
      %v2375 = vmul.f32 %v2365, 1.442695
      %v2376 = vpow.pop %v2375
      %v2377 = vmul.f32 %v2366, 1.442695
      %v2378 = vpow.pop %v2377
      %v2379 = vmul.f32 %v2367, 1.442695
      %v2380 = vpow.pop %v2379
      %v2381 = vmul.f32 %v2368, 1.442695
      %v2382 = vpow.pop %v2381
      %v2383 = vmul.f32 %v2369, 1.442695
      %v2384 = vpow.pop %v2383
      %v2385 = vmul.f32 %v2370, 1.442695
      %v2386 = vpow.pop %v2385
      %s2387 = scalar_lea.vmem [#allocation4], 32
      %v2388 = vld [vmem:[%s2387] sm:$0xff]
      %v2389 = vld [vmem:[%s2387 + $0x8] sm:$0xff]
      %v2390 = vmul.f32 %v2350, %v2388
      %v2391 = vmul.f32 %v2352, %v2389
      %v2392 = vadd.f32 %v2372, %v2374
      %v2393 = vadd.f32 %v2392, %v2376
      %v2394 = vadd.f32 %v2393, %v2378
      %2395 = vadd.xlane.f32.xlu0 %v2394
      %v2396 = vpop.xlane.xlu0 %2395
      %v2397 = vadd.f32 %v2380, %v2382
      %v2398 = vadd.f32 %v2397, %v2384
      %v2399 = vadd.f32 %v2398, %v2386
      %2400 = vadd.xlane.f32.xlu0 %v2399
      %v2401 = vpop.xlane.xlu0 %2400
      %v2402 = vadd.f32 %v2390, %v2396
      %v2403 = vadd.f32 %v2391, %v2401
      %2404 = vst.msk [vmem:[%s2387] sm:$0xff] %vm1414, %v2402
      %2405 = vst.msk [vmem:[%s2387 + $0x8] sm:$0xff] %vm1414, %v2403
      %s2406 = scalar_lea.vmem [#allocation5], 32
      %v2407 = vld [vmem:[%s2406] sm:$0xff]
      %v2408 = vld [vmem:[%s2406 + $0x8] sm:$0xff]
      %2410 = vset.pattern.permute.xlu0 0
      %2411 = vperm.xlu0 %2410, %v2350
      %v2412 = vpop.permute.xlu0 %2411
      %2415 = vset.pattern.permute.xlu0 0
      %2416 = vperm.xlu0 %2415, %v2352
      %v2417 = vpop.permute.xlu0 %2416
      %v2419 = vmul.f32 %v2412, %v2407
      %v2420 = vmul.f32 %v2417, %v2408
      %v2421 = vpack.c.bf16 %v2380, %v2372
      %v2422 = vpack.c.bf16 %v2382, %v2374
      %v2423 = vpack.c.bf16 %v2384, %v2376
      %v2424 = vpack.c.bf16 %v2386, %v2378
      %2425 = vrot.lane.b32.xlu0 %v1499, 64
      %v2426 = vpop.permute.xlu0 %2425
      %2427 = vrot.lane.b32.xlu0 %v1500, 64
      %v2428 = vpop.permute.xlu0 %2427
      %2429 = vrot.lane.b32.xlu0 %v1501, 64
      %v2430 = vpop.permute.xlu0 %2429
      %2431 = vrot.lane.b32.xlu0 %v1502, 64
      %v2432 = vpop.permute.xlu0 %2431
      %2433 = vrot.lane.b32.xlu0 %v1503, 64
      %v2434 = vpop.permute.xlu0 %2433
      %2435 = vrot.lane.b32.xlu0 %v1504, 64
      %v2436 = vpop.permute.xlu0 %2435
      %2437 = vrot.lane.b32.xlu0 %v1505, 64
      %v2438 = vpop.permute.xlu0 %2437
      %2439 = vrot.lane.b32.xlu0 %v1506, 64
      %v2440 = vpop.permute.xlu0 %2439
      %2441 = vrot.lane.b32.xlu0 %v1507, 64
      %v2442 = vpop.permute.xlu0 %2441
      %2443 = vrot.lane.b32.xlu0 %v1508, 64
      %v2444 = vpop.permute.xlu0 %2443
      %2445 = vrot.lane.b32.xlu0 %v1509, 64
      %v2446 = vpop.permute.xlu0 %2445
      %2447 = vrot.lane.b32.xlu0 %v1510, 64
      %v2448 = vpop.permute.xlu0 %2447
      %2449 = vrot.lane.b32.xlu0 %v1511, 64
      %v2450 = vpop.permute.xlu0 %2449
      %2451 = vrot.lane.b32.xlu0 %v1512, 64
      %v2452 = vpop.permute.xlu0 %2451
      %2453 = vrot.lane.b32.xlu0 %v1513, 64
      %v2454 = vpop.permute.xlu0 %2453
      %2455 = vrot.lane.b32.xlu0 %v1514, 64
      %v2456 = vpop.permute.xlu0 %2455
      %2457 = vrot.lane.b32.xlu0 %v1515, 64
      %v2458 = vpop.permute.xlu0 %2457
      %2459 = vrot.lane.b32.xlu0 %v1516, 64
      %v2460 = vpop.permute.xlu0 %2459
      %2461 = vrot.lane.b32.xlu0 %v1517, 64
      %v2462 = vpop.permute.xlu0 %2461
      %2463 = vrot.lane.b32.xlu0 %v1518, 64
      %v2464 = vpop.permute.xlu0 %2463
      %2465 = vrot.lane.b32.xlu0 %v1519, 64
      %v2466 = vpop.permute.xlu0 %2465
      %2467 = vrot.lane.b32.xlu0 %v1520, 64
      %v2468 = vpop.permute.xlu0 %2467
      %2469 = vrot.lane.b32.xlu0 %v1521, 64
      %v2470 = vpop.permute.xlu0 %2469
      %2471 = vrot.lane.b32.xlu0 %v1522, 64
      %v2472 = vpop.permute.xlu0 %2471
      %2473 = vrot.lane.b32.xlu0 %v1523, 64
      %v2474 = vpop.permute.xlu0 %2473
      %2475 = vrot.lane.b32.xlu0 %v1524, 64
      %v2476 = vpop.permute.xlu0 %2475
      %2477 = vrot.lane.b32.xlu0 %v1525, 64
      %v2478 = vpop.permute.xlu0 %2477
      %2479 = vrot.lane.b32.xlu0 %v1526, 64
      %v2480 = vpop.permute.xlu0 %2479
      %2481 = vrot.lane.b32.xlu0 %v1527, 64
      %v2482 = vpop.permute.xlu0 %2481
      %2483 = vrot.lane.b32.xlu0 %v1528, 64
      %v2484 = vpop.permute.xlu0 %2483
      %2485 = vrot.lane.b32.xlu0 %v1529, 64
      %v2486 = vpop.permute.xlu0 %2485
      %2487 = vrot.lane.b32.xlu0 %v1530, 64
      %v2488 = vpop.permute.xlu0 %2487
      %2521 = vmatpush.bf16.msra.mxu0 %v2440
      %2522 = vmatpush.bf16.msra.mxu0 %v2438
      %2523 = vmatpush.bf16.msra.mxu0 %v2436
      %2524 = vmatpush.bf16.msra.mxu0 %v2434
      %2525 = vmatpush.bf16.msra.mxu0 %v2432
      %2526 = vmatpush.bf16.msra.mxu0 %v2430
      %2527 = vmatpush.bf16.msra.mxu0 %v2428
      %2528 = vmatpush.bf16.msra.mxu0 %v2426
      %2529 = vmatmul.bf16.gmra.mxu0 %v2421
      %v2530 = vpop.f32.mrf.mxu0
      %v2531 = vadd.f32 0.0, %v2530
      %v2532 = vpop.f32.mrf.mxu0
      %v2533 = vadd.f32 0.0, %v2532
      %2534 = vdwg.mxu0
      %2535 = vmatpush.bf16.msra.mxu0 %v2456
      %2536 = vmatpush.bf16.msra.mxu0 %v2454
      %2537 = vmatpush.bf16.msra.mxu0 %v2452
      %2538 = vmatpush.bf16.msra.mxu0 %v2450
      %2539 = vmatpush.bf16.msra.mxu0 %v2448
      %2540 = vmatpush.bf16.msra.mxu0 %v2446
      %2541 = vmatpush.bf16.msra.mxu0 %v2444
      %2542 = vmatpush.bf16.msra.mxu0 %v2442
      %2543 = vmatmul.bf16.gmra.mxu0 %v2422
      %v2544 = vpop.f32.mrf.mxu0
      %v2545 = vadd.f32 %v2531, %v2544
      %v2546 = vpop.f32.mrf.mxu0
      %v2547 = vadd.f32 %v2533, %v2546
      %2548 = vdwg.mxu0
      %2549 = vmatpush.bf16.msra.mxu0 %v2472
      %2550 = vmatpush.bf16.msra.mxu0 %v2470
      %2551 = vmatpush.bf16.msra.mxu0 %v2468
      %2552 = vmatpush.bf16.msra.mxu0 %v2466
      %2553 = vmatpush.bf16.msra.mxu0 %v2464
      %2554 = vmatpush.bf16.msra.mxu0 %v2462
      %2555 = vmatpush.bf16.msra.mxu0 %v2460
      %2556 = vmatpush.bf16.msra.mxu0 %v2458
      %2557 = vmatmul.bf16.gmra.mxu0 %v2423
      %v2558 = vpop.f32.mrf.mxu0
      %v2559 = vadd.f32 %v2545, %v2558
      %v2560 = vpop.f32.mrf.mxu0
      %v2561 = vadd.f32 %v2547, %v2560
      %2562 = vdwg.mxu0
      %2563 = vmatpush.bf16.msra.mxu0 %v2488
      %2564 = vmatpush.bf16.msra.mxu0 %v2486
      %2565 = vmatpush.bf16.msra.mxu0 %v2484
      %2566 = vmatpush.bf16.msra.mxu0 %v2482
      %2567 = vmatpush.bf16.msra.mxu0 %v2480
      %2568 = vmatpush.bf16.msra.mxu0 %v2478
      %2569 = vmatpush.bf16.msra.mxu0 %v2476
      %2570 = vmatpush.bf16.msra.mxu0 %v2474
      %2571 = vmatmul.bf16.gmra.mxu0 %v2424
      %v2572 = vpop.f32.mrf.mxu0
      %v2573 = vadd.f32 %v2559, %v2572
      %v2574 = vpop.f32.mrf.mxu0
      %v2575 = vadd.f32 %v2561, %v2574
      %2576 = vdwg.mxu0
      %v2577 = vadd.f32 %v2419, %v2573
      %v2578 = vadd.f32 %v2420, %v2575
      %2579 = vst.msk [vmem:[%s2406] sm:$0xff] %vm1188, %v2577
      %2580 = vst.msk [vmem:[%s2406 + $0x8] sm:$0xff] %vm1188, %v2578
      %2581 = vst.msk [vmem:[%s2332] sm:$0xff] %vm1414, %v2345
      %2582 = vst.msk [vmem:[%s2332 + $0x8] sm:$0xff] %vm1414, %v2346
      %v2583 = vld [vmem:[#allocation2] sm:$0xf]
      %v2584 = vld [vmem:[#allocation2 + $0x4] sm:$0xf]
      %v2587 = vunpack.c.l.b16 %v2583
      %v2588 = vunpack.c.l.b16 %v2584
      %v2589 = vpack.c.b16 %v2588, %v2587
      %2590 = vrot.lane.b32.xlu0 %v2589, 32
      %v2591 = vpop.permute.xlu0 %2590
      %2592 = vrot.lane.b32.xlu0 %v1156, 32
      %v2593 = vpop.permute.xlu0 %2592
      %2594 = vrot.lane.b32.xlu0 %v1157, 32
      %v2595 = vpop.permute.xlu0 %2594
      %2596 = vrot.lane.b32.xlu0 %v1158, 32
      %v2597 = vpop.permute.xlu0 %2596
      %2598 = vrot.lane.b32.xlu0 %v1159, 32
      %v2599 = vpop.permute.xlu0 %2598
      %2600 = vrot.lane.b32.xlu0 %v1160, 32
      %v2601 = vpop.permute.xlu0 %2600
      %2602 = vrot.lane.b32.xlu0 %v1161, 32
      %v2603 = vpop.permute.xlu0 %2602
      %2604 = vrot.lane.b32.xlu0 %v1162, 32
      %v2605 = vpop.permute.xlu0 %2604
      %2606 = vrot.lane.b32.xlu0 %v1163, 32
      %v2607 = vpop.permute.xlu0 %2606
      %2608 = vrot.lane.b32.xlu0 %v1164, 32
      %v2609 = vpop.permute.xlu0 %2608
      %2610 = vrot.lane.b32.xlu0 %v1165, 32
      %v2611 = vpop.permute.xlu0 %2610
      %2612 = vrot.lane.b32.xlu0 %v1166, 32
      %v2613 = vpop.permute.xlu0 %2612
      %2614 = vrot.lane.b32.xlu0 %v1167, 32
      %v2615 = vpop.permute.xlu0 %2614
      %2616 = vrot.lane.b32.xlu0 %v1168, 32
      %v2617 = vpop.permute.xlu0 %2616
      %2618 = vrot.lane.b32.xlu0 %v1169, 32
      %v2619 = vpop.permute.xlu0 %2618
      %2620 = vrot.lane.b32.xlu0 %v1170, 32
      %v2621 = vpop.permute.xlu0 %2620
      %2622 = vrot.lane.b32.xlu0 %v1171, 32
      %v2623 = vpop.permute.xlu0 %2622
      %2624 = vrot.lane.b32.xlu0 %v1172, 32
      %v2625 = vpop.permute.xlu0 %2624
      %2626 = vrot.lane.b32.xlu0 %v1173, 32
      %v2627 = vpop.permute.xlu0 %2626
      %2628 = vrot.lane.b32.xlu0 %v1174, 32
      %v2629 = vpop.permute.xlu0 %2628
      %2630 = vrot.lane.b32.xlu0 %v1175, 32
      %v2631 = vpop.permute.xlu0 %2630
      %2632 = vrot.lane.b32.xlu0 %v1176, 32
      %v2633 = vpop.permute.xlu0 %2632
      %2634 = vrot.lane.b32.xlu0 %v1177, 32
      %v2635 = vpop.permute.xlu0 %2634
      %2636 = vrot.lane.b32.xlu0 %v1178, 32
      %v2637 = vpop.permute.xlu0 %2636
      %2638 = vrot.lane.b32.xlu0 %v1179, 32
      %v2639 = vpop.permute.xlu0 %2638
      %2640 = vrot.lane.b32.xlu0 %v1180, 32
      %v2641 = vpop.permute.xlu0 %2640
      %2642 = vrot.lane.b32.xlu0 %v1181, 32
      %v2643 = vpop.permute.xlu0 %2642
      %2644 = vrot.lane.b32.xlu0 %v1182, 32
      %v2645 = vpop.permute.xlu0 %2644
      %2646 = vrot.lane.b32.xlu0 %v1183, 32
      %v2647 = vpop.permute.xlu0 %2646
      %2648 = vrot.lane.b32.xlu0 %v1184, 32
      %v2649 = vpop.permute.xlu0 %2648
      %2650 = vrot.lane.b32.xlu0 %v1185, 32
      %v2651 = vpop.permute.xlu0 %2650
      %2652 = vrot.lane.b32.xlu0 %v1186, 32
      %v2653 = vpop.permute.xlu0 %2652
      %2654 = vrot.lane.b32.xlu0 %v1187, 32
      %v2655 = vpop.permute.xlu0 %2654
      %v2657 = vsel %vm1188, %v2591, 0
      %v2660 = vsel %vm1188, %v2593, 0
      %v2663 = vsel %vm1188, %v2595, 0
      %v2666 = vsel %vm1188, %v2597, 0
      %v2669 = vsel %vm1188, %v2599, 0
      %v2672 = vsel %vm1188, %v2601, 0
      %v2675 = vsel %vm1188, %v2603, 0
      %v2678 = vsel %vm1188, %v2605, 0
      %v2681 = vsel %vm1188, %v2607, 0
      %v2684 = vsel %vm1188, %v2609, 0
      %v2687 = vsel %vm1188, %v2611, 0
      %v2690 = vsel %vm1188, %v2613, 0
      %v2693 = vsel %vm1188, %v2615, 0
      %v2696 = vsel %vm1188, %v2617, 0
      %v2699 = vsel %vm1188, %v2619, 0
      %v2702 = vsel %vm1188, %v2621, 0
      %v2705 = vsel %vm1188, %v2623, 0
      %v2708 = vsel %vm1188, %v2625, 0
      %v2711 = vsel %vm1188, %v2627, 0
      %v2714 = vsel %vm1188, %v2629, 0
      %v2717 = vsel %vm1188, %v2631, 0
      %v2720 = vsel %vm1188, %v2633, 0
      %v2723 = vsel %vm1188, %v2635, 0
      %v2726 = vsel %vm1188, %v2637, 0
      %v2729 = vsel %vm1188, %v2639, 0
      %v2732 = vsel %vm1188, %v2641, 0
      %v2735 = vsel %vm1188, %v2643, 0
      %v2738 = vsel %vm1188, %v2645, 0
      %v2741 = vsel %vm1188, %v2647, 0
      %v2744 = vsel %vm1188, %v2649, 0
      %v2747 = vsel %vm1188, %v2651, 0
      %v2750 = vsel %vm1188, %v2653, 0
      %v2753 = vsel %vm1188, %v2655, 0
      %2755 = vmatpush.bf16.xpose.msra.mxu0 %v2681
      %2756 = vmatpush.bf16.xpose.msra.mxu0 %v2678
      %2757 = vmatpush.bf16.xpose.msra.mxu0 %v2675
      %2758 = vmatpush.bf16.xpose.msra.mxu0 %v2672
      %2759 = vmatpush.bf16.xpose.msra.mxu0 %v2669
      %2760 = vmatpush.bf16.xpose.msra.mxu0 %v2666
      %2761 = vmatpush.bf16.xpose.msra.mxu0 %v2663
      %2762 = vmatpush.bf16.xpose.msra.mxu0 %v2660
      %2763 = vmatmul.bf16.gmra.mxu0 %v2657
      %v2764 = vpop.f32.mrf.mxu0
      %v2765 = vadd.f32 0.0, %v2764
      %v2766 = vpop.f32.mrf.mxu0
      %v2767 = vadd.f32 0.0, %v2766
      %2768 = vdwg.mxu0
      %2769 = vmatpush.bf16.xpose.msra.mxu0 %v2705
      %2770 = vmatpush.bf16.xpose.msra.mxu0 %v2702
      %2771 = vmatpush.bf16.xpose.msra.mxu0 %v2699
      %2772 = vmatpush.bf16.xpose.msra.mxu0 %v2696
      %2773 = vmatpush.bf16.xpose.msra.mxu0 %v2693
      %2774 = vmatpush.bf16.xpose.msra.mxu0 %v2690
      %2775 = vmatpush.bf16.xpose.msra.mxu0 %v2687
      %2776 = vmatpush.bf16.xpose.msra.mxu0 %v2684
      %2777 = vmatmul.bf16.gmra.mxu0 %v2657
      %v2778 = vpop.f32.mrf.mxu0
      %v2779 = vadd.f32 0.0, %v2778
      %v2780 = vpop.f32.mrf.mxu0
      %v2781 = vadd.f32 0.0, %v2780
      %2782 = vdwg.mxu0
      %2783 = vmatpush.bf16.xpose.msra.mxu0 %v2729
      %2784 = vmatpush.bf16.xpose.msra.mxu0 %v2726
      %2785 = vmatpush.bf16.xpose.msra.mxu0 %v2723
      %2786 = vmatpush.bf16.xpose.msra.mxu0 %v2720
      %2787 = vmatpush.bf16.xpose.msra.mxu0 %v2717
      %2788 = vmatpush.bf16.xpose.msra.mxu0 %v2714
      %2789 = vmatpush.bf16.xpose.msra.mxu0 %v2711
      %2790 = vmatpush.bf16.xpose.msra.mxu0 %v2708
      %2791 = vmatmul.bf16.gmra.mxu0 %v2657
      %v2792 = vpop.f32.mrf.mxu0
      %v2793 = vadd.f32 0.0, %v2792
      %v2794 = vpop.f32.mrf.mxu0
      %v2795 = vadd.f32 0.0, %v2794
      %2796 = vdwg.mxu0
      %2797 = vmatpush.bf16.xpose.msra.mxu0 %v2753
      %2798 = vmatpush.bf16.xpose.msra.mxu0 %v2750
      %2799 = vmatpush.bf16.xpose.msra.mxu0 %v2747
      %2800 = vmatpush.bf16.xpose.msra.mxu0 %v2744
      %2801 = vmatpush.bf16.xpose.msra.mxu0 %v2741
      %2802 = vmatpush.bf16.xpose.msra.mxu0 %v2738
      %2803 = vmatpush.bf16.xpose.msra.mxu0 %v2735
      %2804 = vmatpush.bf16.xpose.msra.mxu0 %v2732
      %2805 = vmatmul.bf16.gmra.mxu0 %v2657
      %v2806 = vpop.f32.mrf.mxu0
      %v2807 = vadd.f32 0.0, %v2806
      %v2808 = vpop.f32.mrf.mxu0
      %v2809 = vadd.f32 0.0, %v2808
      %2810 = vdwg.mxu0
      %s2811 = scalar_lea.vmem [#allocation3], 48
      %v2812 = vld [vmem:[%s2811] sm:$0xff]
      %v2813 = vld [vmem:[%s2811 + $0x8] sm:$0xff]
      %v2814 = vmax.f32 %v2765, %v2793
      %v2815 = vmax.f32 %v2779, %v2807
      %v2816 = vmax.f32 %v2814, %v2815
      %2817 = vmax.xlane.f32.xlu0 %v2816
      %v2818 = vpop.xlane.xlu0 %2817
      %v2819 = vmax.f32 %v2767, %v2795
      %v2820 = vmax.f32 %v2781, %v2809
      %v2821 = vmax.f32 %v2819, %v2820
      %2822 = vmax.xlane.f32.xlu0 %v2821
      %v2823 = vpop.xlane.xlu0 %2822
      %v2824 = vmax.f32 %v2812, %v2818
      %v2825 = vmax.f32 %v2813, %v2823
      %v2826 = vsub.f32 %v2812, %v2824
      %v2827 = vsub.f32 %v2813, %v2825
      %v2828 = vmul.f32 %v2826, 1.442695
      %v2829 = vpow.pop %v2828
      %v2830 = vmul.f32 %v2827, 1.442695
      %v2831 = vpow.pop %v2830
      %2833 = vset.pattern.permute.xlu0 0
      %2834 = vperm.xlu0 %2833, %v2824
      %v2835 = vpop.permute.xlu0 %2834
      %2838 = vset.pattern.permute.xlu0 0
      %2839 = vperm.xlu0 %2838, %v2825
      %v2840 = vpop.permute.xlu0 %2839
      %v2842 = vsub.f32 %v2765, %v2835
      %v2843 = vsub.f32 %v2779, %v2835
      %v2844 = vsub.f32 %v2793, %v2835
      %v2845 = vsub.f32 %v2807, %v2835
      %v2846 = vsub.f32 %v2767, %v2840
      %v2847 = vsub.f32 %v2781, %v2840
      %v2848 = vsub.f32 %v2795, %v2840
      %v2849 = vsub.f32 %v2809, %v2840
      %v2850 = vmul.f32 %v2842, 1.442695
      %v2851 = vpow.pop %v2850
      %v2852 = vmul.f32 %v2843, 1.442695
      %v2853 = vpow.pop %v2852
      %v2854 = vmul.f32 %v2844, 1.442695
      %v2855 = vpow.pop %v2854
      %v2856 = vmul.f32 %v2845, 1.442695
      %v2857 = vpow.pop %v2856
      %v2858 = vmul.f32 %v2846, 1.442695
      %v2859 = vpow.pop %v2858
      %v2860 = vmul.f32 %v2847, 1.442695
      %v2861 = vpow.pop %v2860
      %v2862 = vmul.f32 %v2848, 1.442695
      %v2863 = vpow.pop %v2862
      %v2864 = vmul.f32 %v2849, 1.442695
      %v2865 = vpow.pop %v2864
      %s2866 = scalar_lea.vmem [#allocation4], 48
      %v2867 = vld [vmem:[%s2866] sm:$0xff]
      %v2868 = vld [vmem:[%s2866 + $0x8] sm:$0xff]
      %v2869 = vmul.f32 %v2829, %v2867
      %v2870 = vmul.f32 %v2831, %v2868
      %v2871 = vadd.f32 %v2851, %v2853
      %v2872 = vadd.f32 %v2871, %v2855
      %v2873 = vadd.f32 %v2872, %v2857
      %2874 = vadd.xlane.f32.xlu0 %v2873
      %v2875 = vpop.xlane.xlu0 %2874
      %v2876 = vadd.f32 %v2859, %v2861
      %v2877 = vadd.f32 %v2876, %v2863
      %v2878 = vadd.f32 %v2877, %v2865
      %2879 = vadd.xlane.f32.xlu0 %v2878
      %v2880 = vpop.xlane.xlu0 %2879
      %v2881 = vadd.f32 %v2869, %v2875
      %v2882 = vadd.f32 %v2870, %v2880
      %2883 = vst.msk [vmem:[%s2866] sm:$0xff] %vm1414, %v2881
      %2884 = vst.msk [vmem:[%s2866 + $0x8] sm:$0xff] %vm1414, %v2882
      %s2885 = scalar_lea.vmem [#allocation5], 48
      %v2886 = vld [vmem:[%s2885] sm:$0xff]
      %v2887 = vld [vmem:[%s2885 + $0x8] sm:$0xff]
      %2889 = vset.pattern.permute.xlu0 0
      %2890 = vperm.xlu0 %2889, %v2829
      %v2891 = vpop.permute.xlu0 %2890
      %2894 = vset.pattern.permute.xlu0 0
      %2895 = vperm.xlu0 %2894, %v2831
      %v2896 = vpop.permute.xlu0 %2895
      %v2898 = vmul.f32 %v2891, %v2886
      %v2899 = vmul.f32 %v2896, %v2887
      %v2900 = vpack.c.bf16 %v2859, %v2851
      %v2901 = vpack.c.bf16 %v2861, %v2853
      %v2902 = vpack.c.bf16 %v2863, %v2855
      %v2903 = vpack.c.bf16 %v2865, %v2857
      %2904 = vrot.lane.b32.xlu0 %v1499, 32
      %v2905 = vpop.permute.xlu0 %2904
      %2906 = vrot.lane.b32.xlu0 %v1500, 32
      %v2907 = vpop.permute.xlu0 %2906
      %2908 = vrot.lane.b32.xlu0 %v1501, 32
      %v2909 = vpop.permute.xlu0 %2908
      %2910 = vrot.lane.b32.xlu0 %v1502, 32
      %v2911 = vpop.permute.xlu0 %2910
      %2912 = vrot.lane.b32.xlu0 %v1503, 32
      %v2913 = vpop.permute.xlu0 %2912
      %2914 = vrot.lane.b32.xlu0 %v1504, 32
      %v2915 = vpop.permute.xlu0 %2914
      %2916 = vrot.lane.b32.xlu0 %v1505, 32
      %v2917 = vpop.permute.xlu0 %2916
      %2918 = vrot.lane.b32.xlu0 %v1506, 32
      %v2919 = vpop.permute.xlu0 %2918
      %2920 = vrot.lane.b32.xlu0 %v1507, 32
      %v2921 = vpop.permute.xlu0 %2920
      %2922 = vrot.lane.b32.xlu0 %v1508, 32
      %v2923 = vpop.permute.xlu0 %2922
      %2924 = vrot.lane.b32.xlu0 %v1509, 32
      %v2925 = vpop.permute.xlu0 %2924
      %2926 = vrot.lane.b32.xlu0 %v1510, 32
      %v2927 = vpop.permute.xlu0 %2926
      %2928 = vrot.lane.b32.xlu0 %v1511, 32
      %v2929 = vpop.permute.xlu0 %2928
      %2930 = vrot.lane.b32.xlu0 %v1512, 32
      %v2931 = vpop.permute.xlu0 %2930
      %2932 = vrot.lane.b32.xlu0 %v1513, 32
      %v2933 = vpop.permute.xlu0 %2932
      %2934 = vrot.lane.b32.xlu0 %v1514, 32
      %v2935 = vpop.permute.xlu0 %2934
      %2936 = vrot.lane.b32.xlu0 %v1515, 32
      %v2937 = vpop.permute.xlu0 %2936
      %2938 = vrot.lane.b32.xlu0 %v1516, 32
      %v2939 = vpop.permute.xlu0 %2938
      %2940 = vrot.lane.b32.xlu0 %v1517, 32
      %v2941 = vpop.permute.xlu0 %2940
      %2942 = vrot.lane.b32.xlu0 %v1518, 32
      %v2943 = vpop.permute.xlu0 %2942
      %2944 = vrot.lane.b32.xlu0 %v1519, 32
      %v2945 = vpop.permute.xlu0 %2944
      %2946 = vrot.lane.b32.xlu0 %v1520, 32
      %v2947 = vpop.permute.xlu0 %2946
      %2948 = vrot.lane.b32.xlu0 %v1521, 32
      %v2949 = vpop.permute.xlu0 %2948
      %2950 = vrot.lane.b32.xlu0 %v1522, 32
      %v2951 = vpop.permute.xlu0 %2950
      %2952 = vrot.lane.b32.xlu0 %v1523, 32
      %v2953 = vpop.permute.xlu0 %2952
      %2954 = vrot.lane.b32.xlu0 %v1524, 32
      %v2955 = vpop.permute.xlu0 %2954
      %2956 = vrot.lane.b32.xlu0 %v1525, 32
      %v2957 = vpop.permute.xlu0 %2956
      %2958 = vrot.lane.b32.xlu0 %v1526, 32
      %v2959 = vpop.permute.xlu0 %2958
      %2960 = vrot.lane.b32.xlu0 %v1527, 32
      %v2961 = vpop.permute.xlu0 %2960
      %2962 = vrot.lane.b32.xlu0 %v1528, 32
      %v2963 = vpop.permute.xlu0 %2962
      %2964 = vrot.lane.b32.xlu0 %v1529, 32
      %v2965 = vpop.permute.xlu0 %2964
      %2966 = vrot.lane.b32.xlu0 %v1530, 32
      %v2967 = vpop.permute.xlu0 %2966
      %3000 = vmatpush.bf16.msra.mxu0 %v2919
      %3001 = vmatpush.bf16.msra.mxu0 %v2917
      %3002 = vmatpush.bf16.msra.mxu0 %v2915
      %3003 = vmatpush.bf16.msra.mxu0 %v2913
      %3004 = vmatpush.bf16.msra.mxu0 %v2911
      %3005 = vmatpush.bf16.msra.mxu0 %v2909
      %3006 = vmatpush.bf16.msra.mxu0 %v2907
      %3007 = vmatpush.bf16.msra.mxu0 %v2905
      %3008 = vmatmul.bf16.gmra.mxu0 %v2900
      %v3009 = vpop.f32.mrf.mxu0
      %v3010 = vadd.f32 0.0, %v3009
      %v3011 = vpop.f32.mrf.mxu0
      %v3012 = vadd.f32 0.0, %v3011
      %3013 = vdwg.mxu0
      %3014 = vmatpush.bf16.msra.mxu0 %v2935
      %3015 = vmatpush.bf16.msra.mxu0 %v2933
      %3016 = vmatpush.bf16.msra.mxu0 %v2931
      %3017 = vmatpush.bf16.msra.mxu0 %v2929
      %3018 = vmatpush.bf16.msra.mxu0 %v2927
      %3019 = vmatpush.bf16.msra.mxu0 %v2925
      %3020 = vmatpush.bf16.msra.mxu0 %v2923
      %3021 = vmatpush.bf16.msra.mxu0 %v2921
      %3022 = vmatmul.bf16.gmra.mxu0 %v2901
      %v3023 = vpop.f32.mrf.mxu0
      %v3024 = vadd.f32 %v3010, %v3023
      %v3025 = vpop.f32.mrf.mxu0
      %v3026 = vadd.f32 %v3012, %v3025
      %3027 = vdwg.mxu0
      %3028 = vmatpush.bf16.msra.mxu0 %v2951
      %3029 = vmatpush.bf16.msra.mxu0 %v2949
      %3030 = vmatpush.bf16.msra.mxu0 %v2947
      %3031 = vmatpush.bf16.msra.mxu0 %v2945
      %3032 = vmatpush.bf16.msra.mxu0 %v2943
      %3033 = vmatpush.bf16.msra.mxu0 %v2941
      %3034 = vmatpush.bf16.msra.mxu0 %v2939
      %3035 = vmatpush.bf16.msra.mxu0 %v2937
      %3036 = vmatmul.bf16.gmra.mxu0 %v2902
      %v3037 = vpop.f32.mrf.mxu0
      %v3038 = vadd.f32 %v3024, %v3037
      %v3039 = vpop.f32.mrf.mxu0
      %v3040 = vadd.f32 %v3026, %v3039
      %3041 = vdwg.mxu0
      %3042 = vmatpush.bf16.msra.mxu0 %v2967
      %3043 = vmatpush.bf16.msra.mxu0 %v2965
      %3044 = vmatpush.bf16.msra.mxu0 %v2963
      %3045 = vmatpush.bf16.msra.mxu0 %v2961
      %3046 = vmatpush.bf16.msra.mxu0 %v2959
      %3047 = vmatpush.bf16.msra.mxu0 %v2957
      %3048 = vmatpush.bf16.msra.mxu0 %v2955
      %3049 = vmatpush.bf16.msra.mxu0 %v2953
      %3050 = vmatmul.bf16.gmra.mxu0 %v2903
      %v3051 = vpop.f32.mrf.mxu0
      %v3052 = vadd.f32 %v3038, %v3051
      %v3053 = vpop.f32.mrf.mxu0
      %v3054 = vadd.f32 %v3040, %v3053
      %3055 = vdwg.mxu0
      %v3056 = vadd.f32 %v2898, %v3052
      %v3057 = vadd.f32 %v2899, %v3054
      %3058 = vst.msk [vmem:[%s2885] sm:$0xff] %vm1188, %v3056
      %3059 = vst.msk [vmem:[%s2885 + $0x8] sm:$0xff] %vm1188, %v3057
      %3060 = vst.msk [vmem:[%s2811] sm:$0xff] %vm1414, %v2824
      %3061 = vst.msk [vmem:[%s2811 + $0x8] sm:$0xff] %vm1414, %v2825
      %p3062 = scmp.eq.s32.totalorder %s22, 1
      // Predicated region
      $region49: #{tpn_decoder.5} parent=43 // pred_check
        %p3063 = pneg %p3062
      $region50: #{tpn_decoder.5} parent=43 // pred_check_branch
        %3065 = sbr.rel (%p3063) target = $region52
      $region51: #{tpn_decoder.5} parent=43 // pred_region
        %v3066 = vld [vmem:[#allocation5] sm:$0xff]
        %v3067 = vld [vmem:[#allocation5 + $0x8] sm:$0xff]
        %v3068 = vld [vmem:[#allocation4] sm:$0xff]
        %v3069 = vld [vmem:[#allocation4 + $0x8] sm:$0xff]
        %v3070 = vrcp.pop %v3068
        %v3071 = vmul.f32 %v3068, %v3070
        %v3072 = vsub.f32 1.0, %v3071
        %v3073 = vmul.f32 %v3070, %v3072
        %v3074 = vadd.f32 %v3070, %v3073
        %vm3075 = vweird.f32 %v3068
        %vm3076 = vweird.f32 %v3070
        %vm3077 = vmor %vm3075, %vm3076
        %v3078 = vsel %vm3077, %v3070, %v3074
        %v3079 = vand.u32 2147483647, %v3068
        %vm3080 = vcmp.eq.f32.partialorder %v3079, 8.507059e+37
        %v3081 = vand.u32 %v3068, 2147483648
        %v3082 = vor.u32 1.1754944e-38, %v3081
        %v3083 = vsel %vm3080, %v3082, %v3078
        %v3084 = vmul.f32 1.0, %v3083
        %v3085 = vrcp.pop %v3069
        %v3086 = vmul.f32 %v3069, %v3085
        %v3087 = vsub.f32 1.0, %v3086
        %v3088 = vmul.f32 %v3085, %v3087
        %v3089 = vadd.f32 %v3085, %v3088
        %vm3090 = vweird.f32 %v3069
        %vm3091 = vweird.f32 %v3085
        %vm3092 = vmor %vm3090, %vm3091
        %v3093 = vsel %vm3092, %v3085, %v3089
        %v3094 = vand.u32 2147483647, %v3069
        %vm3095 = vcmp.eq.f32.partialorder %v3094, 8.507059e+37
        %v3096 = vand.u32 %v3069, 2147483648
        %v3097 = vor.u32 1.1754944e-38, %v3096
        %v3098 = vsel %vm3095, %v3097, %v3093
        %v3099 = vmul.f32 1.0, %v3098
        %3101 = vset.pattern.permute.xlu0 0
        %3102 = vperm.xlu0 %3101, %v3084
        %v3103 = vpop.permute.xlu0 %3102
        %3106 = vset.pattern.permute.xlu0 0
        %3107 = vperm.xlu0 %3106, %v3099
        %v3108 = vpop.permute.xlu0 %3107
        %v3110 = vmul.f32 %v3066, %v3103
        %v3111 = vmul.f32 %v3067, %v3108
        %v3112 = vld [vmem:[%s1927] sm:$0xff]
        %v3113 = vld [vmem:[%s1927 + $0x8] sm:$0xff]
        %v3114 = vld [vmem:[%s1908] sm:$0xff]
        %v3115 = vld [vmem:[%s1908 + $0x8] sm:$0xff]
        %v3116 = vrcp.pop %v3114
        %v3117 = vmul.f32 %v3114, %v3116
        %v3118 = vsub.f32 1.0, %v3117
        %v3119 = vmul.f32 %v3116, %v3118
        %v3120 = vadd.f32 %v3116, %v3119
        %vm3121 = vweird.f32 %v3114
        %vm3122 = vweird.f32 %v3116
        %vm3123 = vmor %vm3121, %vm3122
        %v3124 = vsel %vm3123, %v3116, %v3120
        %v3125 = vand.u32 2147483647, %v3114
        %vm3126 = vcmp.eq.f32.partialorder %v3125, 8.507059e+37
        %v3127 = vand.u32 %v3114, 2147483648
        %v3128 = vor.u32 1.1754944e-38, %v3127
        %v3129 = vsel %vm3126, %v3128, %v3124
        %v3130 = vmul.f32 1.0, %v3129
        %v3131 = vrcp.pop %v3115
        %v3132 = vmul.f32 %v3115, %v3131
        %v3133 = vsub.f32 1.0, %v3132
        %v3134 = vmul.f32 %v3131, %v3133
        %v3135 = vadd.f32 %v3131, %v3134
        %vm3136 = vweird.f32 %v3115
        %vm3137 = vweird.f32 %v3131
        %vm3138 = vmor %vm3136, %vm3137
        %v3139 = vsel %vm3138, %v3131, %v3135
        %v3140 = vand.u32 2147483647, %v3115
        %vm3141 = vcmp.eq.f32.partialorder %v3140, 8.507059e+37
        %v3142 = vand.u32 %v3115, 2147483648
        %v3143 = vor.u32 1.1754944e-38, %v3142
        %v3144 = vsel %vm3141, %v3143, %v3139
        %v3145 = vmul.f32 1.0, %v3144
        %3147 = vset.pattern.permute.xlu0 0
        %3148 = vperm.xlu0 %3147, %v3130
        %v3149 = vpop.permute.xlu0 %3148
        %3152 = vset.pattern.permute.xlu0 0
        %3153 = vperm.xlu0 %3152, %v3145
        %v3154 = vpop.permute.xlu0 %3153
        %v3156 = vmul.f32 %v3112, %v3149
        %v3157 = vmul.f32 %v3113, %v3154
        %v3158 = vld [vmem:[%s2406] sm:$0xff]
        %v3159 = vld [vmem:[%s2406 + $0x8] sm:$0xff]
        %v3160 = vld [vmem:[%s2387] sm:$0xff]
        %v3161 = vld [vmem:[%s2387 + $0x8] sm:$0xff]
        %v3162 = vrcp.pop %v3160
        %v3163 = vmul.f32 %v3160, %v3162
        %v3164 = vsub.f32 1.0, %v3163
        %v3165 = vmul.f32 %v3162, %v3164
        %v3166 = vadd.f32 %v3162, %v3165
        %vm3167 = vweird.f32 %v3160
        %vm3168 = vweird.f32 %v3162
        %vm3169 = vmor %vm3167, %vm3168
        %v3170 = vsel %vm3169, %v3162, %v3166
        %v3171 = vand.u32 2147483647, %v3160
        %vm3172 = vcmp.eq.f32.partialorder %v3171, 8.507059e+37
        %v3173 = vand.u32 %v3160, 2147483648
        %v3174 = vor.u32 1.1754944e-38, %v3173
        %v3175 = vsel %vm3172, %v3174, %v3170
        %v3176 = vmul.f32 1.0, %v3175
        %v3177 = vrcp.pop %v3161
        %v3178 = vmul.f32 %v3161, %v3177
        %v3179 = vsub.f32 1.0, %v3178
        %v3180 = vmul.f32 %v3177, %v3179
        %v3181 = vadd.f32 %v3177, %v3180
        %vm3182 = vweird.f32 %v3161
        %vm3183 = vweird.f32 %v3177
        %vm3184 = vmor %vm3182, %vm3183
        %v3185 = vsel %vm3184, %v3177, %v3181
        %v3186 = vand.u32 2147483647, %v3161
        %vm3187 = vcmp.eq.f32.partialorder %v3186, 8.507059e+37
        %v3188 = vand.u32 %v3161, 2147483648
        %v3189 = vor.u32 1.1754944e-38, %v3188
        %v3190 = vsel %vm3187, %v3189, %v3185
        %v3191 = vmul.f32 1.0, %v3190
        %3193 = vset.pattern.permute.xlu0 0
        %3194 = vperm.xlu0 %3193, %v3176
        %v3195 = vpop.permute.xlu0 %3194
        %3198 = vset.pattern.permute.xlu0 0
        %3199 = vperm.xlu0 %3198, %v3191
        %v3200 = vpop.permute.xlu0 %3199
        %v3202 = vmul.f32 %v3158, %v3195
        %v3203 = vmul.f32 %v3159, %v3200
        %v3204 = vld [vmem:[%s2885] sm:$0xff]
        %v3205 = vld [vmem:[%s2885 + $0x8] sm:$0xff]
        %v3206 = vld [vmem:[%s2866] sm:$0xff]
        %v3207 = vld [vmem:[%s2866 + $0x8] sm:$0xff]
        %v3208 = vrcp.pop %v3206
        %v3209 = vmul.f32 %v3206, %v3208
        %v3210 = vsub.f32 1.0, %v3209
        %v3211 = vmul.f32 %v3208, %v3210
        %v3212 = vadd.f32 %v3208, %v3211
        %vm3213 = vweird.f32 %v3206
        %vm3214 = vweird.f32 %v3208
        %vm3215 = vmor %vm3213, %vm3214
        %v3216 = vsel %vm3215, %v3208, %v3212
        %v3217 = vand.u32 2147483647, %v3206
        %vm3218 = vcmp.eq.f32.partialorder %v3217, 8.507059e+37
        %v3219 = vand.u32 %v3206, 2147483648
        %v3220 = vor.u32 1.1754944e-38, %v3219
        %v3221 = vsel %vm3218, %v3220, %v3216
        %v3222 = vmul.f32 1.0, %v3221
        %v3223 = vrcp.pop %v3207
        %v3224 = vmul.f32 %v3207, %v3223
        %v3225 = vsub.f32 1.0, %v3224
        %v3226 = vmul.f32 %v3223, %v3225
        %v3227 = vadd.f32 %v3223, %v3226
        %vm3228 = vweird.f32 %v3207
        %vm3229 = vweird.f32 %v3223
        %vm3230 = vmor %vm3228, %vm3229
        %v3231 = vsel %vm3230, %v3223, %v3227
        %v3232 = vand.u32 2147483647, %v3207
        %vm3233 = vcmp.eq.f32.partialorder %v3232, 8.507059e+37
        %v3234 = vand.u32 %v3207, 2147483648
        %v3235 = vor.u32 1.1754944e-38, %v3234
        %v3236 = vsel %vm3233, %v3235, %v3231
        %v3237 = vmul.f32 1.0, %v3236
        %3239 = vset.pattern.permute.xlu0 0
        %3240 = vperm.xlu0 %3239, %v3222
        %v3241 = vpop.permute.xlu0 %3240
        %3244 = vset.pattern.permute.xlu0 0
        %3245 = vperm.xlu0 %3244, %v3237
        %v3246 = vpop.permute.xlu0 %3245
        %v3248 = vmul.f32 %v3204, %v3241
        %v3249 = vmul.f32 %v3205, %v3246
        %3252 = vrot.lane.b32.xlu0 %v3156, 32
        %v3253 = vpop.permute.xlu0 %3252
        %3254 = vrot.lane.b32.xlu0 %v3157, 32
        %v3255 = vpop.permute.xlu0 %3254
        %3260 = vrot.lane.b32.xlu0 %v3202, 64
        %v3261 = vpop.permute.xlu0 %3260
        %3262 = vrot.lane.b32.xlu0 %v3203, 64
        %v3263 = vpop.permute.xlu0 %3262
        %3268 = vrot.lane.b32.xlu0 %v3248, 96
        %v3269 = vpop.permute.xlu0 %3268
        %3270 = vrot.lane.b32.xlu0 %v3249, 96
        %v3271 = vpop.permute.xlu0 %3270
        %v3274 = vsel %vm1188, %v3110, %v3253
        %v3275 = vsel %vm1188, %v3111, %v3255
        %vm3276 = vcmask 523264
        %v3277 = vsel %vm3276, %v3274, %v3261
        %v3278 = vsel %vm3276, %v3275, %v3263
        %vm3279 = vcmask 785408
        %v3280 = vsel %vm3279, %v3277, %v3269
        %v3281 = vsel %vm3279, %v3278, %v3271
        %3282 = vst [vmem:[%s299] sm:$0xff] %v3280
        %3283 = vst [vmem:[%s299 + $0x8] sm:$0xff] %v3281
      $region52: #{tpn_decoder.5} parent=43 // pred_fallthru
        _
      %p3284 = scmp.lt.s32.totalorder %s21, 1
      %s3285 = scalar_select %p3284, %s21, 1
      %s3286 = smul.addr %s3285, 2
      %s3287 = smul.addr %s3286, 8
      %s3288 = scalar_lea.vmem %s6, %s3287
      // Predicated region
      $region53: #{tpn_decoder.5} parent=43 // pred_check
        %p3289 = pneg %p185
      $region54: #{tpn_decoder.5} parent=43 // pred_check_branch
        %3291 = sbr.rel (%p3289) target = $region56
      $region55: #{tpn_decoder.5} parent=43 // pred_region
        _
      $region56: #{tpn_decoder.5} parent=43 // pred_fallthru
        _
    $region44: #{tpn_decoder.5} parent=5 // pred_fallthru
      _
    %p3292 = scmp.le.s32.totalorder 2, %s12
    // Predicated region
    $region57: #{tpn_decoder.5} parent=5 // pred_check
      %p3293 = pneg %p3292
    $region58: #{tpn_decoder.5} parent=5 // pred_check_branch
      %3295 = sbr.rel (%p3293) target = $region60
    $region59: #{tpn_decoder.5} parent=5 // pred_region
      %s3296 = ssub.s32 %s12, 2
      // Predicated region
      $region61: #{tpn_decoder.5} parent=59 // pred_check
        %p3297 = pneg %p191
      $region62: #{tpn_decoder.5} parent=59 // pred_check_branch
        %3299 = sbr.rel (%p3297) target = $region64
      $region63: #{tpn_decoder.5} parent=59 // pred_region
        %p3300 = scmp.lt.s32.totalorder %s23, 1
        %s3301 = scalar_select %p3300, %s23, 1
        %s3302 = smul.addr %s3301, 2
        %s3303 = smul.addr %s3302, 8
        %s3304 = scalar_lea.vmem %s6, %s3303
      $region64: #{tpn_decoder.5} parent=59 // pred_fallthru
        _
    $region60: #{tpn_decoder.5} parent=5 // pred_fallthru
      _
  $region6: #{tpn_decoder.5} parent=0 // loop_footer
    %s16 = sadd.s32 1, %s12
  $region7: #{tpn_decoder.5} parent=0 // loop_footer_branch
    %11 = sbr.rel target = $region3
  $region8: #{tpn_decoder.5} parent=0 // loop_exit
    _

// kernel: tpn_decoder.7
$region0: #{tpn_decoder.7}
  #allocation0 [shape = 'u32[]', space=smem, size = 0x4, offset = 0x4, fixed_abs, tag = 'smem constant byte address 0x4 - core index']
  #allocation1 [shape = 'u32[72,128]{1,0:T(1,128)}', space=vmem, size = 0x9000, scoped, tag = 'internal scratch']
  #allocation2 [shape = 'bf16[16,128]{1,0:T(8,128)(2,1)}', space=vmem, size = 0x1000, scoped, tag = 'scratch operand']
  #allocation3 [shape = 'f32[4,16,1]{2,1,0:T(8,128)}', space=vmem, size = 0x8000, scoped, tag = 'scratch operand']
  #allocation4 [shape = 'f32[4,16,1]{2,1,0:T(8,128)}', space=vmem, size = 0x8000, scoped, tag = 'scratch operand']
  #allocation5 [shape = 'f32[4,16,32]{2,1,0:T(8,128)}', space=vmem, size = 0x8000, scoped, tag = 'scratch operand']
  %s0 = inlined_call_operand.vmem [shape: f32[2,16,128], index: 0, kind: input, shape index: {}]
  %s1 = inlined_call_operand.vmem [shape: f32[2,1024,128], index: 1, kind: input, shape index: {}]
  %s2 = inlined_call_operand.vmem [shape: bf16[128,128], index: 2, kind: input, shape index: {}]
  %s3 = inlined_call_operand.vmem [shape: f32[1,128], index: 3, kind: input, shape index: {}]
  %s4 = inlined_call_operand.vmem [shape: bf16[128,256], index: 4, kind: input, shape index: {}]
  %s5 = inlined_call_operand.vmem [shape: f32[1,256], index: 5, kind: input, shape index: {}]
  %s6 = inlined_call_operand.vmem [shape: f32[2,16,128], index: 6, kind: output, shape index: {0}]
  %s7 = inlined_call_operand.hbm [shape: f32[2,16,1024], index: 7, kind: output, shape index: {1}]
  %8 = xla_tuple %s6, %s7
  %s9 = sld [smem:[#allocation0]]
  $region73: #{tpn_decoder.7} parent=0
    _
  %s11 = ssub.s32 1, %s9
  %s12 = scalar_select 0, %s11, %s9
  $region1: #{tpn_decoder.7} parent=0
    #allocation6 [shape = 'u8[65536]{0}', space=vmem, size = 0x10000, scoped, tag = 'output window, operand 1']
    #allocation7 [shape = 's32[2]{0}', space=sflag, size = 0x8, scoped, tag = 'scoped memory for tpn_decoder.7']
    %13 = vsyncpa [#allocation7], 0
    %s14 = scalar_lea.sflag [#allocation7], 1
    %15 = vsyncpa %s14, 0
    loop: start=0, step=1, limit=6
    $region2: #{tpn_decoder.7} parent=1 // loop_pre_header
      _
    $region3: #{tpn_decoder.7} parent=1 // loop_header
      %s17 = sphi 0, %s21
      %p18 = scmp.ge.s32.totalorder %s17, 6
      %s24 = sphi 0, %s36
      %s25 = sphi 0, %s32
      %s26 = sphi 0, %s24
      %s27 = sphi 0, %s25
      %s28 = sphi 0, %s26
      %s29 = sphi 0, %s27
      %s39 = sphi 0, %s41
      %s42 = sphi 0, %s39
      %s43 = sphi 0, %s42
      %s59 = sphi 0, %s43
      %s67 = sphi 0, %s69
      %s70 = sphi 0, %s67
      %s71 = sphi 0, %s70
      %s87 = sphi 0, %s71
      %s91 = sphi 0, %s91
      %s93 = sphi 0, %s91
      %s94 = sphi 0, %s93
      %s108 = sphi 0, %s94
      %s112 = sphi 0, %s112
      %s114 = sphi 0, %s112
      %s115 = sphi 0, %s114
      %s129 = sphi 0, %s115
      %s133 = sphi 0, %s133
      %s135 = sphi 0, %s133
      %s136 = sphi 0, %s135
      %s150 = sphi 0, %s136
      %s154 = sphi 0, %s154
      %s156 = sphi 0, %s154
      %s157 = sphi 0, %s156
      %s171 = sphi 0, %s157
      %s177 = sphi 0, %s179
      %s180 = sphi 0, %s177
      %s181 = sphi 0, %s180
      %s197 = sphi 0, %s181
      %s205 = sphi 0, %s207
      %s208 = sphi 0, %s205
      %s209 = sphi 0, %s208
      %s225 = sphi 0, %s209
    $region4: #{tpn_decoder.7} parent=1 // loop_header_branch
      %20 = sbr.rel (%p18) target = $region8
    $region5: #{tpn_decoder.7} parent=1 // loop_body
      %s22 = ssub.s32 %s17, 1
      %s23 = ssub.s32 %s17, 2
      %s30 = sadd.s32 1, %s25
      %p31 = scmp.ge.s32.totalorder %s30, 2
      %s32 = scalar_select %p31, 0, %s30
      %s33 = sadd.s32 1, %s24
      %s34 = scalar_select %p31, %s33, %s24
      %p35 = scmp.ge.s32.totalorder %s34, 2
      %s36 = scalar_select %p35, 0, %s34
      %s37 = ssub.s32 %s24, %s36
      %p38 = scmp.eq.s32.totalorder %s37, 0
      %s40 = sadd.s32 %s39, 1
      %s41 = scalar_select %p38, %s39, %s40
      %p44 = pneg %p38
      %p45 = scmp.eq.s32.totalorder %s17, 3
      %p46 = por %p44, %p45
      %p47 = scmp.ne.s32.totalorder %s39, %s42
      %p48 = scmp.eq.s32.totalorder %s17, 0
      %p49 = por %p47, %p48
      %p50 = scmp.ne.s32.totalorder %s39, %s42
      %p51 = scmp.eq.s32.totalorder %s22, 3
      %p52 = por %p50, %p51
      %p53 = scmp.ne.s32.totalorder %s42, %s43
      %p54 = scmp.eq.s32.totalorder %s22, 0
      %p55 = por %p53, %p54
      %p56 = scmp.ne.s32.totalorder %s42, %s43
      %p57 = scmp.eq.s32.totalorder %s23, 3
      %p58 = por %p56, %p57
      %p60 = scmp.ne.s32.totalorder %s43, %s59
      %p61 = scmp.eq.s32.totalorder %s23, 0
      %p62 = por %p60, %p61
      %s63 = ssub.s32 %s24, %s36
      %s64 = ssub.s32 %s25, %s32
      %s65 = sor.u32 %s63, %s64
      %p66 = scmp.eq.s32.totalorder %s65, 0
      %s68 = sadd.s32 %s67, 1
      %s69 = scalar_select %p66, %s67, %s68
      %p72 = pneg %p66
      %p73 = scmp.eq.s32.totalorder %s17, 3
      %p74 = por %p72, %p73
      %p75 = scmp.ne.s32.totalorder %s67, %s70
      %p76 = scmp.eq.s32.totalorder %s17, 0
      %p77 = por %p75, %p76
      %p78 = scmp.ne.s32.totalorder %s67, %s70
      %p79 = scmp.eq.s32.totalorder %s22, 3
      %p80 = por %p78, %p79
      %p81 = scmp.ne.s32.totalorder %s70, %s71
      %p82 = scmp.eq.s32.totalorder %s22, 0
      %p83 = por %p81, %p82
      %p84 = scmp.ne.s32.totalorder %s70, %s71
      %p85 = scmp.eq.s32.totalorder %s23, 3
      %p86 = por %p84, %p85
      %p88 = scmp.ne.s32.totalorder %s71, %s87
      %p89 = scmp.eq.s32.totalorder %s23, 0
      %p90 = por %p88, %p89
      %s92 = sadd.s32 %s91, 1
      %p95 = scmp.eq.s32.totalorder %s17, 3
      %p96 = scmp.ne.s32.totalorder %s91, %s93
      %p97 = scmp.eq.s32.totalorder %s17, 0
      %p98 = por %p96, %p97
      %p99 = scmp.ne.s32.totalorder %s91, %s93
      %p100 = scmp.eq.s32.totalorder %s22, 3
      %p101 = por %p99, %p100
      %p102 = scmp.ne.s32.totalorder %s93, %s94
      %p103 = scmp.eq.s32.totalorder %s22, 0
      %p104 = por %p102, %p103
      %p105 = scmp.ne.s32.totalorder %s93, %s94
      %p106 = scmp.eq.s32.totalorder %s23, 3
      %p107 = por %p105, %p106
      %p109 = scmp.ne.s32.totalorder %s94, %s108
      %p110 = scmp.eq.s32.totalorder %s23, 0
      %p111 = por %p109, %p110
      %s113 = sadd.s32 %s112, 1
      %p116 = scmp.eq.s32.totalorder %s17, 3
      %p117 = scmp.ne.s32.totalorder %s112, %s114
      %p118 = scmp.eq.s32.totalorder %s17, 0
      %p119 = por %p117, %p118
      %p120 = scmp.ne.s32.totalorder %s112, %s114
      %p121 = scmp.eq.s32.totalorder %s22, 3
      %p122 = por %p120, %p121
      %p123 = scmp.ne.s32.totalorder %s114, %s115
      %p124 = scmp.eq.s32.totalorder %s22, 0
      %p125 = por %p123, %p124
      %p126 = scmp.ne.s32.totalorder %s114, %s115
      %p127 = scmp.eq.s32.totalorder %s23, 3
      %p128 = por %p126, %p127
      %p130 = scmp.ne.s32.totalorder %s115, %s129
      %p131 = scmp.eq.s32.totalorder %s23, 0
      %p132 = por %p130, %p131
      %s134 = sadd.s32 %s133, 1
      %p137 = scmp.eq.s32.totalorder %s17, 3
      %p138 = scmp.ne.s32.totalorder %s133, %s135
      %p139 = scmp.eq.s32.totalorder %s17, 0
      %p140 = por %p138, %p139
      %p141 = scmp.ne.s32.totalorder %s133, %s135
      %p142 = scmp.eq.s32.totalorder %s22, 3
      %p143 = por %p141, %p142
      %p144 = scmp.ne.s32.totalorder %s135, %s136
      %p145 = scmp.eq.s32.totalorder %s22, 0
      %p146 = por %p144, %p145
      %p147 = scmp.ne.s32.totalorder %s135, %s136
      %p148 = scmp.eq.s32.totalorder %s23, 3
      %p149 = por %p147, %p148
      %p151 = scmp.ne.s32.totalorder %s136, %s150
      %p152 = scmp.eq.s32.totalorder %s23, 0
      %p153 = por %p151, %p152
      %s155 = sadd.s32 %s154, 1
      %p158 = scmp.eq.s32.totalorder %s17, 3
      %p159 = scmp.ne.s32.totalorder %s154, %s156
      %p160 = scmp.eq.s32.totalorder %s17, 0
      %p161 = por %p159, %p160
      %p162 = scmp.ne.s32.totalorder %s154, %s156
      %p163 = scmp.eq.s32.totalorder %s22, 3
      %p164 = por %p162, %p163
      %p165 = scmp.ne.s32.totalorder %s156, %s157
      %p166 = scmp.eq.s32.totalorder %s22, 0
      %p167 = por %p165, %p166
      %p168 = scmp.ne.s32.totalorder %s156, %s157
      %p169 = scmp.eq.s32.totalorder %s23, 3
      %p170 = por %p168, %p169
      %p172 = scmp.ne.s32.totalorder %s157, %s171
      %p173 = scmp.eq.s32.totalorder %s23, 0
      %p174 = por %p172, %p173
      %s175 = ssub.s32 %s24, %s36
      %p176 = scmp.eq.s32.totalorder %s175, 0
      %s178 = sadd.s32 %s177, 1
      %s179 = scalar_select %p176, %s177, %s178
      %p182 = pneg %p176
      %p183 = scmp.eq.s32.totalorder %s17, 3
      %p184 = por %p182, %p183
      %p185 = scmp.ne.s32.totalorder %s177, %s180
      %p186 = scmp.eq.s32.totalorder %s17, 0
      %p187 = por %p185, %p186
      %p188 = scmp.ne.s32.totalorder %s177, %s180
      %p189 = scmp.eq.s32.totalorder %s22, 3
      %p190 = por %p188, %p189
      %p191 = scmp.ne.s32.totalorder %s180, %s181
      %p192 = scmp.eq.s32.totalorder %s22, 0
      %p193 = por %p191, %p192
      %p194 = scmp.ne.s32.totalorder %s180, %s181
      %p195 = scmp.eq.s32.totalorder %s23, 3
      %p196 = por %p194, %p195
      %p198 = scmp.ne.s32.totalorder %s181, %s197
      %p199 = scmp.eq.s32.totalorder %s23, 0
      %p200 = por %p198, %p199
      %s201 = ssub.s32 %s24, %s36
      %s202 = ssub.s32 %s25, %s32
      %s203 = sor.u32 %s201, %s202
      %p204 = scmp.eq.s32.totalorder %s203, 0
      %s206 = sadd.s32 %s205, 1
      %s207 = scalar_select %p204, %s205, %s206
      %p210 = pneg %p204
      %p211 = scmp.eq.s32.totalorder %s17, 3
      %p212 = por %p210, %p211
      %p213 = scmp.ne.s32.totalorder %s205, %s208
      %p214 = scmp.eq.s32.totalorder %s17, 0
      %p215 = por %p213, %p214
      %p216 = scmp.ne.s32.totalorder %s205, %s208
      %p217 = scmp.eq.s32.totalorder %s22, 3
      %p218 = por %p216, %p217
      %p219 = scmp.ne.s32.totalorder %s208, %s209
      %p220 = scmp.eq.s32.totalorder %s22, 0
      %p221 = por %p219, %p220
      %p222 = scmp.ne.s32.totalorder %s208, %s209
      %p223 = scmp.eq.s32.totalorder %s23, 3
      %p224 = por %p222, %p223
      %p226 = scmp.ne.s32.totalorder %s209, %s225
      %p227 = scmp.eq.s32.totalorder %s23, 0
      %p228 = por %p226, %p227
      %p229 = scmp.le.s32.totalorder 1, %s17
      %p230 = scmp.lt.s32.totalorder %s17, 5
      %p231 = pnand %p229, %p230
      %p232 = pneg %p231
      // Predicated region
      $region9: #{tpn_decoder.7} parent=5 // pred_check
        _
      $region10: #{tpn_decoder.7} parent=5 // pred_check_branch
        %234 = sbr.rel (%p231) target = $region12
      $region11: #{tpn_decoder.7} parent=5 // pred_region
        %s235 = ssub.s32 %s17, 1
        // Predicated region
        $region13: #{tpn_decoder.7} parent=11 // pred_check
          %p236 = pneg %p104
        $region14: #{tpn_decoder.7} parent=11 // pred_check_branch
          %238 = sbr.rel (%p236) target = $region16
        $region15: #{tpn_decoder.7} parent=11 // pred_region
          _
        $region16: #{tpn_decoder.7} parent=11 // pred_fallthru
          _
        // Predicated region
        $region17: #{tpn_decoder.7} parent=11 // pred_check
          %p239 = pneg %p125
        $region18: #{tpn_decoder.7} parent=11 // pred_check_branch
          %241 = sbr.rel (%p239) target = $region20
        $region19: #{tpn_decoder.7} parent=11 // pred_region
          _
        $region20: #{tpn_decoder.7} parent=11 // pred_fallthru
          _
        // Predicated region
        $region21: #{tpn_decoder.7} parent=11 // pred_check
          %p242 = pneg %p146
        $region22: #{tpn_decoder.7} parent=11 // pred_check_branch
          %244 = sbr.rel (%p242) target = $region24
        $region23: #{tpn_decoder.7} parent=11 // pred_region
          _
        $region24: #{tpn_decoder.7} parent=11 // pred_fallthru
          _
        // Predicated region
        $region25: #{tpn_decoder.7} parent=11 // pred_check
          %p245 = pneg %p167
        $region26: #{tpn_decoder.7} parent=11 // pred_check_branch
          %247 = sbr.rel (%p245) target = $region28
        $region27: #{tpn_decoder.7} parent=11 // pred_region
          _
        $region28: #{tpn_decoder.7} parent=11 // pred_fallthru
          _
      $region12: #{tpn_decoder.7} parent=5 // pred_fallthru
        _
      %p248 = scmp.lt.s32.totalorder %s17, 4
      // Predicated region
      $region29: #{tpn_decoder.7} parent=5 // pred_check
        %p249 = pneg %p248
      $region30: #{tpn_decoder.7} parent=5 // pred_check_branch
        %251 = sbr.rel (%p249) target = $region32
      $region31: #{tpn_decoder.7} parent=5 // pred_region
        // Predicated region
        $region33: #{tpn_decoder.7} parent=31 // pred_check
          %p252 = pneg %p49
        $region34: #{tpn_decoder.7} parent=31 // pred_check_branch
          %254 = sbr.rel (%p252) target = $region36
        $region35: #{tpn_decoder.7} parent=31 // pred_region
          %p255 = scmp.lt.s32.totalorder %s24, 1
          %s256 = scalar_select %p255, %s24, 1
          %s257 = smul.addr %s256, 2
          %s258 = smul.addr %s257, 8
          %s259 = scalar_lea.vmem %s0, %s258
        $region36: #{tpn_decoder.7} parent=31 // pred_fallthru
          _
        // Predicated region
        $region37: #{tpn_decoder.7} parent=31 // pred_check
          %p260 = pneg %p77
        $region38: #{tpn_decoder.7} parent=31 // pred_check_branch
          %262 = sbr.rel (%p260) target = $region40
        $region39: #{tpn_decoder.7} parent=31 // pred_region
          %s263 = smul.u32 64, %s25
          %p264 = scmp.lt.s32.totalorder %s24, 1
          %s265 = scalar_select %p264, %s24, 1
          %p266 = scmp.lt.s32.totalorder %s263, 127
          %s267 = scalar_select %p266, %s263, 127
          %s268 = smul.addr %s265, 128
          %s269 = sadd.s32 %s267, %s268
          %s270 = smul.addr %s269, 8
          %s271 = scalar_lea.vmem %s1, %s270
          %s272 = smul.u32 64, %s25
        $region40: #{tpn_decoder.7} parent=31 // pred_fallthru
          _
      $region32: #{tpn_decoder.7} parent=5 // pred_fallthru
        _
      %p273 = scmp.le.s32.totalorder 1, %s17
      %p274 = scmp.lt.s32.totalorder %s17, 5
      %p275 = pnand %p273, %p274
      %p276 = pneg %p275
      // Predicated region
      $region41: #{tpn_decoder.7} parent=5 // pred_check
        _
      $region42: #{tpn_decoder.7} parent=5 // pred_check_branch
        %278 = sbr.rel (%p275) target = $region44
      $region43: #{tpn_decoder.7} parent=5 // pred_region
        %s279 = ssub.s32 %s17, 1
        %p280 = scmp.lt.s32.totalorder %s26, 1
        %s281 = scalar_select %p280, %s26, 1
        %s282 = smul.addr %s281, 2
        %s283 = smul.addr %s282, 8
        %s284 = scalar_lea.vmem %s0, %s283
        %p285 = pneg %p55
        %p286 = pneg %p52
        %s287 = smul.u32 64, %s27
        %p288 = scmp.lt.s32.totalorder %s26, 1
        %s289 = scalar_select %p288, %s26, 1
        %p290 = scmp.lt.s32.totalorder %s287, 127
        %s291 = scalar_select %p290, %s287, 127
        %s292 = smul.addr %s289, 128
        %s293 = sadd.s32 %s291, %s292
        %s294 = smul.addr %s293, 8
        %s295 = scalar_lea.vmem %s1, %s294
        %p296 = pneg %p83
        %p297 = pneg %p80
        %p298 = pneg %p104
        %p299 = pneg %p101
        %p300 = pneg %p125
        %p301 = pneg %p122
        %p302 = pneg %p146
        %p303 = pneg %p143
        %p304 = pneg %p167
        %p305 = pneg %p164
        %p306 = pneg %p193
        %p307 = pneg %p190
        %p308 = scmp.lt.s32.totalorder %s26, 1
        %s309 = scalar_select %p308, %s26, 1
        %s310 = smul.addr %s309, 2
        %s311 = smul.addr %s310, 8
        %s312 = scalar_lea.vmem %s6, %s311
        %p313 = pneg %p221
        %p314 = pneg %p218
        %s315 = sand.u32 %s208, 1
        %s316 = scalar_lea.sflag [#allocation7], %s315
        %s317 = sand.u32 %s208, 1
        %s318 = smul.addr %s317, 64
        %s319 = scalar_lea.vmem [#allocation6], %s318
        %p320 = scmp.lt.s32.totalorder %s26, 1
        %s321 = scalar_select %p320, %s26, 1
        %s322 = smul.addr %s321, 2
        %s323 = smul.addr %s322, 8
        %s324 = scalar_lea.vmem %s0, %s323
        %s325 = smul.u32 64, %s27
        %p326 = scmp.lt.s32.totalorder %s26, 1
        %s327 = scalar_select %p326, %s26, 1
        %p328 = scmp.lt.s32.totalorder %s325, 127
        %s329 = scalar_select %p328, %s325, 127
        %s330 = smul.addr %s327, 128
        %s331 = sadd.s32 %s329, %s330
        %s332 = smul.addr %s331, 8
        %s333 = scalar_lea.vmem %s1, %s332
        %s334 = smul.u32 64, %s27
        %p335 = scmp.lt.s32.totalorder %s26, 1
        %s336 = scalar_select %p335, %s26, 1
        %s337 = smul.addr %s336, 2
        %s338 = smul.addr %s337, 8
        %s339 = scalar_lea.vmem %s6, %s338
        %s340 = smul.u32 4, %s27
        %p341 = scmp.eq.s32.totalorder %s27, 0
        // Predicated region
        $region45: #{tpn_decoder.7} parent=43 // pred_check
          %p342 = pneg %p341
        $region46: #{tpn_decoder.7} parent=43 // pred_check_branch
          %344 = sbr.rel (%p342) target = $region48
        $region47: #{tpn_decoder.7} parent=43 // pred_region
          %v345 = vld [vmem:[%s324] sm:$0xff]
          %v346 = vld [vmem:[%s324 + $0x8] sm:$0xff]
          %v347 = vpack.c.bf16 %v346, %v345
          %v348 = vld [vmem:[%s2] sm:$0xf]
          %v349 = vld [vmem:[%s2 + $0x4] sm:$0xf]
          %v350 = vld [vmem:[%s2 + $0x8] sm:$0xf]
          %v351 = vld [vmem:[%s2 + $0xc] sm:$0xf]
          %v352 = vld [vmem:[%s2 + $0x10] sm:$0xf]
          %v353 = vld [vmem:[%s2 + $0x14] sm:$0xf]
          %v354 = vld [vmem:[%s2 + $0x18] sm:$0xf]
          %v355 = vld [vmem:[%s2 + $0x1c] sm:$0xf]
          %v356 = vld [vmem:[%s2 + $0x20] sm:$0xf]
          %v357 = vld [vmem:[%s2 + $0x24] sm:$0xf]
          %v358 = vld [vmem:[%s2 + $0x28] sm:$0xf]
          %v359 = vld [vmem:[%s2 + $0x2c] sm:$0xf]
          %v360 = vld [vmem:[%s2 + $0x30] sm:$0xf]
          %v361 = vld [vmem:[%s2 + $0x34] sm:$0xf]
          %v362 = vld [vmem:[%s2 + $0x38] sm:$0xf]
          %v363 = vld [vmem:[%s2 + $0x3c] sm:$0xf]
          %v364 = vld [vmem:[%s3] sm:$0x1]
          %v366 = vperm.slane %v364, 0
          %v384 = vunpack.c.l.b16 %v348
          %v385 = vunpack.c.l.b16 %v349
          %v386 = vunpack.c.l.b16 %v350
          %v387 = vunpack.c.l.b16 %v351
          %v388 = vunpack.c.l.b16 %v352
          %v389 = vunpack.c.l.b16 %v353
          %v390 = vunpack.c.l.b16 %v354
          %v391 = vunpack.c.l.b16 %v355
          %v392 = vunpack.c.l.b16 %v356
          %v393 = vunpack.c.l.b16 %v357
          %v394 = vunpack.c.l.b16 %v358
          %v395 = vunpack.c.l.b16 %v359
          %v396 = vunpack.c.l.b16 %v360
          %v397 = vunpack.c.l.b16 %v361
          %v398 = vunpack.c.l.b16 %v362
          %v399 = vunpack.c.l.b16 %v363
          %v400 = vpack.c.b16 %v385, %v384
          %v401 = vpack.c.b16 %v387, %v386
          %v402 = vpack.c.b16 %v389, %v388
          %v403 = vpack.c.b16 %v391, %v390
          %v404 = vpack.c.b16 %v393, %v392
          %v405 = vpack.c.b16 %v395, %v394
          %v406 = vpack.c.b16 %v397, %v396
          %v407 = vpack.c.b16 %v399, %v398
          %416 = vmatpush.bf16.msra.mxu0 %v407
          %417 = vmatpush.bf16.msra.mxu0 %v406
          %418 = vmatpush.bf16.msra.mxu0 %v405
          %419 = vmatpush.bf16.msra.mxu0 %v404
          %420 = vmatpush.bf16.msra.mxu0 %v403
          %421 = vmatpush.bf16.msra.mxu0 %v402
          %422 = vmatpush.bf16.msra.mxu0 %v401
          %423 = vmatpush.bf16.msra.mxu0 %v400
          %424 = vmatmul.bf16.gmra.mxu0 %v347
          %v425 = vpop.f32.mrf.mxu0
          %v426 = vadd.f32 %v366, %v425
          %v427 = vpop.f32.mrf.mxu0
          %v428 = vadd.f32 %v366, %v427
          %429 = vdwg.mxu0
          %v430 = vmul.f32 %v426, 0.17677669
          %v431 = vmul.f32 %v428, 0.17677669
          %v432 = vpack.c.bf16 %v430, %v430
          %v433 = vpack.c.bf16 %v431, %v431
          %434 = vst [vmem:[#allocation2] sm:$0xf] %v432
          %435 = vst [vmem:[#allocation2 + $0x4] sm:$0xf] %v433
          %vm436 = vcmask 7168
          %437 = vst.msk [vmem:[#allocation3] sm:$0xff] %vm436, -inf
          %438 = vst.msk [vmem:[#allocation3 + $0x8] sm:$0xff] %vm436, -inf
          %439 = vst.msk [vmem:[#allocation3 + $0x10] sm:$0xff] %vm436, -inf
          %440 = vst.msk [vmem:[#allocation3 + $0x18] sm:$0xff] %vm436, -inf
          %441 = vst.msk [vmem:[#allocation3 + $0x20] sm:$0xff] %vm436, -inf
          %442 = vst.msk [vmem:[#allocation3 + $0x28] sm:$0xff] %vm436, -inf
          %443 = vst.msk [vmem:[#allocation3 + $0x30] sm:$0xff] %vm436, -inf
          %444 = vst.msk [vmem:[#allocation3 + $0x38] sm:$0xff] %vm436, -inf
          %445 = vst.msk [vmem:[#allocation4] sm:$0xff] %vm436, 0.0
          %446 = vst.msk [vmem:[#allocation4 + $0x8] sm:$0xff] %vm436, 0.0
          %447 = vst.msk [vmem:[#allocation4 + $0x10] sm:$0xff] %vm436, 0.0
          %448 = vst.msk [vmem:[#allocation4 + $0x18] sm:$0xff] %vm436, 0.0
          %449 = vst.msk [vmem:[#allocation4 + $0x20] sm:$0xff] %vm436, 0.0
          %450 = vst.msk [vmem:[#allocation4 + $0x28] sm:$0xff] %vm436, 0.0
          %451 = vst.msk [vmem:[#allocation4 + $0x30] sm:$0xff] %vm436, 0.0
          %452 = vst.msk [vmem:[#allocation4 + $0x38] sm:$0xff] %vm436, 0.0
          %vm453 = vcmask 261120
          %454 = vst.msk [vmem:[#allocation5] sm:$0xff] %vm453, 0.0
          %455 = vst.msk [vmem:[#allocation5 + $0x8] sm:$0xff] %vm453, 0.0
          %456 = vst.msk [vmem:[#allocation5 + $0x10] sm:$0xff] %vm453, 0.0
          %457 = vst.msk [vmem:[#allocation5 + $0x18] sm:$0xff] %vm453, 0.0
          %458 = vst.msk [vmem:[#allocation5 + $0x20] sm:$0xff] %vm453, 0.0
          %459 = vst.msk [vmem:[#allocation5 + $0x28] sm:$0xff] %vm453, 0.0
          %460 = vst.msk [vmem:[#allocation5 + $0x30] sm:$0xff] %vm453, 0.0
          %461 = vst.msk [vmem:[#allocation5 + $0x38] sm:$0xff] %vm453, 0.0
        $region48: #{tpn_decoder.7} parent=43 // pred_fallthru
          _
        %v462 = vld [vmem:[%s333] sm:$0xff]
        %v463 = vld [vmem:[%s333 + $0x8] sm:$0xff]
        %v464 = vld [vmem:[%s333 + $0x10] sm:$0xff]
        %v465 = vld [vmem:[%s333 + $0x18] sm:$0xff]
        %v466 = vld [vmem:[%s333 + $0x20] sm:$0xff]
        %v467 = vld [vmem:[%s333 + $0x28] sm:$0xff]
        %v468 = vld [vmem:[%s333 + $0x30] sm:$0xff]
        %v469 = vld [vmem:[%s333 + $0x38] sm:$0xff]
        %v470 = vld [vmem:[%s333 + $0x40] sm:$0xff]
        %v471 = vld [vmem:[%s333 + $0x48] sm:$0xff]
        %v472 = vld [vmem:[%s333 + $0x50] sm:$0xff]
        %v473 = vld [vmem:[%s333 + $0x58] sm:$0xff]
        %v474 = vld [vmem:[%s333 + $0x60] sm:$0xff]
        %v475 = vld [vmem:[%s333 + $0x68] sm:$0xff]
        %v476 = vld [vmem:[%s333 + $0x70] sm:$0xff]
        %v477 = vld [vmem:[%s333 + $0x78] sm:$0xff]
        %v478 = vld [vmem:[%s333 + $0x80] sm:$0xff]
        %v479 = vld [vmem:[%s333 + $0x88] sm:$0xff]
        %v480 = vld [vmem:[%s333 + $0x90] sm:$0xff]
        %v481 = vld [vmem:[%s333 + $0x98] sm:$0xff]
        %v482 = vld [vmem:[%s333 + $0xa0] sm:$0xff]
        %v483 = vld [vmem:[%s333 + $0xa8] sm:$0xff]
        %v484 = vld [vmem:[%s333 + $0xb0] sm:$0xff]
        %v485 = vld [vmem:[%s333 + $0xb8] sm:$0xff]
        %v486 = vld [vmem:[%s333 + $0xc0] sm:$0xff]
        %v487 = vld [vmem:[%s333 + $0xc8] sm:$0xff]
        %v488 = vld [vmem:[%s333 + $0xd0] sm:$0xff]
        %v489 = vld [vmem:[%s333 + $0xd8] sm:$0xff]
        %v490 = vld [vmem:[%s333 + $0xe0] sm:$0xff]
        %v491 = vld [vmem:[%s333 + $0xe8] sm:$0xff]
        %v492 = vld [vmem:[%s333 + $0xf0] sm:$0xff]
        %v493 = vld [vmem:[%s333 + $0xf8] sm:$0xff]
        %v494 = vld [vmem:[%s333 + $0x100] sm:$0xff]
        %v495 = vld [vmem:[%s333 + $0x108] sm:$0xff]
        %v496 = vld [vmem:[%s333 + $0x110] sm:$0xff]
        %v497 = vld [vmem:[%s333 + $0x118] sm:$0xff]
        %v498 = vld [vmem:[%s333 + $0x120] sm:$0xff]
        %v499 = vld [vmem:[%s333 + $0x128] sm:$0xff]
        %v500 = vld [vmem:[%s333 + $0x130] sm:$0xff]
        %v501 = vld [vmem:[%s333 + $0x138] sm:$0xff]
        %v502 = vld [vmem:[%s333 + $0x140] sm:$0xff]
        %v503 = vld [vmem:[%s333 + $0x148] sm:$0xff]
        %v504 = vld [vmem:[%s333 + $0x150] sm:$0xff]
        %v505 = vld [vmem:[%s333 + $0x158] sm:$0xff]
        %v506 = vld [vmem:[%s333 + $0x160] sm:$0xff]
        %v507 = vld [vmem:[%s333 + $0x168] sm:$0xff]
        %v508 = vld [vmem:[%s333 + $0x170] sm:$0xff]
        %v509 = vld [vmem:[%s333 + $0x178] sm:$0xff]
        %v510 = vld [vmem:[%s333 + $0x180] sm:$0xff]
        %v511 = vld [vmem:[%s333 + $0x188] sm:$0xff]
        %v512 = vld [vmem:[%s333 + $0x190] sm:$0xff]
        %v513 = vld [vmem:[%s333 + $0x198] sm:$0xff]
        %v514 = vld [vmem:[%s333 + $0x1a0] sm:$0xff]
        %v515 = vld [vmem:[%s333 + $0x1a8] sm:$0xff]
        %v516 = vld [vmem:[%s333 + $0x1b0] sm:$0xff]
        %v517 = vld [vmem:[%s333 + $0x1b8] sm:$0xff]
        %v518 = vld [vmem:[%s333 + $0x1c0] sm:$0xff]
        %v519 = vld [vmem:[%s333 + $0x1c8] sm:$0xff]
        %v520 = vld [vmem:[%s333 + $0x1d0] sm:$0xff]
        %v521 = vld [vmem:[%s333 + $0x1d8] sm:$0xff]
        %v522 = vld [vmem:[%s333 + $0x1e0] sm:$0xff]
        %v523 = vld [vmem:[%s333 + $0x1e8] sm:$0xff]
        %v524 = vld [vmem:[%s333 + $0x1f0] sm:$0xff]
        %v525 = vld [vmem:[%s333 + $0x1f8] sm:$0xff]
        %v526 = vpack.c.bf16 %v463, %v462
        %v527 = vpack.c.bf16 %v465, %v464
        %v528 = vpack.c.bf16 %v467, %v466
        %v529 = vpack.c.bf16 %v469, %v468
        %v530 = vpack.c.bf16 %v471, %v470
        %v531 = vpack.c.bf16 %v473, %v472
        %v532 = vpack.c.bf16 %v475, %v474
        %v533 = vpack.c.bf16 %v477, %v476
        %v534 = vpack.c.bf16 %v479, %v478
        %v535 = vpack.c.bf16 %v481, %v480
        %v536 = vpack.c.bf16 %v483, %v482
        %v537 = vpack.c.bf16 %v485, %v484
        %v538 = vpack.c.bf16 %v487, %v486
        %v539 = vpack.c.bf16 %v489, %v488
        %v540 = vpack.c.bf16 %v491, %v490
        %v541 = vpack.c.bf16 %v493, %v492
        %v542 = vpack.c.bf16 %v495, %v494
        %v543 = vpack.c.bf16 %v497, %v496
        %v544 = vpack.c.bf16 %v499, %v498
        %v545 = vpack.c.bf16 %v501, %v500
        %v546 = vpack.c.bf16 %v503, %v502
        %v547 = vpack.c.bf16 %v505, %v504
        %v548 = vpack.c.bf16 %v507, %v506
        %v549 = vpack.c.bf16 %v509, %v508
        %v550 = vpack.c.bf16 %v511, %v510
        %v551 = vpack.c.bf16 %v513, %v512
        %v552 = vpack.c.bf16 %v515, %v514
        %v553 = vpack.c.bf16 %v517, %v516
        %v554 = vpack.c.bf16 %v519, %v518
        %v555 = vpack.c.bf16 %v521, %v520
        %v556 = vpack.c.bf16 %v523, %v522
        %v557 = vpack.c.bf16 %v525, %v524
        %v558 = vld [vmem:[%s4] sm:$0xff]
        %v559 = vld [vmem:[%s4 + $0x8] sm:$0xff]
        %v560 = vld [vmem:[%s4 + $0x10] sm:$0xff]
        %v561 = vld [vmem:[%s4 + $0x18] sm:$0xff]
        %v562 = vld [vmem:[%s4 + $0x20] sm:$0xff]
        %v563 = vld [vmem:[%s4 + $0x28] sm:$0xff]
        %v564 = vld [vmem:[%s4 + $0x30] sm:$0xff]
        %v565 = vld [vmem:[%s4 + $0x38] sm:$0xff]
        %v566 = vld [vmem:[%s4 + $0x40] sm:$0xff]
        %v567 = vld [vmem:[%s4 + $0x48] sm:$0xff]
        %v568 = vld [vmem:[%s4 + $0x50] sm:$0xff]
        %v569 = vld [vmem:[%s4 + $0x58] sm:$0xff]
        %v570 = vld [vmem:[%s4 + $0x60] sm:$0xff]
        %v571 = vld [vmem:[%s4 + $0x68] sm:$0xff]
        %v572 = vld [vmem:[%s4 + $0x70] sm:$0xff]
        %v573 = vld [vmem:[%s4 + $0x78] sm:$0xff]
        %v574 = vld [vmem:[%s5] sm:$0x3]
        %v576 = vperm.slane %v574, 0
        %v577 = vperm.slane %v574, 1
        %v596 = vunpack.c.l.b16 %v558
        %v597 = vunpack.c.h.b16 %v558
        %v598 = vunpack.c.l.b16 %v559
        %v599 = vunpack.c.h.b16 %v559
        %v600 = vunpack.c.l.b16 %v560
        %v601 = vunpack.c.h.b16 %v560
        %v602 = vunpack.c.l.b16 %v561
        %v603 = vunpack.c.h.b16 %v561
        %v604 = vunpack.c.l.b16 %v562
        %v605 = vunpack.c.h.b16 %v562
        %v606 = vunpack.c.l.b16 %v563
        %v607 = vunpack.c.h.b16 %v563
        %v608 = vunpack.c.l.b16 %v564
        %v609 = vunpack.c.h.b16 %v564
        %v610 = vunpack.c.l.b16 %v565
        %v611 = vunpack.c.h.b16 %v565
        %v612 = vunpack.c.l.b16 %v566
        %v613 = vunpack.c.h.b16 %v566
        %v614 = vunpack.c.l.b16 %v567
        %v615 = vunpack.c.h.b16 %v567
        %v616 = vunpack.c.l.b16 %v568
        %v617 = vunpack.c.h.b16 %v568
        %v618 = vunpack.c.l.b16 %v569
        %v619 = vunpack.c.h.b16 %v569
        %v620 = vunpack.c.l.b16 %v570
        %v621 = vunpack.c.h.b16 %v570
        %v622 = vunpack.c.l.b16 %v571
        %v623 = vunpack.c.h.b16 %v571
        %v624 = vunpack.c.l.b16 %v572
        %v625 = vunpack.c.h.b16 %v572
        %v626 = vunpack.c.l.b16 %v573
        %v627 = vunpack.c.h.b16 %v573
        %v628 = vpack.c.b16 %v598, %v596
        %v629 = vpack.c.b16 %v599, %v597
        %v630 = vpack.c.b16 %v602, %v600
        %v631 = vpack.c.b16 %v603, %v601
        %v632 = vpack.c.b16 %v606, %v604
        %v633 = vpack.c.b16 %v607, %v605
        %v634 = vpack.c.b16 %v610, %v608
        %v635 = vpack.c.b16 %v611, %v609
        %v636 = vpack.c.b16 %v614, %v612
        %v637 = vpack.c.b16 %v615, %v613
        %v638 = vpack.c.b16 %v618, %v616
        %v639 = vpack.c.b16 %v619, %v617
        %v640 = vpack.c.b16 %v622, %v620
        %v641 = vpack.c.b16 %v623, %v621
        %v642 = vpack.c.b16 %v626, %v624
        %v643 = vpack.c.b16 %v627, %v625
        %660 = vmatpush.bf16.msra.mxu0 %v642
        %661 = vmatpush.bf16.msra.mxu0 %v640
        %662 = vmatpush.bf16.msra.mxu0 %v638
        %663 = vmatpush.bf16.msra.mxu0 %v636
        %664 = vmatpush.bf16.msra.mxu0 %v634
        %665 = vmatpush.bf16.msra.mxu0 %v632
        %666 = vmatpush.bf16.msra.mxu0 %v630
        %667 = vmatpush.bf16.msra.mxu0 %v628
        %668 = vmatmul.bf16.gmra.mxu0 %v526
        %v669 = vpop.f32.mrf.mxu0
        %v670 = vadd.f32 %v576, %v669
        %v671 = vpop.f32.mrf.mxu0
        %v672 = vadd.f32 %v576, %v671
        %673 = vmatmul.bf16.gmra.mxu0 %v527
        %v674 = vpop.f32.mrf.mxu0
        %v675 = vadd.f32 %v576, %v674
        %v676 = vpop.f32.mrf.mxu0
        %v677 = vadd.f32 %v576, %v676
        %678 = vmatmul.bf16.gmra.mxu0 %v528
        %v679 = vpop.f32.mrf.mxu0
        %v680 = vadd.f32 %v576, %v679
        %v681 = vpop.f32.mrf.mxu0
        %v682 = vadd.f32 %v576, %v681
        %683 = vmatmul.bf16.gmra.mxu0 %v529
        %v684 = vpop.f32.mrf.mxu0
        %v685 = vadd.f32 %v576, %v684
        %v686 = vpop.f32.mrf.mxu0
        %v687 = vadd.f32 %v576, %v686
        %688 = vmatmul.bf16.gmra.mxu0 %v530
        %v689 = vpop.f32.mrf.mxu0
        %v690 = vadd.f32 %v576, %v689
        %v691 = vpop.f32.mrf.mxu0
        %v692 = vadd.f32 %v576, %v691
        %693 = vmatmul.bf16.gmra.mxu0 %v531
        %v694 = vpop.f32.mrf.mxu0
        %v695 = vadd.f32 %v576, %v694
        %v696 = vpop.f32.mrf.mxu0
        %v697 = vadd.f32 %v576, %v696
        %698 = vmatmul.bf16.gmra.mxu0 %v532
        %v699 = vpop.f32.mrf.mxu0
        %v700 = vadd.f32 %v576, %v699
        %v701 = vpop.f32.mrf.mxu0
        %v702 = vadd.f32 %v576, %v701
        %703 = vmatmul.bf16.gmra.mxu0 %v533
        %v704 = vpop.f32.mrf.mxu0
        %v705 = vadd.f32 %v576, %v704
        %v706 = vpop.f32.mrf.mxu0
        %v707 = vadd.f32 %v576, %v706
        %708 = vmatmul.bf16.gmra.mxu0 %v534
        %v709 = vpop.f32.mrf.mxu0
        %v710 = vadd.f32 %v576, %v709
        %v711 = vpop.f32.mrf.mxu0
        %v712 = vadd.f32 %v576, %v711
        %713 = vmatmul.bf16.gmra.mxu0 %v535
        %v714 = vpop.f32.mrf.mxu0
        %v715 = vadd.f32 %v576, %v714
        %v716 = vpop.f32.mrf.mxu0
        %v717 = vadd.f32 %v576, %v716
        %718 = vmatmul.bf16.gmra.mxu0 %v536
        %v719 = vpop.f32.mrf.mxu0
        %v720 = vadd.f32 %v576, %v719
        %v721 = vpop.f32.mrf.mxu0
        %v722 = vadd.f32 %v576, %v721
        %723 = vmatmul.bf16.gmra.mxu0 %v537
        %v724 = vpop.f32.mrf.mxu0
        %v725 = vadd.f32 %v576, %v724
        %v726 = vpop.f32.mrf.mxu0
        %v727 = vadd.f32 %v576, %v726
        %728 = vmatmul.bf16.gmra.mxu0 %v538
        %v729 = vpop.f32.mrf.mxu0
        %v730 = vadd.f32 %v576, %v729
        %v731 = vpop.f32.mrf.mxu0
        %v732 = vadd.f32 %v576, %v731
        %733 = vmatmul.bf16.gmra.mxu0 %v539
        %v734 = vpop.f32.mrf.mxu0
        %v735 = vadd.f32 %v576, %v734
        %v736 = vpop.f32.mrf.mxu0
        %v737 = vadd.f32 %v576, %v736
        %738 = vmatmul.bf16.gmra.mxu0 %v540
        %v739 = vpop.f32.mrf.mxu0
        %v740 = vadd.f32 %v576, %v739
        %v741 = vpop.f32.mrf.mxu0
        %v742 = vadd.f32 %v576, %v741
        %743 = vmatmul.bf16.gmra.mxu0 %v541
        %v744 = vpop.f32.mrf.mxu0
        %v745 = vadd.f32 %v576, %v744
        %v746 = vpop.f32.mrf.mxu0
        %v747 = vadd.f32 %v576, %v746
        %748 = vmatmul.bf16.gmra.mxu0 %v542
        %v749 = vpop.f32.mrf.mxu0
        %v750 = vadd.f32 %v576, %v749
        %v751 = vpop.f32.mrf.mxu0
        %v752 = vadd.f32 %v576, %v751
        %753 = vmatmul.bf16.gmra.mxu0 %v543
        %v754 = vpop.f32.mrf.mxu0
        %v755 = vadd.f32 %v576, %v754
        %v756 = vpop.f32.mrf.mxu0
        %v757 = vadd.f32 %v576, %v756
        %758 = vmatmul.bf16.gmra.mxu0 %v544
        %v759 = vpop.f32.mrf.mxu0
        %v760 = vadd.f32 %v576, %v759
        %v761 = vpop.f32.mrf.mxu0
        %v762 = vadd.f32 %v576, %v761
        %763 = vmatmul.bf16.gmra.mxu0 %v545
        %v764 = vpop.f32.mrf.mxu0
        %v765 = vadd.f32 %v576, %v764
        %v766 = vpop.f32.mrf.mxu0
        %v767 = vadd.f32 %v576, %v766
        %768 = vmatmul.bf16.gmra.mxu0 %v546
        %v769 = vpop.f32.mrf.mxu0
        %v770 = vadd.f32 %v576, %v769
        %v771 = vpop.f32.mrf.mxu0
        %v772 = vadd.f32 %v576, %v771
        %773 = vmatmul.bf16.gmra.mxu0 %v547
        %v774 = vpop.f32.mrf.mxu0
        %v775 = vadd.f32 %v576, %v774
        %v776 = vpop.f32.mrf.mxu0
        %v777 = vadd.f32 %v576, %v776
        %778 = vmatmul.bf16.gmra.mxu0 %v548
        %v779 = vpop.f32.mrf.mxu0
        %v780 = vadd.f32 %v576, %v779
        %v781 = vpop.f32.mrf.mxu0
        %v782 = vadd.f32 %v576, %v781
        %783 = vmatmul.bf16.gmra.mxu0 %v549
        %v784 = vpop.f32.mrf.mxu0
        %v785 = vadd.f32 %v576, %v784
        %v786 = vpop.f32.mrf.mxu0
        %v787 = vadd.f32 %v576, %v786
        %788 = vmatmul.bf16.gmra.mxu0 %v550
        %v789 = vpop.f32.mrf.mxu0
        %v790 = vadd.f32 %v576, %v789
        %v791 = vpop.f32.mrf.mxu0
        %v792 = vadd.f32 %v576, %v791
        %793 = vmatmul.bf16.gmra.mxu0 %v551
        %v794 = vpop.f32.mrf.mxu0
        %v795 = vadd.f32 %v576, %v794
        %v796 = vpop.f32.mrf.mxu0
        %v797 = vadd.f32 %v576, %v796
        %798 = vmatmul.bf16.gmra.mxu0 %v552
        %v799 = vpop.f32.mrf.mxu0
        %v800 = vadd.f32 %v576, %v799
        %v801 = vpop.f32.mrf.mxu0
        %v802 = vadd.f32 %v576, %v801
        %803 = vmatmul.bf16.gmra.mxu0 %v553
        %v804 = vpop.f32.mrf.mxu0
        %v805 = vadd.f32 %v576, %v804
        %v806 = vpop.f32.mrf.mxu0
        %v807 = vadd.f32 %v576, %v806
        %808 = vmatmul.bf16.gmra.mxu0 %v554
        %v809 = vpop.f32.mrf.mxu0
        %v810 = vadd.f32 %v576, %v809
        %v811 = vpop.f32.mrf.mxu0
        %v812 = vadd.f32 %v576, %v811
        %813 = vmatmul.bf16.gmra.mxu0 %v555
        %v814 = vpop.f32.mrf.mxu0
        %v815 = vadd.f32 %v576, %v814
        %v816 = vpop.f32.mrf.mxu0
        %v817 = vadd.f32 %v576, %v816
        %818 = vmatmul.bf16.gmra.mxu0 %v556
        %v819 = vpop.f32.mrf.mxu0
        %v820 = vadd.f32 %v576, %v819
        %v821 = vpop.f32.mrf.mxu0
        %v822 = vadd.f32 %v576, %v821
        %823 = vmatmul.bf16.gmra.mxu0 %v557
        %v824 = vpop.f32.mrf.mxu0
        %v825 = vadd.f32 %v576, %v824
        %v826 = vpop.f32.mrf.mxu0
        %v827 = vadd.f32 %v576, %v826
        %828 = vdwg.mxu0
        %829 = vmatpush.bf16.msra.mxu0 %v643
        %830 = vmatpush.bf16.msra.mxu0 %v641
        %831 = vmatpush.bf16.msra.mxu0 %v639
        %832 = vmatpush.bf16.msra.mxu0 %v637
        %833 = vmatpush.bf16.msra.mxu0 %v635
        %834 = vmatpush.bf16.msra.mxu0 %v633
        %835 = vmatpush.bf16.msra.mxu0 %v631
        %836 = vmatpush.bf16.msra.mxu0 %v629
        %837 = vmatmul.bf16.gmra.mxu0 %v526
        %v838 = vpop.f32.mrf.mxu0
        %v839 = vadd.f32 %v577, %v838
        %v840 = vpop.f32.mrf.mxu0
        %v841 = vadd.f32 %v577, %v840
        %842 = vmatmul.bf16.gmra.mxu0 %v527
        %v843 = vpop.f32.mrf.mxu0
        %v844 = vadd.f32 %v577, %v843
        %v845 = vpop.f32.mrf.mxu0
        %v846 = vadd.f32 %v577, %v845
        %847 = vmatmul.bf16.gmra.mxu0 %v528
        %v848 = vpop.f32.mrf.mxu0
        %v849 = vadd.f32 %v577, %v848
        %v850 = vpop.f32.mrf.mxu0
        %v851 = vadd.f32 %v577, %v850
        %852 = vmatmul.bf16.gmra.mxu0 %v529
        %v853 = vpop.f32.mrf.mxu0
        %v854 = vadd.f32 %v577, %v853
        %v855 = vpop.f32.mrf.mxu0
        %v856 = vadd.f32 %v577, %v855
        %857 = vmatmul.bf16.gmra.mxu0 %v530
        %v858 = vpop.f32.mrf.mxu0
        %v859 = vadd.f32 %v577, %v858
        %v860 = vpop.f32.mrf.mxu0
        %v861 = vadd.f32 %v577, %v860
        %862 = vmatmul.bf16.gmra.mxu0 %v531
        %v863 = vpop.f32.mrf.mxu0
        %v864 = vadd.f32 %v577, %v863
        %v865 = vpop.f32.mrf.mxu0
        %v866 = vadd.f32 %v577, %v865
        %867 = vmatmul.bf16.gmra.mxu0 %v532
        %v868 = vpop.f32.mrf.mxu0
        %v869 = vadd.f32 %v577, %v868
        %v870 = vpop.f32.mrf.mxu0
        %v871 = vadd.f32 %v577, %v870
        %872 = vmatmul.bf16.gmra.mxu0 %v533
        %v873 = vpop.f32.mrf.mxu0
        %v874 = vadd.f32 %v577, %v873
        %v875 = vpop.f32.mrf.mxu0
        %v876 = vadd.f32 %v577, %v875
        %877 = vmatmul.bf16.gmra.mxu0 %v534
        %v878 = vpop.f32.mrf.mxu0
        %v879 = vadd.f32 %v577, %v878
        %v880 = vpop.f32.mrf.mxu0
        %v881 = vadd.f32 %v577, %v880
        %882 = vmatmul.bf16.gmra.mxu0 %v535
        %v883 = vpop.f32.mrf.mxu0
        %v884 = vadd.f32 %v577, %v883
        %v885 = vpop.f32.mrf.mxu0
        %v886 = vadd.f32 %v577, %v885
        %887 = vmatmul.bf16.gmra.mxu0 %v536
        %v888 = vpop.f32.mrf.mxu0
        %v889 = vadd.f32 %v577, %v888
        %v890 = vpop.f32.mrf.mxu0
        %v891 = vadd.f32 %v577, %v890
        %892 = vmatmul.bf16.gmra.mxu0 %v537
        %v893 = vpop.f32.mrf.mxu0
        %v894 = vadd.f32 %v577, %v893
        %v895 = vpop.f32.mrf.mxu0
        %v896 = vadd.f32 %v577, %v895
        %897 = vmatmul.bf16.gmra.mxu0 %v538
        %v898 = vpop.f32.mrf.mxu0
        %v899 = vadd.f32 %v577, %v898
        %v900 = vpop.f32.mrf.mxu0
        %v901 = vadd.f32 %v577, %v900
        %902 = vmatmul.bf16.gmra.mxu0 %v539
        %v903 = vpop.f32.mrf.mxu0
        %v904 = vadd.f32 %v577, %v903
        %v905 = vpop.f32.mrf.mxu0
        %v906 = vadd.f32 %v577, %v905
        %907 = vmatmul.bf16.gmra.mxu0 %v540
        %v908 = vpop.f32.mrf.mxu0
        %v909 = vadd.f32 %v577, %v908
        %v910 = vpop.f32.mrf.mxu0
        %v911 = vadd.f32 %v577, %v910
        %912 = vmatmul.bf16.gmra.mxu0 %v541
        %v913 = vpop.f32.mrf.mxu0
        %v914 = vadd.f32 %v577, %v913
        %v915 = vpop.f32.mrf.mxu0
        %v916 = vadd.f32 %v577, %v915
        %917 = vmatmul.bf16.gmra.mxu0 %v542
        %v918 = vpop.f32.mrf.mxu0
        %v919 = vadd.f32 %v577, %v918
        %v920 = vpop.f32.mrf.mxu0
        %v921 = vadd.f32 %v577, %v920
        %922 = vmatmul.bf16.gmra.mxu0 %v543
        %v923 = vpop.f32.mrf.mxu0
        %v924 = vadd.f32 %v577, %v923
        %v925 = vpop.f32.mrf.mxu0
        %v926 = vadd.f32 %v577, %v925
        %927 = vmatmul.bf16.gmra.mxu0 %v544
        %v928 = vpop.f32.mrf.mxu0
        %v929 = vadd.f32 %v577, %v928
        %v930 = vpop.f32.mrf.mxu0
        %v931 = vadd.f32 %v577, %v930
        %932 = vmatmul.bf16.gmra.mxu0 %v545
        %v933 = vpop.f32.mrf.mxu0
        %v934 = vadd.f32 %v577, %v933
        %v935 = vpop.f32.mrf.mxu0
        %v936 = vadd.f32 %v577, %v935
        %937 = vmatmul.bf16.gmra.mxu0 %v546
        %v938 = vpop.f32.mrf.mxu0
        %v939 = vadd.f32 %v577, %v938
        %v940 = vpop.f32.mrf.mxu0
        %v941 = vadd.f32 %v577, %v940
        %942 = vmatmul.bf16.gmra.mxu0 %v547
        %v943 = vpop.f32.mrf.mxu0
        %v944 = vadd.f32 %v577, %v943
        %v945 = vpop.f32.mrf.mxu0
        %v946 = vadd.f32 %v577, %v945
        %947 = vmatmul.bf16.gmra.mxu0 %v548
        %v948 = vpop.f32.mrf.mxu0
        %v949 = vadd.f32 %v577, %v948
        %v950 = vpop.f32.mrf.mxu0
        %v951 = vadd.f32 %v577, %v950
        %952 = vmatmul.bf16.gmra.mxu0 %v549
        %v953 = vpop.f32.mrf.mxu0
        %v954 = vadd.f32 %v577, %v953
        %v955 = vpop.f32.mrf.mxu0
        %v956 = vadd.f32 %v577, %v955
        %957 = vmatmul.bf16.gmra.mxu0 %v550
        %v958 = vpop.f32.mrf.mxu0
        %v959 = vadd.f32 %v577, %v958
        %v960 = vpop.f32.mrf.mxu0
        %v961 = vadd.f32 %v577, %v960
        %962 = vmatmul.bf16.gmra.mxu0 %v551
        %v963 = vpop.f32.mrf.mxu0
        %v964 = vadd.f32 %v577, %v963
        %v965 = vpop.f32.mrf.mxu0
        %v966 = vadd.f32 %v577, %v965
        %967 = vmatmul.bf16.gmra.mxu0 %v552
        %v968 = vpop.f32.mrf.mxu0
        %v969 = vadd.f32 %v577, %v968
        %v970 = vpop.f32.mrf.mxu0
        %v971 = vadd.f32 %v577, %v970
        %972 = vmatmul.bf16.gmra.mxu0 %v553
        %v973 = vpop.f32.mrf.mxu0
        %v974 = vadd.f32 %v577, %v973
        %v975 = vpop.f32.mrf.mxu0
        %v976 = vadd.f32 %v577, %v975
        %977 = vmatmul.bf16.gmra.mxu0 %v554
        %v978 = vpop.f32.mrf.mxu0
        %v979 = vadd.f32 %v577, %v978
        %v980 = vpop.f32.mrf.mxu0
        %v981 = vadd.f32 %v577, %v980
        %982 = vmatmul.bf16.gmra.mxu0 %v555
        %v983 = vpop.f32.mrf.mxu0
        %v984 = vadd.f32 %v577, %v983
        %v985 = vpop.f32.mrf.mxu0
        %v986 = vadd.f32 %v577, %v985
        %987 = vmatmul.bf16.gmra.mxu0 %v556
        %v988 = vpop.f32.mrf.mxu0
        %v989 = vadd.f32 %v577, %v988
        %v990 = vpop.f32.mrf.mxu0
        %v991 = vadd.f32 %v577, %v990
        %992 = vmatmul.bf16.gmra.mxu0 %v557
        %v993 = vpop.f32.mrf.mxu0
        %v994 = vadd.f32 %v577, %v993
        %v995 = vpop.f32.mrf.mxu0
        %v996 = vadd.f32 %v577, %v995
        %997 = vdwg.mxu0
        %v998 = vpack.c.bf16 %v839, %v670
        %v999 = vpack.c.bf16 %v841, %v672
        %v1000 = vpack.c.bf16 %v844, %v675
        %v1001 = vpack.c.bf16 %v846, %v677
        %v1002 = vpack.c.bf16 %v849, %v680
        %v1003 = vpack.c.bf16 %v851, %v682
        %v1004 = vpack.c.bf16 %v854, %v685
        %v1005 = vpack.c.bf16 %v856, %v687
        %v1006 = vpack.c.bf16 %v859, %v690
        %v1007 = vpack.c.bf16 %v861, %v692
        %v1008 = vpack.c.bf16 %v864, %v695
        %v1009 = vpack.c.bf16 %v866, %v697
        %v1010 = vpack.c.bf16 %v869, %v700
        %v1011 = vpack.c.bf16 %v871, %v702
        %v1012 = vpack.c.bf16 %v874, %v705
        %v1013 = vpack.c.bf16 %v876, %v707
        %v1014 = vpack.c.bf16 %v879, %v710
        %v1015 = vpack.c.bf16 %v881, %v712
        %v1016 = vpack.c.bf16 %v884, %v715
        %v1017 = vpack.c.bf16 %v886, %v717
        %v1018 = vpack.c.bf16 %v889, %v720
        %v1019 = vpack.c.bf16 %v891, %v722
        %v1020 = vpack.c.bf16 %v894, %v725
        %v1021 = vpack.c.bf16 %v896, %v727
        %v1022 = vpack.c.bf16 %v899, %v730
        %v1023 = vpack.c.bf16 %v901, %v732
        %v1024 = vpack.c.bf16 %v904, %v735
        %v1025 = vpack.c.bf16 %v906, %v737
        %v1026 = vpack.c.bf16 %v909, %v740
        %v1027 = vpack.c.bf16 %v911, %v742
        %v1028 = vpack.c.bf16 %v914, %v745
        %v1029 = vpack.c.bf16 %v916, %v747
        %v1030 = vpack.c.bf16 %v919, %v750
        %v1031 = vpack.c.bf16 %v921, %v752
        %v1032 = vpack.c.bf16 %v924, %v755
        %v1033 = vpack.c.bf16 %v926, %v757
        %v1034 = vpack.c.bf16 %v929, %v760
        %v1035 = vpack.c.bf16 %v931, %v762
        %v1036 = vpack.c.bf16 %v934, %v765
        %v1037 = vpack.c.bf16 %v936, %v767
        %v1038 = vpack.c.bf16 %v939, %v770
        %v1039 = vpack.c.bf16 %v941, %v772
        %v1040 = vpack.c.bf16 %v944, %v775
        %v1041 = vpack.c.bf16 %v946, %v777
        %v1042 = vpack.c.bf16 %v949, %v780
        %v1043 = vpack.c.bf16 %v951, %v782
        %v1044 = vpack.c.bf16 %v954, %v785
        %v1045 = vpack.c.bf16 %v956, %v787
        %v1046 = vpack.c.bf16 %v959, %v790
        %v1047 = vpack.c.bf16 %v961, %v792
        %v1048 = vpack.c.bf16 %v964, %v795
        %v1049 = vpack.c.bf16 %v966, %v797
        %v1050 = vpack.c.bf16 %v969, %v800
        %v1051 = vpack.c.bf16 %v971, %v802
        %v1052 = vpack.c.bf16 %v974, %v805
        %v1053 = vpack.c.bf16 %v976, %v807
        %v1054 = vpack.c.bf16 %v979, %v810
        %v1055 = vpack.c.bf16 %v981, %v812
        %v1056 = vpack.c.bf16 %v984, %v815
        %v1057 = vpack.c.bf16 %v986, %v817
        %v1058 = vpack.c.bf16 %v989, %v820
        %v1059 = vpack.c.bf16 %v991, %v822
        %v1060 = vpack.c.bf16 %v994, %v825
        %v1061 = vpack.c.bf16 %v996, %v827
        %v1062 = vld [vmem:[#allocation2] sm:$0xf]
        %v1063 = vld [vmem:[#allocation2 + $0x4] sm:$0xf]
        %v1066 = vunpack.c.l.b16 %v1062
        %v1067 = vunpack.c.l.b16 %v1063
        %v1068 = vpack.c.b16 %v1067, %v1066
        %v1133 = vunpack.c.l.b16 %v998
        %v1134 = vunpack.c.l.b16 %v999
        %v1135 = vunpack.c.l.b16 %v1000
        %v1136 = vunpack.c.l.b16 %v1001
        %v1137 = vunpack.c.l.b16 %v1002
        %v1138 = vunpack.c.l.b16 %v1003
        %v1139 = vunpack.c.l.b16 %v1004
        %v1140 = vunpack.c.l.b16 %v1005
        %v1141 = vunpack.c.l.b16 %v1006
        %v1142 = vunpack.c.l.b16 %v1007
        %v1143 = vunpack.c.l.b16 %v1008
        %v1144 = vunpack.c.l.b16 %v1009
        %v1145 = vunpack.c.l.b16 %v1010
        %v1146 = vunpack.c.l.b16 %v1011
        %v1147 = vunpack.c.l.b16 %v1012
        %v1148 = vunpack.c.l.b16 %v1013
        %v1149 = vunpack.c.l.b16 %v1014
        %v1150 = vunpack.c.l.b16 %v1015
        %v1151 = vunpack.c.l.b16 %v1016
        %v1152 = vunpack.c.l.b16 %v1017
        %v1153 = vunpack.c.l.b16 %v1018
        %v1154 = vunpack.c.l.b16 %v1019
        %v1155 = vunpack.c.l.b16 %v1020
        %v1156 = vunpack.c.l.b16 %v1021
        %v1157 = vunpack.c.l.b16 %v1022
        %v1158 = vunpack.c.l.b16 %v1023
        %v1159 = vunpack.c.l.b16 %v1024
        %v1160 = vunpack.c.l.b16 %v1025
        %v1161 = vunpack.c.l.b16 %v1026
        %v1162 = vunpack.c.l.b16 %v1027
        %v1163 = vunpack.c.l.b16 %v1028
        %v1164 = vunpack.c.l.b16 %v1029
        %v1165 = vunpack.c.l.b16 %v1030
        %v1166 = vunpack.c.l.b16 %v1031
        %v1167 = vunpack.c.l.b16 %v1032
        %v1168 = vunpack.c.l.b16 %v1033
        %v1169 = vunpack.c.l.b16 %v1034
        %v1170 = vunpack.c.l.b16 %v1035
        %v1171 = vunpack.c.l.b16 %v1036
        %v1172 = vunpack.c.l.b16 %v1037
        %v1173 = vunpack.c.l.b16 %v1038
        %v1174 = vunpack.c.l.b16 %v1039
        %v1175 = vunpack.c.l.b16 %v1040
        %v1176 = vunpack.c.l.b16 %v1041
        %v1177 = vunpack.c.l.b16 %v1042
        %v1178 = vunpack.c.l.b16 %v1043
        %v1179 = vunpack.c.l.b16 %v1044
        %v1180 = vunpack.c.l.b16 %v1045
        %v1181 = vunpack.c.l.b16 %v1046
        %v1182 = vunpack.c.l.b16 %v1047
        %v1183 = vunpack.c.l.b16 %v1048
        %v1184 = vunpack.c.l.b16 %v1049
        %v1185 = vunpack.c.l.b16 %v1050
        %v1186 = vunpack.c.l.b16 %v1051
        %v1187 = vunpack.c.l.b16 %v1052
        %v1188 = vunpack.c.l.b16 %v1053
        %v1189 = vunpack.c.l.b16 %v1054
        %v1190 = vunpack.c.l.b16 %v1055
        %v1191 = vunpack.c.l.b16 %v1056
        %v1192 = vunpack.c.l.b16 %v1057
        %v1193 = vunpack.c.l.b16 %v1058
        %v1194 = vunpack.c.l.b16 %v1059
        %v1195 = vunpack.c.l.b16 %v1060
        %v1196 = vunpack.c.l.b16 %v1061
        %v1197 = vpack.c.b16 %v1134, %v1133
        %v1198 = vpack.c.b16 %v1136, %v1135
        %v1199 = vpack.c.b16 %v1138, %v1137
        %v1200 = vpack.c.b16 %v1140, %v1139
        %v1201 = vpack.c.b16 %v1142, %v1141
        %v1202 = vpack.c.b16 %v1144, %v1143
        %v1203 = vpack.c.b16 %v1146, %v1145
        %v1204 = vpack.c.b16 %v1148, %v1147
        %v1205 = vpack.c.b16 %v1150, %v1149
        %v1206 = vpack.c.b16 %v1152, %v1151
        %v1207 = vpack.c.b16 %v1154, %v1153
        %v1208 = vpack.c.b16 %v1156, %v1155
        %v1209 = vpack.c.b16 %v1158, %v1157
        %v1210 = vpack.c.b16 %v1160, %v1159
        %v1211 = vpack.c.b16 %v1162, %v1161
        %v1212 = vpack.c.b16 %v1164, %v1163
        %v1213 = vpack.c.b16 %v1166, %v1165
        %v1214 = vpack.c.b16 %v1168, %v1167
        %v1215 = vpack.c.b16 %v1170, %v1169
        %v1216 = vpack.c.b16 %v1172, %v1171
        %v1217 = vpack.c.b16 %v1174, %v1173
        %v1218 = vpack.c.b16 %v1176, %v1175
        %v1219 = vpack.c.b16 %v1178, %v1177
        %v1220 = vpack.c.b16 %v1180, %v1179
        %v1221 = vpack.c.b16 %v1182, %v1181
        %v1222 = vpack.c.b16 %v1184, %v1183
        %v1223 = vpack.c.b16 %v1186, %v1185
        %v1224 = vpack.c.b16 %v1188, %v1187
        %v1225 = vpack.c.b16 %v1190, %v1189
        %v1226 = vpack.c.b16 %v1192, %v1191
        %v1227 = vpack.c.b16 %v1194, %v1193
        %v1228 = vpack.c.b16 %v1196, %v1195
        %vm1229 = vcmask 261120
        %v1231 = vsel %vm1229, %v1068, 0
        %v1234 = vsel %vm1229, %v1197, 0
        %v1237 = vsel %vm1229, %v1198, 0
        %v1240 = vsel %vm1229, %v1199, 0
        %v1243 = vsel %vm1229, %v1200, 0
        %v1246 = vsel %vm1229, %v1201, 0
        %v1249 = vsel %vm1229, %v1202, 0
        %v1252 = vsel %vm1229, %v1203, 0
        %v1255 = vsel %vm1229, %v1204, 0
        %v1258 = vsel %vm1229, %v1205, 0
        %v1261 = vsel %vm1229, %v1206, 0
        %v1264 = vsel %vm1229, %v1207, 0
        %v1267 = vsel %vm1229, %v1208, 0
        %v1270 = vsel %vm1229, %v1209, 0
        %v1273 = vsel %vm1229, %v1210, 0
        %v1276 = vsel %vm1229, %v1211, 0
        %v1279 = vsel %vm1229, %v1212, 0
        %v1282 = vsel %vm1229, %v1213, 0
        %v1285 = vsel %vm1229, %v1214, 0
        %v1288 = vsel %vm1229, %v1215, 0
        %v1291 = vsel %vm1229, %v1216, 0
        %v1294 = vsel %vm1229, %v1217, 0
        %v1297 = vsel %vm1229, %v1218, 0
        %v1300 = vsel %vm1229, %v1219, 0
        %v1303 = vsel %vm1229, %v1220, 0
        %v1306 = vsel %vm1229, %v1221, 0
        %v1309 = vsel %vm1229, %v1222, 0
        %v1312 = vsel %vm1229, %v1223, 0
        %v1315 = vsel %vm1229, %v1224, 0
        %v1318 = vsel %vm1229, %v1225, 0
        %v1321 = vsel %vm1229, %v1226, 0
        %v1324 = vsel %vm1229, %v1227, 0
        %v1327 = vsel %vm1229, %v1228, 0
        %1329 = vmatpush.bf16.xpose.msra.mxu0 %v1255
        %1330 = vmatpush.bf16.xpose.msra.mxu0 %v1252
        %1331 = vmatpush.bf16.xpose.msra.mxu0 %v1249
        %1332 = vmatpush.bf16.xpose.msra.mxu0 %v1246
        %1333 = vmatpush.bf16.xpose.msra.mxu0 %v1243
        %1334 = vmatpush.bf16.xpose.msra.mxu0 %v1240
        %1335 = vmatpush.bf16.xpose.msra.mxu0 %v1237
        %1336 = vmatpush.bf16.xpose.msra.mxu0 %v1234
        %1337 = vmatmul.bf16.gmra.mxu0 %v1231
        %v1338 = vpop.f32.mrf.mxu0
        %v1339 = vadd.f32 0.0, %v1338
        %v1340 = vpop.f32.mrf.mxu0
        %v1341 = vadd.f32 0.0, %v1340
        %1342 = vdwg.mxu0
        %1343 = vmatpush.bf16.xpose.msra.mxu0 %v1279
        %1344 = vmatpush.bf16.xpose.msra.mxu0 %v1276
        %1345 = vmatpush.bf16.xpose.msra.mxu0 %v1273
        %1346 = vmatpush.bf16.xpose.msra.mxu0 %v1270
        %1347 = vmatpush.bf16.xpose.msra.mxu0 %v1267
        %1348 = vmatpush.bf16.xpose.msra.mxu0 %v1264
        %1349 = vmatpush.bf16.xpose.msra.mxu0 %v1261
        %1350 = vmatpush.bf16.xpose.msra.mxu0 %v1258
        %1351 = vmatmul.bf16.gmra.mxu0 %v1231
        %v1352 = vpop.f32.mrf.mxu0
        %v1353 = vadd.f32 0.0, %v1352
        %v1354 = vpop.f32.mrf.mxu0
        %v1355 = vadd.f32 0.0, %v1354
        %1356 = vdwg.mxu0
        %1357 = vmatpush.bf16.xpose.msra.mxu0 %v1303
        %1358 = vmatpush.bf16.xpose.msra.mxu0 %v1300
        %1359 = vmatpush.bf16.xpose.msra.mxu0 %v1297
        %1360 = vmatpush.bf16.xpose.msra.mxu0 %v1294
        %1361 = vmatpush.bf16.xpose.msra.mxu0 %v1291
        %1362 = vmatpush.bf16.xpose.msra.mxu0 %v1288
        %1363 = vmatpush.bf16.xpose.msra.mxu0 %v1285
        %1364 = vmatpush.bf16.xpose.msra.mxu0 %v1282
        %1365 = vmatmul.bf16.gmra.mxu0 %v1231
        %v1366 = vpop.f32.mrf.mxu0
        %v1367 = vadd.f32 0.0, %v1366
        %v1368 = vpop.f32.mrf.mxu0
        %v1369 = vadd.f32 0.0, %v1368
        %1370 = vdwg.mxu0
        %1371 = vmatpush.bf16.xpose.msra.mxu0 %v1327
        %1372 = vmatpush.bf16.xpose.msra.mxu0 %v1324
        %1373 = vmatpush.bf16.xpose.msra.mxu0 %v1321
        %1374 = vmatpush.bf16.xpose.msra.mxu0 %v1318
        %1375 = vmatpush.bf16.xpose.msra.mxu0 %v1315
        %1376 = vmatpush.bf16.xpose.msra.mxu0 %v1312
        %1377 = vmatpush.bf16.xpose.msra.mxu0 %v1309
        %1378 = vmatpush.bf16.xpose.msra.mxu0 %v1306
        %1379 = vmatmul.bf16.gmra.mxu0 %v1231
        %v1380 = vpop.f32.mrf.mxu0
        %v1381 = vadd.f32 0.0, %v1380
        %v1382 = vpop.f32.mrf.mxu0
        %v1383 = vadd.f32 0.0, %v1382
        %1384 = vdwg.mxu0
        %v1385 = vld [vmem:[#allocation3] sm:$0xff]
        %v1386 = vld [vmem:[#allocation3 + $0x8] sm:$0xff]
        %v1387 = vmax.f32 %v1339, %v1367
        %v1388 = vmax.f32 %v1353, %v1381
        %v1389 = vmax.f32 %v1387, %v1388
        %1390 = vmax.xlane.f32.xlu0 %v1389
        %v1391 = vpop.xlane.xlu0 %1390
        %v1392 = vmax.f32 %v1341, %v1369
        %v1393 = vmax.f32 %v1355, %v1383
        %v1394 = vmax.f32 %v1392, %v1393
        %1395 = vmax.xlane.f32.xlu0 %v1394
        %v1396 = vpop.xlane.xlu0 %1395
        %v1397 = vmax.f32 %v1385, %v1391
        %v1398 = vmax.f32 %v1386, %v1396
        %v1399 = vsub.f32 %v1385, %v1397
        %v1400 = vsub.f32 %v1386, %v1398
        %v1401 = vmul.f32 %v1399, 1.442695
        %v1402 = vpow.pop %v1401
        %v1403 = vmul.f32 %v1400, 1.442695
        %v1404 = vpow.pop %v1403
        %1406 = vset.pattern.permute.xlu0 0
        %1407 = vperm.xlu0 %1406, %v1397
        %v1408 = vpop.permute.xlu0 %1407
        %1411 = vset.pattern.permute.xlu0 0
        %1412 = vperm.xlu0 %1411, %v1398
        %v1413 = vpop.permute.xlu0 %1412
        %v1415 = vsub.f32 %v1339, %v1408
        %v1416 = vsub.f32 %v1353, %v1408
        %v1417 = vsub.f32 %v1367, %v1408
        %v1418 = vsub.f32 %v1381, %v1408
        %v1419 = vsub.f32 %v1341, %v1413
        %v1420 = vsub.f32 %v1355, %v1413
        %v1421 = vsub.f32 %v1369, %v1413
        %v1422 = vsub.f32 %v1383, %v1413
        %v1423 = vmul.f32 %v1415, 1.442695
        %v1424 = vpow.pop %v1423
        %v1425 = vmul.f32 %v1416, 1.442695
        %v1426 = vpow.pop %v1425
        %v1427 = vmul.f32 %v1417, 1.442695
        %v1428 = vpow.pop %v1427
        %v1429 = vmul.f32 %v1418, 1.442695
        %v1430 = vpow.pop %v1429
        %v1431 = vmul.f32 %v1419, 1.442695
        %v1432 = vpow.pop %v1431
        %v1433 = vmul.f32 %v1420, 1.442695
        %v1434 = vpow.pop %v1433
        %v1435 = vmul.f32 %v1421, 1.442695
        %v1436 = vpow.pop %v1435
        %v1437 = vmul.f32 %v1422, 1.442695
        %v1438 = vpow.pop %v1437
        %v1439 = vld [vmem:[#allocation4] sm:$0xff]
        %v1440 = vld [vmem:[#allocation4 + $0x8] sm:$0xff]
        %v1441 = vmul.f32 %v1402, %v1439
        %v1442 = vmul.f32 %v1404, %v1440
        %v1443 = vadd.f32 %v1424, %v1426
        %v1444 = vadd.f32 %v1443, %v1428
        %v1445 = vadd.f32 %v1444, %v1430
        %1446 = vadd.xlane.f32.xlu0 %v1445
        %v1447 = vpop.xlane.xlu0 %1446
        %v1448 = vadd.f32 %v1432, %v1434
        %v1449 = vadd.f32 %v1448, %v1436
        %v1450 = vadd.f32 %v1449, %v1438
        %1451 = vadd.xlane.f32.xlu0 %v1450
        %v1452 = vpop.xlane.xlu0 %1451
        %v1453 = vadd.f32 %v1441, %v1447
        %v1454 = vadd.f32 %v1442, %v1452
        %vm1455 = vcmask 7168
        %1456 = vst.msk [vmem:[#allocation4] sm:$0xff] %vm1455, %v1453
        %1457 = vst.msk [vmem:[#allocation4 + $0x8] sm:$0xff] %vm1455, %v1454
        %v1458 = vld [vmem:[#allocation5] sm:$0xff]
        %v1459 = vld [vmem:[#allocation5 + $0x8] sm:$0xff]
        %1461 = vset.pattern.permute.xlu0 0
        %1462 = vperm.xlu0 %1461, %v1402
        %v1463 = vpop.permute.xlu0 %1462
        %1466 = vset.pattern.permute.xlu0 0
        %1467 = vperm.xlu0 %1466, %v1404
        %v1468 = vpop.permute.xlu0 %1467
        %v1470 = vmul.f32 %v1463, %v1458
        %v1471 = vmul.f32 %v1468, %v1459
        %v1472 = vpack.c.bf16 %v1432, %v1424
        %v1473 = vpack.c.bf16 %v1434, %v1426
        %v1474 = vpack.c.bf16 %v1436, %v1428
        %v1475 = vpack.c.bf16 %v1438, %v1430
        %v1476 = vunpack.c.h.b16 %v998
        %v1477 = vunpack.c.h.b16 %v999
        %v1478 = vunpack.c.h.b16 %v1000
        %v1479 = vunpack.c.h.b16 %v1001
        %v1480 = vunpack.c.h.b16 %v1002
        %v1481 = vunpack.c.h.b16 %v1003
        %v1482 = vunpack.c.h.b16 %v1004
        %v1483 = vunpack.c.h.b16 %v1005
        %v1484 = vunpack.c.h.b16 %v1006
        %v1485 = vunpack.c.h.b16 %v1007
        %v1486 = vunpack.c.h.b16 %v1008
        %v1487 = vunpack.c.h.b16 %v1009
        %v1488 = vunpack.c.h.b16 %v1010
        %v1489 = vunpack.c.h.b16 %v1011
        %v1490 = vunpack.c.h.b16 %v1012
        %v1491 = vunpack.c.h.b16 %v1013
        %v1492 = vunpack.c.h.b16 %v1014
        %v1493 = vunpack.c.h.b16 %v1015
        %v1494 = vunpack.c.h.b16 %v1016
        %v1495 = vunpack.c.h.b16 %v1017
        %v1496 = vunpack.c.h.b16 %v1018
        %v1497 = vunpack.c.h.b16 %v1019
        %v1498 = vunpack.c.h.b16 %v1020
        %v1499 = vunpack.c.h.b16 %v1021
        %v1500 = vunpack.c.h.b16 %v1022
        %v1501 = vunpack.c.h.b16 %v1023
        %v1502 = vunpack.c.h.b16 %v1024
        %v1503 = vunpack.c.h.b16 %v1025
        %v1504 = vunpack.c.h.b16 %v1026
        %v1505 = vunpack.c.h.b16 %v1027
        %v1506 = vunpack.c.h.b16 %v1028
        %v1507 = vunpack.c.h.b16 %v1029
        %v1508 = vunpack.c.h.b16 %v1030
        %v1509 = vunpack.c.h.b16 %v1031
        %v1510 = vunpack.c.h.b16 %v1032
        %v1511 = vunpack.c.h.b16 %v1033
        %v1512 = vunpack.c.h.b16 %v1034
        %v1513 = vunpack.c.h.b16 %v1035
        %v1514 = vunpack.c.h.b16 %v1036
        %v1515 = vunpack.c.h.b16 %v1037
        %v1516 = vunpack.c.h.b16 %v1038
        %v1517 = vunpack.c.h.b16 %v1039
        %v1518 = vunpack.c.h.b16 %v1040
        %v1519 = vunpack.c.h.b16 %v1041
        %v1520 = vunpack.c.h.b16 %v1042
        %v1521 = vunpack.c.h.b16 %v1043
        %v1522 = vunpack.c.h.b16 %v1044
        %v1523 = vunpack.c.h.b16 %v1045
        %v1524 = vunpack.c.h.b16 %v1046
        %v1525 = vunpack.c.h.b16 %v1047
        %v1526 = vunpack.c.h.b16 %v1048
        %v1527 = vunpack.c.h.b16 %v1049
        %v1528 = vunpack.c.h.b16 %v1050
        %v1529 = vunpack.c.h.b16 %v1051
        %v1530 = vunpack.c.h.b16 %v1052
        %v1531 = vunpack.c.h.b16 %v1053
        %v1532 = vunpack.c.h.b16 %v1054
        %v1533 = vunpack.c.h.b16 %v1055
        %v1534 = vunpack.c.h.b16 %v1056
        %v1535 = vunpack.c.h.b16 %v1057
        %v1536 = vunpack.c.h.b16 %v1058
        %v1537 = vunpack.c.h.b16 %v1059
        %v1538 = vunpack.c.h.b16 %v1060
        %v1539 = vunpack.c.h.b16 %v1061
        %v1540 = vpack.c.b16 %v1477, %v1476
        %v1541 = vpack.c.b16 %v1479, %v1478
        %v1542 = vpack.c.b16 %v1481, %v1480
        %v1543 = vpack.c.b16 %v1483, %v1482
        %v1544 = vpack.c.b16 %v1485, %v1484
        %v1545 = vpack.c.b16 %v1487, %v1486
        %v1546 = vpack.c.b16 %v1489, %v1488
        %v1547 = vpack.c.b16 %v1491, %v1490
        %v1548 = vpack.c.b16 %v1493, %v1492
        %v1549 = vpack.c.b16 %v1495, %v1494
        %v1550 = vpack.c.b16 %v1497, %v1496
        %v1551 = vpack.c.b16 %v1499, %v1498
        %v1552 = vpack.c.b16 %v1501, %v1500
        %v1553 = vpack.c.b16 %v1503, %v1502
        %v1554 = vpack.c.b16 %v1505, %v1504
        %v1555 = vpack.c.b16 %v1507, %v1506
        %v1556 = vpack.c.b16 %v1509, %v1508
        %v1557 = vpack.c.b16 %v1511, %v1510
        %v1558 = vpack.c.b16 %v1513, %v1512
        %v1559 = vpack.c.b16 %v1515, %v1514
        %v1560 = vpack.c.b16 %v1517, %v1516
        %v1561 = vpack.c.b16 %v1519, %v1518
        %v1562 = vpack.c.b16 %v1521, %v1520
        %v1563 = vpack.c.b16 %v1523, %v1522
        %v1564 = vpack.c.b16 %v1525, %v1524
        %v1565 = vpack.c.b16 %v1527, %v1526
        %v1566 = vpack.c.b16 %v1529, %v1528
        %v1567 = vpack.c.b16 %v1531, %v1530
        %v1568 = vpack.c.b16 %v1533, %v1532
        %v1569 = vpack.c.b16 %v1535, %v1534
        %v1570 = vpack.c.b16 %v1537, %v1536
        %v1571 = vpack.c.b16 %v1539, %v1538
        %1604 = vmatpush.bf16.msra.mxu0 %v1547
        %1605 = vmatpush.bf16.msra.mxu0 %v1546
        %1606 = vmatpush.bf16.msra.mxu0 %v1545
        %1607 = vmatpush.bf16.msra.mxu0 %v1544
        %1608 = vmatpush.bf16.msra.mxu0 %v1543
        %1609 = vmatpush.bf16.msra.mxu0 %v1542
        %1610 = vmatpush.bf16.msra.mxu0 %v1541
        %1611 = vmatpush.bf16.msra.mxu0 %v1540
        %1612 = vmatmul.bf16.gmra.mxu0 %v1472
        %v1613 = vpop.f32.mrf.mxu0
        %v1614 = vadd.f32 0.0, %v1613
        %v1615 = vpop.f32.mrf.mxu0
        %v1616 = vadd.f32 0.0, %v1615
        %1617 = vdwg.mxu0
        %1618 = vmatpush.bf16.msra.mxu0 %v1555
        %1619 = vmatpush.bf16.msra.mxu0 %v1554
        %1620 = vmatpush.bf16.msra.mxu0 %v1553
        %1621 = vmatpush.bf16.msra.mxu0 %v1552
        %1622 = vmatpush.bf16.msra.mxu0 %v1551
        %1623 = vmatpush.bf16.msra.mxu0 %v1550
        %1624 = vmatpush.bf16.msra.mxu0 %v1549
        %1625 = vmatpush.bf16.msra.mxu0 %v1548
        %1626 = vmatmul.bf16.gmra.mxu0 %v1473
        %v1627 = vpop.f32.mrf.mxu0
        %v1628 = vadd.f32 %v1614, %v1627
        %v1629 = vpop.f32.mrf.mxu0
        %v1630 = vadd.f32 %v1616, %v1629
        %1631 = vdwg.mxu0
        %1632 = vmatpush.bf16.msra.mxu0 %v1563
        %1633 = vmatpush.bf16.msra.mxu0 %v1562
        %1634 = vmatpush.bf16.msra.mxu0 %v1561
        %1635 = vmatpush.bf16.msra.mxu0 %v1560
        %1636 = vmatpush.bf16.msra.mxu0 %v1559
        %1637 = vmatpush.bf16.msra.mxu0 %v1558
        %1638 = vmatpush.bf16.msra.mxu0 %v1557
        %1639 = vmatpush.bf16.msra.mxu0 %v1556
        %1640 = vmatmul.bf16.gmra.mxu0 %v1474
        %v1641 = vpop.f32.mrf.mxu0
        %v1642 = vadd.f32 %v1628, %v1641
        %v1643 = vpop.f32.mrf.mxu0
        %v1644 = vadd.f32 %v1630, %v1643
        %1645 = vdwg.mxu0
        %1646 = vmatpush.bf16.msra.mxu0 %v1571
        %1647 = vmatpush.bf16.msra.mxu0 %v1570
        %1648 = vmatpush.bf16.msra.mxu0 %v1569
        %1649 = vmatpush.bf16.msra.mxu0 %v1568
        %1650 = vmatpush.bf16.msra.mxu0 %v1567
        %1651 = vmatpush.bf16.msra.mxu0 %v1566
        %1652 = vmatpush.bf16.msra.mxu0 %v1565
        %1653 = vmatpush.bf16.msra.mxu0 %v1564
        %1654 = vmatmul.bf16.gmra.mxu0 %v1475
        %v1655 = vpop.f32.mrf.mxu0
        %v1656 = vadd.f32 %v1642, %v1655
        %v1657 = vpop.f32.mrf.mxu0
        %v1658 = vadd.f32 %v1644, %v1657
        %1659 = vdwg.mxu0
        %v1660 = vadd.f32 %v1470, %v1656
        %v1661 = vadd.f32 %v1471, %v1658
        %1662 = vst.msk [vmem:[#allocation5] sm:$0xff] %vm1229, %v1660
        %1663 = vst.msk [vmem:[#allocation5 + $0x8] sm:$0xff] %vm1229, %v1661
        %1664 = vst.msk [vmem:[#allocation3] sm:$0xff] %vm1455, %v1397
        %1665 = vst.msk [vmem:[#allocation3 + $0x8] sm:$0xff] %vm1455, %v1398
        %v1666 = vld [vmem:[#allocation2] sm:$0xf]
        %v1667 = vld [vmem:[#allocation2 + $0x4] sm:$0xf]
        %v1670 = vunpack.c.l.b16 %v1666
        %v1671 = vunpack.c.l.b16 %v1667
        %v1672 = vpack.c.b16 %v1671, %v1670
        %1673 = vrot.lane.b32.xlu0 %v1672, 96
        %v1674 = vpop.permute.xlu0 %1673
        %1675 = vrot.lane.b32.xlu0 %v1197, 96
        %v1676 = vpop.permute.xlu0 %1675
        %1677 = vrot.lane.b32.xlu0 %v1198, 96
        %v1678 = vpop.permute.xlu0 %1677
        %1679 = vrot.lane.b32.xlu0 %v1199, 96
        %v1680 = vpop.permute.xlu0 %1679
        %1681 = vrot.lane.b32.xlu0 %v1200, 96
        %v1682 = vpop.permute.xlu0 %1681
        %1683 = vrot.lane.b32.xlu0 %v1201, 96
        %v1684 = vpop.permute.xlu0 %1683
        %1685 = vrot.lane.b32.xlu0 %v1202, 96
        %v1686 = vpop.permute.xlu0 %1685
        %1687 = vrot.lane.b32.xlu0 %v1203, 96
        %v1688 = vpop.permute.xlu0 %1687
        %1689 = vrot.lane.b32.xlu0 %v1204, 96
        %v1690 = vpop.permute.xlu0 %1689
        %1691 = vrot.lane.b32.xlu0 %v1205, 96
        %v1692 = vpop.permute.xlu0 %1691
        %1693 = vrot.lane.b32.xlu0 %v1206, 96
        %v1694 = vpop.permute.xlu0 %1693
        %1695 = vrot.lane.b32.xlu0 %v1207, 96
        %v1696 = vpop.permute.xlu0 %1695
        %1697 = vrot.lane.b32.xlu0 %v1208, 96
        %v1698 = vpop.permute.xlu0 %1697
        %1699 = vrot.lane.b32.xlu0 %v1209, 96
        %v1700 = vpop.permute.xlu0 %1699
        %1701 = vrot.lane.b32.xlu0 %v1210, 96
        %v1702 = vpop.permute.xlu0 %1701
        %1703 = vrot.lane.b32.xlu0 %v1211, 96
        %v1704 = vpop.permute.xlu0 %1703
        %1705 = vrot.lane.b32.xlu0 %v1212, 96
        %v1706 = vpop.permute.xlu0 %1705
        %1707 = vrot.lane.b32.xlu0 %v1213, 96
        %v1708 = vpop.permute.xlu0 %1707
        %1709 = vrot.lane.b32.xlu0 %v1214, 96
        %v1710 = vpop.permute.xlu0 %1709
        %1711 = vrot.lane.b32.xlu0 %v1215, 96
        %v1712 = vpop.permute.xlu0 %1711
        %1713 = vrot.lane.b32.xlu0 %v1216, 96
        %v1714 = vpop.permute.xlu0 %1713
        %1715 = vrot.lane.b32.xlu0 %v1217, 96
        %v1716 = vpop.permute.xlu0 %1715
        %1717 = vrot.lane.b32.xlu0 %v1218, 96
        %v1718 = vpop.permute.xlu0 %1717
        %1719 = vrot.lane.b32.xlu0 %v1219, 96
        %v1720 = vpop.permute.xlu0 %1719
        %1721 = vrot.lane.b32.xlu0 %v1220, 96
        %v1722 = vpop.permute.xlu0 %1721
        %1723 = vrot.lane.b32.xlu0 %v1221, 96
        %v1724 = vpop.permute.xlu0 %1723
        %1725 = vrot.lane.b32.xlu0 %v1222, 96
        %v1726 = vpop.permute.xlu0 %1725
        %1727 = vrot.lane.b32.xlu0 %v1223, 96
        %v1728 = vpop.permute.xlu0 %1727
        %1729 = vrot.lane.b32.xlu0 %v1224, 96
        %v1730 = vpop.permute.xlu0 %1729
        %1731 = vrot.lane.b32.xlu0 %v1225, 96
        %v1732 = vpop.permute.xlu0 %1731
        %1733 = vrot.lane.b32.xlu0 %v1226, 96
        %v1734 = vpop.permute.xlu0 %1733
        %1735 = vrot.lane.b32.xlu0 %v1227, 96
        %v1736 = vpop.permute.xlu0 %1735
        %1737 = vrot.lane.b32.xlu0 %v1228, 96
        %v1738 = vpop.permute.xlu0 %1737
        %v1740 = vsel %vm1229, %v1674, 0
        %v1743 = vsel %vm1229, %v1676, 0
        %v1746 = vsel %vm1229, %v1678, 0
        %v1749 = vsel %vm1229, %v1680, 0
        %v1752 = vsel %vm1229, %v1682, 0
        %v1755 = vsel %vm1229, %v1684, 0
        %v1758 = vsel %vm1229, %v1686, 0
        %v1761 = vsel %vm1229, %v1688, 0
        %v1764 = vsel %vm1229, %v1690, 0
        %v1767 = vsel %vm1229, %v1692, 0
        %v1770 = vsel %vm1229, %v1694, 0
        %v1773 = vsel %vm1229, %v1696, 0
        %v1776 = vsel %vm1229, %v1698, 0
        %v1779 = vsel %vm1229, %v1700, 0
        %v1782 = vsel %vm1229, %v1702, 0
        %v1785 = vsel %vm1229, %v1704, 0
        %v1788 = vsel %vm1229, %v1706, 0
        %v1791 = vsel %vm1229, %v1708, 0
        %v1794 = vsel %vm1229, %v1710, 0
        %v1797 = vsel %vm1229, %v1712, 0
        %v1800 = vsel %vm1229, %v1714, 0
        %v1803 = vsel %vm1229, %v1716, 0
        %v1806 = vsel %vm1229, %v1718, 0
        %v1809 = vsel %vm1229, %v1720, 0
        %v1812 = vsel %vm1229, %v1722, 0
        %v1815 = vsel %vm1229, %v1724, 0
        %v1818 = vsel %vm1229, %v1726, 0
        %v1821 = vsel %vm1229, %v1728, 0
        %v1824 = vsel %vm1229, %v1730, 0
        %v1827 = vsel %vm1229, %v1732, 0
        %v1830 = vsel %vm1229, %v1734, 0
        %v1833 = vsel %vm1229, %v1736, 0
        %v1836 = vsel %vm1229, %v1738, 0
        %1838 = vmatpush.bf16.xpose.msra.mxu0 %v1764
        %1839 = vmatpush.bf16.xpose.msra.mxu0 %v1761
        %1840 = vmatpush.bf16.xpose.msra.mxu0 %v1758
        %1841 = vmatpush.bf16.xpose.msra.mxu0 %v1755
        %1842 = vmatpush.bf16.xpose.msra.mxu0 %v1752
        %1843 = vmatpush.bf16.xpose.msra.mxu0 %v1749
        %1844 = vmatpush.bf16.xpose.msra.mxu0 %v1746
        %1845 = vmatpush.bf16.xpose.msra.mxu0 %v1743
        %1846 = vmatmul.bf16.gmra.mxu0 %v1740
        %v1847 = vpop.f32.mrf.mxu0
        %v1848 = vadd.f32 0.0, %v1847
        %v1849 = vpop.f32.mrf.mxu0
        %v1850 = vadd.f32 0.0, %v1849
        %1851 = vdwg.mxu0
        %1852 = vmatpush.bf16.xpose.msra.mxu0 %v1788
        %1853 = vmatpush.bf16.xpose.msra.mxu0 %v1785
        %1854 = vmatpush.bf16.xpose.msra.mxu0 %v1782
        %1855 = vmatpush.bf16.xpose.msra.mxu0 %v1779
        %1856 = vmatpush.bf16.xpose.msra.mxu0 %v1776
        %1857 = vmatpush.bf16.xpose.msra.mxu0 %v1773
        %1858 = vmatpush.bf16.xpose.msra.mxu0 %v1770
        %1859 = vmatpush.bf16.xpose.msra.mxu0 %v1767
        %1860 = vmatmul.bf16.gmra.mxu0 %v1740
        %v1861 = vpop.f32.mrf.mxu0
        %v1862 = vadd.f32 0.0, %v1861
        %v1863 = vpop.f32.mrf.mxu0
        %v1864 = vadd.f32 0.0, %v1863
        %1865 = vdwg.mxu0
        %1866 = vmatpush.bf16.xpose.msra.mxu0 %v1812
        %1867 = vmatpush.bf16.xpose.msra.mxu0 %v1809
        %1868 = vmatpush.bf16.xpose.msra.mxu0 %v1806
        %1869 = vmatpush.bf16.xpose.msra.mxu0 %v1803
        %1870 = vmatpush.bf16.xpose.msra.mxu0 %v1800
        %1871 = vmatpush.bf16.xpose.msra.mxu0 %v1797
        %1872 = vmatpush.bf16.xpose.msra.mxu0 %v1794
        %1873 = vmatpush.bf16.xpose.msra.mxu0 %v1791
        %1874 = vmatmul.bf16.gmra.mxu0 %v1740
        %v1875 = vpop.f32.mrf.mxu0
        %v1876 = vadd.f32 0.0, %v1875
        %v1877 = vpop.f32.mrf.mxu0
        %v1878 = vadd.f32 0.0, %v1877
        %1879 = vdwg.mxu0
        %1880 = vmatpush.bf16.xpose.msra.mxu0 %v1836
        %1881 = vmatpush.bf16.xpose.msra.mxu0 %v1833
        %1882 = vmatpush.bf16.xpose.msra.mxu0 %v1830
        %1883 = vmatpush.bf16.xpose.msra.mxu0 %v1827
        %1884 = vmatpush.bf16.xpose.msra.mxu0 %v1824
        %1885 = vmatpush.bf16.xpose.msra.mxu0 %v1821
        %1886 = vmatpush.bf16.xpose.msra.mxu0 %v1818
        %1887 = vmatpush.bf16.xpose.msra.mxu0 %v1815
        %1888 = vmatmul.bf16.gmra.mxu0 %v1740
        %v1889 = vpop.f32.mrf.mxu0
        %v1890 = vadd.f32 0.0, %v1889
        %v1891 = vpop.f32.mrf.mxu0
        %v1892 = vadd.f32 0.0, %v1891
        %1893 = vdwg.mxu0
        %v1894 = vadd.f32 %v1339, %v1848
        %v1895 = vadd.f32 %v1353, %v1862
        %v1896 = vadd.f32 %v1367, %v1876
        %v1897 = vadd.f32 %v1381, %v1890
        %v1898 = vadd.f32 %v1341, %v1850
        %v1899 = vadd.f32 %v1355, %v1864
        %v1900 = vadd.f32 %v1369, %v1878
        %v1901 = vadd.f32 %v1383, %v1892
        %s1902 = scalar_lea.vmem [#allocation3], 16
        %v1903 = vld [vmem:[%s1902] sm:$0xff]
        %v1904 = vld [vmem:[%s1902 + $0x8] sm:$0xff]
        %v1905 = vmax.f32 %v1848, %v1876
        %v1906 = vmax.f32 %v1862, %v1890
        %v1907 = vmax.f32 %v1905, %v1906
        %1908 = vmax.xlane.f32.xlu0 %v1907
        %v1909 = vpop.xlane.xlu0 %1908
        %v1910 = vmax.f32 %v1850, %v1878
        %v1911 = vmax.f32 %v1864, %v1892
        %v1912 = vmax.f32 %v1910, %v1911
        %1913 = vmax.xlane.f32.xlu0 %v1912
        %v1914 = vpop.xlane.xlu0 %1913
        %v1915 = vmax.f32 %v1903, %v1909
        %v1916 = vmax.f32 %v1904, %v1914
        %v1917 = vsub.f32 %v1903, %v1915
        %v1918 = vsub.f32 %v1904, %v1916
        %v1919 = vmul.f32 %v1917, 1.442695
        %v1920 = vpow.pop %v1919
        %v1921 = vmul.f32 %v1918, 1.442695
        %v1922 = vpow.pop %v1921
        %1924 = vset.pattern.permute.xlu0 0
        %1925 = vperm.xlu0 %1924, %v1915
        %v1926 = vpop.permute.xlu0 %1925
        %1929 = vset.pattern.permute.xlu0 0
        %1930 = vperm.xlu0 %1929, %v1916
        %v1931 = vpop.permute.xlu0 %1930
        %v1933 = vsub.f32 %v1848, %v1926
        %v1934 = vsub.f32 %v1862, %v1926
        %v1935 = vsub.f32 %v1876, %v1926
        %v1936 = vsub.f32 %v1890, %v1926
        %v1937 = vsub.f32 %v1850, %v1931
        %v1938 = vsub.f32 %v1864, %v1931
        %v1939 = vsub.f32 %v1878, %v1931
        %v1940 = vsub.f32 %v1892, %v1931
        %v1941 = vmul.f32 %v1933, 1.442695
        %v1942 = vpow.pop %v1941
        %v1943 = vmul.f32 %v1934, 1.442695
        %v1944 = vpow.pop %v1943
        %v1945 = vmul.f32 %v1935, 1.442695
        %v1946 = vpow.pop %v1945
        %v1947 = vmul.f32 %v1936, 1.442695
        %v1948 = vpow.pop %v1947
        %v1949 = vmul.f32 %v1937, 1.442695
        %v1950 = vpow.pop %v1949
        %v1951 = vmul.f32 %v1938, 1.442695
        %v1952 = vpow.pop %v1951
        %v1953 = vmul.f32 %v1939, 1.442695
        %v1954 = vpow.pop %v1953
        %v1955 = vmul.f32 %v1940, 1.442695
        %v1956 = vpow.pop %v1955
        %s1957 = scalar_lea.vmem [#allocation4], 16
        %v1958 = vld [vmem:[%s1957] sm:$0xff]
        %v1959 = vld [vmem:[%s1957 + $0x8] sm:$0xff]
        %v1960 = vmul.f32 %v1920, %v1958
        %v1961 = vmul.f32 %v1922, %v1959
        %v1962 = vadd.f32 %v1942, %v1944
        %v1963 = vadd.f32 %v1962, %v1946
        %v1964 = vadd.f32 %v1963, %v1948
        %1965 = vadd.xlane.f32.xlu0 %v1964
        %v1966 = vpop.xlane.xlu0 %1965
        %v1967 = vadd.f32 %v1950, %v1952
        %v1968 = vadd.f32 %v1967, %v1954
        %v1969 = vadd.f32 %v1968, %v1956
        %1970 = vadd.xlane.f32.xlu0 %v1969
        %v1971 = vpop.xlane.xlu0 %1970
        %v1972 = vadd.f32 %v1960, %v1966
        %v1973 = vadd.f32 %v1961, %v1971
        %1974 = vst.msk [vmem:[%s1957] sm:$0xff] %vm1455, %v1972
        %1975 = vst.msk [vmem:[%s1957 + $0x8] sm:$0xff] %vm1455, %v1973
        %s1976 = scalar_lea.vmem [#allocation5], 16
        %v1977 = vld [vmem:[%s1976] sm:$0xff]
        %v1978 = vld [vmem:[%s1976 + $0x8] sm:$0xff]
        %1980 = vset.pattern.permute.xlu0 0
        %1981 = vperm.xlu0 %1980, %v1920
        %v1982 = vpop.permute.xlu0 %1981
        %1985 = vset.pattern.permute.xlu0 0
        %1986 = vperm.xlu0 %1985, %v1922
        %v1987 = vpop.permute.xlu0 %1986
        %v1989 = vmul.f32 %v1982, %v1977
        %v1990 = vmul.f32 %v1987, %v1978
        %v1991 = vpack.c.bf16 %v1950, %v1942
        %v1992 = vpack.c.bf16 %v1952, %v1944
        %v1993 = vpack.c.bf16 %v1954, %v1946
        %v1994 = vpack.c.bf16 %v1956, %v1948
        %1995 = vrot.lane.b32.xlu0 %v1540, 96
        %v1996 = vpop.permute.xlu0 %1995
        %1997 = vrot.lane.b32.xlu0 %v1541, 96
        %v1998 = vpop.permute.xlu0 %1997
        %1999 = vrot.lane.b32.xlu0 %v1542, 96
        %v2000 = vpop.permute.xlu0 %1999
        %2001 = vrot.lane.b32.xlu0 %v1543, 96
        %v2002 = vpop.permute.xlu0 %2001
        %2003 = vrot.lane.b32.xlu0 %v1544, 96
        %v2004 = vpop.permute.xlu0 %2003
        %2005 = vrot.lane.b32.xlu0 %v1545, 96
        %v2006 = vpop.permute.xlu0 %2005
        %2007 = vrot.lane.b32.xlu0 %v1546, 96
        %v2008 = vpop.permute.xlu0 %2007
        %2009 = vrot.lane.b32.xlu0 %v1547, 96
        %v2010 = vpop.permute.xlu0 %2009
        %2011 = vrot.lane.b32.xlu0 %v1548, 96
        %v2012 = vpop.permute.xlu0 %2011
        %2013 = vrot.lane.b32.xlu0 %v1549, 96
        %v2014 = vpop.permute.xlu0 %2013
        %2015 = vrot.lane.b32.xlu0 %v1550, 96
        %v2016 = vpop.permute.xlu0 %2015
        %2017 = vrot.lane.b32.xlu0 %v1551, 96
        %v2018 = vpop.permute.xlu0 %2017
        %2019 = vrot.lane.b32.xlu0 %v1552, 96
        %v2020 = vpop.permute.xlu0 %2019
        %2021 = vrot.lane.b32.xlu0 %v1553, 96
        %v2022 = vpop.permute.xlu0 %2021
        %2023 = vrot.lane.b32.xlu0 %v1554, 96
        %v2024 = vpop.permute.xlu0 %2023
        %2025 = vrot.lane.b32.xlu0 %v1555, 96
        %v2026 = vpop.permute.xlu0 %2025
        %2027 = vrot.lane.b32.xlu0 %v1556, 96
        %v2028 = vpop.permute.xlu0 %2027
        %2029 = vrot.lane.b32.xlu0 %v1557, 96
        %v2030 = vpop.permute.xlu0 %2029
        %2031 = vrot.lane.b32.xlu0 %v1558, 96
        %v2032 = vpop.permute.xlu0 %2031
        %2033 = vrot.lane.b32.xlu0 %v1559, 96
        %v2034 = vpop.permute.xlu0 %2033
        %2035 = vrot.lane.b32.xlu0 %v1560, 96
        %v2036 = vpop.permute.xlu0 %2035
        %2037 = vrot.lane.b32.xlu0 %v1561, 96
        %v2038 = vpop.permute.xlu0 %2037
        %2039 = vrot.lane.b32.xlu0 %v1562, 96
        %v2040 = vpop.permute.xlu0 %2039
        %2041 = vrot.lane.b32.xlu0 %v1563, 96
        %v2042 = vpop.permute.xlu0 %2041
        %2043 = vrot.lane.b32.xlu0 %v1564, 96
        %v2044 = vpop.permute.xlu0 %2043
        %2045 = vrot.lane.b32.xlu0 %v1565, 96
        %v2046 = vpop.permute.xlu0 %2045
        %2047 = vrot.lane.b32.xlu0 %v1566, 96
        %v2048 = vpop.permute.xlu0 %2047
        %2049 = vrot.lane.b32.xlu0 %v1567, 96
        %v2050 = vpop.permute.xlu0 %2049
        %2051 = vrot.lane.b32.xlu0 %v1568, 96
        %v2052 = vpop.permute.xlu0 %2051
        %2053 = vrot.lane.b32.xlu0 %v1569, 96
        %v2054 = vpop.permute.xlu0 %2053
        %2055 = vrot.lane.b32.xlu0 %v1570, 96
        %v2056 = vpop.permute.xlu0 %2055
        %2057 = vrot.lane.b32.xlu0 %v1571, 96
        %v2058 = vpop.permute.xlu0 %2057
        %2091 = vmatpush.bf16.msra.mxu0 %v2010
        %2092 = vmatpush.bf16.msra.mxu0 %v2008
        %2093 = vmatpush.bf16.msra.mxu0 %v2006
        %2094 = vmatpush.bf16.msra.mxu0 %v2004
        %2095 = vmatpush.bf16.msra.mxu0 %v2002
        %2096 = vmatpush.bf16.msra.mxu0 %v2000
        %2097 = vmatpush.bf16.msra.mxu0 %v1998
        %2098 = vmatpush.bf16.msra.mxu0 %v1996
        %2099 = vmatmul.bf16.gmra.mxu0 %v1991
        %v2100 = vpop.f32.mrf.mxu0
        %v2101 = vadd.f32 0.0, %v2100
        %v2102 = vpop.f32.mrf.mxu0
        %v2103 = vadd.f32 0.0, %v2102
        %2104 = vdwg.mxu0
        %2105 = vmatpush.bf16.msra.mxu0 %v2026
        %2106 = vmatpush.bf16.msra.mxu0 %v2024
        %2107 = vmatpush.bf16.msra.mxu0 %v2022
        %2108 = vmatpush.bf16.msra.mxu0 %v2020
        %2109 = vmatpush.bf16.msra.mxu0 %v2018
        %2110 = vmatpush.bf16.msra.mxu0 %v2016
        %2111 = vmatpush.bf16.msra.mxu0 %v2014
        %2112 = vmatpush.bf16.msra.mxu0 %v2012
        %2113 = vmatmul.bf16.gmra.mxu0 %v1992
        %v2114 = vpop.f32.mrf.mxu0
        %v2115 = vadd.f32 %v2101, %v2114
        %v2116 = vpop.f32.mrf.mxu0
        %v2117 = vadd.f32 %v2103, %v2116
        %2118 = vdwg.mxu0
        %2119 = vmatpush.bf16.msra.mxu0 %v2042
        %2120 = vmatpush.bf16.msra.mxu0 %v2040
        %2121 = vmatpush.bf16.msra.mxu0 %v2038
        %2122 = vmatpush.bf16.msra.mxu0 %v2036
        %2123 = vmatpush.bf16.msra.mxu0 %v2034
        %2124 = vmatpush.bf16.msra.mxu0 %v2032
        %2125 = vmatpush.bf16.msra.mxu0 %v2030
        %2126 = vmatpush.bf16.msra.mxu0 %v2028
        %2127 = vmatmul.bf16.gmra.mxu0 %v1993
        %v2128 = vpop.f32.mrf.mxu0
        %v2129 = vadd.f32 %v2115, %v2128
        %v2130 = vpop.f32.mrf.mxu0
        %v2131 = vadd.f32 %v2117, %v2130
        %2132 = vdwg.mxu0
        %2133 = vmatpush.bf16.msra.mxu0 %v2058
        %2134 = vmatpush.bf16.msra.mxu0 %v2056
        %2135 = vmatpush.bf16.msra.mxu0 %v2054
        %2136 = vmatpush.bf16.msra.mxu0 %v2052
        %2137 = vmatpush.bf16.msra.mxu0 %v2050
        %2138 = vmatpush.bf16.msra.mxu0 %v2048
        %2139 = vmatpush.bf16.msra.mxu0 %v2046
        %2140 = vmatpush.bf16.msra.mxu0 %v2044
        %2141 = vmatmul.bf16.gmra.mxu0 %v1994
        %v2142 = vpop.f32.mrf.mxu0
        %v2143 = vadd.f32 %v2129, %v2142
        %v2144 = vpop.f32.mrf.mxu0
        %v2145 = vadd.f32 %v2131, %v2144
        %2146 = vdwg.mxu0
        %v2147 = vadd.f32 %v1989, %v2143
        %v2148 = vadd.f32 %v1990, %v2145
        %2149 = vst.msk [vmem:[%s1976] sm:$0xff] %vm1229, %v2147
        %2150 = vst.msk [vmem:[%s1976 + $0x8] sm:$0xff] %vm1229, %v2148
        %2151 = vst.msk [vmem:[%s1902] sm:$0xff] %vm1455, %v1915
        %2152 = vst.msk [vmem:[%s1902 + $0x8] sm:$0xff] %vm1455, %v1916
        %v2153 = vld [vmem:[#allocation2] sm:$0xf]
        %v2154 = vld [vmem:[#allocation2 + $0x4] sm:$0xf]
        %v2157 = vunpack.c.l.b16 %v2153
        %v2158 = vunpack.c.l.b16 %v2154
        %v2159 = vpack.c.b16 %v2158, %v2157
        %2160 = vrot.lane.b32.xlu0 %v2159, 64
        %v2161 = vpop.permute.xlu0 %2160
        %2162 = vrot.lane.b32.xlu0 %v1197, 64
        %v2163 = vpop.permute.xlu0 %2162
        %2164 = vrot.lane.b32.xlu0 %v1198, 64
        %v2165 = vpop.permute.xlu0 %2164
        %2166 = vrot.lane.b32.xlu0 %v1199, 64
        %v2167 = vpop.permute.xlu0 %2166
        %2168 = vrot.lane.b32.xlu0 %v1200, 64
        %v2169 = vpop.permute.xlu0 %2168
        %2170 = vrot.lane.b32.xlu0 %v1201, 64
        %v2171 = vpop.permute.xlu0 %2170
        %2172 = vrot.lane.b32.xlu0 %v1202, 64
        %v2173 = vpop.permute.xlu0 %2172
        %2174 = vrot.lane.b32.xlu0 %v1203, 64
        %v2175 = vpop.permute.xlu0 %2174
        %2176 = vrot.lane.b32.xlu0 %v1204, 64
        %v2177 = vpop.permute.xlu0 %2176
        %2178 = vrot.lane.b32.xlu0 %v1205, 64
        %v2179 = vpop.permute.xlu0 %2178
        %2180 = vrot.lane.b32.xlu0 %v1206, 64
        %v2181 = vpop.permute.xlu0 %2180
        %2182 = vrot.lane.b32.xlu0 %v1207, 64
        %v2183 = vpop.permute.xlu0 %2182
        %2184 = vrot.lane.b32.xlu0 %v1208, 64
        %v2185 = vpop.permute.xlu0 %2184
        %2186 = vrot.lane.b32.xlu0 %v1209, 64
        %v2187 = vpop.permute.xlu0 %2186
        %2188 = vrot.lane.b32.xlu0 %v1210, 64
        %v2189 = vpop.permute.xlu0 %2188
        %2190 = vrot.lane.b32.xlu0 %v1211, 64
        %v2191 = vpop.permute.xlu0 %2190
        %2192 = vrot.lane.b32.xlu0 %v1212, 64
        %v2193 = vpop.permute.xlu0 %2192
        %2194 = vrot.lane.b32.xlu0 %v1213, 64
        %v2195 = vpop.permute.xlu0 %2194
        %2196 = vrot.lane.b32.xlu0 %v1214, 64
        %v2197 = vpop.permute.xlu0 %2196
        %2198 = vrot.lane.b32.xlu0 %v1215, 64
        %v2199 = vpop.permute.xlu0 %2198
        %2200 = vrot.lane.b32.xlu0 %v1216, 64
        %v2201 = vpop.permute.xlu0 %2200
        %2202 = vrot.lane.b32.xlu0 %v1217, 64
        %v2203 = vpop.permute.xlu0 %2202
        %2204 = vrot.lane.b32.xlu0 %v1218, 64
        %v2205 = vpop.permute.xlu0 %2204
        %2206 = vrot.lane.b32.xlu0 %v1219, 64
        %v2207 = vpop.permute.xlu0 %2206
        %2208 = vrot.lane.b32.xlu0 %v1220, 64
        %v2209 = vpop.permute.xlu0 %2208
        %2210 = vrot.lane.b32.xlu0 %v1221, 64
        %v2211 = vpop.permute.xlu0 %2210
        %2212 = vrot.lane.b32.xlu0 %v1222, 64
        %v2213 = vpop.permute.xlu0 %2212
        %2214 = vrot.lane.b32.xlu0 %v1223, 64
        %v2215 = vpop.permute.xlu0 %2214
        %2216 = vrot.lane.b32.xlu0 %v1224, 64
        %v2217 = vpop.permute.xlu0 %2216
        %2218 = vrot.lane.b32.xlu0 %v1225, 64
        %v2219 = vpop.permute.xlu0 %2218
        %2220 = vrot.lane.b32.xlu0 %v1226, 64
        %v2221 = vpop.permute.xlu0 %2220
        %2222 = vrot.lane.b32.xlu0 %v1227, 64
        %v2223 = vpop.permute.xlu0 %2222
        %2224 = vrot.lane.b32.xlu0 %v1228, 64
        %v2225 = vpop.permute.xlu0 %2224
        %v2227 = vsel %vm1229, %v2161, 0
        %v2230 = vsel %vm1229, %v2163, 0
        %v2233 = vsel %vm1229, %v2165, 0
        %v2236 = vsel %vm1229, %v2167, 0
        %v2239 = vsel %vm1229, %v2169, 0
        %v2242 = vsel %vm1229, %v2171, 0
        %v2245 = vsel %vm1229, %v2173, 0
        %v2248 = vsel %vm1229, %v2175, 0
        %v2251 = vsel %vm1229, %v2177, 0
        %v2254 = vsel %vm1229, %v2179, 0
        %v2257 = vsel %vm1229, %v2181, 0
        %v2260 = vsel %vm1229, %v2183, 0
        %v2263 = vsel %vm1229, %v2185, 0
        %v2266 = vsel %vm1229, %v2187, 0
        %v2269 = vsel %vm1229, %v2189, 0
        %v2272 = vsel %vm1229, %v2191, 0
        %v2275 = vsel %vm1229, %v2193, 0
        %v2278 = vsel %vm1229, %v2195, 0
        %v2281 = vsel %vm1229, %v2197, 0
        %v2284 = vsel %vm1229, %v2199, 0
        %v2287 = vsel %vm1229, %v2201, 0
        %v2290 = vsel %vm1229, %v2203, 0
        %v2293 = vsel %vm1229, %v2205, 0
        %v2296 = vsel %vm1229, %v2207, 0
        %v2299 = vsel %vm1229, %v2209, 0
        %v2302 = vsel %vm1229, %v2211, 0
        %v2305 = vsel %vm1229, %v2213, 0
        %v2308 = vsel %vm1229, %v2215, 0
        %v2311 = vsel %vm1229, %v2217, 0
        %v2314 = vsel %vm1229, %v2219, 0
        %v2317 = vsel %vm1229, %v2221, 0
        %v2320 = vsel %vm1229, %v2223, 0
        %v2323 = vsel %vm1229, %v2225, 0
        %2325 = vmatpush.bf16.xpose.msra.mxu0 %v2251
        %2326 = vmatpush.bf16.xpose.msra.mxu0 %v2248
        %2327 = vmatpush.bf16.xpose.msra.mxu0 %v2245
        %2328 = vmatpush.bf16.xpose.msra.mxu0 %v2242
        %2329 = vmatpush.bf16.xpose.msra.mxu0 %v2239
        %2330 = vmatpush.bf16.xpose.msra.mxu0 %v2236
        %2331 = vmatpush.bf16.xpose.msra.mxu0 %v2233
        %2332 = vmatpush.bf16.xpose.msra.mxu0 %v2230
        %2333 = vmatmul.bf16.gmra.mxu0 %v2227
        %v2334 = vpop.f32.mrf.mxu0
        %v2335 = vadd.f32 0.0, %v2334
        %v2336 = vpop.f32.mrf.mxu0
        %v2337 = vadd.f32 0.0, %v2336
        %2338 = vdwg.mxu0
        %2339 = vmatpush.bf16.xpose.msra.mxu0 %v2275
        %2340 = vmatpush.bf16.xpose.msra.mxu0 %v2272
        %2341 = vmatpush.bf16.xpose.msra.mxu0 %v2269
        %2342 = vmatpush.bf16.xpose.msra.mxu0 %v2266
        %2343 = vmatpush.bf16.xpose.msra.mxu0 %v2263
        %2344 = vmatpush.bf16.xpose.msra.mxu0 %v2260
        %2345 = vmatpush.bf16.xpose.msra.mxu0 %v2257
        %2346 = vmatpush.bf16.xpose.msra.mxu0 %v2254
        %2347 = vmatmul.bf16.gmra.mxu0 %v2227
        %v2348 = vpop.f32.mrf.mxu0
        %v2349 = vadd.f32 0.0, %v2348
        %v2350 = vpop.f32.mrf.mxu0
        %v2351 = vadd.f32 0.0, %v2350
        %2352 = vdwg.mxu0
        %2353 = vmatpush.bf16.xpose.msra.mxu0 %v2299
        %2354 = vmatpush.bf16.xpose.msra.mxu0 %v2296
        %2355 = vmatpush.bf16.xpose.msra.mxu0 %v2293
        %2356 = vmatpush.bf16.xpose.msra.mxu0 %v2290
        %2357 = vmatpush.bf16.xpose.msra.mxu0 %v2287
        %2358 = vmatpush.bf16.xpose.msra.mxu0 %v2284
        %2359 = vmatpush.bf16.xpose.msra.mxu0 %v2281
        %2360 = vmatpush.bf16.xpose.msra.mxu0 %v2278
        %2361 = vmatmul.bf16.gmra.mxu0 %v2227
        %v2362 = vpop.f32.mrf.mxu0
        %v2363 = vadd.f32 0.0, %v2362
        %v2364 = vpop.f32.mrf.mxu0
        %v2365 = vadd.f32 0.0, %v2364
        %2366 = vdwg.mxu0
        %2367 = vmatpush.bf16.xpose.msra.mxu0 %v2323
        %2368 = vmatpush.bf16.xpose.msra.mxu0 %v2320
        %2369 = vmatpush.bf16.xpose.msra.mxu0 %v2317
        %2370 = vmatpush.bf16.xpose.msra.mxu0 %v2314
        %2371 = vmatpush.bf16.xpose.msra.mxu0 %v2311
        %2372 = vmatpush.bf16.xpose.msra.mxu0 %v2308
        %2373 = vmatpush.bf16.xpose.msra.mxu0 %v2305
        %2374 = vmatpush.bf16.xpose.msra.mxu0 %v2302
        %2375 = vmatmul.bf16.gmra.mxu0 %v2227
        %v2376 = vpop.f32.mrf.mxu0
        %v2377 = vadd.f32 0.0, %v2376
        %v2378 = vpop.f32.mrf.mxu0
        %v2379 = vadd.f32 0.0, %v2378
        %2380 = vdwg.mxu0
        %v2381 = vadd.f32 %v1894, %v2335
        %v2382 = vadd.f32 %v1895, %v2349
        %v2383 = vadd.f32 %v1896, %v2363
        %v2384 = vadd.f32 %v1897, %v2377
        %v2385 = vadd.f32 %v1898, %v2337
        %v2386 = vadd.f32 %v1899, %v2351
        %v2387 = vadd.f32 %v1900, %v2365
        %v2388 = vadd.f32 %v1901, %v2379
        %s2389 = scalar_lea.vmem [#allocation3], 32
        %v2390 = vld [vmem:[%s2389] sm:$0xff]
        %v2391 = vld [vmem:[%s2389 + $0x8] sm:$0xff]
        %v2392 = vmax.f32 %v2335, %v2363
        %v2393 = vmax.f32 %v2349, %v2377
        %v2394 = vmax.f32 %v2392, %v2393
        %2395 = vmax.xlane.f32.xlu0 %v2394
        %v2396 = vpop.xlane.xlu0 %2395
        %v2397 = vmax.f32 %v2337, %v2365
        %v2398 = vmax.f32 %v2351, %v2379
        %v2399 = vmax.f32 %v2397, %v2398
        %2400 = vmax.xlane.f32.xlu0 %v2399
        %v2401 = vpop.xlane.xlu0 %2400
        %v2402 = vmax.f32 %v2390, %v2396
        %v2403 = vmax.f32 %v2391, %v2401
        %v2404 = vsub.f32 %v2390, %v2402
        %v2405 = vsub.f32 %v2391, %v2403
        %v2406 = vmul.f32 %v2404, 1.442695
        %v2407 = vpow.pop %v2406
        %v2408 = vmul.f32 %v2405, 1.442695
        %v2409 = vpow.pop %v2408
        %2411 = vset.pattern.permute.xlu0 0
        %2412 = vperm.xlu0 %2411, %v2402
        %v2413 = vpop.permute.xlu0 %2412
        %2416 = vset.pattern.permute.xlu0 0
        %2417 = vperm.xlu0 %2416, %v2403
        %v2418 = vpop.permute.xlu0 %2417
        %v2420 = vsub.f32 %v2335, %v2413
        %v2421 = vsub.f32 %v2349, %v2413
        %v2422 = vsub.f32 %v2363, %v2413
        %v2423 = vsub.f32 %v2377, %v2413
        %v2424 = vsub.f32 %v2337, %v2418
        %v2425 = vsub.f32 %v2351, %v2418
        %v2426 = vsub.f32 %v2365, %v2418
        %v2427 = vsub.f32 %v2379, %v2418
        %v2428 = vmul.f32 %v2420, 1.442695
        %v2429 = vpow.pop %v2428
        %v2430 = vmul.f32 %v2421, 1.442695
        %v2431 = vpow.pop %v2430
        %v2432 = vmul.f32 %v2422, 1.442695
        %v2433 = vpow.pop %v2432
        %v2434 = vmul.f32 %v2423, 1.442695
        %v2435 = vpow.pop %v2434
        %v2436 = vmul.f32 %v2424, 1.442695
        %v2437 = vpow.pop %v2436
        %v2438 = vmul.f32 %v2425, 1.442695
        %v2439 = vpow.pop %v2438
        %v2440 = vmul.f32 %v2426, 1.442695
        %v2441 = vpow.pop %v2440
        %v2442 = vmul.f32 %v2427, 1.442695
        %v2443 = vpow.pop %v2442
        %s2444 = scalar_lea.vmem [#allocation4], 32
        %v2445 = vld [vmem:[%s2444] sm:$0xff]
        %v2446 = vld [vmem:[%s2444 + $0x8] sm:$0xff]
        %v2447 = vmul.f32 %v2407, %v2445
        %v2448 = vmul.f32 %v2409, %v2446
        %v2449 = vadd.f32 %v2429, %v2431
        %v2450 = vadd.f32 %v2449, %v2433
        %v2451 = vadd.f32 %v2450, %v2435
        %2452 = vadd.xlane.f32.xlu0 %v2451
        %v2453 = vpop.xlane.xlu0 %2452
        %v2454 = vadd.f32 %v2437, %v2439
        %v2455 = vadd.f32 %v2454, %v2441
        %v2456 = vadd.f32 %v2455, %v2443
        %2457 = vadd.xlane.f32.xlu0 %v2456
        %v2458 = vpop.xlane.xlu0 %2457
        %v2459 = vadd.f32 %v2447, %v2453
        %v2460 = vadd.f32 %v2448, %v2458
        %2461 = vst.msk [vmem:[%s2444] sm:$0xff] %vm1455, %v2459
        %2462 = vst.msk [vmem:[%s2444 + $0x8] sm:$0xff] %vm1455, %v2460
        %s2463 = scalar_lea.vmem [#allocation5], 32
        %v2464 = vld [vmem:[%s2463] sm:$0xff]
        %v2465 = vld [vmem:[%s2463 + $0x8] sm:$0xff]
        %2467 = vset.pattern.permute.xlu0 0
        %2468 = vperm.xlu0 %2467, %v2407
        %v2469 = vpop.permute.xlu0 %2468
        %2472 = vset.pattern.permute.xlu0 0
        %2473 = vperm.xlu0 %2472, %v2409
        %v2474 = vpop.permute.xlu0 %2473
        %v2476 = vmul.f32 %v2469, %v2464
        %v2477 = vmul.f32 %v2474, %v2465
        %v2478 = vpack.c.bf16 %v2437, %v2429
        %v2479 = vpack.c.bf16 %v2439, %v2431
        %v2480 = vpack.c.bf16 %v2441, %v2433
        %v2481 = vpack.c.bf16 %v2443, %v2435
        %2482 = vrot.lane.b32.xlu0 %v1540, 64
        %v2483 = vpop.permute.xlu0 %2482
        %2484 = vrot.lane.b32.xlu0 %v1541, 64
        %v2485 = vpop.permute.xlu0 %2484
        %2486 = vrot.lane.b32.xlu0 %v1542, 64
        %v2487 = vpop.permute.xlu0 %2486
        %2488 = vrot.lane.b32.xlu0 %v1543, 64
        %v2489 = vpop.permute.xlu0 %2488
        %2490 = vrot.lane.b32.xlu0 %v1544, 64
        %v2491 = vpop.permute.xlu0 %2490
        %2492 = vrot.lane.b32.xlu0 %v1545, 64
        %v2493 = vpop.permute.xlu0 %2492
        %2494 = vrot.lane.b32.xlu0 %v1546, 64
        %v2495 = vpop.permute.xlu0 %2494
        %2496 = vrot.lane.b32.xlu0 %v1547, 64
        %v2497 = vpop.permute.xlu0 %2496
        %2498 = vrot.lane.b32.xlu0 %v1548, 64
        %v2499 = vpop.permute.xlu0 %2498
        %2500 = vrot.lane.b32.xlu0 %v1549, 64
        %v2501 = vpop.permute.xlu0 %2500
        %2502 = vrot.lane.b32.xlu0 %v1550, 64
        %v2503 = vpop.permute.xlu0 %2502
        %2504 = vrot.lane.b32.xlu0 %v1551, 64
        %v2505 = vpop.permute.xlu0 %2504
        %2506 = vrot.lane.b32.xlu0 %v1552, 64
        %v2507 = vpop.permute.xlu0 %2506
        %2508 = vrot.lane.b32.xlu0 %v1553, 64
        %v2509 = vpop.permute.xlu0 %2508
        %2510 = vrot.lane.b32.xlu0 %v1554, 64
        %v2511 = vpop.permute.xlu0 %2510
        %2512 = vrot.lane.b32.xlu0 %v1555, 64
        %v2513 = vpop.permute.xlu0 %2512
        %2514 = vrot.lane.b32.xlu0 %v1556, 64
        %v2515 = vpop.permute.xlu0 %2514
        %2516 = vrot.lane.b32.xlu0 %v1557, 64
        %v2517 = vpop.permute.xlu0 %2516
        %2518 = vrot.lane.b32.xlu0 %v1558, 64
        %v2519 = vpop.permute.xlu0 %2518
        %2520 = vrot.lane.b32.xlu0 %v1559, 64
        %v2521 = vpop.permute.xlu0 %2520
        %2522 = vrot.lane.b32.xlu0 %v1560, 64
        %v2523 = vpop.permute.xlu0 %2522
        %2524 = vrot.lane.b32.xlu0 %v1561, 64
        %v2525 = vpop.permute.xlu0 %2524
        %2526 = vrot.lane.b32.xlu0 %v1562, 64
        %v2527 = vpop.permute.xlu0 %2526
        %2528 = vrot.lane.b32.xlu0 %v1563, 64
        %v2529 = vpop.permute.xlu0 %2528
        %2530 = vrot.lane.b32.xlu0 %v1564, 64
        %v2531 = vpop.permute.xlu0 %2530
        %2532 = vrot.lane.b32.xlu0 %v1565, 64
        %v2533 = vpop.permute.xlu0 %2532
        %2534 = vrot.lane.b32.xlu0 %v1566, 64
        %v2535 = vpop.permute.xlu0 %2534
        %2536 = vrot.lane.b32.xlu0 %v1567, 64
        %v2537 = vpop.permute.xlu0 %2536
        %2538 = vrot.lane.b32.xlu0 %v1568, 64
        %v2539 = vpop.permute.xlu0 %2538
        %2540 = vrot.lane.b32.xlu0 %v1569, 64
        %v2541 = vpop.permute.xlu0 %2540
        %2542 = vrot.lane.b32.xlu0 %v1570, 64
        %v2543 = vpop.permute.xlu0 %2542
        %2544 = vrot.lane.b32.xlu0 %v1571, 64
        %v2545 = vpop.permute.xlu0 %2544
        %2578 = vmatpush.bf16.msra.mxu0 %v2497
        %2579 = vmatpush.bf16.msra.mxu0 %v2495
        %2580 = vmatpush.bf16.msra.mxu0 %v2493
        %2581 = vmatpush.bf16.msra.mxu0 %v2491
        %2582 = vmatpush.bf16.msra.mxu0 %v2489
        %2583 = vmatpush.bf16.msra.mxu0 %v2487
        %2584 = vmatpush.bf16.msra.mxu0 %v2485
        %2585 = vmatpush.bf16.msra.mxu0 %v2483
        %2586 = vmatmul.bf16.gmra.mxu0 %v2478
        %v2587 = vpop.f32.mrf.mxu0
        %v2588 = vadd.f32 0.0, %v2587
        %v2589 = vpop.f32.mrf.mxu0
        %v2590 = vadd.f32 0.0, %v2589
        %2591 = vdwg.mxu0
        %2592 = vmatpush.bf16.msra.mxu0 %v2513
        %2593 = vmatpush.bf16.msra.mxu0 %v2511
        %2594 = vmatpush.bf16.msra.mxu0 %v2509
        %2595 = vmatpush.bf16.msra.mxu0 %v2507
        %2596 = vmatpush.bf16.msra.mxu0 %v2505
        %2597 = vmatpush.bf16.msra.mxu0 %v2503
        %2598 = vmatpush.bf16.msra.mxu0 %v2501
        %2599 = vmatpush.bf16.msra.mxu0 %v2499
        %2600 = vmatmul.bf16.gmra.mxu0 %v2479
        %v2601 = vpop.f32.mrf.mxu0
        %v2602 = vadd.f32 %v2588, %v2601
        %v2603 = vpop.f32.mrf.mxu0
        %v2604 = vadd.f32 %v2590, %v2603
        %2605 = vdwg.mxu0
        %2606 = vmatpush.bf16.msra.mxu0 %v2529
        %2607 = vmatpush.bf16.msra.mxu0 %v2527
        %2608 = vmatpush.bf16.msra.mxu0 %v2525
        %2609 = vmatpush.bf16.msra.mxu0 %v2523
        %2610 = vmatpush.bf16.msra.mxu0 %v2521
        %2611 = vmatpush.bf16.msra.mxu0 %v2519
        %2612 = vmatpush.bf16.msra.mxu0 %v2517
        %2613 = vmatpush.bf16.msra.mxu0 %v2515
        %2614 = vmatmul.bf16.gmra.mxu0 %v2480
        %v2615 = vpop.f32.mrf.mxu0
        %v2616 = vadd.f32 %v2602, %v2615
        %v2617 = vpop.f32.mrf.mxu0
        %v2618 = vadd.f32 %v2604, %v2617
        %2619 = vdwg.mxu0
        %2620 = vmatpush.bf16.msra.mxu0 %v2545
        %2621 = vmatpush.bf16.msra.mxu0 %v2543
        %2622 = vmatpush.bf16.msra.mxu0 %v2541
        %2623 = vmatpush.bf16.msra.mxu0 %v2539
        %2624 = vmatpush.bf16.msra.mxu0 %v2537
        %2625 = vmatpush.bf16.msra.mxu0 %v2535
        %2626 = vmatpush.bf16.msra.mxu0 %v2533
        %2627 = vmatpush.bf16.msra.mxu0 %v2531
        %2628 = vmatmul.bf16.gmra.mxu0 %v2481
        %v2629 = vpop.f32.mrf.mxu0
        %v2630 = vadd.f32 %v2616, %v2629
        %v2631 = vpop.f32.mrf.mxu0
        %v2632 = vadd.f32 %v2618, %v2631
        %2633 = vdwg.mxu0
        %v2634 = vadd.f32 %v2476, %v2630
        %v2635 = vadd.f32 %v2477, %v2632
        %2636 = vst.msk [vmem:[%s2463] sm:$0xff] %vm1229, %v2634
        %2637 = vst.msk [vmem:[%s2463 + $0x8] sm:$0xff] %vm1229, %v2635
        %2638 = vst.msk [vmem:[%s2389] sm:$0xff] %vm1455, %v2402
        %2639 = vst.msk [vmem:[%s2389 + $0x8] sm:$0xff] %vm1455, %v2403
        %v2640 = vld [vmem:[#allocation2] sm:$0xf]
        %v2641 = vld [vmem:[#allocation2 + $0x4] sm:$0xf]
        %v2644 = vunpack.c.l.b16 %v2640
        %v2645 = vunpack.c.l.b16 %v2641
        %v2646 = vpack.c.b16 %v2645, %v2644
        %2647 = vrot.lane.b32.xlu0 %v2646, 32
        %v2648 = vpop.permute.xlu0 %2647
        %2649 = vrot.lane.b32.xlu0 %v1197, 32
        %v2650 = vpop.permute.xlu0 %2649
        %2651 = vrot.lane.b32.xlu0 %v1198, 32
        %v2652 = vpop.permute.xlu0 %2651
        %2653 = vrot.lane.b32.xlu0 %v1199, 32
        %v2654 = vpop.permute.xlu0 %2653
        %2655 = vrot.lane.b32.xlu0 %v1200, 32
        %v2656 = vpop.permute.xlu0 %2655
        %2657 = vrot.lane.b32.xlu0 %v1201, 32
        %v2658 = vpop.permute.xlu0 %2657
        %2659 = vrot.lane.b32.xlu0 %v1202, 32
        %v2660 = vpop.permute.xlu0 %2659
        %2661 = vrot.lane.b32.xlu0 %v1203, 32
        %v2662 = vpop.permute.xlu0 %2661
        %2663 = vrot.lane.b32.xlu0 %v1204, 32
        %v2664 = vpop.permute.xlu0 %2663
        %2665 = vrot.lane.b32.xlu0 %v1205, 32
        %v2666 = vpop.permute.xlu0 %2665
        %2667 = vrot.lane.b32.xlu0 %v1206, 32
        %v2668 = vpop.permute.xlu0 %2667
        %2669 = vrot.lane.b32.xlu0 %v1207, 32
        %v2670 = vpop.permute.xlu0 %2669
        %2671 = vrot.lane.b32.xlu0 %v1208, 32
        %v2672 = vpop.permute.xlu0 %2671
        %2673 = vrot.lane.b32.xlu0 %v1209, 32
        %v2674 = vpop.permute.xlu0 %2673
        %2675 = vrot.lane.b32.xlu0 %v1210, 32
        %v2676 = vpop.permute.xlu0 %2675
        %2677 = vrot.lane.b32.xlu0 %v1211, 32
        %v2678 = vpop.permute.xlu0 %2677
        %2679 = vrot.lane.b32.xlu0 %v1212, 32
        %v2680 = vpop.permute.xlu0 %2679
        %2681 = vrot.lane.b32.xlu0 %v1213, 32
        %v2682 = vpop.permute.xlu0 %2681
        %2683 = vrot.lane.b32.xlu0 %v1214, 32
        %v2684 = vpop.permute.xlu0 %2683
        %2685 = vrot.lane.b32.xlu0 %v1215, 32
        %v2686 = vpop.permute.xlu0 %2685
        %2687 = vrot.lane.b32.xlu0 %v1216, 32
        %v2688 = vpop.permute.xlu0 %2687
        %2689 = vrot.lane.b32.xlu0 %v1217, 32
        %v2690 = vpop.permute.xlu0 %2689
        %2691 = vrot.lane.b32.xlu0 %v1218, 32
        %v2692 = vpop.permute.xlu0 %2691
        %2693 = vrot.lane.b32.xlu0 %v1219, 32
        %v2694 = vpop.permute.xlu0 %2693
        %2695 = vrot.lane.b32.xlu0 %v1220, 32
        %v2696 = vpop.permute.xlu0 %2695
        %2697 = vrot.lane.b32.xlu0 %v1221, 32
        %v2698 = vpop.permute.xlu0 %2697
        %2699 = vrot.lane.b32.xlu0 %v1222, 32
        %v2700 = vpop.permute.xlu0 %2699
        %2701 = vrot.lane.b32.xlu0 %v1223, 32
        %v2702 = vpop.permute.xlu0 %2701
        %2703 = vrot.lane.b32.xlu0 %v1224, 32
        %v2704 = vpop.permute.xlu0 %2703
        %2705 = vrot.lane.b32.xlu0 %v1225, 32
        %v2706 = vpop.permute.xlu0 %2705
        %2707 = vrot.lane.b32.xlu0 %v1226, 32
        %v2708 = vpop.permute.xlu0 %2707
        %2709 = vrot.lane.b32.xlu0 %v1227, 32
        %v2710 = vpop.permute.xlu0 %2709
        %2711 = vrot.lane.b32.xlu0 %v1228, 32
        %v2712 = vpop.permute.xlu0 %2711
        %v2714 = vsel %vm1229, %v2648, 0
        %v2717 = vsel %vm1229, %v2650, 0
        %v2720 = vsel %vm1229, %v2652, 0
        %v2723 = vsel %vm1229, %v2654, 0
        %v2726 = vsel %vm1229, %v2656, 0
        %v2729 = vsel %vm1229, %v2658, 0
        %v2732 = vsel %vm1229, %v2660, 0
        %v2735 = vsel %vm1229, %v2662, 0
        %v2738 = vsel %vm1229, %v2664, 0
        %v2741 = vsel %vm1229, %v2666, 0
        %v2744 = vsel %vm1229, %v2668, 0
        %v2747 = vsel %vm1229, %v2670, 0
        %v2750 = vsel %vm1229, %v2672, 0
        %v2753 = vsel %vm1229, %v2674, 0
        %v2756 = vsel %vm1229, %v2676, 0
        %v2759 = vsel %vm1229, %v2678, 0
        %v2762 = vsel %vm1229, %v2680, 0
        %v2765 = vsel %vm1229, %v2682, 0
        %v2768 = vsel %vm1229, %v2684, 0
        %v2771 = vsel %vm1229, %v2686, 0
        %v2774 = vsel %vm1229, %v2688, 0
        %v2777 = vsel %vm1229, %v2690, 0
        %v2780 = vsel %vm1229, %v2692, 0
        %v2783 = vsel %vm1229, %v2694, 0
        %v2786 = vsel %vm1229, %v2696, 0
        %v2789 = vsel %vm1229, %v2698, 0
        %v2792 = vsel %vm1229, %v2700, 0
        %v2795 = vsel %vm1229, %v2702, 0
        %v2798 = vsel %vm1229, %v2704, 0
        %v2801 = vsel %vm1229, %v2706, 0
        %v2804 = vsel %vm1229, %v2708, 0
        %v2807 = vsel %vm1229, %v2710, 0
        %v2810 = vsel %vm1229, %v2712, 0
        %2812 = vmatpush.bf16.xpose.msra.mxu0 %v2738
        %2813 = vmatpush.bf16.xpose.msra.mxu0 %v2735
        %2814 = vmatpush.bf16.xpose.msra.mxu0 %v2732
        %2815 = vmatpush.bf16.xpose.msra.mxu0 %v2729
        %2816 = vmatpush.bf16.xpose.msra.mxu0 %v2726
        %2817 = vmatpush.bf16.xpose.msra.mxu0 %v2723
        %2818 = vmatpush.bf16.xpose.msra.mxu0 %v2720
        %2819 = vmatpush.bf16.xpose.msra.mxu0 %v2717
        %2820 = vmatmul.bf16.gmra.mxu0 %v2714
        %v2821 = vpop.f32.mrf.mxu0
        %v2822 = vadd.f32 0.0, %v2821
        %v2823 = vpop.f32.mrf.mxu0
        %v2824 = vadd.f32 0.0, %v2823
        %2825 = vdwg.mxu0
        %2826 = vmatpush.bf16.xpose.msra.mxu0 %v2762
        %2827 = vmatpush.bf16.xpose.msra.mxu0 %v2759
        %2828 = vmatpush.bf16.xpose.msra.mxu0 %v2756
        %2829 = vmatpush.bf16.xpose.msra.mxu0 %v2753
        %2830 = vmatpush.bf16.xpose.msra.mxu0 %v2750
        %2831 = vmatpush.bf16.xpose.msra.mxu0 %v2747
        %2832 = vmatpush.bf16.xpose.msra.mxu0 %v2744
        %2833 = vmatpush.bf16.xpose.msra.mxu0 %v2741
        %2834 = vmatmul.bf16.gmra.mxu0 %v2714
        %v2835 = vpop.f32.mrf.mxu0
        %v2836 = vadd.f32 0.0, %v2835
        %v2837 = vpop.f32.mrf.mxu0
        %v2838 = vadd.f32 0.0, %v2837
        %2839 = vdwg.mxu0
        %2840 = vmatpush.bf16.xpose.msra.mxu0 %v2786
        %2841 = vmatpush.bf16.xpose.msra.mxu0 %v2783
        %2842 = vmatpush.bf16.xpose.msra.mxu0 %v2780
        %2843 = vmatpush.bf16.xpose.msra.mxu0 %v2777
        %2844 = vmatpush.bf16.xpose.msra.mxu0 %v2774
        %2845 = vmatpush.bf16.xpose.msra.mxu0 %v2771
        %2846 = vmatpush.bf16.xpose.msra.mxu0 %v2768
        %2847 = vmatpush.bf16.xpose.msra.mxu0 %v2765
        %2848 = vmatmul.bf16.gmra.mxu0 %v2714
        %v2849 = vpop.f32.mrf.mxu0
        %v2850 = vadd.f32 0.0, %v2849
        %v2851 = vpop.f32.mrf.mxu0
        %v2852 = vadd.f32 0.0, %v2851
        %2853 = vdwg.mxu0
        %2854 = vmatpush.bf16.xpose.msra.mxu0 %v2810
        %2855 = vmatpush.bf16.xpose.msra.mxu0 %v2807
        %2856 = vmatpush.bf16.xpose.msra.mxu0 %v2804
        %2857 = vmatpush.bf16.xpose.msra.mxu0 %v2801
        %2858 = vmatpush.bf16.xpose.msra.mxu0 %v2798
        %2859 = vmatpush.bf16.xpose.msra.mxu0 %v2795
        %2860 = vmatpush.bf16.xpose.msra.mxu0 %v2792
        %2861 = vmatpush.bf16.xpose.msra.mxu0 %v2789
        %2862 = vmatmul.bf16.gmra.mxu0 %v2714
        %v2863 = vpop.f32.mrf.mxu0
        %v2864 = vadd.f32 0.0, %v2863
        %v2865 = vpop.f32.mrf.mxu0
        %v2866 = vadd.f32 0.0, %v2865
        %2867 = vdwg.mxu0
        %v2868 = vadd.f32 %v2381, %v2822
        %v2869 = vadd.f32 %v2382, %v2836
        %v2870 = vadd.f32 %v2383, %v2850
        %v2871 = vadd.f32 %v2384, %v2864
        %v2872 = vadd.f32 %v2385, %v2824
        %v2873 = vadd.f32 %v2386, %v2838
        %v2874 = vadd.f32 %v2387, %v2852
        %v2875 = vadd.f32 %v2388, %v2866
        %s2876 = scalar_lea.vmem [#allocation3], 48
        %v2877 = vld [vmem:[%s2876] sm:$0xff]
        %v2878 = vld [vmem:[%s2876 + $0x8] sm:$0xff]
        %v2879 = vmax.f32 %v2822, %v2850
        %v2880 = vmax.f32 %v2836, %v2864
        %v2881 = vmax.f32 %v2879, %v2880
        %2882 = vmax.xlane.f32.xlu0 %v2881
        %v2883 = vpop.xlane.xlu0 %2882
        %v2884 = vmax.f32 %v2824, %v2852
        %v2885 = vmax.f32 %v2838, %v2866
        %v2886 = vmax.f32 %v2884, %v2885
        %2887 = vmax.xlane.f32.xlu0 %v2886
        %v2888 = vpop.xlane.xlu0 %2887
        %v2889 = vmax.f32 %v2877, %v2883
        %v2890 = vmax.f32 %v2878, %v2888
        %v2891 = vsub.f32 %v2877, %v2889
        %v2892 = vsub.f32 %v2878, %v2890
        %v2893 = vmul.f32 %v2891, 1.442695
        %v2894 = vpow.pop %v2893
        %v2895 = vmul.f32 %v2892, 1.442695
        %v2896 = vpow.pop %v2895
        %2898 = vset.pattern.permute.xlu0 0
        %2899 = vperm.xlu0 %2898, %v2889
        %v2900 = vpop.permute.xlu0 %2899
        %2903 = vset.pattern.permute.xlu0 0
        %2904 = vperm.xlu0 %2903, %v2890
        %v2905 = vpop.permute.xlu0 %2904
        %v2907 = vsub.f32 %v2822, %v2900
        %v2908 = vsub.f32 %v2836, %v2900
        %v2909 = vsub.f32 %v2850, %v2900
        %v2910 = vsub.f32 %v2864, %v2900
        %v2911 = vsub.f32 %v2824, %v2905
        %v2912 = vsub.f32 %v2838, %v2905
        %v2913 = vsub.f32 %v2852, %v2905
        %v2914 = vsub.f32 %v2866, %v2905
        %v2915 = vmul.f32 %v2907, 1.442695
        %v2916 = vpow.pop %v2915
        %v2917 = vmul.f32 %v2908, 1.442695
        %v2918 = vpow.pop %v2917
        %v2919 = vmul.f32 %v2909, 1.442695
        %v2920 = vpow.pop %v2919
        %v2921 = vmul.f32 %v2910, 1.442695
        %v2922 = vpow.pop %v2921
        %v2923 = vmul.f32 %v2911, 1.442695
        %v2924 = vpow.pop %v2923
        %v2925 = vmul.f32 %v2912, 1.442695
        %v2926 = vpow.pop %v2925
        %v2927 = vmul.f32 %v2913, 1.442695
        %v2928 = vpow.pop %v2927
        %v2929 = vmul.f32 %v2914, 1.442695
        %v2930 = vpow.pop %v2929
        %s2931 = scalar_lea.vmem [#allocation4], 48
        %v2932 = vld [vmem:[%s2931] sm:$0xff]
        %v2933 = vld [vmem:[%s2931 + $0x8] sm:$0xff]
        %v2934 = vmul.f32 %v2894, %v2932
        %v2935 = vmul.f32 %v2896, %v2933
        %v2936 = vadd.f32 %v2916, %v2918
        %v2937 = vadd.f32 %v2936, %v2920
        %v2938 = vadd.f32 %v2937, %v2922
        %2939 = vadd.xlane.f32.xlu0 %v2938
        %v2940 = vpop.xlane.xlu0 %2939
        %v2941 = vadd.f32 %v2924, %v2926
        %v2942 = vadd.f32 %v2941, %v2928
        %v2943 = vadd.f32 %v2942, %v2930
        %2944 = vadd.xlane.f32.xlu0 %v2943
        %v2945 = vpop.xlane.xlu0 %2944
        %v2946 = vadd.f32 %v2934, %v2940
        %v2947 = vadd.f32 %v2935, %v2945
        %2948 = vst.msk [vmem:[%s2931] sm:$0xff] %vm1455, %v2946
        %2949 = vst.msk [vmem:[%s2931 + $0x8] sm:$0xff] %vm1455, %v2947
        %s2950 = scalar_lea.vmem [#allocation5], 48
        %v2951 = vld [vmem:[%s2950] sm:$0xff]
        %v2952 = vld [vmem:[%s2950 + $0x8] sm:$0xff]
        %2954 = vset.pattern.permute.xlu0 0
        %2955 = vperm.xlu0 %2954, %v2894
        %v2956 = vpop.permute.xlu0 %2955
        %2959 = vset.pattern.permute.xlu0 0
        %2960 = vperm.xlu0 %2959, %v2896
        %v2961 = vpop.permute.xlu0 %2960
        %v2963 = vmul.f32 %v2956, %v2951
        %v2964 = vmul.f32 %v2961, %v2952
        %v2965 = vpack.c.bf16 %v2924, %v2916
        %v2966 = vpack.c.bf16 %v2926, %v2918
        %v2967 = vpack.c.bf16 %v2928, %v2920
        %v2968 = vpack.c.bf16 %v2930, %v2922
        %2969 = vrot.lane.b32.xlu0 %v1540, 32
        %v2970 = vpop.permute.xlu0 %2969
        %2971 = vrot.lane.b32.xlu0 %v1541, 32
        %v2972 = vpop.permute.xlu0 %2971
        %2973 = vrot.lane.b32.xlu0 %v1542, 32
        %v2974 = vpop.permute.xlu0 %2973
        %2975 = vrot.lane.b32.xlu0 %v1543, 32
        %v2976 = vpop.permute.xlu0 %2975
        %2977 = vrot.lane.b32.xlu0 %v1544, 32
        %v2978 = vpop.permute.xlu0 %2977
        %2979 = vrot.lane.b32.xlu0 %v1545, 32
        %v2980 = vpop.permute.xlu0 %2979
        %2981 = vrot.lane.b32.xlu0 %v1546, 32
        %v2982 = vpop.permute.xlu0 %2981
        %2983 = vrot.lane.b32.xlu0 %v1547, 32
        %v2984 = vpop.permute.xlu0 %2983
        %2985 = vrot.lane.b32.xlu0 %v1548, 32
        %v2986 = vpop.permute.xlu0 %2985
        %2987 = vrot.lane.b32.xlu0 %v1549, 32
        %v2988 = vpop.permute.xlu0 %2987
        %2989 = vrot.lane.b32.xlu0 %v1550, 32
        %v2990 = vpop.permute.xlu0 %2989
        %2991 = vrot.lane.b32.xlu0 %v1551, 32
        %v2992 = vpop.permute.xlu0 %2991
        %2993 = vrot.lane.b32.xlu0 %v1552, 32
        %v2994 = vpop.permute.xlu0 %2993
        %2995 = vrot.lane.b32.xlu0 %v1553, 32
        %v2996 = vpop.permute.xlu0 %2995
        %2997 = vrot.lane.b32.xlu0 %v1554, 32
        %v2998 = vpop.permute.xlu0 %2997
        %2999 = vrot.lane.b32.xlu0 %v1555, 32
        %v3000 = vpop.permute.xlu0 %2999
        %3001 = vrot.lane.b32.xlu0 %v1556, 32
        %v3002 = vpop.permute.xlu0 %3001
        %3003 = vrot.lane.b32.xlu0 %v1557, 32
        %v3004 = vpop.permute.xlu0 %3003
        %3005 = vrot.lane.b32.xlu0 %v1558, 32
        %v3006 = vpop.permute.xlu0 %3005
        %3007 = vrot.lane.b32.xlu0 %v1559, 32
        %v3008 = vpop.permute.xlu0 %3007
        %3009 = vrot.lane.b32.xlu0 %v1560, 32
        %v3010 = vpop.permute.xlu0 %3009
        %3011 = vrot.lane.b32.xlu0 %v1561, 32
        %v3012 = vpop.permute.xlu0 %3011
        %3013 = vrot.lane.b32.xlu0 %v1562, 32
        %v3014 = vpop.permute.xlu0 %3013
        %3015 = vrot.lane.b32.xlu0 %v1563, 32
        %v3016 = vpop.permute.xlu0 %3015
        %3017 = vrot.lane.b32.xlu0 %v1564, 32
        %v3018 = vpop.permute.xlu0 %3017
        %3019 = vrot.lane.b32.xlu0 %v1565, 32
        %v3020 = vpop.permute.xlu0 %3019
        %3021 = vrot.lane.b32.xlu0 %v1566, 32
        %v3022 = vpop.permute.xlu0 %3021
        %3023 = vrot.lane.b32.xlu0 %v1567, 32
        %v3024 = vpop.permute.xlu0 %3023
        %3025 = vrot.lane.b32.xlu0 %v1568, 32
        %v3026 = vpop.permute.xlu0 %3025
        %3027 = vrot.lane.b32.xlu0 %v1569, 32
        %v3028 = vpop.permute.xlu0 %3027
        %3029 = vrot.lane.b32.xlu0 %v1570, 32
        %v3030 = vpop.permute.xlu0 %3029
        %3031 = vrot.lane.b32.xlu0 %v1571, 32
        %v3032 = vpop.permute.xlu0 %3031
        %3065 = vmatpush.bf16.msra.mxu0 %v2984
        %3066 = vmatpush.bf16.msra.mxu0 %v2982
        %3067 = vmatpush.bf16.msra.mxu0 %v2980
        %3068 = vmatpush.bf16.msra.mxu0 %v2978
        %3069 = vmatpush.bf16.msra.mxu0 %v2976
        %3070 = vmatpush.bf16.msra.mxu0 %v2974
        %3071 = vmatpush.bf16.msra.mxu0 %v2972
        %3072 = vmatpush.bf16.msra.mxu0 %v2970
        %3073 = vmatmul.bf16.gmra.mxu0 %v2965
        %v3074 = vpop.f32.mrf.mxu0
        %v3075 = vadd.f32 0.0, %v3074
        %v3076 = vpop.f32.mrf.mxu0
        %v3077 = vadd.f32 0.0, %v3076
        %3078 = vdwg.mxu0
        %3079 = vmatpush.bf16.msra.mxu0 %v3000
        %3080 = vmatpush.bf16.msra.mxu0 %v2998
        %3081 = vmatpush.bf16.msra.mxu0 %v2996
        %3082 = vmatpush.bf16.msra.mxu0 %v2994
        %3083 = vmatpush.bf16.msra.mxu0 %v2992
        %3084 = vmatpush.bf16.msra.mxu0 %v2990
        %3085 = vmatpush.bf16.msra.mxu0 %v2988
        %3086 = vmatpush.bf16.msra.mxu0 %v2986
        %3087 = vmatmul.bf16.gmra.mxu0 %v2966
        %v3088 = vpop.f32.mrf.mxu0
        %v3089 = vadd.f32 %v3075, %v3088
        %v3090 = vpop.f32.mrf.mxu0
        %v3091 = vadd.f32 %v3077, %v3090
        %3092 = vdwg.mxu0
        %3093 = vmatpush.bf16.msra.mxu0 %v3016
        %3094 = vmatpush.bf16.msra.mxu0 %v3014
        %3095 = vmatpush.bf16.msra.mxu0 %v3012
        %3096 = vmatpush.bf16.msra.mxu0 %v3010
        %3097 = vmatpush.bf16.msra.mxu0 %v3008
        %3098 = vmatpush.bf16.msra.mxu0 %v3006
        %3099 = vmatpush.bf16.msra.mxu0 %v3004
        %3100 = vmatpush.bf16.msra.mxu0 %v3002
        %3101 = vmatmul.bf16.gmra.mxu0 %v2967
        %v3102 = vpop.f32.mrf.mxu0
        %v3103 = vadd.f32 %v3089, %v3102
        %v3104 = vpop.f32.mrf.mxu0
        %v3105 = vadd.f32 %v3091, %v3104
        %3106 = vdwg.mxu0
        %3107 = vmatpush.bf16.msra.mxu0 %v3032
        %3108 = vmatpush.bf16.msra.mxu0 %v3030
        %3109 = vmatpush.bf16.msra.mxu0 %v3028
        %3110 = vmatpush.bf16.msra.mxu0 %v3026
        %3111 = vmatpush.bf16.msra.mxu0 %v3024
        %3112 = vmatpush.bf16.msra.mxu0 %v3022
        %3113 = vmatpush.bf16.msra.mxu0 %v3020
        %3114 = vmatpush.bf16.msra.mxu0 %v3018
        %3115 = vmatmul.bf16.gmra.mxu0 %v2968
        %v3116 = vpop.f32.mrf.mxu0
        %v3117 = vadd.f32 %v3103, %v3116
        %v3118 = vpop.f32.mrf.mxu0
        %v3119 = vadd.f32 %v3105, %v3118
        %3120 = vdwg.mxu0
        %v3121 = vadd.f32 %v2963, %v3117
        %v3122 = vadd.f32 %v2964, %v3119
        %3123 = vst.msk [vmem:[%s2950] sm:$0xff] %vm1229, %v3121
        %3124 = vst.msk [vmem:[%s2950 + $0x8] sm:$0xff] %vm1229, %v3122
        %3125 = vst.msk [vmem:[%s2876] sm:$0xff] %vm1455, %v2889
        %3126 = vst.msk [vmem:[%s2876 + $0x8] sm:$0xff] %vm1455, %v2890
        %v3127 = vmul.f32 %v2868, 0.25
        %v3128 = vmul.f32 %v2869, 0.25
        %v3129 = vmul.f32 %v2870, 0.25
        %v3130 = vmul.f32 %v2871, 0.25
        %v3131 = vmul.f32 %v2872, 0.25
        %v3132 = vmul.f32 %v2873, 0.25
        %v3133 = vmul.f32 %v2874, 0.25
        %v3134 = vmul.f32 %v2875, 0.25
        %3135 = vst [vmem:[%s319] sm:$0xff] %v3127
        %3136 = vst [vmem:[%s319 + $0x8] sm:$0xff] %v3128
        %3137 = vst [vmem:[%s319 + $0x10] sm:$0xff] %v3129
        %3138 = vst [vmem:[%s319 + $0x18] sm:$0xff] %v3130
        %3139 = vst [vmem:[%s319 + $0x20] sm:$0xff] %v3131
        %3140 = vst [vmem:[%s319 + $0x28] sm:$0xff] %v3132
        %3141 = vst [vmem:[%s319 + $0x30] sm:$0xff] %v3133
        %3142 = vst [vmem:[%s319 + $0x38] sm:$0xff] %v3134
        %p3143 = scmp.eq.s32.totalorder %s27, 1
        // Predicated region
        $region49: #{tpn_decoder.7} parent=43 // pred_check
          %p3144 = pneg %p3143
        $region50: #{tpn_decoder.7} parent=43 // pred_check_branch
          %3146 = sbr.rel (%p3144) target = $region52
        $region51: #{tpn_decoder.7} parent=43 // pred_region
          %v3147 = vld [vmem:[#allocation5] sm:$0xff]
          %v3148 = vld [vmem:[#allocation5 + $0x8] sm:$0xff]
          %v3149 = vld [vmem:[#allocation4] sm:$0xff]
          %v3150 = vld [vmem:[#allocation4 + $0x8] sm:$0xff]
          %v3151 = vrcp.pop %v3149
          %v3152 = vmul.f32 %v3149, %v3151
          %v3153 = vsub.f32 1.0, %v3152
          %v3154 = vmul.f32 %v3151, %v3153
          %v3155 = vadd.f32 %v3151, %v3154
          %vm3156 = vweird.f32 %v3149
          %vm3157 = vweird.f32 %v3151
          %vm3158 = vmor %vm3156, %vm3157
          %v3159 = vsel %vm3158, %v3151, %v3155
          %v3160 = vand.u32 2147483647, %v3149
          %vm3161 = vcmp.eq.f32.partialorder %v3160, 8.507059e+37
          %v3162 = vand.u32 %v3149, 2147483648
          %v3163 = vor.u32 1.1754944e-38, %v3162
          %v3164 = vsel %vm3161, %v3163, %v3159
          %v3165 = vmul.f32 1.0, %v3164
          %v3166 = vrcp.pop %v3150
          %v3167 = vmul.f32 %v3150, %v3166
          %v3168 = vsub.f32 1.0, %v3167
          %v3169 = vmul.f32 %v3166, %v3168
          %v3170 = vadd.f32 %v3166, %v3169
          %vm3171 = vweird.f32 %v3150
          %vm3172 = vweird.f32 %v3166
          %vm3173 = vmor %vm3171, %vm3172
          %v3174 = vsel %vm3173, %v3166, %v3170
          %v3175 = vand.u32 2147483647, %v3150
          %vm3176 = vcmp.eq.f32.partialorder %v3175, 8.507059e+37
          %v3177 = vand.u32 %v3150, 2147483648
          %v3178 = vor.u32 1.1754944e-38, %v3177
          %v3179 = vsel %vm3176, %v3178, %v3174
          %v3180 = vmul.f32 1.0, %v3179
          %3182 = vset.pattern.permute.xlu0 0
          %3183 = vperm.xlu0 %3182, %v3165
          %v3184 = vpop.permute.xlu0 %3183
          %3187 = vset.pattern.permute.xlu0 0
          %3188 = vperm.xlu0 %3187, %v3180
          %v3189 = vpop.permute.xlu0 %3188
          %v3191 = vmul.f32 %v3147, %v3184
          %v3192 = vmul.f32 %v3148, %v3189
          %v3193 = vld [vmem:[%s1976] sm:$0xff]
          %v3194 = vld [vmem:[%s1976 + $0x8] sm:$0xff]
          %v3195 = vld [vmem:[%s1957] sm:$0xff]
          %v3196 = vld [vmem:[%s1957 + $0x8] sm:$0xff]
          %v3197 = vrcp.pop %v3195
          %v3198 = vmul.f32 %v3195, %v3197
          %v3199 = vsub.f32 1.0, %v3198
          %v3200 = vmul.f32 %v3197, %v3199
          %v3201 = vadd.f32 %v3197, %v3200
          %vm3202 = vweird.f32 %v3195
          %vm3203 = vweird.f32 %v3197
          %vm3204 = vmor %vm3202, %vm3203
          %v3205 = vsel %vm3204, %v3197, %v3201
          %v3206 = vand.u32 2147483647, %v3195
          %vm3207 = vcmp.eq.f32.partialorder %v3206, 8.507059e+37
          %v3208 = vand.u32 %v3195, 2147483648
          %v3209 = vor.u32 1.1754944e-38, %v3208
          %v3210 = vsel %vm3207, %v3209, %v3205
          %v3211 = vmul.f32 1.0, %v3210
          %v3212 = vrcp.pop %v3196
          %v3213 = vmul.f32 %v3196, %v3212
          %v3214 = vsub.f32 1.0, %v3213
          %v3215 = vmul.f32 %v3212, %v3214
          %v3216 = vadd.f32 %v3212, %v3215
          %vm3217 = vweird.f32 %v3196
          %vm3218 = vweird.f32 %v3212
          %vm3219 = vmor %vm3217, %vm3218
          %v3220 = vsel %vm3219, %v3212, %v3216
          %v3221 = vand.u32 2147483647, %v3196
          %vm3222 = vcmp.eq.f32.partialorder %v3221, 8.507059e+37
          %v3223 = vand.u32 %v3196, 2147483648
          %v3224 = vor.u32 1.1754944e-38, %v3223
          %v3225 = vsel %vm3222, %v3224, %v3220
          %v3226 = vmul.f32 1.0, %v3225
          %3228 = vset.pattern.permute.xlu0 0
          %3229 = vperm.xlu0 %3228, %v3211
          %v3230 = vpop.permute.xlu0 %3229
          %3233 = vset.pattern.permute.xlu0 0
          %3234 = vperm.xlu0 %3233, %v3226
          %v3235 = vpop.permute.xlu0 %3234
          %v3237 = vmul.f32 %v3193, %v3230
          %v3238 = vmul.f32 %v3194, %v3235
          %v3239 = vld [vmem:[%s2463] sm:$0xff]
          %v3240 = vld [vmem:[%s2463 + $0x8] sm:$0xff]
          %v3241 = vld [vmem:[%s2444] sm:$0xff]
          %v3242 = vld [vmem:[%s2444 + $0x8] sm:$0xff]
          %v3243 = vrcp.pop %v3241
          %v3244 = vmul.f32 %v3241, %v3243
          %v3245 = vsub.f32 1.0, %v3244
          %v3246 = vmul.f32 %v3243, %v3245
          %v3247 = vadd.f32 %v3243, %v3246
          %vm3248 = vweird.f32 %v3241
          %vm3249 = vweird.f32 %v3243
          %vm3250 = vmor %vm3248, %vm3249
          %v3251 = vsel %vm3250, %v3243, %v3247
          %v3252 = vand.u32 2147483647, %v3241
          %vm3253 = vcmp.eq.f32.partialorder %v3252, 8.507059e+37
          %v3254 = vand.u32 %v3241, 2147483648
          %v3255 = vor.u32 1.1754944e-38, %v3254
          %v3256 = vsel %vm3253, %v3255, %v3251
          %v3257 = vmul.f32 1.0, %v3256
          %v3258 = vrcp.pop %v3242
          %v3259 = vmul.f32 %v3242, %v3258
          %v3260 = vsub.f32 1.0, %v3259
          %v3261 = vmul.f32 %v3258, %v3260
          %v3262 = vadd.f32 %v3258, %v3261
          %vm3263 = vweird.f32 %v3242
          %vm3264 = vweird.f32 %v3258
          %vm3265 = vmor %vm3263, %vm3264
          %v3266 = vsel %vm3265, %v3258, %v3262
          %v3267 = vand.u32 2147483647, %v3242
          %vm3268 = vcmp.eq.f32.partialorder %v3267, 8.507059e+37
          %v3269 = vand.u32 %v3242, 2147483648
          %v3270 = vor.u32 1.1754944e-38, %v3269
          %v3271 = vsel %vm3268, %v3270, %v3266
          %v3272 = vmul.f32 1.0, %v3271
          %3274 = vset.pattern.permute.xlu0 0
          %3275 = vperm.xlu0 %3274, %v3257
          %v3276 = vpop.permute.xlu0 %3275
          %3279 = vset.pattern.permute.xlu0 0
          %3280 = vperm.xlu0 %3279, %v3272
          %v3281 = vpop.permute.xlu0 %3280
          %v3283 = vmul.f32 %v3239, %v3276
          %v3284 = vmul.f32 %v3240, %v3281
          %v3285 = vld [vmem:[%s2950] sm:$0xff]
          %v3286 = vld [vmem:[%s2950 + $0x8] sm:$0xff]
          %v3287 = vld [vmem:[%s2931] sm:$0xff]
          %v3288 = vld [vmem:[%s2931 + $0x8] sm:$0xff]
          %v3289 = vrcp.pop %v3287
          %v3290 = vmul.f32 %v3287, %v3289
          %v3291 = vsub.f32 1.0, %v3290
          %v3292 = vmul.f32 %v3289, %v3291
          %v3293 = vadd.f32 %v3289, %v3292
          %vm3294 = vweird.f32 %v3287
          %vm3295 = vweird.f32 %v3289
          %vm3296 = vmor %vm3294, %vm3295
          %v3297 = vsel %vm3296, %v3289, %v3293
          %v3298 = vand.u32 2147483647, %v3287
          %vm3299 = vcmp.eq.f32.partialorder %v3298, 8.507059e+37
          %v3300 = vand.u32 %v3287, 2147483648
          %v3301 = vor.u32 1.1754944e-38, %v3300
          %v3302 = vsel %vm3299, %v3301, %v3297
          %v3303 = vmul.f32 1.0, %v3302
          %v3304 = vrcp.pop %v3288
          %v3305 = vmul.f32 %v3288, %v3304
          %v3306 = vsub.f32 1.0, %v3305
          %v3307 = vmul.f32 %v3304, %v3306
          %v3308 = vadd.f32 %v3304, %v3307
          %vm3309 = vweird.f32 %v3288
          %vm3310 = vweird.f32 %v3304
          %vm3311 = vmor %vm3309, %vm3310
          %v3312 = vsel %vm3311, %v3304, %v3308
          %v3313 = vand.u32 2147483647, %v3288
          %vm3314 = vcmp.eq.f32.partialorder %v3313, 8.507059e+37
          %v3315 = vand.u32 %v3288, 2147483648
          %v3316 = vor.u32 1.1754944e-38, %v3315
          %v3317 = vsel %vm3314, %v3316, %v3312
          %v3318 = vmul.f32 1.0, %v3317
          %3320 = vset.pattern.permute.xlu0 0
          %3321 = vperm.xlu0 %3320, %v3303
          %v3322 = vpop.permute.xlu0 %3321
          %3325 = vset.pattern.permute.xlu0 0
          %3326 = vperm.xlu0 %3325, %v3318
          %v3327 = vpop.permute.xlu0 %3326
          %v3329 = vmul.f32 %v3285, %v3322
          %v3330 = vmul.f32 %v3286, %v3327
          %3333 = vrot.lane.b32.xlu0 %v3237, 32
          %v3334 = vpop.permute.xlu0 %3333
          %3335 = vrot.lane.b32.xlu0 %v3238, 32
          %v3336 = vpop.permute.xlu0 %3335
          %3341 = vrot.lane.b32.xlu0 %v3283, 64
          %v3342 = vpop.permute.xlu0 %3341
          %3343 = vrot.lane.b32.xlu0 %v3284, 64
          %v3344 = vpop.permute.xlu0 %3343
          %3349 = vrot.lane.b32.xlu0 %v3329, 96
          %v3350 = vpop.permute.xlu0 %3349
          %3351 = vrot.lane.b32.xlu0 %v3330, 96
          %v3352 = vpop.permute.xlu0 %3351
          %v3355 = vsel %vm1229, %v3191, %v3334
          %v3356 = vsel %vm1229, %v3192, %v3336
          %vm3357 = vcmask 523264
          %v3358 = vsel %vm3357, %v3355, %v3342
          %v3359 = vsel %vm3357, %v3356, %v3344
          %vm3360 = vcmask 785408
          %v3361 = vsel %vm3360, %v3358, %v3350
          %v3362 = vsel %vm3360, %v3359, %v3352
          %3363 = vst [vmem:[%s339] sm:$0xff] %v3361
          %3364 = vst [vmem:[%s339 + $0x8] sm:$0xff] %v3362
        $region52: #{tpn_decoder.7} parent=43 // pred_fallthru
          _
        %p3365 = scmp.lt.s32.totalorder %s26, 1
        %s3366 = scalar_select %p3365, %s26, 1
        %s3367 = smul.addr %s3366, 2
        %s3368 = smul.addr %s3367, 8
        %s3369 = scalar_lea.vmem %s6, %s3368
        %s3370 = sand.u32 %s208, 1
        %s3371 = scalar_lea.sflag [#allocation7], %s3370
        %s3372 = sand.u32 %s208, 1
        %s3373 = smul.addr %s3372, 64
        %s3374 = scalar_lea.vmem [#allocation6], %s3373
        // Predicated region
        $region53: #{tpn_decoder.7} parent=43 // pred_check
          %p3375 = pneg %p190
        $region54: #{tpn_decoder.7} parent=43 // pred_check_branch
          %3377 = sbr.rel (%p3375) target = $region56
        $region55: #{tpn_decoder.7} parent=43 // pred_region
          _
        $region56: #{tpn_decoder.7} parent=43 // pred_fallthru
          _
        // Predicated region
        $region57: #{tpn_decoder.7} parent=43 // pred_check
          %p3378 = pneg %p218
        $region58: #{tpn_decoder.7} parent=43 // pred_check_branch
          %3380 = sbr.rel (%p3378) target = $region60
        $region59: #{tpn_decoder.7} parent=43 // pred_region
          %s3381 = smul.u32 4, %s27
          %3383 = vsyncadd %s3371, 0
          %s3384 = smul.addr %s26, 16
          %s3385 = sadd.s32 %s3381, %s3384
          %s3386 = smul.addr %s3385, 8
          %s3387 = scalar_lea.hbm %s7, %s3386
          %s3388 = sshll.u32 %s3374, 4
          %s3389 = int_to_ptr.vmem [resolvable:$true] %s3388
          %s3390 = sshll.u32 %s3387, 4
          %s3391 = int_to_ptr.hbm [resolvable:$true] %s3390
          %3396 = dma.vmem_to_hbm [thread:$0]  %s3389, 1024, %s3391, %s3371, 512, 1024, 32
        $region60: #{tpn_decoder.7} parent=43 // pred_fallthru
          _
      $region44: #{tpn_decoder.7} parent=5 // pred_fallthru
        _
      %p3397 = scmp.le.s32.totalorder 2, %s17
      // Predicated region
      $region61: #{tpn_decoder.7} parent=5 // pred_check
        %p3398 = pneg %p3397
      $region62: #{tpn_decoder.7} parent=5 // pred_check_branch
        %3400 = sbr.rel (%p3398) target = $region64
      $region63: #{tpn_decoder.7} parent=5 // pred_region
        %s3401 = ssub.s32 %s17, 2
        // Predicated region
        $region65: #{tpn_decoder.7} parent=63 // pred_check
          %p3402 = pneg %p196
        $region66: #{tpn_decoder.7} parent=63 // pred_check_branch
          %3404 = sbr.rel (%p3402) target = $region68
        $region67: #{tpn_decoder.7} parent=63 // pred_region
          %p3405 = scmp.lt.s32.totalorder %s28, 1
          %s3406 = scalar_select %p3405, %s28, 1
          %s3407 = smul.addr %s3406, 2
          %s3408 = smul.addr %s3407, 8
          %s3409 = scalar_lea.vmem %s6, %s3408
        $region68: #{tpn_decoder.7} parent=63 // pred_fallthru
          _
        // Predicated region
        $region69: #{tpn_decoder.7} parent=63 // pred_check
          %p3410 = pneg %p224
        $region70: #{tpn_decoder.7} parent=63 // pred_check_branch
          %3412 = sbr.rel (%p3410) target = $region72
        $region71: #{tpn_decoder.7} parent=63 // pred_region
          %s3413 = sand.u32 %s209, 1
          %s3414 = scalar_lea.sflag [#allocation7], %s3413
          %s3415 = sand.u32 %s209, 1
          %s3416 = smul.addr %s3415, 64
          %s3417 = scalar_lea.vmem [#allocation6], %s3416
          %3419 = dma.done %s3414, 1024
        $region72: #{tpn_decoder.7} parent=63 // pred_fallthru
          _
      $region64: #{tpn_decoder.7} parent=5 // pred_fallthru
        _
    $region6: #{tpn_decoder.7} parent=1 // loop_footer
      %s21 = sadd.s32 1, %s17
    $region7: #{tpn_decoder.7} parent=1 // loop_footer_branch
      %16 = sbr.rel target = $region3
    $region8: #{tpn_decoder.7} parent=1 // loop_exit
      _
    %3420 = vsyncpa [#allocation7], 1
    %s3421 = scalar_lea.sflag [#allocation7], 1
    %3422 = vsyncpa %s3421, 1

</llo_original>
